<compile_context>
chip_gen: v7x
topology: tpu7x:2x2x1
jax: 0.10.0
libtpu: 0.0.40
codegen_flags: <defaults>
</compile_context>

<pallas_src>
import functools

import jax
import jax.numpy as jnp
import numpy as np
from jax import lax
from jax.experimental import pallas as pl
from jax.experimental.pallas import tpu as pltpu

KH = KW = 4  # conv kernel size used by every layer


# ----------------------------- Pallas kernels -----------------------------

def _conv_relu_pool_kernel(a_ref, w_ref, b_ref, o_ref):
    """Fused conv (im2col matmul) + bias + ReLU + MaxPool2d(2), lane-dense.

    a_ref: (4, K, TM) bf16 -- im2col patches; axis 0 = the 4 positions of the
                              2x2 pooling window, TM = tile of M = N*Hp*Wp
                              pixels (pixels sit on the lane axis).
    w_ref: (Cout, K)  bf16 -- conv weights, resident across the M grid.
    b_ref: (Cout, 1)  f32  -- conv bias, resident.
    o_ref: (Cout, TM) f32  -- pooled output tile.
    """
    w = w_ref[...]
    b = b_ref[...]
    out = None
    for g in range(4):                 # static unroll over the 2x2 pool window
        y = jnp.dot(w, a_ref[g], preferred_element_type=jnp.float32) + b
        y = jnp.maximum(y, 0.0)                               # ReLU
        out = y if out is None else jnp.maximum(out, y)       # MaxPool2d(2)
    o_ref[...] = out


def _mlp_kernel(x_ref, w1_ref, b1_ref, g1_ref, be1_ref,
                w2_ref, b2_ref, g2_ref, be2_ref,
                w3_ref, b3_ref, o_ref):
    """Linear(1600,400) -> BN(400) -> ReLU -> Linear(400,200) -> ReLU
       -> BN(200) -> Linear(200,136)."""
    eps = 1e-5

    def bn(h, gamma, beta):            # one-pass batch stats, biased variance
        m = jnp.mean(h, axis=0, keepdims=True)
        v = jnp.mean(h * h, axis=0, keepdims=True) - m * m
        return (h - m) * lax.rsqrt(v + eps) * gamma + beta

    h = jnp.dot(x_ref[...], w1_ref[...],
                preferred_element_type=jnp.float32) + b1_ref[...]
    h = jnp.maximum(bn(h, g1_ref[...], be1_ref[...]), 0.0)

    h = jnp.dot(h.astype(jnp.bfloat16), w2_ref[...],
                preferred_element_type=jnp.float32) + b2_ref[...]
    h = bn(jnp.maximum(h, 0.0), g2_ref[...], be2_ref[...])

    o_ref[...] = jnp.dot(h.astype(jnp.bfloat16), w3_ref[...],
                         preferred_element_type=jnp.float32) + b3_ref[...]


# ------------------------------- wrappers ---------------------------------

def _zero_map(nd):
    return lambda *_i, _nd=nd: (0,) * _nd


def _pick_tile_m(m):
    """Largest tile <= 512 that is a multiple of 128 and divides M; else M."""
    for t in (512, 384, 256, 128):
        if m % t == 0:
            return t
    return m


def _im2col_pool_groups(x_nhwc, pad):
    """NHWC input -> (4, K, M) bf16 im2col patches grouped by 2x2 pool offset.

    A[g, k, m] = padded_x[n, 2*hp + dh + kh, 2*wp + dw + kw, cin] with
    g = (dh, dw), k = (kh, kw, cin), m = (n, hp, wp).  The pixel index m is
    last so it maps onto the TPU lane axis inside the kernel.
    """
    N, H, W, Cin = x_nhwc.shape
    xp = jnp.pad(x_nhwc, ((0, 0), (pad, pad), (pad, pad), (0, 0)))
    Hout = H + 2 * pad - KH + 1
    Wout = W + 2 * pad - KW + 1
    K = KH * KW * Cin
    cols = [xp[:, kh:kh + Hout, kw:kw + Wout, :]
            for kh in range(KH) for kw in range(KW)]
    patches = jnp.concatenate(cols, axis=-1)                  # (N, Hout, Wout, K)

    Hp, Wp = Hout // 2, Wout // 2                             # MaxPool2d floor mode
    M = N * Hp * Wp
    groups = [jnp.transpose(patches[:, dh:2 * Hp:2, dw:2 * Wp:2, :],
                            (3, 0, 1, 2)).reshape(K, M)
              for dh in (0, 1) for dw in (0, 1)]
    A = jnp.stack(groups, axis=0).astype(jnp.bfloat16)        # (4, K, M)
    return A, Hp, Wp


def conv_relu_pool(x_nhwc, w_hwio, b, pad, use_pallas=True):
    """Conv2d(k=4, stride=1, padding=pad) + ReLU + MaxPool2d(2) on NHWC input."""
    N = x_nhwc.shape[0]
    Cout = w_hwio.shape[-1]
    A, Hp, Wp = _im2col_pool_groups(x_nhwc, pad)
    _, K, M = A.shape
    # (Cout, K) weights; k ordering (kh, kw, cin) matches the im2col K axis.
    Wmat = jnp.transpose(w_hwio, (3, 0, 1, 2)).reshape(Cout, K).astype(jnp.bfloat16)
    bmat = b.reshape(Cout, 1).astype(jnp.float32)

    if use_pallas:
        tm = _pick_tile_m(M)
        out = pl.pallas_call(
            _conv_relu_pool_kernel,
            out_shape=jax.ShapeDtypeStruct((Cout, M), jnp.float32),
            grid=(M // tm,),
            in_specs=[
                pl.BlockSpec((4, K, tm), lambda i: (0, 0, i)),
                pl.BlockSpec((Cout, K), lambda i: (0, 0)),    # resident weights
                pl.BlockSpec((Cout, 1), lambda i: (0, 0)),    # resident bias
            ],
            out_specs=pl.BlockSpec((Cout, tm), lambda i: (0, i)),
            compiler_params=pltpu.CompilerParams(
                dimension_semantics=("parallel",)),
        )(A, Wmat, bmat)
    else:  # plain-JAX reference (identical math: bf16 operands, f32 accum)
        ys = [jnp.maximum(
            jnp.dot(Wmat, A[g], preferred_element_type=jnp.float32) + bmat, 0.0)
            for g in range(4)]
        out = functools.reduce(jnp.maximum, ys)
    # (Cout, N*Hp*Wp) -> NHWC for the next layer.
    return jnp.transpose(out.reshape(Cout, N, Hp, Wp), (1, 2, 3, 0))


def mlp(xf, p, use_pallas=True):
    N = xf.shape[0]
    x_bf = xf.astype(jnp.bfloat16)
    w1 = p["w1"].astype(jnp.bfloat16)
    w2 = p["w2"].astype(jnp.bfloat16)
    w3 = p["w3"].astype(jnp.bfloat16)
    args = (x_bf, w1, p["b1"], p["g1"], p["be1"],
            w2, p["b2"], p["g2"], p["be2"],
            w3, p["b3"])
    if use_pallas:
        return pl.pallas_call(
            _mlp_kernel,
            out_shape=jax.ShapeDtypeStruct((N, 136), jnp.float32),
            grid=(1,),
            in_specs=[pl.BlockSpec(a.shape, _zero_map(a.ndim)) for a in args],
            out_specs=pl.BlockSpec((N, 136), _zero_map(2)),
        )(*args)
    # plain-JAX reference (identical math)
    eps = 1e-5

    def bn(h, gamma, beta):
        m = jnp.mean(h, axis=0, keepdims=True)
        v = jnp.mean(h * h, axis=0, keepdims=True) - m * m
        return (h - m) * lax.rsqrt(v + eps) * gamma + beta

    h = jnp.dot(x_bf, w1, preferred_element_type=jnp.float32) + p["b1"]
    h = jnp.maximum(bn(h, p["g1"], p["be1"]), 0.0)
    h = jnp.dot(h.astype(jnp.bfloat16), w2,
                preferred_element_type=jnp.float32) + p["b2"]
    h = bn(jnp.maximum(h, 0.0), p["g2"], p["be2"])
    return jnp.dot(h.astype(jnp.bfloat16), w3,
                   preferred_element_type=jnp.float32) + p["b3"]


def conv_features(x_nchw, params, use_pallas=True):
    x = jnp.transpose(x_nchw, (0, 2, 3, 1))                   # NCHW -> NHWC
    x = conv_relu_pool(x, params["cw1"], params["cb1"], pad=2, use_pallas=use_pallas)
    x = conv_relu_pool(x, params["cw2"], params["cb2"], pad=2, use_pallas=use_pallas)
    x = conv_relu_pool(x, params["cw3"], params["cb3"], pad=2, use_pallas=use_pallas)
    x = conv_relu_pool(x, params["cw4"], params["cb4"], pad=1, use_pallas=use_pallas)
    # flatten exactly like PyTorch x.view(N, -1) on an NCHW tensor -> (N, 1600)
    return jnp.transpose(x, (0, 3, 1, 2)).reshape(x.shape[0], -1)


def conv_classifier_forward(x_nchw, params, use_pallas=True):
    return mlp(conv_features(x_nchw, params, use_pallas=use_pallas),
               params, use_pallas=use_pallas)


# ------------------------------ param init --------------------------------

def init_params(key):
    ks = jax.random.split(key, 7)

    def conv_w(k, kh, kw, cin, cout):
        fan_in = cin * kh * kw
        return (jax.random.normal(k, (kh, kw, cin, cout), jnp.float32)
                / np.sqrt(float(fan_in)))

    def lin_w(k, fin, fout):                                  # xavier_normal
        std = np.sqrt(2.0 / (fin + fout))
        return jax.random.normal(k, (fin, fout), jnp.float32) * std

    return {
        "cw1": conv_w(ks[0], 4, 4, 1, 8),   "cb1": jnp.zeros((8,), jnp.float32),
        "cw2": conv_w(ks[1], 4, 4, 8, 16),  "cb2": jnp.zeros((16,), jnp.float32),
        "cw3": conv_w(ks[2], 4, 4, 16, 32), "cb3": jnp.zeros((32,), jnp.float32),
        "cw4": conv_w(ks[3], 4, 4, 32, 64), "cb4": jnp.zeros((64,), jnp.float32),
        "w1": lin_w(ks[4], 1600, 400), "b1": jnp.zeros((1, 400), jnp.float32),
        "g1": jnp.ones((1, 400), jnp.float32), "be1": jnp.zeros((1, 400), jnp.float32),
        "w2": lin_w(ks[5], 400, 200), "b2": jnp.zeros((1, 200), jnp.float32),
        "g2": jnp.ones((1, 200), jnp.float32), "be2": jnp.zeros((1, 200), jnp.float32),
        "w3": lin_w(ks[6], 200, 136), "b3": jnp.zeros((1, 136), jnp.float32),
    }


# --------------------------------- main ------------------------------------

if __name__ == "__main__":
    key = jax.random.PRNGKey(0)
    kx, kp = jax.random.split(key)
    # Smallest input compatible with Linear(40*40, 400): 96x96 single-channel
    # images -> conv stack output (N, 64, 5, 5) -> 1600 flattened features.
    x = jax.random.normal(kx, (2, 1, 96, 96), jnp.float32)
    params = init_params(kp)

    # Full Pallas forward pass (the deliverable).
    fwd = jax.jit(functools.partial(conv_classifier_forward, use_pallas=True))
    out = jax.block_until_ready(fwd(x, params))
    assert out.shape == (2, 136), out.shape

    # Validation is done piecewise: BatchNorm over a batch of 2 amplifies
    # sub-ulp input differences into +-1 sign flips, so the MLP kernel is
    # checked against reference math on identical inputs, while the conv
    # stack (no BN) is checked end-to-end.
    feats_pl = jax.block_until_ready(
        jax.jit(functools.partial(conv_features, use_pallas=True))(x, params))
    feats_ref = conv_features(x, params, use_pallas=False)
    np.testing.assert_allclose(np.asarray(feats_pl), np.asarray(feats_ref),
                               rtol=2e-2, atol=2e-2)

    mlp_pl = jax.block_until_ready(
        jax.jit(functools.partial(mlp, use_pallas=True))(feats_pl, params))
    mlp_ref = mlp(feats_pl, params, use_pallas=False)
    np.testing.assert_allclose(np.asarray(mlp_pl), np.asarray(mlp_ref),
                               rtol=2e-2, atol=2e-2)

    print("KERNEL_OK")
</pallas_src>

<mosaic_0001>
module attributes {stable_mosaic.version = 11 : i64} {
  func.func @_conv_relu_pool_kernel(%arg0: i32, %arg1: memref<4x16x512xbf16, #tpu.memory_space<vmem>>, %arg2: memref<8x16xbf16, #tpu.memory_space<vmem>>, %arg3: memref<8x1xf32, #tpu.memory_space<vmem>>, %arg4: memref<8x512xf32, #tpu.memory_space<vmem>>) attributes {dimension_semantics = [#tpu.dimension_semantics<parallel>], iteration_bounds = array<i64: 9>, scalar_prefetch = 0 : i64, scratch_operands = 0 : i64, tpu.core_type = #tpu.core_type<tc>, window_params = [{transform_indices = @transform_0, window_bounds = array<i64: 4, 16, 512>}, {pipeline_mode = #tpu.pipeline_mode<synchronous>, transform_indices = @transform_1, window_bounds = array<i64: 8, 16>}, {pipeline_mode = #tpu.pipeline_mode<synchronous>, transform_indices = @transform_2, window_bounds = array<i64: 8, 1>}, {transform_indices = @transform_3, window_bounds = array<i64: 8, 512>}]} {
    %c0 = arith.constant 0 : index
    %c0_0 = arith.constant 0 : index
    %0 = vector.load %arg2[%c0, %c0_0] : memref<8x16xbf16, #tpu.memory_space<vmem>>, vector<8x16xbf16>
    %c0_1 = arith.constant 0 : index
    %c0_2 = arith.constant 0 : index
    %1 = vector.load %arg3[%c0_1, %c0_2] : memref<8x1xf32, #tpu.memory_space<vmem>>, vector<8x1xf32>
    %c0_3 = arith.constant 0 : index
    %c0_4 = arith.constant 0 : index
    %c0_5 = arith.constant 0 : index
    %2 = vector.load %arg1[%c0_3, %c0_4, %c0_5] : memref<4x16x512xbf16, #tpu.memory_space<vmem>>, vector<1x16x512xbf16>
    %3 = vector.shape_cast %2 : vector<1x16x512xbf16> to vector<16x512xbf16>
    %cst = arith.constant dense<0.000000e+00> : vector<8x512xf32>
    %4 = tpu.matmul %0, %3, %cst {dimension_numbers = #tpu.dot_dimension_numbers<[1], [0], [0], [1], [0, 0, 1, 1], [], []>} : vector<8x16xbf16>, vector<16x512xbf16>, vector<8x512xf32> -> vector<8x512xf32>
    %5 = vector.broadcast %1 : vector<8x1xf32> to vector<8x512xf32>
    %6 = arith.addf %4, %5 : vector<8x512xf32>
    %cst_6 = arith.constant 0.000000e+00 : f32
    %7 = vector.broadcast %cst_6 : f32 to vector<8x512xf32>
    %8 = arith.maximumf %6, %7 : vector<8x512xf32>
    %c1 = arith.constant 1 : index
    %c0_7 = arith.constant 0 : index
    %c0_8 = arith.constant 0 : index
    %9 = vector.load %arg1[%c1, %c0_7, %c0_8] : memref<4x16x512xbf16, #tpu.memory_space<vmem>>, vector<1x16x512xbf16>
    %10 = vector.shape_cast %9 : vector<1x16x512xbf16> to vector<16x512xbf16>
    %cst_9 = arith.constant dense<0.000000e+00> : vector<8x512xf32>
    %11 = tpu.matmul %0, %10, %cst_9 {dimension_numbers = #tpu.dot_dimension_numbers<[1], [0], [0], [1], [0, 0, 1, 1], [], []>} : vector<8x16xbf16>, vector<16x512xbf16>, vector<8x512xf32> -> vector<8x512xf32>
    %12 = vector.broadcast %1 : vector<8x1xf32> to vector<8x512xf32>
    %13 = arith.addf %11, %12 : vector<8x512xf32>
    %cst_10 = arith.constant 0.000000e+00 : f32
    %14 = vector.broadcast %cst_10 : f32 to vector<8x512xf32>
    %15 = arith.maximumf %13, %14 : vector<8x512xf32>
    %16 = arith.maximumf %8, %15 : vector<8x512xf32>
    %c2 = arith.constant 2 : index
    %c0_11 = arith.constant 0 : index
    %c0_12 = arith.constant 0 : index
    %17 = vector.load %arg1[%c2, %c0_11, %c0_12] : memref<4x16x512xbf16, #tpu.memory_space<vmem>>, vector<1x16x512xbf16>
    %18 = vector.shape_cast %17 : vector<1x16x512xbf16> to vector<16x512xbf16>
    %cst_13 = arith.constant dense<0.000000e+00> : vector<8x512xf32>
    %19 = tpu.matmul %0, %18, %cst_13 {dimension_numbers = #tpu.dot_dimension_numbers<[1], [0], [0], [1], [0, 0, 1, 1], [], []>} : vector<8x16xbf16>, vector<16x512xbf16>, vector<8x512xf32> -> vector<8x512xf32>
    %20 = vector.broadcast %1 : vector<8x1xf32> to vector<8x512xf32>
    %21 = arith.addf %19, %20 : vector<8x512xf32>
    %cst_14 = arith.constant 0.000000e+00 : f32
    %22 = vector.broadcast %cst_14 : f32 to vector<8x512xf32>
    %23 = arith.maximumf %21, %22 : vector<8x512xf32>
    %24 = arith.maximumf %16, %23 : vector<8x512xf32>
    %c3 = arith.constant 3 : index
    %c0_15 = arith.constant 0 : index
    %c0_16 = arith.constant 0 : index
    %25 = vector.load %arg1[%c3, %c0_15, %c0_16] : memref<4x16x512xbf16, #tpu.memory_space<vmem>>, vector<1x16x512xbf16>
    %26 = vector.shape_cast %25 : vector<1x16x512xbf16> to vector<16x512xbf16>
    %cst_17 = arith.constant dense<0.000000e+00> : vector<8x512xf32>
    %27 = tpu.matmul %0, %26, %cst_17 {dimension_numbers = #tpu.dot_dimension_numbers<[1], [0], [0], [1], [0, 0, 1, 1], [], []>} : vector<8x16xbf16>, vector<16x512xbf16>, vector<8x512xf32> -> vector<8x512xf32>
    %28 = vector.broadcast %1 : vector<8x1xf32> to vector<8x512xf32>
    %29 = arith.addf %27, %28 : vector<8x512xf32>
    %cst_18 = arith.constant 0.000000e+00 : f32
    %30 = vector.broadcast %cst_18 : f32 to vector<8x512xf32>
    %31 = arith.maximumf %29, %30 : vector<8x512xf32>
    %32 = arith.maximumf %24, %31 : vector<8x512xf32>
    %c0_19 = arith.constant 0 : index
    %c0_20 = arith.constant 0 : index
    %33 = vector.load %arg4[%c0_19, %c0_20] : memref<8x512xf32, #tpu.memory_space<vmem>>, vector<8x512xf32>
    tpu.vector_store %arg4[%c0_19, %c0_20], %32 {strides = array<i32>} : memref<8x512xf32, #tpu.memory_space<vmem>>, vector<8x512xf32>,
    return
  }
  func.func @transform_0(%arg0: i32) -> (i32, i32, i32) {
    %c0_i32 = arith.constant 0 : i32
    %c0_i32_0 = arith.constant 0 : i32
    %c0_i32_1 = arith.constant 0 : i32
    return %c0_i32, %c0_i32_0, %arg0 : i32, i32, i32
  }
  func.func @transform_1(%arg0: i32) -> (i32, i32) {
    %c0_i32 = arith.constant 0 : i32
    %c0_i32_0 = arith.constant 0 : i32
    %c0_i32_1 = arith.constant 0 : i32
    return %c0_i32, %c0_i32_0 : i32, i32
  }
  func.func @transform_2(%arg0: i32) -> (i32, i32) {
    %c0_i32 = arith.constant 0 : i32
    %c0_i32_0 = arith.constant 0 : i32
    %c0_i32_1 = arith.constant 0 : i32
    return %c0_i32, %c0_i32_0 : i32, i32
  }
  func.func @transform_3(%arg0: i32) -> (i32, i32) {
    %c0_i32 = arith.constant 0 : i32
    %c0_i32_0 = arith.constant 0 : i32
    return %c0_i32, %arg0 : i32, i32
  }
}

module attributes {stable_mosaic.version = 11 : i64} {
  func.func @_conv_relu_pool_kernel(%arg0: i32, %arg1: memref<4x128x384xbf16, #tpu.memory_space<vmem>>, %arg2: memref<16x128xbf16, #tpu.memory_space<vmem>>, %arg3: memref<16x1xf32, #tpu.memory_space<vmem>>, %arg4: memref<16x384xf32, #tpu.memory_space<vmem>>) attributes {dimension_semantics = [#tpu.dimension_semantics<parallel>], iteration_bounds = array<i64: 3>, scalar_prefetch = 0 : i64, scratch_operands = 0 : i64, tpu.core_type = #tpu.core_type<tc>, window_params = [{transform_indices = @transform_0, window_bounds = array<i64: 4, 128, 384>}, {pipeline_mode = #tpu.pipeline_mode<synchronous>, transform_indices = @transform_1, window_bounds = array<i64: 16, 128>}, {pipeline_mode = #tpu.pipeline_mode<synchronous>, transform_indices = @transform_2, window_bounds = array<i64: 16, 1>}, {transform_indices = @transform_3, window_bounds = array<i64: 16, 384>}]} {
    %c0 = arith.constant 0 : index
    %c0_0 = arith.constant 0 : index
    %0 = vector.load %arg2[%c0, %c0_0] : memref<16x128xbf16, #tpu.memory_space<vmem>>, vector<16x128xbf16>
    %c0_1 = arith.constant 0 : index
    %c0_2 = arith.constant 0 : index
    %1 = vector.load %arg3[%c0_1, %c0_2] : memref<16x1xf32, #tpu.memory_space<vmem>>, vector<16x1xf32>
    %c0_3 = arith.constant 0 : index
    %c0_4 = arith.constant 0 : index
    %c0_5 = arith.constant 0 : index
    %2 = vector.load %arg1[%c0_3, %c0_4, %c0_5] : memref<4x128x384xbf16, #tpu.memory_space<vmem>>, vector<1x128x384xbf16>
    %3 = vector.shape_cast %2 : vector<1x128x384xbf16> to vector<128x384xbf16>
    %cst = arith.constant dense<0.000000e+00> : vector<16x384xf32>
    %4 = tpu.matmul %0, %3, %cst {dimension_numbers = #tpu.dot_dimension_numbers<[1], [0], [0], [1], [0, 0, 1, 1], [], []>} : vector<16x128xbf16>, vector<128x384xbf16>, vector<16x384xf32> -> vector<16x384xf32>
    %5 = vector.broadcast %1 : vector<16x1xf32> to vector<16x384xf32>
    %6 = arith.addf %4, %5 : vector<16x384xf32>
    %cst_6 = arith.constant 0.000000e+00 : f32
    %7 = vector.broadcast %cst_6 : f32 to vector<16x384xf32>
    %8 = arith.maximumf %6, %7 : vector<16x384xf32>
    %c1 = arith.constant 1 : index
    %c0_7 = arith.constant 0 : index
    %c0_8 = arith.constant 0 : index
    %9 = vector.load %arg1[%c1, %c0_7, %c0_8] : memref<4x128x384xbf16, #tpu.memory_space<vmem>>, vector<1x128x384xbf16>
    %10 = vector.shape_cast %9 : vector<1x128x384xbf16> to vector<128x384xbf16>
    %cst_9 = arith.constant dense<0.000000e+00> : vector<16x384xf32>
    %11 = tpu.matmul %0, %10, %cst_9 {dimension_numbers = #tpu.dot_dimension_numbers<[1], [0], [0], [1], [0, 0, 1, 1], [], []>} : vector<16x128xbf16>, vector<128x384xbf16>, vector<16x384xf32> -> vector<16x384xf32>
    %12 = vector.broadcast %1 : vector<16x1xf32> to vector<16x384xf32>
    %13 = arith.addf %11, %12 : vector<16x384xf32>
    %cst_10 = arith.constant 0.000000e+00 : f32
    %14 = vector.broadcast %cst_10 : f32 to vector<16x384xf32>
    %15 = arith.maximumf %13, %14 : vector<16x384xf32>
    %16 = arith.maximumf %8, %15 : vector<16x384xf32>
    %c2 = arith.constant 2 : index
    %c0_11 = arith.constant 0 : index
    %c0_12 = arith.constant 0 : index
    %17 = vector.load %arg1[%c2, %c0_11, %c0_12] : memref<4x128x384xbf16, #tpu.memory_space<vmem>>, vector<1x128x384xbf16>
    %18 = vector.shape_cast %17 : vector<1x128x384xbf16> to vector<128x384xbf16>
    %cst_13 = arith.constant dense<0.000000e+00> : vector<16x384xf32>
    %19 = tpu.matmul %0, %18, %cst_13 {dimension_numbers = #tpu.dot_dimension_numbers<[1], [0], [0], [1], [0, 0, 1, 1], [], []>} : vector<16x128xbf16>, vector<128x384xbf16>, vector<16x384xf32> -> vector<16x384xf32>
    %20 = vector.broadcast %1 : vector<16x1xf32> to vector<16x384xf32>
    %21 = arith.addf %19, %20 : vector<16x384xf32>
    %cst_14 = arith.constant 0.000000e+00 : f32
    %22 = vector.broadcast %cst_14 : f32 to vector<16x384xf32>
    %23 = arith.maximumf %21, %22 : vector<16x384xf32>
    %24 = arith.maximumf %16, %23 : vector<16x384xf32>
    %c3 = arith.constant 3 : index
    %c0_15 = arith.constant 0 : index
    %c0_16 = arith.constant 0 : index
    %25 = vector.load %arg1[%c3, %c0_15, %c0_16] : memref<4x128x384xbf16, #tpu.memory_space<vmem>>, vector<1x128x384xbf16>
    %26 = vector.shape_cast %25 : vector<1x128x384xbf16> to vector<128x384xbf16>
    %cst_17 = arith.constant dense<0.000000e+00> : vector<16x384xf32>
    %27 = tpu.matmul %0, %26, %cst_17 {dimension_numbers = #tpu.dot_dimension_numbers<[1], [0], [0], [1], [0, 0, 1, 1], [], []>} : vector<16x128xbf16>, vector<128x384xbf16>, vector<16x384xf32> -> vector<16x384xf32>
    %28 = vector.broadcast %1 : vector<16x1xf32> to vector<16x384xf32>
    %29 = arith.addf %27, %28 : vector<16x384xf32>
    %cst_18 = arith.constant 0.000000e+00 : f32
    %30 = vector.broadcast %cst_18 : f32 to vector<16x384xf32>
    %31 = arith.maximumf %29, %30 : vector<16x384xf32>
    %32 = arith.maximumf %24, %31 : vector<16x384xf32>
    %c0_19 = arith.constant 0 : index
    %c0_20 = arith.constant 0 : index
    %33 = vector.load %arg4[%c0_19, %c0_20] : memref<16x384xf32, #tpu.memory_space<vmem>>, vector<16x384xf32>
    tpu.vector_store %arg4[%c0_19, %c0_20], %32 {strides = array<i32>} : memref<16x384xf32, #tpu.memory_space<vmem>>, vector<16x384xf32>,
    return
  }
  func.func @transform_0(%arg0: i32) -> (i32, i32, i32) {
    %c0_i32 = arith.constant 0 : i32
    %c0_i32_0 = arith.constant 0 : i32
    %c0_i32_1 = arith.constant 0 : i32
    return %c0_i32, %c0_i32_0, %arg0 : i32, i32, i32
  }
  func.func @transform_1(%arg0: i32) -> (i32, i32) {
    %c0_i32 = arith.constant 0 : i32
    %c0_i32_0 = arith.constant 0 : i32
    %c0_i32_1 = arith.constant 0 : i32
    return %c0_i32, %c0_i32_0 : i32, i32
  }
  func.func @transform_2(%arg0: i32) -> (i32, i32) {
    %c0_i32 = arith.constant 0 : i32
    %c0_i32_0 = arith.constant 0 : i32
    %c0_i32_1 = arith.constant 0 : i32
    return %c0_i32, %c0_i32_0 : i32, i32
  }
  func.func @transform_3(%arg0: i32) -> (i32, i32) {
    %c0_i32 = arith.constant 0 : i32
    %c0_i32_0 = arith.constant 0 : i32
    return %c0_i32, %arg0 : i32, i32
  }
}

module attributes {stable_mosaic.version = 11 : i64} {
  func.func @_conv_relu_pool_kernel(%arg0: i32, %arg1: memref<4x256x288xbf16, #tpu.memory_space<vmem>>, %arg2: memref<32x256xbf16, #tpu.memory_space<vmem>>, %arg3: memref<32x1xf32, #tpu.memory_space<vmem>>, %arg4: memref<32x288xf32, #tpu.memory_space<vmem>>) attributes {dimension_semantics = [#tpu.dimension_semantics<parallel>], iteration_bounds = array<i64: 1>, scalar_prefetch = 0 : i64, scratch_operands = 0 : i64, tpu.core_type = #tpu.core_type<tc>, window_params = [{transform_indices = @transform_0, window_bounds = array<i64: 4, 256, 288>}, {pipeline_mode = #tpu.pipeline_mode<synchronous>, transform_indices = @transform_1, window_bounds = array<i64: 32, 256>}, {pipeline_mode = #tpu.pipeline_mode<synchronous>, transform_indices = @transform_2, window_bounds = array<i64: 32, 1>}, {transform_indices = @transform_3, window_bounds = array<i64: 32, 288>}]} {
    %c0 = arith.constant 0 : index
    %c0_0 = arith.constant 0 : index
    %0 = vector.load %arg2[%c0, %c0_0] : memref<32x256xbf16, #tpu.memory_space<vmem>>, vector<32x256xbf16>
    %c0_1 = arith.constant 0 : index
    %c0_2 = arith.constant 0 : index
    %1 = vector.load %arg3[%c0_1, %c0_2] : memref<32x1xf32, #tpu.memory_space<vmem>>, vector<32x1xf32>
    %c0_3 = arith.constant 0 : index
    %c0_4 = arith.constant 0 : index
    %c0_5 = arith.constant 0 : index
    %2 = vector.load %arg1[%c0_3, %c0_4, %c0_5] : memref<4x256x288xbf16, #tpu.memory_space<vmem>>, vector<1x256x288xbf16>
    %3 = vector.shape_cast %2 : vector<1x256x288xbf16> to vector<256x288xbf16>
    %cst = arith.constant dense<0.000000e+00> : vector<32x288xf32>
    %4 = tpu.matmul %0, %3, %cst {dimension_numbers = #tpu.dot_dimension_numbers<[1], [0], [0], [1], [0, 0, 1, 1], [], []>} : vector<32x256xbf16>, vector<256x288xbf16>, vector<32x288xf32> -> vector<32x288xf32>
    %5 = vector.broadcast %1 : vector<32x1xf32> to vector<32x288xf32>
    %6 = arith.addf %4, %5 : vector<32x288xf32>
    %cst_6 = arith.constant 0.000000e+00 : f32
    %7 = vector.broadcast %cst_6 : f32 to vector<32x288xf32>
    %8 = arith.maximumf %6, %7 : vector<32x288xf32>
    %c1 = arith.constant 1 : index
    %c0_7 = arith.constant 0 : index
    %c0_8 = arith.constant 0 : index
    %9 = vector.load %arg1[%c1, %c0_7, %c0_8] : memref<4x256x288xbf16, #tpu.memory_space<vmem>>, vector<1x256x288xbf16>
    %10 = vector.shape_cast %9 : vector<1x256x288xbf16> to vector<256x288xbf16>
    %cst_9 = arith.constant dense<0.000000e+00> : vector<32x288xf32>
    %11 = tpu.matmul %0, %10, %cst_9 {dimension_numbers = #tpu.dot_dimension_numbers<[1], [0], [0], [1], [0, 0, 1, 1], [], []>} : vector<32x256xbf16>, vector<256x288xbf16>, vector<32x288xf32> -> vector<32x288xf32>
    %12 = vector.broadcast %1 : vector<32x1xf32> to vector<32x288xf32>
    %13 = arith.addf %11, %12 : vector<32x288xf32>
    %cst_10 = arith.constant 0.000000e+00 : f32
    %14 = vector.broadcast %cst_10 : f32 to vector<32x288xf32>
    %15 = arith.maximumf %13, %14 : vector<32x288xf32>
    %16 = arith.maximumf %8, %15 : vector<32x288xf32>
    %c2 = arith.constant 2 : index
    %c0_11 = arith.constant 0 : index
    %c0_12 = arith.constant 0 : index
    %17 = vector.load %arg1[%c2, %c0_11, %c0_12] : memref<4x256x288xbf16, #tpu.memory_space<vmem>>, vector<1x256x288xbf16>
    %18 = vector.shape_cast %17 : vector<1x256x288xbf16> to vector<256x288xbf16>
    %cst_13 = arith.constant dense<0.000000e+00> : vector<32x288xf32>
    %19 = tpu.matmul %0, %18, %cst_13 {dimension_numbers = #tpu.dot_dimension_numbers<[1], [0], [0], [1], [0, 0, 1, 1], [], []>} : vector<32x256xbf16>, vector<256x288xbf16>, vector<32x288xf32> -> vector<32x288xf32>
    %20 = vector.broadcast %1 : vector<32x1xf32> to vector<32x288xf32>
    %21 = arith.addf %19, %20 : vector<32x288xf32>
    %cst_14 = arith.constant 0.000000e+00 : f32
    %22 = vector.broadcast %cst_14 : f32 to vector<32x288xf32>
    %23 = arith.maximumf %21, %22 : vector<32x288xf32>
    %24 = arith.maximumf %16, %23 : vector<32x288xf32>
    %c3 = arith.constant 3 : index
    %c0_15 = arith.constant 0 : index
    %c0_16 = arith.constant 0 : index
    %25 = vector.load %arg1[%c3, %c0_15, %c0_16] : memref<4x256x288xbf16, #tpu.memory_space<vmem>>, vector<1x256x288xbf16>
    %26 = vector.shape_cast %25 : vector<1x256x288xbf16> to vector<256x288xbf16>
    %cst_17 = arith.constant dense<0.000000e+00> : vector<32x288xf32>
    %27 = tpu.matmul %0, %26, %cst_17 {dimension_numbers = #tpu.dot_dimension_numbers<[1], [0], [0], [1], [0, 0, 1, 1], [], []>} : vector<32x256xbf16>, vector<256x288xbf16>, vector<32x288xf32> -> vector<32x288xf32>
    %28 = vector.broadcast %1 : vector<32x1xf32> to vector<32x288xf32>
    %29 = arith.addf %27, %28 : vector<32x288xf32>
    %cst_18 = arith.constant 0.000000e+00 : f32
    %30 = vector.broadcast %cst_18 : f32 to vector<32x288xf32>
    %31 = arith.maximumf %29, %30 : vector<32x288xf32>
    %32 = arith.maximumf %24, %31 : vector<32x288xf32>
    %c0_19 = arith.constant 0 : index
    %c0_20 = arith.constant 0 : index
    %33 = vector.load %arg4[%c0_19, %c0_20] : memref<32x288xf32, #tpu.memory_space<vmem>>, vector<32x288xf32>
    tpu.vector_store %arg4[%c0_19, %c0_20], %32 {strides = array<i32>} : memref<32x288xf32, #tpu.memory_space<vmem>>, vector<32x288xf32>,
    return
  }
  func.func @transform_0(%arg0: i32) -> (i32, i32, i32) {
    %c0_i32 = arith.constant 0 : i32
    %c0_i32_0 = arith.constant 0 : i32
    %c0_i32_1 = arith.constant 0 : i32
    return %c0_i32, %c0_i32_0, %arg0 : i32, i32, i32
  }
  func.func @transform_1(%arg0: i32) -> (i32, i32) {
    %c0_i32 = arith.constant 0 : i32
    %c0_i32_0 = arith.constant 0 : i32
    %c0_i32_1 = arith.constant 0 : i32
    return %c0_i32, %c0_i32_0 : i32, i32
  }
  func.func @transform_2(%arg0: i32) -> (i32, i32) {
    %c0_i32 = arith.constant 0 : i32
    %c0_i32_0 = arith.constant 0 : i32
    %c0_i32_1 = arith.constant 0 : i32
    return %c0_i32, %c0_i32_0 : i32, i32
  }
  func.func @transform_3(%arg0: i32) -> (i32, i32) {
    %c0_i32 = arith.constant 0 : i32
    %c0_i32_0 = arith.constant 0 : i32
    return %c0_i32, %arg0 : i32, i32
  }
}

module attributes {stable_mosaic.version = 11 : i64} {
  func.func @_conv_relu_pool_kernel(%arg0: i32, %arg1: memref<4x512x50xbf16, #tpu.memory_space<vmem>>, %arg2: memref<64x512xbf16, #tpu.memory_space<vmem>>, %arg3: memref<64x1xf32, #tpu.memory_space<vmem>>, %arg4: memref<64x50xf32, #tpu.memory_space<vmem>>) attributes {dimension_semantics = [#tpu.dimension_semantics<parallel>], iteration_bounds = array<i64: 1>, scalar_prefetch = 0 : i64, scratch_operands = 0 : i64, tpu.core_type = #tpu.core_type<tc>, window_params = [{transform_indices = @transform_0, window_bounds = array<i64: 4, 512, 50>}, {pipeline_mode = #tpu.pipeline_mode<synchronous>, transform_indices = @transform_1, window_bounds = array<i64: 64, 512>}, {pipeline_mode = #tpu.pipeline_mode<synchronous>, transform_indices = @transform_2, window_bounds = array<i64: 64, 1>}, {transform_indices = @transform_3, window_bounds = array<i64: 64, 50>}]} {
    %c0 = arith.constant 0 : index
    %c0_0 = arith.constant 0 : index
    %0 = vector.load %arg2[%c0, %c0_0] : memref<64x512xbf16, #tpu.memory_space<vmem>>, vector<64x512xbf16>
    %c0_1 = arith.constant 0 : index
    %c0_2 = arith.constant 0 : index
    %1 = vector.load %arg3[%c0_1, %c0_2] : memref<64x1xf32, #tpu.memory_space<vmem>>, vector<64x1xf32>
    %c0_3 = arith.constant 0 : index
    %c0_4 = arith.constant 0 : index
    %c0_5 = arith.constant 0 : index
    %2 = vector.load %arg1[%c0_3, %c0_4, %c0_5] : memref<4x512x50xbf16, #tpu.memory_space<vmem>>, vector<1x512x50xbf16>
    %3 = vector.shape_cast %2 : vector<1x512x50xbf16> to vector<512x50xbf16>
    %cst = arith.constant dense<0.000000e+00> : vector<64x50xf32>
    %4 = tpu.matmul %0, %3, %cst {dimension_numbers = #tpu.dot_dimension_numbers<[1], [0], [0], [1], [0, 0, 1, 1], [], []>} : vector<64x512xbf16>, vector<512x50xbf16>, vector<64x50xf32> -> vector<64x50xf32>
    %5 = vector.broadcast %1 : vector<64x1xf32> to vector<64x50xf32>
    %6 = arith.addf %4, %5 : vector<64x50xf32>
    %cst_6 = arith.constant 0.000000e+00 : f32
    %7 = vector.broadcast %cst_6 : f32 to vector<64x50xf32>
    %8 = arith.maximumf %6, %7 : vector<64x50xf32>
    %c1 = arith.constant 1 : index
    %c0_7 = arith.constant 0 : index
    %c0_8 = arith.constant 0 : index
    %9 = vector.load %arg1[%c1, %c0_7, %c0_8] : memref<4x512x50xbf16, #tpu.memory_space<vmem>>, vector<1x512x50xbf16>
    %10 = vector.shape_cast %9 : vector<1x512x50xbf16> to vector<512x50xbf16>
    %cst_9 = arith.constant dense<0.000000e+00> : vector<64x50xf32>
    %11 = tpu.matmul %0, %10, %cst_9 {dimension_numbers = #tpu.dot_dimension_numbers<[1], [0], [0], [1], [0, 0, 1, 1], [], []>} : vector<64x512xbf16>, vector<512x50xbf16>, vector<64x50xf32> -> vector<64x50xf32>
    %12 = vector.broadcast %1 : vector<64x1xf32> to vector<64x50xf32>
    %13 = arith.addf %11, %12 : vector<64x50xf32>
    %cst_10 = arith.constant 0.000000e+00 : f32
    %14 = vector.broadcast %cst_10 : f32 to vector<64x50xf32>
    %15 = arith.maximumf %13, %14 : vector<64x50xf32>
    %16 = arith.maximumf %8, %15 : vector<64x50xf32>
    %c2 = arith.constant 2 : index
    %c0_11 = arith.constant 0 : index
    %c0_12 = arith.constant 0 : index
    %17 = vector.load %arg1[%c2, %c0_11, %c0_12] : memref<4x512x50xbf16, #tpu.memory_space<vmem>>, vector<1x512x50xbf16>
    %18 = vector.shape_cast %17 : vector<1x512x50xbf16> to vector<512x50xbf16>
    %cst_13 = arith.constant dense<0.000000e+00> : vector<64x50xf32>
    %19 = tpu.matmul %0, %18, %cst_13 {dimension_numbers = #tpu.dot_dimension_numbers<[1], [0], [0], [1], [0, 0, 1, 1], [], []>} : vector<64x512xbf16>, vector<512x50xbf16>, vector<64x50xf32> -> vector<64x50xf32>
    %20 = vector.broadcast %1 : vector<64x1xf32> to vector<64x50xf32>
    %21 = arith.addf %19, %20 : vector<64x50xf32>
    %cst_14 = arith.constant 0.000000e+00 : f32
    %22 = vector.broadcast %cst_14 : f32 to vector<64x50xf32>
    %23 = arith.maximumf %21, %22 : vector<64x50xf32>
    %24 = arith.maximumf %16, %23 : vector<64x50xf32>
    %c3 = arith.constant 3 : index
    %c0_15 = arith.constant 0 : index
    %c0_16 = arith.constant 0 : index
    %25 = vector.load %arg1[%c3, %c0_15, %c0_16] : memref<4x512x50xbf16, #tpu.memory_space<vmem>>, vector<1x512x50xbf16>
    %26 = vector.shape_cast %25 : vector<1x512x50xbf16> to vector<512x50xbf16>
    %cst_17 = arith.constant dense<0.000000e+00> : vector<64x50xf32>
    %27 = tpu.matmul %0, %26, %cst_17 {dimension_numbers = #tpu.dot_dimension_numbers<[1], [0], [0], [1], [0, 0, 1, 1], [], []>} : vector<64x512xbf16>, vector<512x50xbf16>, vector<64x50xf32> -> vector<64x50xf32>
    %28 = vector.broadcast %1 : vector<64x1xf32> to vector<64x50xf32>
    %29 = arith.addf %27, %28 : vector<64x50xf32>
    %cst_18 = arith.constant 0.000000e+00 : f32
    %30 = vector.broadcast %cst_18 : f32 to vector<64x50xf32>
    %31 = arith.maximumf %29, %30 : vector<64x50xf32>
    %32 = arith.maximumf %24, %31 : vector<64x50xf32>
    %c0_19 = arith.constant 0 : index
    %c0_20 = arith.constant 0 : index
    %33 = vector.load %arg4[%c0_19, %c0_20] : memref<64x50xf32, #tpu.memory_space<vmem>>, vector<64x50xf32>
    tpu.vector_store %arg4[%c0_19, %c0_20], %32 {strides = array<i32>} : memref<64x50xf32, #tpu.memory_space<vmem>>, vector<64x50xf32>,
    return
  }
  func.func @transform_0(%arg0: i32) -> (i32, i32, i32) {
    %c0_i32 = arith.constant 0 : i32
    %c0_i32_0 = arith.constant 0 : i32
    %c0_i32_1 = arith.constant 0 : i32
    return %c0_i32, %c0_i32_0, %arg0 : i32, i32, i32
  }
  func.func @transform_1(%arg0: i32) -> (i32, i32) {
    %c0_i32 = arith.constant 0 : i32
    %c0_i32_0 = arith.constant 0 : i32
    %c0_i32_1 = arith.constant 0 : i32
    return %c0_i32, %c0_i32_0 : i32, i32
  }
  func.func @transform_2(%arg0: i32) -> (i32, i32) {
    %c0_i32 = arith.constant 0 : i32
    %c0_i32_0 = arith.constant 0 : i32
    %c0_i32_1 = arith.constant 0 : i32
    return %c0_i32, %c0_i32_0 : i32, i32
  }
  func.func @transform_3(%arg0: i32) -> (i32, i32) {
    %c0_i32 = arith.constant 0 : i32
    %c0_i32_0 = arith.constant 0 : i32
    return %c0_i32, %arg0 : i32, i32
  }
}

module attributes {stable_mosaic.version = 11 : i64} {
  func.func @_mlp_kernel(%arg0: i32, %arg1: memref<2x1600xbf16, #tpu.memory_space<vmem>>, %arg2: memref<1600x400xbf16, #tpu.memory_space<vmem>>, %arg3: memref<1x400xf32, #tpu.memory_space<vmem>>, %arg4: memref<1x400xf32, #tpu.memory_space<vmem>>, %arg5: memref<1x400xf32, #tpu.memory_space<vmem>>, %arg6: memref<400x200xbf16, #tpu.memory_space<vmem>>, %arg7: memref<1x200xf32, #tpu.memory_space<vmem>>, %arg8: memref<1x200xf32, #tpu.memory_space<vmem>>, %arg9: memref<1x200xf32, #tpu.memory_space<vmem>>, %arg10: memref<200x136xbf16, #tpu.memory_space<vmem>>, %arg11: memref<1x136xf32, #tpu.memory_space<vmem>>, %arg12: memref<2x136xf32, #tpu.memory_space<vmem>>) attributes {dimension_semantics = [#tpu.dimension_semantics<arbitrary>], iteration_bounds = array<i64: 1>, scalar_prefetch = 0 : i64, scratch_operands = 0 : i64, tpu.core_type = #tpu.core_type<tc>, window_params = [{pipeline_mode = #tpu.pipeline_mode<synchronous>, transform_indices = @transform_0, window_bounds = array<i64: 2, 1600>}, {pipeline_mode = #tpu.pipeline_mode<synchronous>, transform_indices = @transform_1, window_bounds = array<i64: 1600, 400>}, {pipeline_mode = #tpu.pipeline_mode<synchronous>, transform_indices = @transform_2, window_bounds = array<i64: 1, 400>}, {pipeline_mode = #tpu.pipeline_mode<synchronous>, transform_indices = @transform_3, window_bounds = array<i64: 1, 400>}, {pipeline_mode = #tpu.pipeline_mode<synchronous>, transform_indices = @transform_4, window_bounds = array<i64: 1, 400>}, {pipeline_mode = #tpu.pipeline_mode<synchronous>, transform_indices = @transform_5, window_bounds = array<i64: 400, 200>}, {pipeline_mode = #tpu.pipeline_mode<synchronous>, transform_indices = @transform_6, window_bounds = array<i64: 1, 200>}, {pipeline_mode = #tpu.pipeline_mode<synchronous>, transform_indices = @transform_7, window_bounds = array<i64: 1, 200>}, {pipeline_mode = #tpu.pipeline_mode<synchronous>, transform_indices = @transform_8, window_bounds = array<i64: 1, 200>}, {pipeline_mode = #tpu.pipeline_mode<synchronous>, transform_indices = @transform_9, window_bounds = array<i64: 200, 136>}, {pipeline_mode = #tpu.pipeline_mode<synchronous>, transform_indices = @transform_10, window_bounds = array<i64: 1, 136>}, {pipeline_mode = #tpu.pipeline_mode<synchronous>, transform_indices = @transform_11, window_bounds = array<i64: 2, 136>}]} {
    %c0 = arith.constant 0 : index
    %c0_0 = arith.constant 0 : index
    %0 = vector.load %arg1[%c0, %c0_0] : memref<2x1600xbf16, #tpu.memory_space<vmem>>, vector<2x1600xbf16>
    %c0_1 = arith.constant 0 : index
    %c0_2 = arith.constant 0 : index
    %1 = vector.load %arg2[%c0_1, %c0_2] : memref<1600x400xbf16, #tpu.memory_space<vmem>>, vector<1600x400xbf16>
    %cst = arith.constant dense<0.000000e+00> : vector<2x400xf32>
    %2 = tpu.matmul %0, %1, %cst {dimension_numbers = #tpu.dot_dimension_numbers<[1], [0], [0], [1], [0, 0, 1, 1], [], []>} : vector<2x1600xbf16>, vector<1600x400xbf16>, vector<2x400xf32> -> vector<2x400xf32>
    %c0_3 = arith.constant 0 : index
    %c0_4 = arith.constant 0 : index
    %3 = vector.load %arg3[%c0_3, %c0_4] : memref<1x400xf32, #tpu.memory_space<vmem>>, vector<1x400xf32>
    %4 = vector.broadcast %3 : vector<1x400xf32> to vector<2x400xf32>
    %5 = arith.addf %2, %4 : vector<2x400xf32>
    %c0_5 = arith.constant 0 : index
    %c0_6 = arith.constant 0 : index
    %6 = vector.load %arg4[%c0_5, %c0_6] : memref<1x400xf32, #tpu.memory_space<vmem>>, vector<1x400xf32>
    %c0_7 = arith.constant 0 : index
    %c0_8 = arith.constant 0 : index
    %7 = vector.load %arg5[%c0_7, %c0_8] : memref<1x400xf32, #tpu.memory_space<vmem>>, vector<1x400xf32>
    %cst_9 = arith.constant dense<0.000000e+00> : vector<400xf32>
    %8 = vector.multi_reduction <add>, %5, %cst_9 [0] : vector<2x400xf32> to vector<400xf32>
    %9 = vector.shape_cast %8 : vector<400xf32> to vector<1x400xf32>
    %cst_10 = arith.constant 2.000000e+00 : f32
    %10 = vector.broadcast %cst_10 : f32 to vector<1x400xf32>
    %11 = arith.divf %9, %10 : vector<1x400xf32>
    %12 = arith.mulf %5, %5 : vector<2x400xf32>
    %cst_11 = arith.constant dense<0.000000e+00> : vector<400xf32>
    %13 = vector.multi_reduction <add>, %12, %cst_11 [0] : vector<2x400xf32> to vector<400xf32>
    %14 = vector.shape_cast %13 : vector<400xf32> to vector<1x400xf32>
    %cst_12 = arith.constant 2.000000e+00 : f32
    %15 = vector.broadcast %cst_12 : f32 to vector<1x400xf32>
    %16 = arith.divf %14, %15 : vector<1x400xf32>
    %17 = arith.mulf %11, %11 : vector<1x400xf32>
    %18 = arith.subf %16, %17 : vector<1x400xf32>
    %19 = vector.broadcast %11 : vector<1x400xf32> to vector<2x400xf32>
    %20 = arith.subf %5, %19 : vector<2x400xf32>
    %cst_13 = arith.constant 9.99999974E-6 : f32
    %21 = vector.broadcast %cst_13 : f32 to vector<1x400xf32>
    %22 = arith.addf %18, %21 : vector<1x400xf32>
    %23 = math.rsqrt %22 : vector<1x400xf32>
    %24 = vector.broadcast %23 : vector<1x400xf32> to vector<2x400xf32>
    %25 = arith.mulf %20, %24 : vector<2x400xf32>
    %26 = vector.broadcast %6 : vector<1x400xf32> to vector<2x400xf32>
    %27 = arith.mulf %25, %26 : vector<2x400xf32>
    %28 = vector.broadcast %7 : vector<1x400xf32> to vector<2x400xf32>
    %29 = arith.addf %27, %28 : vector<2x400xf32>
    %cst_14 = arith.constant 0.000000e+00 : f32
    %30 = vector.broadcast %cst_14 : f32 to vector<2x400xf32>
    %31 = arith.maximumf %29, %30 : vector<2x400xf32>
    %32 = arith.truncf %31 : vector<2x400xf32> to vector<2x400xbf16>
    %c0_15 = arith.constant 0 : index
    %c0_16 = arith.constant 0 : index
    %33 = vector.load %arg6[%c0_15, %c0_16] : memref<400x200xbf16, #tpu.memory_space<vmem>>, vector<400x200xbf16>
    %cst_17 = arith.constant dense<0.000000e+00> : vector<2x200xf32>
    %34 = tpu.matmul %32, %33, %cst_17 {dimension_numbers = #tpu.dot_dimension_numbers<[1], [0], [0], [1], [0, 0, 1, 1], [], []>} : vector<2x400xbf16>, vector<400x200xbf16>, vector<2x200xf32> -> vector<2x200xf32>
    %c0_18 = arith.constant 0 : index
    %c0_19 = arith.constant 0 : index
    %35 = vector.load %arg7[%c0_18, %c0_19] : memref<1x200xf32, #tpu.memory_space<vmem>>, vector<1x200xf32>
    %36 = vector.broadcast %35 : vector<1x200xf32> to vector<2x200xf32>
    %37 = arith.addf %34, %36 : vector<2x200xf32>
    %cst_20 = arith.constant 0.000000e+00 : f32
    %38 = vector.broadcast %cst_20 : f32 to vector<2x200xf32>
    %39 = arith.maximumf %37, %38 : vector<2x200xf32>
    %c0_21 = arith.constant 0 : index
    %c0_22 = arith.constant 0 : index
    %40 = vector.load %arg8[%c0_21, %c0_22] : memref<1x200xf32, #tpu.memory_space<vmem>>, vector<1x200xf32>
    %c0_23 = arith.constant 0 : index
    %c0_24 = arith.constant 0 : index
    %41 = vector.load %arg9[%c0_23, %c0_24] : memref<1x200xf32, #tpu.memory_space<vmem>>, vector<1x200xf32>
    %cst_25 = arith.constant dense<0.000000e+00> : vector<200xf32>
    %42 = vector.multi_reduction <add>, %39, %cst_25 [0] : vector<2x200xf32> to vector<200xf32>
    %43 = vector.shape_cast %42 : vector<200xf32> to vector<1x200xf32>
    %cst_26 = arith.constant 2.000000e+00 : f32
    %44 = vector.broadcast %cst_26 : f32 to vector<1x200xf32>
    %45 = arith.divf %43, %44 : vector<1x200xf32>
    %46 = arith.mulf %39, %39 : vector<2x200xf32>
    %cst_27 = arith.constant dense<0.000000e+00> : vector<200xf32>
    %47 = vector.multi_reduction <add>, %46, %cst_27 [0] : vector<2x200xf32> to vector<200xf32>
    %48 = vector.shape_cast %47 : vector<200xf32> to vector<1x200xf32>
    %cst_28 = arith.constant 2.000000e+00 : f32
    %49 = vector.broadcast %cst_28 : f32 to vector<1x200xf32>
    %50 = arith.divf %48, %49 : vector<1x200xf32>
    %51 = arith.mulf %45, %45 : vector<1x200xf32>
    %52 = arith.subf %50, %51 : vector<1x200xf32>
    %53 = vector.broadcast %45 : vector<1x200xf32> to vector<2x200xf32>
    %54 = arith.subf %39, %53 : vector<2x200xf32>
    %cst_29 = arith.constant 9.99999974E-6 : f32
    %55 = vector.broadcast %cst_29 : f32 to vector<1x200xf32>
    %56 = arith.addf %52, %55 : vector<1x200xf32>
    %57 = math.rsqrt %56 : vector<1x200xf32>
    %58 = vector.broadcast %57 : vector<1x200xf32> to vector<2x200xf32>
    %59 = arith.mulf %54, %58 : vector<2x200xf32>
    %60 = vector.broadcast %40 : vector<1x200xf32> to vector<2x200xf32>
    %61 = arith.mulf %59, %60 : vector<2x200xf32>
    %62 = vector.broadcast %41 : vector<1x200xf32> to vector<2x200xf32>
    %63 = arith.addf %61, %62 : vector<2x200xf32>
    %64 = arith.truncf %63 : vector<2x200xf32> to vector<2x200xbf16>
    %c0_30 = arith.constant 0 : index
    %c0_31 = arith.constant 0 : index
    %65 = vector.load %arg10[%c0_30, %c0_31] : memref<200x136xbf16, #tpu.memory_space<vmem>>, vector<200x136xbf16>
    %cst_32 = arith.constant dense<0.000000e+00> : vector<2x136xf32>
    %66 = tpu.matmul %64, %65, %cst_32 {dimension_numbers = #tpu.dot_dimension_numbers<[1], [0], [0], [1], [0, 0, 1, 1], [], []>} : vector<2x200xbf16>, vector<200x136xbf16>, vector<2x136xf32> -> vector<2x136xf32>
    %c0_33 = arith.constant 0 : index
    %c0_34 = arith.constant 0 : index
    %67 = vector.load %arg11[%c0_33, %c0_34] : memref<1x136xf32, #tpu.memory_space<vmem>>, vector<1x136xf32>
    %68 = vector.broadcast %67 : vector<1x136xf32> to vector<2x136xf32>
    %69 = arith.addf %66, %68 : vector<2x136xf32>
    %c0_35 = arith.constant 0 : index
    %c0_36 = arith.constant 0 : index
    %70 = vector.load %arg12[%c0_35, %c0_36] : memref<2x136xf32, #tpu.memory_space<vmem>>, vector<2x136xf32>
    tpu.vector_store %arg12[%c0_35, %c0_36], %69 {strides = array<i32>} : memref<2x136xf32, #tpu.memory_space<vmem>>, vector<2x136xf32>,
    return
  }
  func.func @transform_0(%arg0: i32) -> (i32, i32) {
    %c0_i32 = arith.constant 0 : i32
    %c0_i32_0 = arith.constant 0 : i32
    %c0_i32_1 = arith.constant 0 : i32
    return %c0_i32, %c0_i32_0 : i32, i32
  }
  func.func @transform_1(%arg0: i32) -> (i32, i32) {
    %c0_i32 = arith.constant 0 : i32
    %c0_i32_0 = arith.constant 0 : i32
    %c0_i32_1 = arith.constant 0 : i32
    return %c0_i32, %c0_i32_0 : i32, i32
  }
  func.func @transform_2(%arg0: i32) -> (i32, i32) {
    %c0_i32 = arith.constant 0 : i32
    %c0_i32_0 = arith.constant 0 : i32
    %c0_i32_1 = arith.constant 0 : i32
    return %c0_i32, %c0_i32_0 : i32, i32
  }
  func.func @transform_3(%arg0: i32) -> (i32, i32) {
    %c0_i32 = arith.constant 0 : i32
    %c0_i32_0 = arith.constant 0 : i32
    %c0_i32_1 = arith.constant 0 : i32
    return %c0_i32, %c0_i32_0 : i32, i32
  }
  func.func @transform_4(%arg0: i32) -> (i32, i32) {
    %c0_i32 = arith.constant 0 : i32
    %c0_i32_0 = arith.constant 0 : i32
    %c0_i32_1 = arith.constant 0 : i32
    return %c0_i32, %c0_i32_0 : i32, i32
  }
  func.func @transform_5(%arg0: i32) -> (i32, i32) {
    %c0_i32 = arith.constant 0 : i32
    %c0_i32_0 = arith.constant 0 : i32
    %c0_i32_1 = arith.constant 0 : i32
    return %c0_i32, %c0_i32_0 : i32, i32
  }
  func.func @transform_6(%arg0: i32) -> (i32, i32) {
    %c0_i32 = arith.constant 0 : i32
    %c0_i32_0 = arith.constant 0 : i32
    %c0_i32_1 = arith.constant 0 : i32
    return %c0_i32, %c0_i32_0 : i32, i32
  }
  func.func @transform_7(%arg0: i32) -> (i32, i32) {
    %c0_i32 = arith.constant 0 : i32
    %c0_i32_0 = arith.constant 0 : i32
    %c0_i32_1 = arith.constant 0 : i32
    return %c0_i32, %c0_i32_0 : i32, i32
  }
  func.func @transform_8(%arg0: i32) -> (i32, i32) {
    %c0_i32 = arith.constant 0 : i32
    %c0_i32_0 = arith.constant 0 : i32
    %c0_i32_1 = arith.constant 0 : i32
    return %c0_i32, %c0_i32_0 : i32, i32
  }
  func.func @transform_9(%arg0: i32) -> (i32, i32) {
    %c0_i32 = arith.constant 0 : i32
    %c0_i32_0 = arith.constant 0 : i32
    %c0_i32_1 = arith.constant 0 : i32
    return %c0_i32, %c0_i32_0 : i32, i32
  }
  func.func @transform_10(%arg0: i32) -> (i32, i32) {
    %c0_i32 = arith.constant 0 : i32
    %c0_i32_0 = arith.constant 0 : i32
    %c0_i32_1 = arith.constant 0 : i32
    return %c0_i32, %c0_i32_0 : i32, i32
  }
  func.func @transform_11(%arg0: i32) -> (i32, i32) {
    %c0_i32 = arith.constant 0 : i32
    %c0_i32_0 = arith.constant 0 : i32
    %c0_i32_1 = arith.constant 0 : i32
    return %c0_i32, %c0_i32_0 : i32, i32
  }
}

</mosaic_0001>

<llo_original>
// kernel: conv_classifier_forward.5
$region0: #{conv_classifier_forward.5}
  #allocation0 [shape = 'u32[]', space=smem, size = 0x4, offset = 0x4, fixed_abs, tag = 'smem constant byte address 0x4 - core index']
  #allocation1 [shape = 'u32[144,128]{1,0:T(1,128)}', space=vmem, size = 0x12000, scoped, tag = 'internal scratch']
  %s0 = inlined_call_operand.vmem [shape: bf16[4,16,4608], index: 0, kind: input, shape index: {}]
  %s1 = inlined_call_operand.vmem [shape: bf16[8,16], index: 1, kind: input, shape index: {}]
  %s2 = inlined_call_operand.vmem [shape: f32[8,1], index: 2, kind: input, shape index: {}]
  %s3 = inlined_call_operand.vmem [shape: f32[8,4608], index: 3, kind: output, shape index: {}]
  %s4 = sld [smem:[#allocation0]]
  $region68: #{conv_classifier_forward.5} parent=0
    _
  %s6 = ssub.s32 1, %s4
  %s7 = scalar_select 0, %s6, %s4
  $region1: #{conv_classifier_forward.5} parent=0
    #allocation2 [shape = 'u8[131072]{0}', space=vmem, size = 0x20000, scoped, tag = 'input window, operand 0']
    loop: start=0, step=1, limit=11
    $region2: #{conv_classifier_forward.5} parent=1 // loop_pre_header
      _
    $region3: #{conv_classifier_forward.5} parent=1 // loop_header
      %s9 = sphi 0, %s13
      %p10 = scmp.ge.s32.totalorder %s9, 11
      %s19 = sphi 0, %s21
      %s22 = sphi 0, %s19
      %s23 = sphi 0, %s22
      %s39 = sphi 0, %s23
      %s43 = sphi 0, %s43
      %s45 = sphi 0, %s43
      %s46 = sphi 0, %s45
      %s60 = sphi 0, %s46
      %s64 = sphi 0, %s64
      %s66 = sphi 0, %s64
      %s67 = sphi 0, %s66
      %s81 = sphi 0, %s67
      %s87 = sphi 0, %s89
      %s90 = sphi 0, %s87
      %s91 = sphi 0, %s90
      %s107 = sphi 0, %s91
    $region4: #{conv_classifier_forward.5} parent=1 // loop_header_branch
      %12 = sbr.rel (%p10) target = $region8
    $region5: #{conv_classifier_forward.5} parent=1 // loop_body
      %s14 = ssub.s32 %s9, 1
      %s15 = ssub.s32 %s9, 2
      %s16 = sadd.s32 %s9, 1
      %s17 = ssub.s32 %s9, %s16
      %p18 = scmp.eq.s32.totalorder %s17, 0
      %s20 = sadd.s32 %s19, 1
      %s21 = scalar_select %p18, %s19, %s20
      %p24 = pneg %p18
      %p25 = scmp.eq.s32.totalorder %s9, 8
      %p26 = por %p24, %p25
      %p27 = scmp.ne.s32.totalorder %s19, %s22
      %p28 = scmp.eq.s32.totalorder %s9, 0
      %p29 = por %p27, %p28
      %p30 = scmp.ne.s32.totalorder %s19, %s22
      %p31 = scmp.eq.s32.totalorder %s14, 8
      %p32 = por %p30, %p31
      %p33 = scmp.ne.s32.totalorder %s22, %s23
      %p34 = scmp.eq.s32.totalorder %s14, 0
      %p35 = por %p33, %p34
      %p36 = scmp.ne.s32.totalorder %s22, %s23
      %p37 = scmp.eq.s32.totalorder %s15, 8
      %p38 = por %p36, %p37
      %p40 = scmp.ne.s32.totalorder %s23, %s39
      %p41 = scmp.eq.s32.totalorder %s15, 0
      %p42 = por %p40, %p41
      %s44 = sadd.s32 %s43, 1
      %p47 = scmp.eq.s32.totalorder %s9, 8
      %p48 = scmp.ne.s32.totalorder %s43, %s45
      %p49 = scmp.eq.s32.totalorder %s9, 0
      %p50 = por %p48, %p49
      %p51 = scmp.ne.s32.totalorder %s43, %s45
      %p52 = scmp.eq.s32.totalorder %s14, 8
      %p53 = por %p51, %p52
      %p54 = scmp.ne.s32.totalorder %s45, %s46
      %p55 = scmp.eq.s32.totalorder %s14, 0
      %p56 = por %p54, %p55
      %p57 = scmp.ne.s32.totalorder %s45, %s46
      %p58 = scmp.eq.s32.totalorder %s15, 8
      %p59 = por %p57, %p58
      %p61 = scmp.ne.s32.totalorder %s46, %s60
      %p62 = scmp.eq.s32.totalorder %s15, 0
      %p63 = por %p61, %p62
      %s65 = sadd.s32 %s64, 1
      %p68 = scmp.eq.s32.totalorder %s9, 8
      %p69 = scmp.ne.s32.totalorder %s64, %s66
      %p70 = scmp.eq.s32.totalorder %s9, 0
      %p71 = por %p69, %p70
      %p72 = scmp.ne.s32.totalorder %s64, %s66
      %p73 = scmp.eq.s32.totalorder %s14, 8
      %p74 = por %p72, %p73
      %p75 = scmp.ne.s32.totalorder %s66, %s67
      %p76 = scmp.eq.s32.totalorder %s14, 0
      %p77 = por %p75, %p76
      %p78 = scmp.ne.s32.totalorder %s66, %s67
      %p79 = scmp.eq.s32.totalorder %s15, 8
      %p80 = por %p78, %p79
      %p82 = scmp.ne.s32.totalorder %s67, %s81
      %p83 = scmp.eq.s32.totalorder %s15, 0
      %p84 = por %p82, %p83
      %s85 = ssub.s32 %s9, %s16
      %p86 = scmp.eq.s32.totalorder %s85, 0
      %s88 = sadd.s32 %s87, 1
      %s89 = scalar_select %p86, %s87, %s88
      %p92 = pneg %p86
      %p93 = scmp.eq.s32.totalorder %s9, 8
      %p94 = por %p92, %p93
      %p95 = scmp.ne.s32.totalorder %s87, %s90
      %p96 = scmp.eq.s32.totalorder %s9, 0
      %p97 = por %p95, %p96
      %p98 = scmp.ne.s32.totalorder %s87, %s90
      %p99 = scmp.eq.s32.totalorder %s14, 8
      %p100 = por %p98, %p99
      %p101 = scmp.ne.s32.totalorder %s90, %s91
      %p102 = scmp.eq.s32.totalorder %s14, 0
      %p103 = por %p101, %p102
      %p104 = scmp.ne.s32.totalorder %s90, %s91
      %p105 = scmp.eq.s32.totalorder %s15, 8
      %p106 = por %p104, %p105
      %p108 = scmp.ne.s32.totalorder %s91, %s107
      %p109 = scmp.eq.s32.totalorder %s15, 0
      %p110 = por %p108, %p109
      %p111 = scmp.le.s32.totalorder 1, %s9
      %p112 = scmp.lt.s32.totalorder %s9, 10
      %p113 = pnand %p111, %p112
      %p114 = pneg %p113
      // Predicated region
      $region9: #{conv_classifier_forward.5} parent=5 // pred_check
        _
      $region10: #{conv_classifier_forward.5} parent=5 // pred_check_branch
        %116 = sbr.rel (%p113) target = $region12
      $region11: #{conv_classifier_forward.5} parent=5 // pred_region
        %s117 = ssub.s32 %s9, 1
        // Predicated region
        $region13: #{conv_classifier_forward.5} parent=11 // pred_check
          %p118 = pneg %p56
        $region14: #{conv_classifier_forward.5} parent=11 // pred_check_branch
          %120 = sbr.rel (%p118) target = $region16
        $region15: #{conv_classifier_forward.5} parent=11 // pred_region
          _
        $region16: #{conv_classifier_forward.5} parent=11 // pred_fallthru
          _
        // Predicated region
        $region17: #{conv_classifier_forward.5} parent=11 // pred_check
          %p121 = pneg %p77
        $region18: #{conv_classifier_forward.5} parent=11 // pred_check_branch
          %123 = sbr.rel (%p121) target = $region20
        $region19: #{conv_classifier_forward.5} parent=11 // pred_region
          _
        $region20: #{conv_classifier_forward.5} parent=11 // pred_fallthru
          _
      $region12: #{conv_classifier_forward.5} parent=5 // pred_fallthru
        _
      %p124 = scmp.lt.s32.totalorder %s9, 9
      // Predicated region
      $region21: #{conv_classifier_forward.5} parent=5 // pred_check
        %p125 = pneg %p124
      $region22: #{conv_classifier_forward.5} parent=5 // pred_check_branch
        %127 = sbr.rel (%p125) target = $region24
      $region23: #{conv_classifier_forward.5} parent=5 // pred_region
        // Predicated region
        $region25: #{conv_classifier_forward.5} parent=23 // pred_check
          %p128 = pneg %p29
        $region26: #{conv_classifier_forward.5} parent=23 // pred_check_branch
          %130 = sbr.rel (%p128) target = $region28
        $region27: #{conv_classifier_forward.5} parent=23 // pred_region
          %s131 = sand.u32 %s19, 1
          %s132 = sand.u32 %s19, 1
          %s133 = smul.addr %s132, 128
          %s134 = scalar_lea.vmem [#allocation2], %s133
          %s135 = smul.u32 4, %s9
          %s136 = smul.addr %s135, 4
          %s137 = scalar_lea.vmem %s0, %s136
          // Predicated region
          $region29: #{conv_classifier_forward.5} parent=27 // pred_check
            _
          $region30: #{conv_classifier_forward.5} parent=27 // pred_check_branch
            %139 = sbr.rel (0) target = $region32
          $region31: #{conv_classifier_forward.5} parent=27 // pred_region
            // Predicated region
            $region33: #{conv_classifier_forward.5} parent=31 // pred_check
              _
            $region34: #{conv_classifier_forward.5} parent=31 // pred_check_branch
              %141 = sbr.rel (0) target = $region36
            $region35: #{conv_classifier_forward.5} parent=31 // pred_region
              loop: start=0, step=1, limit=1
              $region37: #{conv_classifier_forward.5} parent=35 // loop_pre_header
                _
              $region38: #{conv_classifier_forward.5} parent=35 // loop_header
                %s143 = sphi 0, %s147
                %p144 = scmp.ge.s32.totalorder %s143, 1
                %s148 = sphi %s137, %s137
                %s149 = sphi %s134, %s134
              $region39: #{conv_classifier_forward.5} parent=35 // loop_header_branch
                %146 = sbr.rel (%p144) target = $region43
              $region40: #{conv_classifier_forward.5} parent=35 // loop_body
                %v150 = vld [vmem:[%s148] sm:$0xff]
                %151 = vst [vmem:[%s149] sm:$0xff] %v150
                %v152 = vld [vmem:[%s148 + $0x8] sm:$0xff]
                %153 = vst [vmem:[%s149 + $0x8] sm:$0xff] %v152
                %v154 = vld [vmem:[%s148 + $0x90] sm:$0xff]
                %155 = vst [vmem:[%s149 + $0x10] sm:$0xff] %v154
                %v156 = vld [vmem:[%s148 + $0x98] sm:$0xff]
                %157 = vst [vmem:[%s149 + $0x18] sm:$0xff] %v156
                %v158 = vld [vmem:[%s148 + $0x120] sm:$0xff]
                %159 = vst [vmem:[%s149 + $0x20] sm:$0xff] %v158
                %v160 = vld [vmem:[%s148 + $0x128] sm:$0xff]
                %161 = vst [vmem:[%s149 + $0x28] sm:$0xff] %v160
                %v162 = vld [vmem:[%s148 + $0x1b0] sm:$0xff]
                %163 = vst [vmem:[%s149 + $0x30] sm:$0xff] %v162
                %v164 = vld [vmem:[%s148 + $0x1b8] sm:$0xff]
                %165 = vst [vmem:[%s149 + $0x38] sm:$0xff] %v164
                %v166 = vld [vmem:[%s148 + $0x240] sm:$0xff]
                %167 = vst [vmem:[%s149 + $0x40] sm:$0xff] %v166
                %v168 = vld [vmem:[%s148 + $0x248] sm:$0xff]
                %169 = vst [vmem:[%s149 + $0x48] sm:$0xff] %v168
                %v170 = vld [vmem:[%s148 + $0x2d0] sm:$0xff]
                %171 = vst [vmem:[%s149 + $0x50] sm:$0xff] %v170
                %v172 = vld [vmem:[%s148 + $0x2d8] sm:$0xff]
                %173 = vst [vmem:[%s149 + $0x58] sm:$0xff] %v172
                %v174 = vld [vmem:[%s148 + $0x360] sm:$0xff]
                %175 = vst [vmem:[%s149 + $0x60] sm:$0xff] %v174
                %v176 = vld [vmem:[%s148 + $0x368] sm:$0xff]
                %177 = vst [vmem:[%s149 + $0x68] sm:$0xff] %v176
                %v178 = vld [vmem:[%s148 + $0x3f0] sm:$0xff]
                %179 = vst [vmem:[%s149 + $0x70] sm:$0xff] %v178
                %v180 = vld [vmem:[%s148 + $0x3f8] sm:$0xff]
                %181 = vst [vmem:[%s149 + $0x78] sm:$0xff] %v180
              $region41: #{conv_classifier_forward.5} parent=35 // loop_footer
                %s147 = sadd.s32 1, %s143
              $region42: #{conv_classifier_forward.5} parent=35 // loop_footer_branch
                %142 = sbr.rel target = $region38
              $region43: #{conv_classifier_forward.5} parent=35 // loop_exit
                _
            $region36: #{conv_classifier_forward.5} parent=31 // pred_fallthru
              _
            // Predicated region
            $region44: #{conv_classifier_forward.5} parent=31 // pred_check
              _
            $region45: #{conv_classifier_forward.5} parent=31 // pred_check_branch
              %183 = sbr.rel target = $region47
            $region46: #{conv_classifier_forward.5} parent=31 // pred_region
              _
            $region47: #{conv_classifier_forward.5} parent=31 // pred_fallthru
              _
          $region32: #{conv_classifier_forward.5} parent=27 // pred_fallthru
            _
          %184 = vnop
        $region28: #{conv_classifier_forward.5} parent=23 // pred_fallthru
          _
      $region24: #{conv_classifier_forward.5} parent=5 // pred_fallthru
        _
      %p185 = scmp.le.s32.totalorder 1, %s9
      %p186 = scmp.lt.s32.totalorder %s9, 10
      %p187 = pnand %p185, %p186
      %p188 = pneg %p187
      // Predicated region
      $region48: #{conv_classifier_forward.5} parent=5 // pred_check
        _
      $region49: #{conv_classifier_forward.5} parent=5 // pred_check_branch
        %190 = sbr.rel (%p187) target = $region51
      $region50: #{conv_classifier_forward.5} parent=5 // pred_region
        %s191 = ssub.s32 %s9, 1
        %s192 = sand.u32 %s22, 1
        %s193 = sand.u32 %s22, 1
        %s194 = smul.addr %s193, 128
        %s195 = scalar_lea.vmem [#allocation2], %s194
        // Predicated region
        $region52: #{conv_classifier_forward.5} parent=50 // pred_check
          %p196 = pneg %p35
        $region53: #{conv_classifier_forward.5} parent=50 // pred_check_branch
          %198 = sbr.rel (%p196) target = $region55
        $region54: #{conv_classifier_forward.5} parent=50 // pred_region
          _
        $region55: #{conv_classifier_forward.5} parent=50 // pred_fallthru
          _
        %s199 = sand.u32 %s22, 1
        %s200 = sand.u32 %s22, 1
        %s201 = smul.addr %s200, 128
        %s202 = scalar_lea.vmem [#allocation2], %s201
        %p203 = pneg %p35
        %p204 = pneg %p32
        %p205 = pneg %p56
        %p206 = pneg %p53
        %p207 = pneg %p77
        %p208 = pneg %p74
        %p209 = pneg %p103
        %p210 = pneg %p100
        %s211 = smul.u32 4, %s14
        %p212 = scmp.lt.s32.totalorder %s211, 35
        %s213 = scalar_select %p212, %s211, 35
        %s214 = smul.addr %s213, 8
        %s215 = scalar_lea.vmem %s3, %s214
        %s216 = smul.u32 4, %s14
        %s217 = smul.u32 4, %s14
        %p218 = scmp.lt.s32.totalorder %s217, 35
        %s219 = scalar_select %p218, %s217, 35
        %s220 = smul.addr %s219, 8
        %s221 = scalar_lea.vmem %s3, %s220
        %s222 = smul.u32 4, %s14
        %v224 = vld [vmem:[%s1] sm:$0xf]
        %v225 = vld [vmem:[%s2] sm:$0xff]
        %v226 = vld [vmem:[%s195] sm:$0xff]
        %v227 = vld [vmem:[%s195 + $0x8] sm:$0xff]
        %v228 = vld [vmem:[%s195 + $0x10] sm:$0xff]
        %v229 = vld [vmem:[%s195 + $0x18] sm:$0xff]
        %231 = vset.pattern.permute.xlu0 0
        %232 = vperm.xlu0 %231, %v225
        %v233 = vpop.permute.xlu0 %232
        %v239 = vunpack.c.l.b16 %v226
        %v240 = vunpack.c.h.b16 %v226
        %v241 = vunpack.c.l.b16 %v227
        %v242 = vunpack.c.h.b16 %v227
        %v243 = vunpack.c.l.b16 %v228
        %v244 = vunpack.c.h.b16 %v228
        %v245 = vunpack.c.l.b16 %v229
        %v246 = vunpack.c.h.b16 %v229
        %v247 = vpack.c.b16 %v243, %v239
        %v248 = vpack.c.b16 %v244, %v240
        %v249 = vpack.c.b16 %v245, %v241
        %v250 = vpack.c.b16 %v246, %v242
        %vm255 = vcmask 130048
        %v257 = vsel %vm255, %v224, 0
        %259 = vmatprep.subr.bf16.mxu0 %v248
        %260 = vmatpush1.bf16.msra.mxu0 %v247
        %261 = vmatprep.subr.bf16.mxu0 0
        %262 = vmatpush1.bf16.msra.mxu0 0
        %263 = vmatprep.subr.bf16.mxu0 0
        %264 = vmatpush1.bf16.msra.mxu0 0
        %265 = vmatprep.subr.bf16.mxu0 0
        %266 = vmatpush1.bf16.msra.mxu0 0
        %267 = vmatprep.subr.bf16.mxu0 0
        %268 = vmatpush1.bf16.msra.mxu0 0
        %269 = vmatprep.subr.bf16.mxu0 0
        %270 = vmatpush1.bf16.msra.mxu0 0
        %271 = vmatprep.subr.bf16.mxu0 0
        %272 = vmatpush1.bf16.msra.mxu0 0
        %273 = vmatprep.subr.bf16.mxu0 0
        %274 = vmatpush1.bf16.msra.mxu0 0
        %275 = vmatprep.subr.bf16.mxu0 0
        %276 = vmatpush1.bf16.msra.mxu0 0
        %277 = vmatprep.subr.bf16.mxu0 0
        %278 = vmatpush1.bf16.msra.mxu0 0
        %279 = vmatprep.subr.bf16.mxu0 0
        %280 = vmatpush1.bf16.msra.mxu0 0
        %281 = vmatprep.subr.bf16.mxu0 0
        %282 = vmatpush1.bf16.msra.mxu0 0
        %283 = vmatprep.subr.bf16.mxu0 0
        %284 = vmatpush1.bf16.msra.mxu0 0
        %285 = vmatprep.subr.bf16.mxu0 0
        %286 = vmatpush1.bf16.msra.mxu0 0
        %287 = vmatprep.subr.bf16.mxu0 0
        %288 = vmatpush1.bf16.msra.mxu0 0
        %289 = vmatprep.subr.bf16.mxu0 0
        %290 = vmatpush1.bf16.msra.mxu0 0
        %291 = vmatprep.mubr.bf16.mxu0 0
        %292 = vmatmul.mubr.bf16.gmra.mrb[0].mxu0 %v257
        %v293 = vpop.f32.mrb[0].mxu0
        %v294 = vadd.f32 %v233, %v293
        %v295 = vpop.f32.mrb[0].mxu0
        %v296 = vadd.f32 %v233, %v295
        %v297 = vpop.f32.mrb[0].mxu0
        %v298 = vpop.f32.mrb[0].mxu0
        %299 = vdwg.mxu0
        %300 = vmatprep.subr.bf16.mxu0 %v250
        %301 = vmatpush1.bf16.msra.mxu0 %v249
        %302 = vmatprep.subr.bf16.mxu0 0
        %303 = vmatpush1.bf16.msra.mxu0 0
        %304 = vmatprep.subr.bf16.mxu0 0
        %305 = vmatpush1.bf16.msra.mxu0 0
        %306 = vmatprep.subr.bf16.mxu0 0
        %307 = vmatpush1.bf16.msra.mxu0 0
        %308 = vmatprep.subr.bf16.mxu0 0
        %309 = vmatpush1.bf16.msra.mxu0 0
        %310 = vmatprep.subr.bf16.mxu0 0
        %311 = vmatpush1.bf16.msra.mxu0 0
        %312 = vmatprep.subr.bf16.mxu0 0
        %313 = vmatpush1.bf16.msra.mxu0 0
        %314 = vmatprep.subr.bf16.mxu0 0
        %315 = vmatpush1.bf16.msra.mxu0 0
        %316 = vmatprep.subr.bf16.mxu0 0
        %317 = vmatpush1.bf16.msra.mxu0 0
        %318 = vmatprep.subr.bf16.mxu0 0
        %319 = vmatpush1.bf16.msra.mxu0 0
        %320 = vmatprep.subr.bf16.mxu0 0
        %321 = vmatpush1.bf16.msra.mxu0 0
        %322 = vmatprep.subr.bf16.mxu0 0
        %323 = vmatpush1.bf16.msra.mxu0 0
        %324 = vmatprep.subr.bf16.mxu0 0
        %325 = vmatpush1.bf16.msra.mxu0 0
        %326 = vmatprep.subr.bf16.mxu0 0
        %327 = vmatpush1.bf16.msra.mxu0 0
        %328 = vmatprep.subr.bf16.mxu0 0
        %329 = vmatpush1.bf16.msra.mxu0 0
        %330 = vmatprep.subr.bf16.mxu0 0
        %331 = vmatpush1.bf16.msra.mxu0 0
        %332 = vmatprep.mubr.bf16.mxu0 0
        %333 = vmatmul.mubr.bf16.gmra.mrb[0].mxu0 %v257
        %v334 = vpop.f32.mrb[0].mxu0
        %v335 = vadd.f32 %v233, %v334
        %v336 = vpop.f32.mrb[0].mxu0
        %v337 = vadd.f32 %v233, %v336
        %v338 = vpop.f32.mrb[0].mxu0
        %v339 = vpop.f32.mrb[0].mxu0
        %340 = vdwg.mxu0
        %v341 = vmax.f32 %v294, 0.0
        %v342 = vmax.f32 %v296, 0.0
        %v343 = vmax.f32 %v335, 0.0
        %v344 = vmax.f32 %v337, 0.0
        %s345 = scalar_lea.vmem %s195, 32 [#allocation2]
        %v346 = vld [vmem:[%s345] sm:$0xff]
        %v347 = vld [vmem:[%s345 + $0x8] sm:$0xff]
        %v348 = vld [vmem:[%s345 + $0x10] sm:$0xff]
        %v349 = vld [vmem:[%s345 + $0x18] sm:$0xff]
        %v354 = vunpack.c.l.b16 %v346
        %v355 = vunpack.c.h.b16 %v346
        %v356 = vunpack.c.l.b16 %v347
        %v357 = vunpack.c.h.b16 %v347
        %v358 = vunpack.c.l.b16 %v348
        %v359 = vunpack.c.h.b16 %v348
        %v360 = vunpack.c.l.b16 %v349
        %v361 = vunpack.c.h.b16 %v349
        %v362 = vpack.c.b16 %v358, %v354
        %v363 = vpack.c.b16 %v359, %v355
        %v364 = vpack.c.b16 %v360, %v356
        %v365 = vpack.c.b16 %v361, %v357
        %370 = vmatprep.subr.bf16.mxu0 %v363
        %371 = vmatpush1.bf16.msra.mxu0 %v362
        %372 = vmatprep.subr.bf16.mxu0 0
        %373 = vmatpush1.bf16.msra.mxu0 0
        %374 = vmatprep.subr.bf16.mxu0 0
        %375 = vmatpush1.bf16.msra.mxu0 0
        %376 = vmatprep.subr.bf16.mxu0 0
        %377 = vmatpush1.bf16.msra.mxu0 0
        %378 = vmatprep.subr.bf16.mxu0 0
        %379 = vmatpush1.bf16.msra.mxu0 0
        %380 = vmatprep.subr.bf16.mxu0 0
        %381 = vmatpush1.bf16.msra.mxu0 0
        %382 = vmatprep.subr.bf16.mxu0 0
        %383 = vmatpush1.bf16.msra.mxu0 0
        %384 = vmatprep.subr.bf16.mxu0 0
        %385 = vmatpush1.bf16.msra.mxu0 0
        %386 = vmatprep.subr.bf16.mxu0 0
        %387 = vmatpush1.bf16.msra.mxu0 0
        %388 = vmatprep.subr.bf16.mxu0 0
        %389 = vmatpush1.bf16.msra.mxu0 0
        %390 = vmatprep.subr.bf16.mxu0 0
        %391 = vmatpush1.bf16.msra.mxu0 0
        %392 = vmatprep.subr.bf16.mxu0 0
        %393 = vmatpush1.bf16.msra.mxu0 0
        %394 = vmatprep.subr.bf16.mxu0 0
        %395 = vmatpush1.bf16.msra.mxu0 0
        %396 = vmatprep.subr.bf16.mxu0 0
        %397 = vmatpush1.bf16.msra.mxu0 0
        %398 = vmatprep.subr.bf16.mxu0 0
        %399 = vmatpush1.bf16.msra.mxu0 0
        %400 = vmatprep.subr.bf16.mxu0 0
        %401 = vmatpush1.bf16.msra.mxu0 0
        %402 = vmatprep.mubr.bf16.mxu0 0
        %403 = vmatmul.mubr.bf16.gmra.mrb[0].mxu0 %v257
        %v404 = vpop.f32.mrb[0].mxu0
        %v405 = vadd.f32 %v233, %v404
        %v406 = vpop.f32.mrb[0].mxu0
        %v407 = vadd.f32 %v233, %v406
        %v408 = vpop.f32.mrb[0].mxu0
        %v409 = vpop.f32.mrb[0].mxu0
        %410 = vdwg.mxu0
        %411 = vmatprep.subr.bf16.mxu0 %v365
        %412 = vmatpush1.bf16.msra.mxu0 %v364
        %413 = vmatprep.subr.bf16.mxu0 0
        %414 = vmatpush1.bf16.msra.mxu0 0
        %415 = vmatprep.subr.bf16.mxu0 0
        %416 = vmatpush1.bf16.msra.mxu0 0
        %417 = vmatprep.subr.bf16.mxu0 0
        %418 = vmatpush1.bf16.msra.mxu0 0
        %419 = vmatprep.subr.bf16.mxu0 0
        %420 = vmatpush1.bf16.msra.mxu0 0
        %421 = vmatprep.subr.bf16.mxu0 0
        %422 = vmatpush1.bf16.msra.mxu0 0
        %423 = vmatprep.subr.bf16.mxu0 0
        %424 = vmatpush1.bf16.msra.mxu0 0
        %425 = vmatprep.subr.bf16.mxu0 0
        %426 = vmatpush1.bf16.msra.mxu0 0
        %427 = vmatprep.subr.bf16.mxu0 0
        %428 = vmatpush1.bf16.msra.mxu0 0
        %429 = vmatprep.subr.bf16.mxu0 0
        %430 = vmatpush1.bf16.msra.mxu0 0
        %431 = vmatprep.subr.bf16.mxu0 0
        %432 = vmatpush1.bf16.msra.mxu0 0
        %433 = vmatprep.subr.bf16.mxu0 0
        %434 = vmatpush1.bf16.msra.mxu0 0
        %435 = vmatprep.subr.bf16.mxu0 0
        %436 = vmatpush1.bf16.msra.mxu0 0
        %437 = vmatprep.subr.bf16.mxu0 0
        %438 = vmatpush1.bf16.msra.mxu0 0
        %439 = vmatprep.subr.bf16.mxu0 0
        %440 = vmatpush1.bf16.msra.mxu0 0
        %441 = vmatprep.subr.bf16.mxu0 0
        %442 = vmatpush1.bf16.msra.mxu0 0
        %443 = vmatprep.mubr.bf16.mxu0 0
        %444 = vmatmul.mubr.bf16.gmra.mrb[0].mxu0 %v257
        %v445 = vpop.f32.mrb[0].mxu0
        %v446 = vadd.f32 %v233, %v445
        %v447 = vpop.f32.mrb[0].mxu0
        %v448 = vadd.f32 %v233, %v447
        %v449 = vpop.f32.mrb[0].mxu0
        %v450 = vpop.f32.mrb[0].mxu0
        %451 = vdwg.mxu0
        %v452 = vmax.f32 %v405, 0.0
        %v453 = vmax.f32 %v407, 0.0
        %v454 = vmax.f32 %v446, 0.0
        %v455 = vmax.f32 %v448, 0.0
        %v456 = vmax.f32 %v341, %v452
        %v457 = vmax.f32 %v342, %v453
        %v458 = vmax.f32 %v343, %v454
        %v459 = vmax.f32 %v344, %v455
        %s460 = scalar_lea.vmem %s195, 64 [#allocation2]
        %v461 = vld [vmem:[%s460] sm:$0xff]
        %v462 = vld [vmem:[%s460 + $0x8] sm:$0xff]
        %v463 = vld [vmem:[%s460 + $0x10] sm:$0xff]
        %v464 = vld [vmem:[%s460 + $0x18] sm:$0xff]
        %v469 = vunpack.c.l.b16 %v461
        %v470 = vunpack.c.h.b16 %v461
        %v471 = vunpack.c.l.b16 %v462
        %v472 = vunpack.c.h.b16 %v462
        %v473 = vunpack.c.l.b16 %v463
        %v474 = vunpack.c.h.b16 %v463
        %v475 = vunpack.c.l.b16 %v464
        %v476 = vunpack.c.h.b16 %v464
        %v477 = vpack.c.b16 %v473, %v469
        %v478 = vpack.c.b16 %v474, %v470
        %v479 = vpack.c.b16 %v475, %v471
        %v480 = vpack.c.b16 %v476, %v472
        %485 = vmatprep.subr.bf16.mxu0 %v478
        %486 = vmatpush1.bf16.msra.mxu0 %v477
        %487 = vmatprep.subr.bf16.mxu0 0
        %488 = vmatpush1.bf16.msra.mxu0 0
        %489 = vmatprep.subr.bf16.mxu0 0
        %490 = vmatpush1.bf16.msra.mxu0 0
        %491 = vmatprep.subr.bf16.mxu0 0
        %492 = vmatpush1.bf16.msra.mxu0 0
        %493 = vmatprep.subr.bf16.mxu0 0
        %494 = vmatpush1.bf16.msra.mxu0 0
        %495 = vmatprep.subr.bf16.mxu0 0
        %496 = vmatpush1.bf16.msra.mxu0 0
        %497 = vmatprep.subr.bf16.mxu0 0
        %498 = vmatpush1.bf16.msra.mxu0 0
        %499 = vmatprep.subr.bf16.mxu0 0
        %500 = vmatpush1.bf16.msra.mxu0 0
        %501 = vmatprep.subr.bf16.mxu0 0
        %502 = vmatpush1.bf16.msra.mxu0 0
        %503 = vmatprep.subr.bf16.mxu0 0
        %504 = vmatpush1.bf16.msra.mxu0 0
        %505 = vmatprep.subr.bf16.mxu0 0
        %506 = vmatpush1.bf16.msra.mxu0 0
        %507 = vmatprep.subr.bf16.mxu0 0
        %508 = vmatpush1.bf16.msra.mxu0 0
        %509 = vmatprep.subr.bf16.mxu0 0
        %510 = vmatpush1.bf16.msra.mxu0 0
        %511 = vmatprep.subr.bf16.mxu0 0
        %512 = vmatpush1.bf16.msra.mxu0 0
        %513 = vmatprep.subr.bf16.mxu0 0
        %514 = vmatpush1.bf16.msra.mxu0 0
        %515 = vmatprep.subr.bf16.mxu0 0
        %516 = vmatpush1.bf16.msra.mxu0 0
        %517 = vmatprep.mubr.bf16.mxu0 0
        %518 = vmatmul.mubr.bf16.gmra.mrb[0].mxu0 %v257
        %v519 = vpop.f32.mrb[0].mxu0
        %v520 = vadd.f32 %v233, %v519
        %v521 = vpop.f32.mrb[0].mxu0
        %v522 = vadd.f32 %v233, %v521
        %v523 = vpop.f32.mrb[0].mxu0
        %v524 = vpop.f32.mrb[0].mxu0
        %525 = vdwg.mxu0
        %526 = vmatprep.subr.bf16.mxu0 %v480
        %527 = vmatpush1.bf16.msra.mxu0 %v479
        %528 = vmatprep.subr.bf16.mxu0 0
        %529 = vmatpush1.bf16.msra.mxu0 0
        %530 = vmatprep.subr.bf16.mxu0 0
        %531 = vmatpush1.bf16.msra.mxu0 0
        %532 = vmatprep.subr.bf16.mxu0 0
        %533 = vmatpush1.bf16.msra.mxu0 0
        %534 = vmatprep.subr.bf16.mxu0 0
        %535 = vmatpush1.bf16.msra.mxu0 0
        %536 = vmatprep.subr.bf16.mxu0 0
        %537 = vmatpush1.bf16.msra.mxu0 0
        %538 = vmatprep.subr.bf16.mxu0 0
        %539 = vmatpush1.bf16.msra.mxu0 0
        %540 = vmatprep.subr.bf16.mxu0 0
        %541 = vmatpush1.bf16.msra.mxu0 0
        %542 = vmatprep.subr.bf16.mxu0 0
        %543 = vmatpush1.bf16.msra.mxu0 0
        %544 = vmatprep.subr.bf16.mxu0 0
        %545 = vmatpush1.bf16.msra.mxu0 0
        %546 = vmatprep.subr.bf16.mxu0 0
        %547 = vmatpush1.bf16.msra.mxu0 0
        %548 = vmatprep.subr.bf16.mxu0 0
        %549 = vmatpush1.bf16.msra.mxu0 0
        %550 = vmatprep.subr.bf16.mxu0 0
        %551 = vmatpush1.bf16.msra.mxu0 0
        %552 = vmatprep.subr.bf16.mxu0 0
        %553 = vmatpush1.bf16.msra.mxu0 0
        %554 = vmatprep.subr.bf16.mxu0 0
        %555 = vmatpush1.bf16.msra.mxu0 0
        %556 = vmatprep.subr.bf16.mxu0 0
        %557 = vmatpush1.bf16.msra.mxu0 0
        %558 = vmatprep.mubr.bf16.mxu0 0
        %559 = vmatmul.mubr.bf16.gmra.mrb[0].mxu0 %v257
        %v560 = vpop.f32.mrb[0].mxu0
        %v561 = vadd.f32 %v233, %v560
        %v562 = vpop.f32.mrb[0].mxu0
        %v563 = vadd.f32 %v233, %v562
        %v564 = vpop.f32.mrb[0].mxu0
        %v565 = vpop.f32.mrb[0].mxu0
        %566 = vdwg.mxu0
        %v567 = vmax.f32 %v520, 0.0
        %v568 = vmax.f32 %v522, 0.0
        %v569 = vmax.f32 %v561, 0.0
        %v570 = vmax.f32 %v563, 0.0
        %v571 = vmax.f32 %v456, %v567
        %v572 = vmax.f32 %v457, %v568
        %v573 = vmax.f32 %v458, %v569
        %v574 = vmax.f32 %v459, %v570
        %s575 = scalar_lea.vmem %s195, 96 [#allocation2]
        %v576 = vld [vmem:[%s575] sm:$0xff]
        %v577 = vld [vmem:[%s575 + $0x8] sm:$0xff]
        %v578 = vld [vmem:[%s575 + $0x10] sm:$0xff]
        %v579 = vld [vmem:[%s575 + $0x18] sm:$0xff]
        %v584 = vunpack.c.l.b16 %v576
        %v585 = vunpack.c.h.b16 %v576
        %v586 = vunpack.c.l.b16 %v577
        %v587 = vunpack.c.h.b16 %v577
        %v588 = vunpack.c.l.b16 %v578
        %v589 = vunpack.c.h.b16 %v578
        %v590 = vunpack.c.l.b16 %v579
        %v591 = vunpack.c.h.b16 %v579
        %v592 = vpack.c.b16 %v588, %v584
        %v593 = vpack.c.b16 %v589, %v585
        %v594 = vpack.c.b16 %v590, %v586
        %v595 = vpack.c.b16 %v591, %v587
        %600 = vmatprep.subr.bf16.mxu0 %v593
        %601 = vmatpush1.bf16.msra.mxu0 %v592
        %602 = vmatprep.subr.bf16.mxu0 0
        %603 = vmatpush1.bf16.msra.mxu0 0
        %604 = vmatprep.subr.bf16.mxu0 0
        %605 = vmatpush1.bf16.msra.mxu0 0
        %606 = vmatprep.subr.bf16.mxu0 0
        %607 = vmatpush1.bf16.msra.mxu0 0
        %608 = vmatprep.subr.bf16.mxu0 0
        %609 = vmatpush1.bf16.msra.mxu0 0
        %610 = vmatprep.subr.bf16.mxu0 0
        %611 = vmatpush1.bf16.msra.mxu0 0
        %612 = vmatprep.subr.bf16.mxu0 0
        %613 = vmatpush1.bf16.msra.mxu0 0
        %614 = vmatprep.subr.bf16.mxu0 0
        %615 = vmatpush1.bf16.msra.mxu0 0
        %616 = vmatprep.subr.bf16.mxu0 0
        %617 = vmatpush1.bf16.msra.mxu0 0
        %618 = vmatprep.subr.bf16.mxu0 0
        %619 = vmatpush1.bf16.msra.mxu0 0
        %620 = vmatprep.subr.bf16.mxu0 0
        %621 = vmatpush1.bf16.msra.mxu0 0
        %622 = vmatprep.subr.bf16.mxu0 0
        %623 = vmatpush1.bf16.msra.mxu0 0
        %624 = vmatprep.subr.bf16.mxu0 0
        %625 = vmatpush1.bf16.msra.mxu0 0
        %626 = vmatprep.subr.bf16.mxu0 0
        %627 = vmatpush1.bf16.msra.mxu0 0
        %628 = vmatprep.subr.bf16.mxu0 0
        %629 = vmatpush1.bf16.msra.mxu0 0
        %630 = vmatprep.subr.bf16.mxu0 0
        %631 = vmatpush1.bf16.msra.mxu0 0
        %632 = vmatprep.mubr.bf16.mxu0 0
        %633 = vmatmul.mubr.bf16.gmra.mrb[0].mxu0 %v257
        %v634 = vpop.f32.mrb[0].mxu0
        %v635 = vadd.f32 %v233, %v634
        %v636 = vpop.f32.mrb[0].mxu0
        %v637 = vadd.f32 %v233, %v636
        %v638 = vpop.f32.mrb[0].mxu0
        %v639 = vpop.f32.mrb[0].mxu0
        %640 = vdwg.mxu0
        %641 = vmatprep.subr.bf16.mxu0 %v595
        %642 = vmatpush1.bf16.msra.mxu0 %v594
        %643 = vmatprep.subr.bf16.mxu0 0
        %644 = vmatpush1.bf16.msra.mxu0 0
        %645 = vmatprep.subr.bf16.mxu0 0
        %646 = vmatpush1.bf16.msra.mxu0 0
        %647 = vmatprep.subr.bf16.mxu0 0
        %648 = vmatpush1.bf16.msra.mxu0 0
        %649 = vmatprep.subr.bf16.mxu0 0
        %650 = vmatpush1.bf16.msra.mxu0 0
        %651 = vmatprep.subr.bf16.mxu0 0
        %652 = vmatpush1.bf16.msra.mxu0 0
        %653 = vmatprep.subr.bf16.mxu0 0
        %654 = vmatpush1.bf16.msra.mxu0 0
        %655 = vmatprep.subr.bf16.mxu0 0
        %656 = vmatpush1.bf16.msra.mxu0 0
        %657 = vmatprep.subr.bf16.mxu0 0
        %658 = vmatpush1.bf16.msra.mxu0 0
        %659 = vmatprep.subr.bf16.mxu0 0
        %660 = vmatpush1.bf16.msra.mxu0 0
        %661 = vmatprep.subr.bf16.mxu0 0
        %662 = vmatpush1.bf16.msra.mxu0 0
        %663 = vmatprep.subr.bf16.mxu0 0
        %664 = vmatpush1.bf16.msra.mxu0 0
        %665 = vmatprep.subr.bf16.mxu0 0
        %666 = vmatpush1.bf16.msra.mxu0 0
        %667 = vmatprep.subr.bf16.mxu0 0
        %668 = vmatpush1.bf16.msra.mxu0 0
        %669 = vmatprep.subr.bf16.mxu0 0
        %670 = vmatpush1.bf16.msra.mxu0 0
        %671 = vmatprep.subr.bf16.mxu0 0
        %672 = vmatpush1.bf16.msra.mxu0 0
        %673 = vmatprep.mubr.bf16.mxu0 0
        %674 = vmatmul.mubr.bf16.gmra.mrb[0].mxu0 %v257
        %v675 = vpop.f32.mrb[0].mxu0
        %v676 = vadd.f32 %v233, %v675
        %v677 = vpop.f32.mrb[0].mxu0
        %v678 = vadd.f32 %v233, %v677
        %v679 = vpop.f32.mrb[0].mxu0
        %v680 = vpop.f32.mrb[0].mxu0
        %681 = vdwg.mxu0
        %v682 = vmax.f32 %v635, 0.0
        %v683 = vmax.f32 %v637, 0.0
        %v684 = vmax.f32 %v676, 0.0
        %v685 = vmax.f32 %v678, 0.0
        %v686 = vmax.f32 %v571, %v682
        %v687 = vmax.f32 %v572, %v683
        %v688 = vmax.f32 %v573, %v684
        %v689 = vmax.f32 %v574, %v685
        %690 = vst [vmem:[%s221] sm:$0xff] %v686
        %691 = vst [vmem:[%s221 + $0x8] sm:$0xff] %v687
        %692 = vst [vmem:[%s221 + $0x10] sm:$0xff] %v688
        %693 = vst [vmem:[%s221 + $0x18] sm:$0xff] %v689
        %s694 = smul.u32 4, %s14
        %p695 = scmp.lt.s32.totalorder %s694, 35
        %s696 = scalar_select %p695, %s694, 35
        %s697 = smul.addr %s696, 8
        %s698 = scalar_lea.vmem %s3, %s697
        // Predicated region
        $region56: #{conv_classifier_forward.5} parent=50 // pred_check
          %p699 = pneg %p100
        $region57: #{conv_classifier_forward.5} parent=50 // pred_check_branch
          %701 = sbr.rel (%p699) target = $region59
        $region58: #{conv_classifier_forward.5} parent=50 // pred_region
          %s702 = smul.u32 4, %s14
        $region59: #{conv_classifier_forward.5} parent=50 // pred_fallthru
          _
      $region51: #{conv_classifier_forward.5} parent=5 // pred_fallthru
        _
      %p703 = scmp.le.s32.totalorder 2, %s9
      // Predicated region
      $region60: #{conv_classifier_forward.5} parent=5 // pred_check
        %p704 = pneg %p703
      $region61: #{conv_classifier_forward.5} parent=5 // pred_check_branch
        %706 = sbr.rel (%p704) target = $region63
      $region62: #{conv_classifier_forward.5} parent=5 // pred_region
        %s707 = ssub.s32 %s9, 2
        // Predicated region
        $region64: #{conv_classifier_forward.5} parent=62 // pred_check
          %p708 = pneg %p106
        $region65: #{conv_classifier_forward.5} parent=62 // pred_check_branch
          %710 = sbr.rel (%p708) target = $region67
        $region66: #{conv_classifier_forward.5} parent=62 // pred_region
          %s711 = smul.u32 4, %s15
          %p712 = scmp.lt.s32.totalorder %s711, 35
          %s713 = scalar_select %p712, %s711, 35
          %s714 = smul.addr %s713, 8
          %s715 = scalar_lea.vmem %s3, %s714
        $region67: #{conv_classifier_forward.5} parent=62 // pred_fallthru
          _
      $region63: #{conv_classifier_forward.5} parent=5 // pred_fallthru
        _
    $region6: #{conv_classifier_forward.5} parent=1 // loop_footer
      %s13 = sadd.s32 1, %s9
    $region7: #{conv_classifier_forward.5} parent=1 // loop_footer_branch
      %8 = sbr.rel target = $region3
    $region8: #{conv_classifier_forward.5} parent=1 // loop_exit
      _

// kernel: conv_classifier_forward.6
$region0: #{conv_classifier_forward.6}
  #allocation0 [shape = 'u32[]', space=smem, size = 0x4, offset = 0x4, fixed_abs, tag = 'smem constant byte address 0x4 - core index']
  #allocation1 [shape = 'u32[144,128]{1,0:T(1,128)}', space=vmem, size = 0x12000, scoped, tag = 'internal scratch']
  %s0 = inlined_call_operand.vmem [shape: bf16[4,128,1152], index: 0, kind: input, shape index: {}]
  %s1 = inlined_call_operand.vmem [shape: bf16[16,128], index: 1, kind: input, shape index: {}]
  %s2 = inlined_call_operand.vmem [shape: f32[16,1], index: 2, kind: input, shape index: {}]
  %s3 = inlined_call_operand.vmem [shape: f32[16,1152], index: 3, kind: output, shape index: {}]
  %s4 = sld [smem:[#allocation0]]
  $region90: #{conv_classifier_forward.6} parent=0
    _
  %s6 = ssub.s32 1, %s4
  %s7 = scalar_select 0, %s6, %s4
  $region1: #{conv_classifier_forward.6} parent=0
    #allocation2 [shape = 'u8[786432]{0}', space=vmem, size = 0xc0000, scoped, tag = 'input window, operand 0']
    #allocation3 [shape = 'u8[49152]{0}', space=vmem, size = 0xc000, scoped, tag = 'output window, operand 0']
    loop: start=0, step=1, limit=5
    $region2: #{conv_classifier_forward.6} parent=1 // loop_pre_header
      _
    $region3: #{conv_classifier_forward.6} parent=1 // loop_header
      %s9 = sphi 0, %s13
      %p10 = scmp.ge.s32.totalorder %s9, 5
      %s19 = sphi 0, %s21
      %s22 = sphi 0, %s19
      %s23 = sphi 0, %s22
      %s39 = sphi 0, %s23
      %s43 = sphi 0, %s43
      %s45 = sphi 0, %s43
      %s46 = sphi 0, %s45
      %s60 = sphi 0, %s46
      %s64 = sphi 0, %s64
      %s66 = sphi 0, %s64
      %s67 = sphi 0, %s66
      %s81 = sphi 0, %s67
      %s87 = sphi 0, %s89
      %s90 = sphi 0, %s87
      %s91 = sphi 0, %s90
      %s107 = sphi 0, %s91
    $region4: #{conv_classifier_forward.6} parent=1 // loop_header_branch
      %12 = sbr.rel (%p10) target = $region8
    $region5: #{conv_classifier_forward.6} parent=1 // loop_body
      %s14 = ssub.s32 %s9, 1
      %s15 = ssub.s32 %s9, 2
      %s16 = sadd.s32 %s9, 1
      %s17 = ssub.s32 %s9, %s16
      %p18 = scmp.eq.s32.totalorder %s17, 0
      %s20 = sadd.s32 %s19, 1
      %s21 = scalar_select %p18, %s19, %s20
      %p24 = pneg %p18
      %p25 = scmp.eq.s32.totalorder %s9, 2
      %p26 = por %p24, %p25
      %p27 = scmp.ne.s32.totalorder %s19, %s22
      %p28 = scmp.eq.s32.totalorder %s9, 0
      %p29 = por %p27, %p28
      %p30 = scmp.ne.s32.totalorder %s19, %s22
      %p31 = scmp.eq.s32.totalorder %s14, 2
      %p32 = por %p30, %p31
      %p33 = scmp.ne.s32.totalorder %s22, %s23
      %p34 = scmp.eq.s32.totalorder %s14, 0
      %p35 = por %p33, %p34
      %p36 = scmp.ne.s32.totalorder %s22, %s23
      %p37 = scmp.eq.s32.totalorder %s15, 2
      %p38 = por %p36, %p37
      %p40 = scmp.ne.s32.totalorder %s23, %s39
      %p41 = scmp.eq.s32.totalorder %s15, 0
      %p42 = por %p40, %p41
      %s44 = sadd.s32 %s43, 1
      %p47 = scmp.eq.s32.totalorder %s9, 2
      %p48 = scmp.ne.s32.totalorder %s43, %s45
      %p49 = scmp.eq.s32.totalorder %s9, 0
      %p50 = por %p48, %p49
      %p51 = scmp.ne.s32.totalorder %s43, %s45
      %p52 = scmp.eq.s32.totalorder %s14, 2
      %p53 = por %p51, %p52
      %p54 = scmp.ne.s32.totalorder %s45, %s46
      %p55 = scmp.eq.s32.totalorder %s14, 0
      %p56 = por %p54, %p55
      %p57 = scmp.ne.s32.totalorder %s45, %s46
      %p58 = scmp.eq.s32.totalorder %s15, 2
      %p59 = por %p57, %p58
      %p61 = scmp.ne.s32.totalorder %s46, %s60
      %p62 = scmp.eq.s32.totalorder %s15, 0
      %p63 = por %p61, %p62
      %s65 = sadd.s32 %s64, 1
      %p68 = scmp.eq.s32.totalorder %s9, 2
      %p69 = scmp.ne.s32.totalorder %s64, %s66
      %p70 = scmp.eq.s32.totalorder %s9, 0
      %p71 = por %p69, %p70
      %p72 = scmp.ne.s32.totalorder %s64, %s66
      %p73 = scmp.eq.s32.totalorder %s14, 2
      %p74 = por %p72, %p73
      %p75 = scmp.ne.s32.totalorder %s66, %s67
      %p76 = scmp.eq.s32.totalorder %s14, 0
      %p77 = por %p75, %p76
      %p78 = scmp.ne.s32.totalorder %s66, %s67
      %p79 = scmp.eq.s32.totalorder %s15, 2
      %p80 = por %p78, %p79
      %p82 = scmp.ne.s32.totalorder %s67, %s81
      %p83 = scmp.eq.s32.totalorder %s15, 0
      %p84 = por %p82, %p83
      %s85 = ssub.s32 %s9, %s16
      %p86 = scmp.eq.s32.totalorder %s85, 0
      %s88 = sadd.s32 %s87, 1
      %s89 = scalar_select %p86, %s87, %s88
      %p92 = pneg %p86
      %p93 = scmp.eq.s32.totalorder %s9, 2
      %p94 = por %p92, %p93
      %p95 = scmp.ne.s32.totalorder %s87, %s90
      %p96 = scmp.eq.s32.totalorder %s9, 0
      %p97 = por %p95, %p96
      %p98 = scmp.ne.s32.totalorder %s87, %s90
      %p99 = scmp.eq.s32.totalorder %s14, 2
      %p100 = por %p98, %p99
      %p101 = scmp.ne.s32.totalorder %s90, %s91
      %p102 = scmp.eq.s32.totalorder %s14, 0
      %p103 = por %p101, %p102
      %p104 = scmp.ne.s32.totalorder %s90, %s91
      %p105 = scmp.eq.s32.totalorder %s15, 2
      %p106 = por %p104, %p105
      %p108 = scmp.ne.s32.totalorder %s91, %s107
      %p109 = scmp.eq.s32.totalorder %s15, 0
      %p110 = por %p108, %p109
      %p111 = scmp.le.s32.totalorder 1, %s9
      %p112 = scmp.lt.s32.totalorder %s9, 4
      %p113 = pnand %p111, %p112
      %p114 = pneg %p113
      // Predicated region
      $region9: #{conv_classifier_forward.6} parent=5 // pred_check
        _
      $region10: #{conv_classifier_forward.6} parent=5 // pred_check_branch
        %116 = sbr.rel (%p113) target = $region12
      $region11: #{conv_classifier_forward.6} parent=5 // pred_region
        %s117 = ssub.s32 %s9, 1
        // Predicated region
        $region13: #{conv_classifier_forward.6} parent=11 // pred_check
          %p118 = pneg %p56
        $region14: #{conv_classifier_forward.6} parent=11 // pred_check_branch
          %120 = sbr.rel (%p118) target = $region16
        $region15: #{conv_classifier_forward.6} parent=11 // pred_region
          _
        $region16: #{conv_classifier_forward.6} parent=11 // pred_fallthru
          _
        // Predicated region
        $region17: #{conv_classifier_forward.6} parent=11 // pred_check
          %p121 = pneg %p77
        $region18: #{conv_classifier_forward.6} parent=11 // pred_check_branch
          %123 = sbr.rel (%p121) target = $region20
        $region19: #{conv_classifier_forward.6} parent=11 // pred_region
          _
        $region20: #{conv_classifier_forward.6} parent=11 // pred_fallthru
          _
      $region12: #{conv_classifier_forward.6} parent=5 // pred_fallthru
        _
      %p124 = scmp.lt.s32.totalorder %s9, 3
      // Predicated region
      $region21: #{conv_classifier_forward.6} parent=5 // pred_check
        %p125 = pneg %p124
      $region22: #{conv_classifier_forward.6} parent=5 // pred_check_branch
        %127 = sbr.rel (%p125) target = $region24
      $region23: #{conv_classifier_forward.6} parent=5 // pred_region
        // Predicated region
        $region25: #{conv_classifier_forward.6} parent=23 // pred_check
          %p128 = pneg %p29
        $region26: #{conv_classifier_forward.6} parent=23 // pred_check_branch
          %130 = sbr.rel (%p128) target = $region28
        $region27: #{conv_classifier_forward.6} parent=23 // pred_region
          %s131 = sand.u32 %s19, 1
          %s132 = sand.u32 %s19, 1
          %s133 = smul.addr %s132, 768
          %s134 = scalar_lea.vmem [#allocation2], %s133
          %s135 = smul.u32 3, %s9
          %s136 = smul.addr %s135, 4
          %s137 = scalar_lea.vmem %s0, %s136
          // Predicated region
          $region29: #{conv_classifier_forward.6} parent=27 // pred_check
            _
          $region30: #{conv_classifier_forward.6} parent=27 // pred_check_branch
            %139 = sbr.rel (0) target = $region32
          $region31: #{conv_classifier_forward.6} parent=27 // pred_region
            // Predicated region
            $region33: #{conv_classifier_forward.6} parent=31 // pred_check
              _
            $region34: #{conv_classifier_forward.6} parent=31 // pred_check_branch
              %141 = sbr.rel (0) target = $region36
            $region35: #{conv_classifier_forward.6} parent=31 // pred_region
              %s142 = scalar_lea.vmem %s137, 8
              %s143 = scalar_lea.vmem %s134, 8 [#allocation2]
              loop: start=0, step=1, limit=1
              $region37: #{conv_classifier_forward.6} parent=35 // loop_pre_header
                _
              $region38: #{conv_classifier_forward.6} parent=35 // loop_header
                %s145 = sphi 0, %s149
                %p146 = scmp.ge.s32.totalorder %s145, 1
                %s150 = sphi %s137, %s137
                %s151 = sphi %s134, %s134
              $region39: #{conv_classifier_forward.6} parent=35 // loop_header_branch
                %148 = sbr.rel (%p146) target = $region43
              $region40: #{conv_classifier_forward.6} parent=35 // loop_body
                %v152 = vld [vmem:[%s150] sm:$0xff]
                %153 = vst [vmem:[%s151] sm:$0xff] %v152
                %v154 = vld [vmem:[%s150 + $0x24] sm:$0xff]
                %155 = vst [vmem:[%s151 + $0xc] sm:$0xff] %v154
                %v156 = vld [vmem:[%s150 + $0x48] sm:$0xff]
                %157 = vst [vmem:[%s151 + $0x18] sm:$0xff] %v156
                %v158 = vld [vmem:[%s150 + $0x6c] sm:$0xff]
                %159 = vst [vmem:[%s151 + $0x24] sm:$0xff] %v158
                %v160 = vld [vmem:[%s150 + $0x90] sm:$0xff]
                %161 = vst [vmem:[%s151 + $0x30] sm:$0xff] %v160
                %v162 = vld [vmem:[%s150 + $0xb4] sm:$0xff]
                %163 = vst [vmem:[%s151 + $0x3c] sm:$0xff] %v162
                %v164 = vld [vmem:[%s150 + $0xd8] sm:$0xff]
                %165 = vst [vmem:[%s151 + $0x48] sm:$0xff] %v164
                %v166 = vld [vmem:[%s150 + $0xfc] sm:$0xff]
                %167 = vst [vmem:[%s151 + $0x54] sm:$0xff] %v166
                %v168 = vld [vmem:[%s150 + $0x120] sm:$0xff]
                %169 = vst [vmem:[%s151 + $0x60] sm:$0xff] %v168
                %v170 = vld [vmem:[%s150 + $0x144] sm:$0xff]
                %171 = vst [vmem:[%s151 + $0x6c] sm:$0xff] %v170
                %v172 = vld [vmem:[%s150 + $0x168] sm:$0xff]
                %173 = vst [vmem:[%s151 + $0x78] sm:$0xff] %v172
                %v174 = vld [vmem:[%s150 + $0x18c] sm:$0xff]
                %175 = vst [vmem:[%s151 + $0x84] sm:$0xff] %v174
                %v176 = vld [vmem:[%s150 + $0x1b0] sm:$0xff]
                %177 = vst [vmem:[%s151 + $0x90] sm:$0xff] %v176
                %v178 = vld [vmem:[%s150 + $0x1d4] sm:$0xff]
                %179 = vst [vmem:[%s151 + $0x9c] sm:$0xff] %v178
                %v180 = vld [vmem:[%s150 + $0x1f8] sm:$0xff]
                %181 = vst [vmem:[%s151 + $0xa8] sm:$0xff] %v180
                %v182 = vld [vmem:[%s150 + $0x21c] sm:$0xff]
                %183 = vst [vmem:[%s151 + $0xb4] sm:$0xff] %v182
                %v184 = vld [vmem:[%s150 + $0x240] sm:$0xff]
                %185 = vst [vmem:[%s151 + $0xc0] sm:$0xff] %v184
                %v186 = vld [vmem:[%s150 + $0x264] sm:$0xff]
                %187 = vst [vmem:[%s151 + $0xcc] sm:$0xff] %v186
                %v188 = vld [vmem:[%s150 + $0x288] sm:$0xff]
                %189 = vst [vmem:[%s151 + $0xd8] sm:$0xff] %v188
                %v190 = vld [vmem:[%s150 + $0x2ac] sm:$0xff]
                %191 = vst [vmem:[%s151 + $0xe4] sm:$0xff] %v190
                %v192 = vld [vmem:[%s150 + $0x2d0] sm:$0xff]
                %193 = vst [vmem:[%s151 + $0xf0] sm:$0xff] %v192
                %v194 = vld [vmem:[%s150 + $0x2f4] sm:$0xff]
                %195 = vst [vmem:[%s151 + $0xfc] sm:$0xff] %v194
                %v196 = vld [vmem:[%s150 + $0x318] sm:$0xff]
                %197 = vst [vmem:[%s151 + $0x108] sm:$0xff] %v196
                %v198 = vld [vmem:[%s150 + $0x33c] sm:$0xff]
                %199 = vst [vmem:[%s151 + $0x114] sm:$0xff] %v198
                %v200 = vld [vmem:[%s150 + $0x360] sm:$0xff]
                %201 = vst [vmem:[%s151 + $0x120] sm:$0xff] %v200
                %v202 = vld [vmem:[%s150 + $0x384] sm:$0xff]
                %203 = vst [vmem:[%s151 + $0x12c] sm:$0xff] %v202
                %v204 = vld [vmem:[%s150 + $0x3a8] sm:$0xff]
                %205 = vst [vmem:[%s151 + $0x138] sm:$0xff] %v204
                %v206 = vld [vmem:[%s150 + $0x3cc] sm:$0xff]
                %207 = vst [vmem:[%s151 + $0x144] sm:$0xff] %v206
                %v208 = vld [vmem:[%s150 + $0x3f0] sm:$0xff]
                %209 = vst [vmem:[%s151 + $0x150] sm:$0xff] %v208
                %v210 = vld [vmem:[%s150 + $0x414] sm:$0xff]
                %211 = vst [vmem:[%s151 + $0x15c] sm:$0xff] %v210
                %v212 = vld [vmem:[%s150 + $0x438] sm:$0xff]
                %213 = vst [vmem:[%s151 + $0x168] sm:$0xff] %v212
                %v214 = vld [vmem:[%s150 + $0x45c] sm:$0xff]
                %215 = vst [vmem:[%s151 + $0x174] sm:$0xff] %v214
                %v216 = vld [vmem:[%s150 + $0x480] sm:$0xff]
                %217 = vst [vmem:[%s151 + $0x180] sm:$0xff] %v216
                %v218 = vld [vmem:[%s150 + $0x4a4] sm:$0xff]
                %219 = vst [vmem:[%s151 + $0x18c] sm:$0xff] %v218
                %v220 = vld [vmem:[%s150 + $0x4c8] sm:$0xff]
                %221 = vst [vmem:[%s151 + $0x198] sm:$0xff] %v220
                %v222 = vld [vmem:[%s150 + $0x4ec] sm:$0xff]
                %223 = vst [vmem:[%s151 + $0x1a4] sm:$0xff] %v222
                %v224 = vld [vmem:[%s150 + $0x510] sm:$0xff]
                %225 = vst [vmem:[%s151 + $0x1b0] sm:$0xff] %v224
                %v226 = vld [vmem:[%s150 + $0x534] sm:$0xff]
                %227 = vst [vmem:[%s151 + $0x1bc] sm:$0xff] %v226
                %v228 = vld [vmem:[%s150 + $0x558] sm:$0xff]
                %229 = vst [vmem:[%s151 + $0x1c8] sm:$0xff] %v228
                %v230 = vld [vmem:[%s150 + $0x57c] sm:$0xff]
                %231 = vst [vmem:[%s151 + $0x1d4] sm:$0xff] %v230
                %v232 = vld [vmem:[%s150 + $0x5a0] sm:$0xff]
                %233 = vst [vmem:[%s151 + $0x1e0] sm:$0xff] %v232
                %v234 = vld [vmem:[%s150 + $0x5c4] sm:$0xff]
                %235 = vst [vmem:[%s151 + $0x1ec] sm:$0xff] %v234
                %v236 = vld [vmem:[%s150 + $0x5e8] sm:$0xff]
                %237 = vst [vmem:[%s151 + $0x1f8] sm:$0xff] %v236
                %v238 = vld [vmem:[%s150 + $0x60c] sm:$0xff]
                %239 = vst [vmem:[%s151 + $0x204] sm:$0xff] %v238
                %v240 = vld [vmem:[%s150 + $0x630] sm:$0xff]
                %241 = vst [vmem:[%s151 + $0x210] sm:$0xff] %v240
                %v242 = vld [vmem:[%s150 + $0x654] sm:$0xff]
                %243 = vst [vmem:[%s151 + $0x21c] sm:$0xff] %v242
                %v244 = vld [vmem:[%s150 + $0x678] sm:$0xff]
                %245 = vst [vmem:[%s151 + $0x228] sm:$0xff] %v244
                %v246 = vld [vmem:[%s150 + $0x69c] sm:$0xff]
                %247 = vst [vmem:[%s151 + $0x234] sm:$0xff] %v246
                %v248 = vld [vmem:[%s150 + $0x6c0] sm:$0xff]
                %249 = vst [vmem:[%s151 + $0x240] sm:$0xff] %v248
                %v250 = vld [vmem:[%s150 + $0x6e4] sm:$0xff]
                %251 = vst [vmem:[%s151 + $0x24c] sm:$0xff] %v250
                %v252 = vld [vmem:[%s150 + $0x708] sm:$0xff]
                %253 = vst [vmem:[%s151 + $0x258] sm:$0xff] %v252
                %v254 = vld [vmem:[%s150 + $0x72c] sm:$0xff]
                %255 = vst [vmem:[%s151 + $0x264] sm:$0xff] %v254
                %v256 = vld [vmem:[%s150 + $0x750] sm:$0xff]
                %257 = vst [vmem:[%s151 + $0x270] sm:$0xff] %v256
                %v258 = vld [vmem:[%s150 + $0x774] sm:$0xff]
                %259 = vst [vmem:[%s151 + $0x27c] sm:$0xff] %v258
                %v260 = vld [vmem:[%s150 + $0x798] sm:$0xff]
                %261 = vst [vmem:[%s151 + $0x288] sm:$0xff] %v260
                %v262 = vld [vmem:[%s150 + $0x7bc] sm:$0xff]
                %263 = vst [vmem:[%s151 + $0x294] sm:$0xff] %v262
                %v264 = vld [vmem:[%s150 + $0x7e0] sm:$0xff]
                %265 = vst [vmem:[%s151 + $0x2a0] sm:$0xff] %v264
                %v266 = vld [vmem:[%s150 + $0x804] sm:$0xff]
                %267 = vst [vmem:[%s151 + $0x2ac] sm:$0xff] %v266
                %v268 = vld [vmem:[%s150 + $0x828] sm:$0xff]
                %269 = vst [vmem:[%s151 + $0x2b8] sm:$0xff] %v268
                %v270 = vld [vmem:[%s150 + $0x84c] sm:$0xff]
                %271 = vst [vmem:[%s151 + $0x2c4] sm:$0xff] %v270
                %v272 = vld [vmem:[%s150 + $0x870] sm:$0xff]
                %273 = vst [vmem:[%s151 + $0x2d0] sm:$0xff] %v272
                %v274 = vld [vmem:[%s150 + $0x894] sm:$0xff]
                %275 = vst [vmem:[%s151 + $0x2dc] sm:$0xff] %v274
                %v276 = vld [vmem:[%s150 + $0x8b8] sm:$0xff]
                %277 = vst [vmem:[%s151 + $0x2e8] sm:$0xff] %v276
                %v278 = vld [vmem:[%s150 + $0x8dc] sm:$0xff]
                %279 = vst [vmem:[%s151 + $0x2f4] sm:$0xff] %v278
              $region41: #{conv_classifier_forward.6} parent=35 // loop_footer
                %s149 = sadd.s32 1, %s145
              $region42: #{conv_classifier_forward.6} parent=35 // loop_footer_branch
                %144 = sbr.rel target = $region38
              $region43: #{conv_classifier_forward.6} parent=35 // loop_exit
                _
              loop: start=0, step=1, limit=1
              $region44: #{conv_classifier_forward.6} parent=35 // loop_pre_header
                _
              $region45: #{conv_classifier_forward.6} parent=35 // loop_header
                %s282 = sphi 0, %s286
                %p283 = scmp.ge.s32.totalorder %s282, 1
                %s287 = sphi %s142, %s142
                %s288 = sphi %s143, %s143
              $region46: #{conv_classifier_forward.6} parent=35 // loop_header_branch
                %285 = sbr.rel (%p283) target = $region50
              $region47: #{conv_classifier_forward.6} parent=35 // loop_body
                %v289 = vld [vmem:[%s287] sm:$0xf]
                %290 = vst [vmem:[%s288] sm:$0xf] %v289
                %v291 = vld [vmem:[%s287 + $0x24] sm:$0xf]
                %292 = vst [vmem:[%s288 + $0xc] sm:$0xf] %v291
                %v293 = vld [vmem:[%s287 + $0x48] sm:$0xf]
                %294 = vst [vmem:[%s288 + $0x18] sm:$0xf] %v293
                %v295 = vld [vmem:[%s287 + $0x6c] sm:$0xf]
                %296 = vst [vmem:[%s288 + $0x24] sm:$0xf] %v295
                %v297 = vld [vmem:[%s287 + $0x90] sm:$0xf]
                %298 = vst [vmem:[%s288 + $0x30] sm:$0xf] %v297
                %v299 = vld [vmem:[%s287 + $0xb4] sm:$0xf]
                %300 = vst [vmem:[%s288 + $0x3c] sm:$0xf] %v299
                %v301 = vld [vmem:[%s287 + $0xd8] sm:$0xf]
                %302 = vst [vmem:[%s288 + $0x48] sm:$0xf] %v301
                %v303 = vld [vmem:[%s287 + $0xfc] sm:$0xf]
                %304 = vst [vmem:[%s288 + $0x54] sm:$0xf] %v303
                %v305 = vld [vmem:[%s287 + $0x120] sm:$0xf]
                %306 = vst [vmem:[%s288 + $0x60] sm:$0xf] %v305
                %v307 = vld [vmem:[%s287 + $0x144] sm:$0xf]
                %308 = vst [vmem:[%s288 + $0x6c] sm:$0xf] %v307
                %v309 = vld [vmem:[%s287 + $0x168] sm:$0xf]
                %310 = vst [vmem:[%s288 + $0x78] sm:$0xf] %v309
                %v311 = vld [vmem:[%s287 + $0x18c] sm:$0xf]
                %312 = vst [vmem:[%s288 + $0x84] sm:$0xf] %v311
                %v313 = vld [vmem:[%s287 + $0x1b0] sm:$0xf]
                %314 = vst [vmem:[%s288 + $0x90] sm:$0xf] %v313
                %v315 = vld [vmem:[%s287 + $0x1d4] sm:$0xf]
                %316 = vst [vmem:[%s288 + $0x9c] sm:$0xf] %v315
                %v317 = vld [vmem:[%s287 + $0x1f8] sm:$0xf]
                %318 = vst [vmem:[%s288 + $0xa8] sm:$0xf] %v317
                %v319 = vld [vmem:[%s287 + $0x21c] sm:$0xf]
                %320 = vst [vmem:[%s288 + $0xb4] sm:$0xf] %v319
                %v321 = vld [vmem:[%s287 + $0x240] sm:$0xf]
                %322 = vst [vmem:[%s288 + $0xc0] sm:$0xf] %v321
                %v323 = vld [vmem:[%s287 + $0x264] sm:$0xf]
                %324 = vst [vmem:[%s288 + $0xcc] sm:$0xf] %v323
                %v325 = vld [vmem:[%s287 + $0x288] sm:$0xf]
                %326 = vst [vmem:[%s288 + $0xd8] sm:$0xf] %v325
                %v327 = vld [vmem:[%s287 + $0x2ac] sm:$0xf]
                %328 = vst [vmem:[%s288 + $0xe4] sm:$0xf] %v327
                %v329 = vld [vmem:[%s287 + $0x2d0] sm:$0xf]
                %330 = vst [vmem:[%s288 + $0xf0] sm:$0xf] %v329
                %v331 = vld [vmem:[%s287 + $0x2f4] sm:$0xf]
                %332 = vst [vmem:[%s288 + $0xfc] sm:$0xf] %v331
                %v333 = vld [vmem:[%s287 + $0x318] sm:$0xf]
                %334 = vst [vmem:[%s288 + $0x108] sm:$0xf] %v333
                %v335 = vld [vmem:[%s287 + $0x33c] sm:$0xf]
                %336 = vst [vmem:[%s288 + $0x114] sm:$0xf] %v335
                %v337 = vld [vmem:[%s287 + $0x360] sm:$0xf]
                %338 = vst [vmem:[%s288 + $0x120] sm:$0xf] %v337
                %v339 = vld [vmem:[%s287 + $0x384] sm:$0xf]
                %340 = vst [vmem:[%s288 + $0x12c] sm:$0xf] %v339
                %v341 = vld [vmem:[%s287 + $0x3a8] sm:$0xf]
                %342 = vst [vmem:[%s288 + $0x138] sm:$0xf] %v341
                %v343 = vld [vmem:[%s287 + $0x3cc] sm:$0xf]
                %344 = vst [vmem:[%s288 + $0x144] sm:$0xf] %v343
                %v345 = vld [vmem:[%s287 + $0x3f0] sm:$0xf]
                %346 = vst [vmem:[%s288 + $0x150] sm:$0xf] %v345
                %v347 = vld [vmem:[%s287 + $0x414] sm:$0xf]
                %348 = vst [vmem:[%s288 + $0x15c] sm:$0xf] %v347
                %v349 = vld [vmem:[%s287 + $0x438] sm:$0xf]
                %350 = vst [vmem:[%s288 + $0x168] sm:$0xf] %v349
                %v351 = vld [vmem:[%s287 + $0x45c] sm:$0xf]
                %352 = vst [vmem:[%s288 + $0x174] sm:$0xf] %v351
                %v353 = vld [vmem:[%s287 + $0x480] sm:$0xf]
                %354 = vst [vmem:[%s288 + $0x180] sm:$0xf] %v353
                %v355 = vld [vmem:[%s287 + $0x4a4] sm:$0xf]
                %356 = vst [vmem:[%s288 + $0x18c] sm:$0xf] %v355
                %v357 = vld [vmem:[%s287 + $0x4c8] sm:$0xf]
                %358 = vst [vmem:[%s288 + $0x198] sm:$0xf] %v357
                %v359 = vld [vmem:[%s287 + $0x4ec] sm:$0xf]
                %360 = vst [vmem:[%s288 + $0x1a4] sm:$0xf] %v359
                %v361 = vld [vmem:[%s287 + $0x510] sm:$0xf]
                %362 = vst [vmem:[%s288 + $0x1b0] sm:$0xf] %v361
                %v363 = vld [vmem:[%s287 + $0x534] sm:$0xf]
                %364 = vst [vmem:[%s288 + $0x1bc] sm:$0xf] %v363
                %v365 = vld [vmem:[%s287 + $0x558] sm:$0xf]
                %366 = vst [vmem:[%s288 + $0x1c8] sm:$0xf] %v365
                %v367 = vld [vmem:[%s287 + $0x57c] sm:$0xf]
                %368 = vst [vmem:[%s288 + $0x1d4] sm:$0xf] %v367
                %v369 = vld [vmem:[%s287 + $0x5a0] sm:$0xf]
                %370 = vst [vmem:[%s288 + $0x1e0] sm:$0xf] %v369
                %v371 = vld [vmem:[%s287 + $0x5c4] sm:$0xf]
                %372 = vst [vmem:[%s288 + $0x1ec] sm:$0xf] %v371
                %v373 = vld [vmem:[%s287 + $0x5e8] sm:$0xf]
                %374 = vst [vmem:[%s288 + $0x1f8] sm:$0xf] %v373
                %v375 = vld [vmem:[%s287 + $0x60c] sm:$0xf]
                %376 = vst [vmem:[%s288 + $0x204] sm:$0xf] %v375
                %v377 = vld [vmem:[%s287 + $0x630] sm:$0xf]
                %378 = vst [vmem:[%s288 + $0x210] sm:$0xf] %v377
                %v379 = vld [vmem:[%s287 + $0x654] sm:$0xf]
                %380 = vst [vmem:[%s288 + $0x21c] sm:$0xf] %v379
                %v381 = vld [vmem:[%s287 + $0x678] sm:$0xf]
                %382 = vst [vmem:[%s288 + $0x228] sm:$0xf] %v381
                %v383 = vld [vmem:[%s287 + $0x69c] sm:$0xf]
                %384 = vst [vmem:[%s288 + $0x234] sm:$0xf] %v383
                %v385 = vld [vmem:[%s287 + $0x6c0] sm:$0xf]
                %386 = vst [vmem:[%s288 + $0x240] sm:$0xf] %v385
                %v387 = vld [vmem:[%s287 + $0x6e4] sm:$0xf]
                %388 = vst [vmem:[%s288 + $0x24c] sm:$0xf] %v387
                %v389 = vld [vmem:[%s287 + $0x708] sm:$0xf]
                %390 = vst [vmem:[%s288 + $0x258] sm:$0xf] %v389
                %v391 = vld [vmem:[%s287 + $0x72c] sm:$0xf]
                %392 = vst [vmem:[%s288 + $0x264] sm:$0xf] %v391
                %v393 = vld [vmem:[%s287 + $0x750] sm:$0xf]
                %394 = vst [vmem:[%s288 + $0x270] sm:$0xf] %v393
                %v395 = vld [vmem:[%s287 + $0x774] sm:$0xf]
                %396 = vst [vmem:[%s288 + $0x27c] sm:$0xf] %v395
                %v397 = vld [vmem:[%s287 + $0x798] sm:$0xf]
                %398 = vst [vmem:[%s288 + $0x288] sm:$0xf] %v397
                %v399 = vld [vmem:[%s287 + $0x7bc] sm:$0xf]
                %400 = vst [vmem:[%s288 + $0x294] sm:$0xf] %v399
                %v401 = vld [vmem:[%s287 + $0x7e0] sm:$0xf]
                %402 = vst [vmem:[%s288 + $0x2a0] sm:$0xf] %v401
                %v403 = vld [vmem:[%s287 + $0x804] sm:$0xf]
                %404 = vst [vmem:[%s288 + $0x2ac] sm:$0xf] %v403
                %v405 = vld [vmem:[%s287 + $0x828] sm:$0xf]
                %406 = vst [vmem:[%s288 + $0x2b8] sm:$0xf] %v405
                %v407 = vld [vmem:[%s287 + $0x84c] sm:$0xf]
                %408 = vst [vmem:[%s288 + $0x2c4] sm:$0xf] %v407
                %v409 = vld [vmem:[%s287 + $0x870] sm:$0xf]
                %410 = vst [vmem:[%s288 + $0x2d0] sm:$0xf] %v409
                %v411 = vld [vmem:[%s287 + $0x894] sm:$0xf]
                %412 = vst [vmem:[%s288 + $0x2dc] sm:$0xf] %v411
                %v413 = vld [vmem:[%s287 + $0x8b8] sm:$0xf]
                %414 = vst [vmem:[%s288 + $0x2e8] sm:$0xf] %v413
                %v415 = vld [vmem:[%s287 + $0x8dc] sm:$0xf]
                %416 = vst [vmem:[%s288 + $0x2f4] sm:$0xf] %v415
              $region48: #{conv_classifier_forward.6} parent=35 // loop_footer
                %s286 = sadd.s32 1, %s282
              $region49: #{conv_classifier_forward.6} parent=35 // loop_footer_branch
                %281 = sbr.rel target = $region45
              $region50: #{conv_classifier_forward.6} parent=35 // loop_exit
                _
            $region36: #{conv_classifier_forward.6} parent=31 // pred_fallthru
              _
          $region32: #{conv_classifier_forward.6} parent=27 // pred_fallthru
            _
          %417 = vnop
        $region28: #{conv_classifier_forward.6} parent=23 // pred_fallthru
          _
      $region24: #{conv_classifier_forward.6} parent=5 // pred_fallthru
        _
      %p418 = scmp.le.s32.totalorder 1, %s9
      %p419 = scmp.lt.s32.totalorder %s9, 4
      %p420 = pnand %p418, %p419
      %p421 = pneg %p420
      // Predicated region
      $region51: #{conv_classifier_forward.6} parent=5 // pred_check
        _
      $region52: #{conv_classifier_forward.6} parent=5 // pred_check_branch
        %423 = sbr.rel (%p420) target = $region54
      $region53: #{conv_classifier_forward.6} parent=5 // pred_region
        %s424 = ssub.s32 %s9, 1
        %s425 = sand.u32 %s22, 1
        %s426 = sand.u32 %s22, 1
        %s427 = smul.addr %s426, 768
        %s428 = scalar_lea.vmem [#allocation2], %s427
        // Predicated region
        $region55: #{conv_classifier_forward.6} parent=53 // pred_check
          %p429 = pneg %p35
        $region56: #{conv_classifier_forward.6} parent=53 // pred_check_branch
          %431 = sbr.rel (%p429) target = $region58
        $region57: #{conv_classifier_forward.6} parent=53 // pred_region
          _
        $region58: #{conv_classifier_forward.6} parent=53 // pred_fallthru
          _
        %s432 = sand.u32 %s22, 1
        %s433 = sand.u32 %s22, 1
        %s434 = smul.addr %s433, 768
        %s435 = scalar_lea.vmem [#allocation2], %s434
        %p436 = pneg %p35
        %p437 = pneg %p32
        %p438 = pneg %p56
        %p439 = pneg %p53
        %p440 = pneg %p77
        %p441 = pneg %p74
        %p442 = pneg %p103
        %p443 = pneg %p100
        %s444 = sand.u32 %s90, 1
        %s445 = sand.u32 %s90, 1
        %s446 = smul.addr %s445, 48
        %s447 = scalar_lea.vmem [#allocation3], %s446
        %s448 = smul.u32 3, %s14
        %s449 = smul.u32 3, %s14
        %v451 = vld [vmem:[%s1] sm:$0xf]
        %v452 = vld [vmem:[%s1 + $0x4] sm:$0xf]
        %v453 = vld [vmem:[%s2] sm:$0xff]
        %v454 = vld [vmem:[%s2 + $0x8] sm:$0xff]
        %v455 = vld [vmem:[%s428] sm:$0xff]
        %v456 = vld [vmem:[%s428 + $0x8] sm:$0xf]
        %v457 = vld [vmem:[%s428 + $0xc] sm:$0xff]
        %v458 = vld [vmem:[%s428 + $0x14] sm:$0xf]
        %v459 = vld [vmem:[%s428 + $0x18] sm:$0xff]
        %v460 = vld [vmem:[%s428 + $0x20] sm:$0xf]
        %v461 = vld [vmem:[%s428 + $0x24] sm:$0xff]
        %v462 = vld [vmem:[%s428 + $0x2c] sm:$0xf]
        %v463 = vld [vmem:[%s428 + $0x30] sm:$0xff]
        %v464 = vld [vmem:[%s428 + $0x38] sm:$0xf]
        %v465 = vld [vmem:[%s428 + $0x3c] sm:$0xff]
        %v466 = vld [vmem:[%s428 + $0x44] sm:$0xf]
        %v467 = vld [vmem:[%s428 + $0x48] sm:$0xff]
        %v468 = vld [vmem:[%s428 + $0x50] sm:$0xf]
        %v469 = vld [vmem:[%s428 + $0x54] sm:$0xff]
        %v470 = vld [vmem:[%s428 + $0x5c] sm:$0xf]
        %v471 = vld [vmem:[%s428 + $0x60] sm:$0xff]
        %v472 = vld [vmem:[%s428 + $0x68] sm:$0xf]
        %v473 = vld [vmem:[%s428 + $0x6c] sm:$0xff]
        %v474 = vld [vmem:[%s428 + $0x74] sm:$0xf]
        %v475 = vld [vmem:[%s428 + $0x78] sm:$0xff]
        %v476 = vld [vmem:[%s428 + $0x80] sm:$0xf]
        %v477 = vld [vmem:[%s428 + $0x84] sm:$0xff]
        %v478 = vld [vmem:[%s428 + $0x8c] sm:$0xf]
        %v479 = vld [vmem:[%s428 + $0x90] sm:$0xff]
        %v480 = vld [vmem:[%s428 + $0x98] sm:$0xf]
        %v481 = vld [vmem:[%s428 + $0x9c] sm:$0xff]
        %v482 = vld [vmem:[%s428 + $0xa4] sm:$0xf]
        %v483 = vld [vmem:[%s428 + $0xa8] sm:$0xff]
        %v484 = vld [vmem:[%s428 + $0xb0] sm:$0xf]
        %v485 = vld [vmem:[%s428 + $0xb4] sm:$0xff]
        %v486 = vld [vmem:[%s428 + $0xbc] sm:$0xf]
        %488 = vset.pattern.permute.xlu0 0
        %489 = vperm.xlu0 %488, %v453
        %v490 = vpop.permute.xlu0 %489
        %493 = vset.pattern.permute.xlu0 0
        %494 = vperm.xlu0 %493, %v454
        %v495 = vpop.permute.xlu0 %494
        %v499 = vunpack.c.l.b16 %v451
        %v500 = vunpack.c.l.b16 %v452
        %v501 = vpack.c.b16 %v500, %v499
        %v535 = vunpack.c.l.b16 %v455
        %v536 = vunpack.c.h.b16 %v455
        %v537 = vunpack.c.l.b16 %v456
        %v538 = vunpack.c.l.b16 %v457
        %v539 = vunpack.c.h.b16 %v457
        %v540 = vunpack.c.l.b16 %v458
        %v541 = vunpack.c.l.b16 %v459
        %v542 = vunpack.c.h.b16 %v459
        %v543 = vunpack.c.l.b16 %v460
        %v544 = vunpack.c.l.b16 %v461
        %v545 = vunpack.c.h.b16 %v461
        %v546 = vunpack.c.l.b16 %v462
        %v547 = vunpack.c.l.b16 %v463
        %v548 = vunpack.c.h.b16 %v463
        %v549 = vunpack.c.l.b16 %v464
        %v550 = vunpack.c.l.b16 %v465
        %v551 = vunpack.c.h.b16 %v465
        %v552 = vunpack.c.l.b16 %v466
        %v553 = vunpack.c.l.b16 %v467
        %v554 = vunpack.c.h.b16 %v467
        %v555 = vunpack.c.l.b16 %v468
        %v556 = vunpack.c.l.b16 %v469
        %v557 = vunpack.c.h.b16 %v469
        %v558 = vunpack.c.l.b16 %v470
        %v559 = vunpack.c.l.b16 %v471
        %v560 = vunpack.c.h.b16 %v471
        %v561 = vunpack.c.l.b16 %v472
        %v562 = vunpack.c.l.b16 %v473
        %v563 = vunpack.c.h.b16 %v473
        %v564 = vunpack.c.l.b16 %v474
        %v565 = vunpack.c.l.b16 %v475
        %v566 = vunpack.c.h.b16 %v475
        %v567 = vunpack.c.l.b16 %v476
        %v568 = vunpack.c.l.b16 %v477
        %v569 = vunpack.c.h.b16 %v477
        %v570 = vunpack.c.l.b16 %v478
        %v571 = vunpack.c.l.b16 %v479
        %v572 = vunpack.c.h.b16 %v479
        %v573 = vunpack.c.l.b16 %v480
        %v574 = vunpack.c.l.b16 %v481
        %v575 = vunpack.c.h.b16 %v481
        %v576 = vunpack.c.l.b16 %v482
        %v577 = vunpack.c.l.b16 %v483
        %v578 = vunpack.c.h.b16 %v483
        %v579 = vunpack.c.l.b16 %v484
        %v580 = vunpack.c.l.b16 %v485
        %v581 = vunpack.c.h.b16 %v485
        %v582 = vunpack.c.l.b16 %v486
        %v583 = vpack.c.b16 %v538, %v535
        %v584 = vpack.c.b16 %v539, %v536
        %v585 = vpack.c.b16 %v540, %v537
        %v586 = vpack.c.b16 %v544, %v541
        %v587 = vpack.c.b16 %v545, %v542
        %v588 = vpack.c.b16 %v546, %v543
        %v589 = vpack.c.b16 %v550, %v547
        %v590 = vpack.c.b16 %v551, %v548
        %v591 = vpack.c.b16 %v552, %v549
        %v592 = vpack.c.b16 %v556, %v553
        %v593 = vpack.c.b16 %v557, %v554
        %v594 = vpack.c.b16 %v558, %v555
        %v595 = vpack.c.b16 %v562, %v559
        %v596 = vpack.c.b16 %v563, %v560
        %v597 = vpack.c.b16 %v564, %v561
        %v598 = vpack.c.b16 %v568, %v565
        %v599 = vpack.c.b16 %v569, %v566
        %v600 = vpack.c.b16 %v570, %v567
        %v601 = vpack.c.b16 %v574, %v571
        %v602 = vpack.c.b16 %v575, %v572
        %v603 = vpack.c.b16 %v576, %v573
        %v604 = vpack.c.b16 %v580, %v577
        %v605 = vpack.c.b16 %v581, %v578
        %v606 = vpack.c.b16 %v582, %v579
        %631 = vmatprep.subr.bf16.mxu0 %v584
        %632 = vmatpush1.bf16.msra.mxu0 %v583
        %633 = vmatprep.subr.bf16.mxu0 %v587
        %634 = vmatpush1.bf16.msra.mxu0 %v586
        %635 = vmatprep.subr.bf16.mxu0 %v590
        %636 = vmatpush1.bf16.msra.mxu0 %v589
        %637 = vmatprep.subr.bf16.mxu0 %v593
        %638 = vmatpush1.bf16.msra.mxu0 %v592
        %639 = vmatprep.subr.bf16.mxu0 %v596
        %640 = vmatpush1.bf16.msra.mxu0 %v595
        %641 = vmatprep.subr.bf16.mxu0 %v599
        %642 = vmatpush1.bf16.msra.mxu0 %v598
        %643 = vmatprep.subr.bf16.mxu0 %v602
        %644 = vmatpush1.bf16.msra.mxu0 %v601
        %645 = vmatprep.subr.bf16.mxu0 %v605
        %646 = vmatpush1.bf16.msra.mxu0 %v604
        %647 = vmatprep.subr.bf16.mxu0 0
        %648 = vmatpush1.bf16.msra.mxu0 0
        %649 = vmatprep.subr.bf16.mxu0 0
        %650 = vmatpush1.bf16.msra.mxu0 0
        %651 = vmatprep.subr.bf16.mxu0 0
        %652 = vmatpush1.bf16.msra.mxu0 0
        %653 = vmatprep.subr.bf16.mxu0 0
        %654 = vmatpush1.bf16.msra.mxu0 0
        %655 = vmatprep.subr.bf16.mxu0 0
        %656 = vmatpush1.bf16.msra.mxu0 0
        %657 = vmatprep.subr.bf16.mxu0 0
        %658 = vmatpush1.bf16.msra.mxu0 0
        %659 = vmatprep.subr.bf16.mxu0 0
        %660 = vmatpush1.bf16.msra.mxu0 0
        %661 = vmatprep.subr.bf16.mxu0 0
        %662 = vmatpush1.bf16.msra.mxu0 0
        %663 = vmatprep.mubr.bf16.mxu0 0
        %664 = vmatmul.mubr.bf16.gmra.mrb[0].mxu0 %v501
        %v665 = vpop.f32.mrb[0].mxu0
        %v666 = vadd.f32 %v490, %v665
        %v667 = vpop.f32.mrb[0].mxu0
        %v668 = vadd.f32 %v490, %v667
        %v669 = vpop.f32.mrb[0].mxu0
        %v670 = vadd.f32 %v495, %v669
        %v671 = vpop.f32.mrb[0].mxu0
        %v672 = vadd.f32 %v495, %v671
        %673 = vdwg.mxu0
        %674 = vmatprep.subr.bf16.mxu0 0
        %675 = vmatpush1.bf16.msra.mxu0 %v585
        %676 = vmatprep.subr.bf16.mxu0 0
        %677 = vmatpush1.bf16.msra.mxu0 %v588
        %678 = vmatprep.subr.bf16.mxu0 0
        %679 = vmatpush1.bf16.msra.mxu0 %v591
        %680 = vmatprep.subr.bf16.mxu0 0
        %681 = vmatpush1.bf16.msra.mxu0 %v594
        %682 = vmatprep.subr.bf16.mxu0 0
        %683 = vmatpush1.bf16.msra.mxu0 %v597
        %684 = vmatprep.subr.bf16.mxu0 0
        %685 = vmatpush1.bf16.msra.mxu0 %v600
        %686 = vmatprep.subr.bf16.mxu0 0
        %687 = vmatpush1.bf16.msra.mxu0 %v603
        %688 = vmatprep.subr.bf16.mxu0 0
        %689 = vmatpush1.bf16.msra.mxu0 %v606
        %690 = vmatprep.subr.bf16.mxu0 0
        %691 = vmatpush1.bf16.msra.mxu0 0
        %692 = vmatprep.subr.bf16.mxu0 0
        %693 = vmatpush1.bf16.msra.mxu0 0
        %694 = vmatprep.subr.bf16.mxu0 0
        %695 = vmatpush1.bf16.msra.mxu0 0
        %696 = vmatprep.subr.bf16.mxu0 0
        %697 = vmatpush1.bf16.msra.mxu0 0
        %698 = vmatprep.subr.bf16.mxu0 0
        %699 = vmatpush1.bf16.msra.mxu0 0
        %700 = vmatprep.subr.bf16.mxu0 0
        %701 = vmatpush1.bf16.msra.mxu0 0
        %702 = vmatprep.subr.bf16.mxu0 0
        %703 = vmatpush1.bf16.msra.mxu0 0
        %704 = vmatprep.subr.bf16.mxu0 0
        %705 = vmatpush1.bf16.msra.mxu0 0
        %706 = vmatprep.mubr.bf16.mxu0 0
        %707 = vmatmul.mubr.bf16.gmra.mrb[0].mxu0 %v501
        %v708 = vpop.f32.mrb[0].mxu0
        %v709 = vadd.f32 %v490, %v708
        %v710 = vpop.f32.mrb[0].mxu0
        %v711 = vpop.f32.mrb[0].mxu0
        %v712 = vadd.f32 %v495, %v711
        %v713 = vpop.f32.mrb[0].mxu0
        %714 = vdwg.mxu0
        %v715 = vmax.f32 %v666, 0.0
        %v716 = vmax.f32 %v668, 0.0
        %v717 = vmax.f32 %v709, 0.0
        %v718 = vmax.f32 %v670, 0.0
        %v719 = vmax.f32 %v672, 0.0
        %v720 = vmax.f32 %v712, 0.0
        %s721 = scalar_lea.vmem %s428, 192 [#allocation2]
        %v722 = vld [vmem:[%s721] sm:$0xff]
        %v723 = vld [vmem:[%s721 + $0x8] sm:$0xf]
        %v724 = vld [vmem:[%s721 + $0xc] sm:$0xff]
        %v725 = vld [vmem:[%s721 + $0x14] sm:$0xf]
        %v726 = vld [vmem:[%s721 + $0x18] sm:$0xff]
        %v727 = vld [vmem:[%s721 + $0x20] sm:$0xf]
        %v728 = vld [vmem:[%s721 + $0x24] sm:$0xff]
        %v729 = vld [vmem:[%s721 + $0x2c] sm:$0xf]
        %v730 = vld [vmem:[%s721 + $0x30] sm:$0xff]
        %v731 = vld [vmem:[%s721 + $0x38] sm:$0xf]
        %v732 = vld [vmem:[%s721 + $0x3c] sm:$0xff]
        %v733 = vld [vmem:[%s721 + $0x44] sm:$0xf]
        %v734 = vld [vmem:[%s721 + $0x48] sm:$0xff]
        %v735 = vld [vmem:[%s721 + $0x50] sm:$0xf]
        %v736 = vld [vmem:[%s721 + $0x54] sm:$0xff]
        %v737 = vld [vmem:[%s721 + $0x5c] sm:$0xf]
        %v738 = vld [vmem:[%s721 + $0x60] sm:$0xff]
        %v739 = vld [vmem:[%s721 + $0x68] sm:$0xf]
        %v740 = vld [vmem:[%s721 + $0x6c] sm:$0xff]
        %v741 = vld [vmem:[%s721 + $0x74] sm:$0xf]
        %v742 = vld [vmem:[%s721 + $0x78] sm:$0xff]
        %v743 = vld [vmem:[%s721 + $0x80] sm:$0xf]
        %v744 = vld [vmem:[%s721 + $0x84] sm:$0xff]
        %v745 = vld [vmem:[%s721 + $0x8c] sm:$0xf]
        %v746 = vld [vmem:[%s721 + $0x90] sm:$0xff]
        %v747 = vld [vmem:[%s721 + $0x98] sm:$0xf]
        %v748 = vld [vmem:[%s721 + $0x9c] sm:$0xff]
        %v749 = vld [vmem:[%s721 + $0xa4] sm:$0xf]
        %v750 = vld [vmem:[%s721 + $0xa8] sm:$0xff]
        %v751 = vld [vmem:[%s721 + $0xb0] sm:$0xf]
        %v752 = vld [vmem:[%s721 + $0xb4] sm:$0xff]
        %v753 = vld [vmem:[%s721 + $0xbc] sm:$0xf]
        %v786 = vunpack.c.l.b16 %v722
        %v787 = vunpack.c.h.b16 %v722
        %v788 = vunpack.c.l.b16 %v723
        %v789 = vunpack.c.l.b16 %v724
        %v790 = vunpack.c.h.b16 %v724
        %v791 = vunpack.c.l.b16 %v725
        %v792 = vunpack.c.l.b16 %v726
        %v793 = vunpack.c.h.b16 %v726
        %v794 = vunpack.c.l.b16 %v727
        %v795 = vunpack.c.l.b16 %v728
        %v796 = vunpack.c.h.b16 %v728
        %v797 = vunpack.c.l.b16 %v729
        %v798 = vunpack.c.l.b16 %v730
        %v799 = vunpack.c.h.b16 %v730
        %v800 = vunpack.c.l.b16 %v731
        %v801 = vunpack.c.l.b16 %v732
        %v802 = vunpack.c.h.b16 %v732
        %v803 = vunpack.c.l.b16 %v733
        %v804 = vunpack.c.l.b16 %v734
        %v805 = vunpack.c.h.b16 %v734
        %v806 = vunpack.c.l.b16 %v735
        %v807 = vunpack.c.l.b16 %v736
        %v808 = vunpack.c.h.b16 %v736
        %v809 = vunpack.c.l.b16 %v737
        %v810 = vunpack.c.l.b16 %v738
        %v811 = vunpack.c.h.b16 %v738
        %v812 = vunpack.c.l.b16 %v739
        %v813 = vunpack.c.l.b16 %v740
        %v814 = vunpack.c.h.b16 %v740
        %v815 = vunpack.c.l.b16 %v741
        %v816 = vunpack.c.l.b16 %v742
        %v817 = vunpack.c.h.b16 %v742
        %v818 = vunpack.c.l.b16 %v743
        %v819 = vunpack.c.l.b16 %v744
        %v820 = vunpack.c.h.b16 %v744
        %v821 = vunpack.c.l.b16 %v745
        %v822 = vunpack.c.l.b16 %v746
        %v823 = vunpack.c.h.b16 %v746
        %v824 = vunpack.c.l.b16 %v747
        %v825 = vunpack.c.l.b16 %v748
        %v826 = vunpack.c.h.b16 %v748
        %v827 = vunpack.c.l.b16 %v749
        %v828 = vunpack.c.l.b16 %v750
        %v829 = vunpack.c.h.b16 %v750
        %v830 = vunpack.c.l.b16 %v751
        %v831 = vunpack.c.l.b16 %v752
        %v832 = vunpack.c.h.b16 %v752
        %v833 = vunpack.c.l.b16 %v753
        %v834 = vpack.c.b16 %v789, %v786
        %v835 = vpack.c.b16 %v790, %v787
        %v836 = vpack.c.b16 %v791, %v788
        %v837 = vpack.c.b16 %v795, %v792
        %v838 = vpack.c.b16 %v796, %v793
        %v839 = vpack.c.b16 %v797, %v794
        %v840 = vpack.c.b16 %v801, %v798
        %v841 = vpack.c.b16 %v802, %v799
        %v842 = vpack.c.b16 %v803, %v800
        %v843 = vpack.c.b16 %v807, %v804
        %v844 = vpack.c.b16 %v808, %v805
        %v845 = vpack.c.b16 %v809, %v806
        %v846 = vpack.c.b16 %v813, %v810
        %v847 = vpack.c.b16 %v814, %v811
        %v848 = vpack.c.b16 %v815, %v812
        %v849 = vpack.c.b16 %v819, %v816
        %v850 = vpack.c.b16 %v820, %v817
        %v851 = vpack.c.b16 %v821, %v818
        %v852 = vpack.c.b16 %v825, %v822
        %v853 = vpack.c.b16 %v826, %v823
        %v854 = vpack.c.b16 %v827, %v824
        %v855 = vpack.c.b16 %v831, %v828
        %v856 = vpack.c.b16 %v832, %v829
        %v857 = vpack.c.b16 %v833, %v830
        %882 = vmatprep.subr.bf16.mxu0 %v835
        %883 = vmatpush1.bf16.msra.mxu0 %v834
        %884 = vmatprep.subr.bf16.mxu0 %v838
        %885 = vmatpush1.bf16.msra.mxu0 %v837
        %886 = vmatprep.subr.bf16.mxu0 %v841
        %887 = vmatpush1.bf16.msra.mxu0 %v840
        %888 = vmatprep.subr.bf16.mxu0 %v844
        %889 = vmatpush1.bf16.msra.mxu0 %v843
        %890 = vmatprep.subr.bf16.mxu0 %v847
        %891 = vmatpush1.bf16.msra.mxu0 %v846
        %892 = vmatprep.subr.bf16.mxu0 %v850
        %893 = vmatpush1.bf16.msra.mxu0 %v849
        %894 = vmatprep.subr.bf16.mxu0 %v853
        %895 = vmatpush1.bf16.msra.mxu0 %v852
        %896 = vmatprep.subr.bf16.mxu0 %v856
        %897 = vmatpush1.bf16.msra.mxu0 %v855
        %898 = vmatprep.subr.bf16.mxu0 0
        %899 = vmatpush1.bf16.msra.mxu0 0
        %900 = vmatprep.subr.bf16.mxu0 0
        %901 = vmatpush1.bf16.msra.mxu0 0
        %902 = vmatprep.subr.bf16.mxu0 0
        %903 = vmatpush1.bf16.msra.mxu0 0
        %904 = vmatprep.subr.bf16.mxu0 0
        %905 = vmatpush1.bf16.msra.mxu0 0
        %906 = vmatprep.subr.bf16.mxu0 0
        %907 = vmatpush1.bf16.msra.mxu0 0
        %908 = vmatprep.subr.bf16.mxu0 0
        %909 = vmatpush1.bf16.msra.mxu0 0
        %910 = vmatprep.subr.bf16.mxu0 0
        %911 = vmatpush1.bf16.msra.mxu0 0
        %912 = vmatprep.subr.bf16.mxu0 0
        %913 = vmatpush1.bf16.msra.mxu0 0
        %914 = vmatprep.mubr.bf16.mxu0 0
        %915 = vmatmul.mubr.bf16.gmra.mrb[0].mxu0 %v501
        %v916 = vpop.f32.mrb[0].mxu0
        %v917 = vadd.f32 %v490, %v916
        %v918 = vpop.f32.mrb[0].mxu0
        %v919 = vadd.f32 %v490, %v918
        %v920 = vpop.f32.mrb[0].mxu0
        %v921 = vadd.f32 %v495, %v920
        %v922 = vpop.f32.mrb[0].mxu0
        %v923 = vadd.f32 %v495, %v922
        %924 = vdwg.mxu0
        %925 = vmatprep.subr.bf16.mxu0 0
        %926 = vmatpush1.bf16.msra.mxu0 %v836
        %927 = vmatprep.subr.bf16.mxu0 0
        %928 = vmatpush1.bf16.msra.mxu0 %v839
        %929 = vmatprep.subr.bf16.mxu0 0
        %930 = vmatpush1.bf16.msra.mxu0 %v842
        %931 = vmatprep.subr.bf16.mxu0 0
        %932 = vmatpush1.bf16.msra.mxu0 %v845
        %933 = vmatprep.subr.bf16.mxu0 0
        %934 = vmatpush1.bf16.msra.mxu0 %v848
        %935 = vmatprep.subr.bf16.mxu0 0
        %936 = vmatpush1.bf16.msra.mxu0 %v851
        %937 = vmatprep.subr.bf16.mxu0 0
        %938 = vmatpush1.bf16.msra.mxu0 %v854
        %939 = vmatprep.subr.bf16.mxu0 0
        %940 = vmatpush1.bf16.msra.mxu0 %v857
        %941 = vmatprep.subr.bf16.mxu0 0
        %942 = vmatpush1.bf16.msra.mxu0 0
        %943 = vmatprep.subr.bf16.mxu0 0
        %944 = vmatpush1.bf16.msra.mxu0 0
        %945 = vmatprep.subr.bf16.mxu0 0
        %946 = vmatpush1.bf16.msra.mxu0 0
        %947 = vmatprep.subr.bf16.mxu0 0
        %948 = vmatpush1.bf16.msra.mxu0 0
        %949 = vmatprep.subr.bf16.mxu0 0
        %950 = vmatpush1.bf16.msra.mxu0 0
        %951 = vmatprep.subr.bf16.mxu0 0
        %952 = vmatpush1.bf16.msra.mxu0 0
        %953 = vmatprep.subr.bf16.mxu0 0
        %954 = vmatpush1.bf16.msra.mxu0 0
        %955 = vmatprep.subr.bf16.mxu0 0
        %956 = vmatpush1.bf16.msra.mxu0 0
        %957 = vmatprep.mubr.bf16.mxu0 0
        %958 = vmatmul.mubr.bf16.gmra.mrb[0].mxu0 %v501
        %v959 = vpop.f32.mrb[0].mxu0
        %v960 = vadd.f32 %v490, %v959
        %v961 = vpop.f32.mrb[0].mxu0
        %v962 = vpop.f32.mrb[0].mxu0
        %v963 = vadd.f32 %v495, %v962
        %v964 = vpop.f32.mrb[0].mxu0
        %965 = vdwg.mxu0
        %v966 = vmax.f32 %v917, 0.0
        %v967 = vmax.f32 %v919, 0.0
        %v968 = vmax.f32 %v960, 0.0
        %v969 = vmax.f32 %v921, 0.0
        %v970 = vmax.f32 %v923, 0.0
        %v971 = vmax.f32 %v963, 0.0
        %v972 = vmax.f32 %v715, %v966
        %v973 = vmax.f32 %v716, %v967
        %v974 = vmax.f32 %v717, %v968
        %v975 = vmax.f32 %v718, %v969
        %v976 = vmax.f32 %v719, %v970
        %v977 = vmax.f32 %v720, %v971
        %s978 = scalar_lea.vmem %s428, 384 [#allocation2]
        %v979 = vld [vmem:[%s978] sm:$0xff]
        %v980 = vld [vmem:[%s978 + $0x8] sm:$0xf]
        %v981 = vld [vmem:[%s978 + $0xc] sm:$0xff]
        %v982 = vld [vmem:[%s978 + $0x14] sm:$0xf]
        %v983 = vld [vmem:[%s978 + $0x18] sm:$0xff]
        %v984 = vld [vmem:[%s978 + $0x20] sm:$0xf]
        %v985 = vld [vmem:[%s978 + $0x24] sm:$0xff]
        %v986 = vld [vmem:[%s978 + $0x2c] sm:$0xf]
        %v987 = vld [vmem:[%s978 + $0x30] sm:$0xff]
        %v988 = vld [vmem:[%s978 + $0x38] sm:$0xf]
        %v989 = vld [vmem:[%s978 + $0x3c] sm:$0xff]
        %v990 = vld [vmem:[%s978 + $0x44] sm:$0xf]
        %v991 = vld [vmem:[%s978 + $0x48] sm:$0xff]
        %v992 = vld [vmem:[%s978 + $0x50] sm:$0xf]
        %v993 = vld [vmem:[%s978 + $0x54] sm:$0xff]
        %v994 = vld [vmem:[%s978 + $0x5c] sm:$0xf]
        %v995 = vld [vmem:[%s978 + $0x60] sm:$0xff]
        %v996 = vld [vmem:[%s978 + $0x68] sm:$0xf]
        %v997 = vld [vmem:[%s978 + $0x6c] sm:$0xff]
        %v998 = vld [vmem:[%s978 + $0x74] sm:$0xf]
        %v999 = vld [vmem:[%s978 + $0x78] sm:$0xff]
        %v1000 = vld [vmem:[%s978 + $0x80] sm:$0xf]
        %v1001 = vld [vmem:[%s978 + $0x84] sm:$0xff]
        %v1002 = vld [vmem:[%s978 + $0x8c] sm:$0xf]
        %v1003 = vld [vmem:[%s978 + $0x90] sm:$0xff]
        %v1004 = vld [vmem:[%s978 + $0x98] sm:$0xf]
        %v1005 = vld [vmem:[%s978 + $0x9c] sm:$0xff]
        %v1006 = vld [vmem:[%s978 + $0xa4] sm:$0xf]
        %v1007 = vld [vmem:[%s978 + $0xa8] sm:$0xff]
        %v1008 = vld [vmem:[%s978 + $0xb0] sm:$0xf]
        %v1009 = vld [vmem:[%s978 + $0xb4] sm:$0xff]
        %v1010 = vld [vmem:[%s978 + $0xbc] sm:$0xf]
        %v1043 = vunpack.c.l.b16 %v979
        %v1044 = vunpack.c.h.b16 %v979
        %v1045 = vunpack.c.l.b16 %v980
        %v1046 = vunpack.c.l.b16 %v981
        %v1047 = vunpack.c.h.b16 %v981
        %v1048 = vunpack.c.l.b16 %v982
        %v1049 = vunpack.c.l.b16 %v983
        %v1050 = vunpack.c.h.b16 %v983
        %v1051 = vunpack.c.l.b16 %v984
        %v1052 = vunpack.c.l.b16 %v985
        %v1053 = vunpack.c.h.b16 %v985
        %v1054 = vunpack.c.l.b16 %v986
        %v1055 = vunpack.c.l.b16 %v987
        %v1056 = vunpack.c.h.b16 %v987
        %v1057 = vunpack.c.l.b16 %v988
        %v1058 = vunpack.c.l.b16 %v989
        %v1059 = vunpack.c.h.b16 %v989
        %v1060 = vunpack.c.l.b16 %v990
        %v1061 = vunpack.c.l.b16 %v991
        %v1062 = vunpack.c.h.b16 %v991
        %v1063 = vunpack.c.l.b16 %v992
        %v1064 = vunpack.c.l.b16 %v993
        %v1065 = vunpack.c.h.b16 %v993
        %v1066 = vunpack.c.l.b16 %v994
        %v1067 = vunpack.c.l.b16 %v995
        %v1068 = vunpack.c.h.b16 %v995
        %v1069 = vunpack.c.l.b16 %v996
        %v1070 = vunpack.c.l.b16 %v997
        %v1071 = vunpack.c.h.b16 %v997
        %v1072 = vunpack.c.l.b16 %v998
        %v1073 = vunpack.c.l.b16 %v999
        %v1074 = vunpack.c.h.b16 %v999
        %v1075 = vunpack.c.l.b16 %v1000
        %v1076 = vunpack.c.l.b16 %v1001
        %v1077 = vunpack.c.h.b16 %v1001
        %v1078 = vunpack.c.l.b16 %v1002
        %v1079 = vunpack.c.l.b16 %v1003
        %v1080 = vunpack.c.h.b16 %v1003
        %v1081 = vunpack.c.l.b16 %v1004
        %v1082 = vunpack.c.l.b16 %v1005
        %v1083 = vunpack.c.h.b16 %v1005
        %v1084 = vunpack.c.l.b16 %v1006
        %v1085 = vunpack.c.l.b16 %v1007
        %v1086 = vunpack.c.h.b16 %v1007
        %v1087 = vunpack.c.l.b16 %v1008
        %v1088 = vunpack.c.l.b16 %v1009
        %v1089 = vunpack.c.h.b16 %v1009
        %v1090 = vunpack.c.l.b16 %v1010
        %v1091 = vpack.c.b16 %v1046, %v1043
        %v1092 = vpack.c.b16 %v1047, %v1044
        %v1093 = vpack.c.b16 %v1048, %v1045
        %v1094 = vpack.c.b16 %v1052, %v1049
        %v1095 = vpack.c.b16 %v1053, %v1050
        %v1096 = vpack.c.b16 %v1054, %v1051
        %v1097 = vpack.c.b16 %v1058, %v1055
        %v1098 = vpack.c.b16 %v1059, %v1056
        %v1099 = vpack.c.b16 %v1060, %v1057
        %v1100 = vpack.c.b16 %v1064, %v1061
        %v1101 = vpack.c.b16 %v1065, %v1062
        %v1102 = vpack.c.b16 %v1066, %v1063
        %v1103 = vpack.c.b16 %v1070, %v1067
        %v1104 = vpack.c.b16 %v1071, %v1068
        %v1105 = vpack.c.b16 %v1072, %v1069
        %v1106 = vpack.c.b16 %v1076, %v1073
        %v1107 = vpack.c.b16 %v1077, %v1074
        %v1108 = vpack.c.b16 %v1078, %v1075
        %v1109 = vpack.c.b16 %v1082, %v1079
        %v1110 = vpack.c.b16 %v1083, %v1080
        %v1111 = vpack.c.b16 %v1084, %v1081
        %v1112 = vpack.c.b16 %v1088, %v1085
        %v1113 = vpack.c.b16 %v1089, %v1086
        %v1114 = vpack.c.b16 %v1090, %v1087
        %1139 = vmatprep.subr.bf16.mxu0 %v1092
        %1140 = vmatpush1.bf16.msra.mxu0 %v1091
        %1141 = vmatprep.subr.bf16.mxu0 %v1095
        %1142 = vmatpush1.bf16.msra.mxu0 %v1094
        %1143 = vmatprep.subr.bf16.mxu0 %v1098
        %1144 = vmatpush1.bf16.msra.mxu0 %v1097
        %1145 = vmatprep.subr.bf16.mxu0 %v1101
        %1146 = vmatpush1.bf16.msra.mxu0 %v1100
        %1147 = vmatprep.subr.bf16.mxu0 %v1104
        %1148 = vmatpush1.bf16.msra.mxu0 %v1103
        %1149 = vmatprep.subr.bf16.mxu0 %v1107
        %1150 = vmatpush1.bf16.msra.mxu0 %v1106
        %1151 = vmatprep.subr.bf16.mxu0 %v1110
        %1152 = vmatpush1.bf16.msra.mxu0 %v1109
        %1153 = vmatprep.subr.bf16.mxu0 %v1113
        %1154 = vmatpush1.bf16.msra.mxu0 %v1112
        %1155 = vmatprep.subr.bf16.mxu0 0
        %1156 = vmatpush1.bf16.msra.mxu0 0
        %1157 = vmatprep.subr.bf16.mxu0 0
        %1158 = vmatpush1.bf16.msra.mxu0 0
        %1159 = vmatprep.subr.bf16.mxu0 0
        %1160 = vmatpush1.bf16.msra.mxu0 0
        %1161 = vmatprep.subr.bf16.mxu0 0
        %1162 = vmatpush1.bf16.msra.mxu0 0
        %1163 = vmatprep.subr.bf16.mxu0 0
        %1164 = vmatpush1.bf16.msra.mxu0 0
        %1165 = vmatprep.subr.bf16.mxu0 0
        %1166 = vmatpush1.bf16.msra.mxu0 0
        %1167 = vmatprep.subr.bf16.mxu0 0
        %1168 = vmatpush1.bf16.msra.mxu0 0
        %1169 = vmatprep.subr.bf16.mxu0 0
        %1170 = vmatpush1.bf16.msra.mxu0 0
        %1171 = vmatprep.mubr.bf16.mxu0 0
        %1172 = vmatmul.mubr.bf16.gmra.mrb[0].mxu0 %v501
        %v1173 = vpop.f32.mrb[0].mxu0
        %v1174 = vadd.f32 %v490, %v1173
        %v1175 = vpop.f32.mrb[0].mxu0
        %v1176 = vadd.f32 %v490, %v1175
        %v1177 = vpop.f32.mrb[0].mxu0
        %v1178 = vadd.f32 %v495, %v1177
        %v1179 = vpop.f32.mrb[0].mxu0
        %v1180 = vadd.f32 %v495, %v1179
        %1181 = vdwg.mxu0
        %1182 = vmatprep.subr.bf16.mxu0 0
        %1183 = vmatpush1.bf16.msra.mxu0 %v1093
        %1184 = vmatprep.subr.bf16.mxu0 0
        %1185 = vmatpush1.bf16.msra.mxu0 %v1096
        %1186 = vmatprep.subr.bf16.mxu0 0
        %1187 = vmatpush1.bf16.msra.mxu0 %v1099
        %1188 = vmatprep.subr.bf16.mxu0 0
        %1189 = vmatpush1.bf16.msra.mxu0 %v1102
        %1190 = vmatprep.subr.bf16.mxu0 0
        %1191 = vmatpush1.bf16.msra.mxu0 %v1105
        %1192 = vmatprep.subr.bf16.mxu0 0
        %1193 = vmatpush1.bf16.msra.mxu0 %v1108
        %1194 = vmatprep.subr.bf16.mxu0 0
        %1195 = vmatpush1.bf16.msra.mxu0 %v1111
        %1196 = vmatprep.subr.bf16.mxu0 0
        %1197 = vmatpush1.bf16.msra.mxu0 %v1114
        %1198 = vmatprep.subr.bf16.mxu0 0
        %1199 = vmatpush1.bf16.msra.mxu0 0
        %1200 = vmatprep.subr.bf16.mxu0 0
        %1201 = vmatpush1.bf16.msra.mxu0 0
        %1202 = vmatprep.subr.bf16.mxu0 0
        %1203 = vmatpush1.bf16.msra.mxu0 0
        %1204 = vmatprep.subr.bf16.mxu0 0
        %1205 = vmatpush1.bf16.msra.mxu0 0
        %1206 = vmatprep.subr.bf16.mxu0 0
        %1207 = vmatpush1.bf16.msra.mxu0 0
        %1208 = vmatprep.subr.bf16.mxu0 0
        %1209 = vmatpush1.bf16.msra.mxu0 0
        %1210 = vmatprep.subr.bf16.mxu0 0
        %1211 = vmatpush1.bf16.msra.mxu0 0
        %1212 = vmatprep.subr.bf16.mxu0 0
        %1213 = vmatpush1.bf16.msra.mxu0 0
        %1214 = vmatprep.mubr.bf16.mxu0 0
        %1215 = vmatmul.mubr.bf16.gmra.mrb[0].mxu0 %v501
        %v1216 = vpop.f32.mrb[0].mxu0
        %v1217 = vadd.f32 %v490, %v1216
        %v1218 = vpop.f32.mrb[0].mxu0
        %v1219 = vpop.f32.mrb[0].mxu0
        %v1220 = vadd.f32 %v495, %v1219
        %v1221 = vpop.f32.mrb[0].mxu0
        %1222 = vdwg.mxu0
        %v1223 = vmax.f32 %v1174, 0.0
        %v1224 = vmax.f32 %v1176, 0.0
        %v1225 = vmax.f32 %v1217, 0.0
        %v1226 = vmax.f32 %v1178, 0.0
        %v1227 = vmax.f32 %v1180, 0.0
        %v1228 = vmax.f32 %v1220, 0.0
        %v1229 = vmax.f32 %v972, %v1223
        %v1230 = vmax.f32 %v973, %v1224
        %v1231 = vmax.f32 %v974, %v1225
        %v1232 = vmax.f32 %v975, %v1226
        %v1233 = vmax.f32 %v976, %v1227
        %v1234 = vmax.f32 %v977, %v1228
        %s1235 = scalar_lea.vmem %s428, 576 [#allocation2]
        %v1236 = vld [vmem:[%s1235] sm:$0xff]
        %v1237 = vld [vmem:[%s1235 + $0x8] sm:$0xf]
        %v1238 = vld [vmem:[%s1235 + $0xc] sm:$0xff]
        %v1239 = vld [vmem:[%s1235 + $0x14] sm:$0xf]
        %v1240 = vld [vmem:[%s1235 + $0x18] sm:$0xff]
        %v1241 = vld [vmem:[%s1235 + $0x20] sm:$0xf]
        %v1242 = vld [vmem:[%s1235 + $0x24] sm:$0xff]
        %v1243 = vld [vmem:[%s1235 + $0x2c] sm:$0xf]
        %v1244 = vld [vmem:[%s1235 + $0x30] sm:$0xff]
        %v1245 = vld [vmem:[%s1235 + $0x38] sm:$0xf]
        %v1246 = vld [vmem:[%s1235 + $0x3c] sm:$0xff]
        %v1247 = vld [vmem:[%s1235 + $0x44] sm:$0xf]
        %v1248 = vld [vmem:[%s1235 + $0x48] sm:$0xff]
        %v1249 = vld [vmem:[%s1235 + $0x50] sm:$0xf]
        %v1250 = vld [vmem:[%s1235 + $0x54] sm:$0xff]
        %v1251 = vld [vmem:[%s1235 + $0x5c] sm:$0xf]
        %v1252 = vld [vmem:[%s1235 + $0x60] sm:$0xff]
        %v1253 = vld [vmem:[%s1235 + $0x68] sm:$0xf]
        %v1254 = vld [vmem:[%s1235 + $0x6c] sm:$0xff]
        %v1255 = vld [vmem:[%s1235 + $0x74] sm:$0xf]
        %v1256 = vld [vmem:[%s1235 + $0x78] sm:$0xff]
        %v1257 = vld [vmem:[%s1235 + $0x80] sm:$0xf]
        %v1258 = vld [vmem:[%s1235 + $0x84] sm:$0xff]
        %v1259 = vld [vmem:[%s1235 + $0x8c] sm:$0xf]
        %v1260 = vld [vmem:[%s1235 + $0x90] sm:$0xff]
        %v1261 = vld [vmem:[%s1235 + $0x98] sm:$0xf]
        %v1262 = vld [vmem:[%s1235 + $0x9c] sm:$0xff]
        %v1263 = vld [vmem:[%s1235 + $0xa4] sm:$0xf]
        %v1264 = vld [vmem:[%s1235 + $0xa8] sm:$0xff]
        %v1265 = vld [vmem:[%s1235 + $0xb0] sm:$0xf]
        %v1266 = vld [vmem:[%s1235 + $0xb4] sm:$0xff]
        %v1267 = vld [vmem:[%s1235 + $0xbc] sm:$0xf]
        %v1300 = vunpack.c.l.b16 %v1236
        %v1301 = vunpack.c.h.b16 %v1236
        %v1302 = vunpack.c.l.b16 %v1237
        %v1303 = vunpack.c.l.b16 %v1238
        %v1304 = vunpack.c.h.b16 %v1238
        %v1305 = vunpack.c.l.b16 %v1239
        %v1306 = vunpack.c.l.b16 %v1240
        %v1307 = vunpack.c.h.b16 %v1240
        %v1308 = vunpack.c.l.b16 %v1241
        %v1309 = vunpack.c.l.b16 %v1242
        %v1310 = vunpack.c.h.b16 %v1242
        %v1311 = vunpack.c.l.b16 %v1243
        %v1312 = vunpack.c.l.b16 %v1244
        %v1313 = vunpack.c.h.b16 %v1244
        %v1314 = vunpack.c.l.b16 %v1245
        %v1315 = vunpack.c.l.b16 %v1246
        %v1316 = vunpack.c.h.b16 %v1246
        %v1317 = vunpack.c.l.b16 %v1247
        %v1318 = vunpack.c.l.b16 %v1248
        %v1319 = vunpack.c.h.b16 %v1248
        %v1320 = vunpack.c.l.b16 %v1249
        %v1321 = vunpack.c.l.b16 %v1250
        %v1322 = vunpack.c.h.b16 %v1250
        %v1323 = vunpack.c.l.b16 %v1251
        %v1324 = vunpack.c.l.b16 %v1252
        %v1325 = vunpack.c.h.b16 %v1252
        %v1326 = vunpack.c.l.b16 %v1253
        %v1327 = vunpack.c.l.b16 %v1254
        %v1328 = vunpack.c.h.b16 %v1254
        %v1329 = vunpack.c.l.b16 %v1255
        %v1330 = vunpack.c.l.b16 %v1256
        %v1331 = vunpack.c.h.b16 %v1256
        %v1332 = vunpack.c.l.b16 %v1257
        %v1333 = vunpack.c.l.b16 %v1258
        %v1334 = vunpack.c.h.b16 %v1258
        %v1335 = vunpack.c.l.b16 %v1259
        %v1336 = vunpack.c.l.b16 %v1260
        %v1337 = vunpack.c.h.b16 %v1260
        %v1338 = vunpack.c.l.b16 %v1261
        %v1339 = vunpack.c.l.b16 %v1262
        %v1340 = vunpack.c.h.b16 %v1262
        %v1341 = vunpack.c.l.b16 %v1263
        %v1342 = vunpack.c.l.b16 %v1264
        %v1343 = vunpack.c.h.b16 %v1264
        %v1344 = vunpack.c.l.b16 %v1265
        %v1345 = vunpack.c.l.b16 %v1266
        %v1346 = vunpack.c.h.b16 %v1266
        %v1347 = vunpack.c.l.b16 %v1267
        %v1348 = vpack.c.b16 %v1303, %v1300
        %v1349 = vpack.c.b16 %v1304, %v1301
        %v1350 = vpack.c.b16 %v1305, %v1302
        %v1351 = vpack.c.b16 %v1309, %v1306
        %v1352 = vpack.c.b16 %v1310, %v1307
        %v1353 = vpack.c.b16 %v1311, %v1308
        %v1354 = vpack.c.b16 %v1315, %v1312
        %v1355 = vpack.c.b16 %v1316, %v1313
        %v1356 = vpack.c.b16 %v1317, %v1314
        %v1357 = vpack.c.b16 %v1321, %v1318
        %v1358 = vpack.c.b16 %v1322, %v1319
        %v1359 = vpack.c.b16 %v1323, %v1320
        %v1360 = vpack.c.b16 %v1327, %v1324
        %v1361 = vpack.c.b16 %v1328, %v1325
        %v1362 = vpack.c.b16 %v1329, %v1326
        %v1363 = vpack.c.b16 %v1333, %v1330
        %v1364 = vpack.c.b16 %v1334, %v1331
        %v1365 = vpack.c.b16 %v1335, %v1332
        %v1366 = vpack.c.b16 %v1339, %v1336
        %v1367 = vpack.c.b16 %v1340, %v1337
        %v1368 = vpack.c.b16 %v1341, %v1338
        %v1369 = vpack.c.b16 %v1345, %v1342
        %v1370 = vpack.c.b16 %v1346, %v1343
        %v1371 = vpack.c.b16 %v1347, %v1344
        %1396 = vmatprep.subr.bf16.mxu0 %v1349
        %1397 = vmatpush1.bf16.msra.mxu0 %v1348
        %1398 = vmatprep.subr.bf16.mxu0 %v1352
        %1399 = vmatpush1.bf16.msra.mxu0 %v1351
        %1400 = vmatprep.subr.bf16.mxu0 %v1355
        %1401 = vmatpush1.bf16.msra.mxu0 %v1354
        %1402 = vmatprep.subr.bf16.mxu0 %v1358
        %1403 = vmatpush1.bf16.msra.mxu0 %v1357
        %1404 = vmatprep.subr.bf16.mxu0 %v1361
        %1405 = vmatpush1.bf16.msra.mxu0 %v1360
        %1406 = vmatprep.subr.bf16.mxu0 %v1364
        %1407 = vmatpush1.bf16.msra.mxu0 %v1363
        %1408 = vmatprep.subr.bf16.mxu0 %v1367
        %1409 = vmatpush1.bf16.msra.mxu0 %v1366
        %1410 = vmatprep.subr.bf16.mxu0 %v1370
        %1411 = vmatpush1.bf16.msra.mxu0 %v1369
        %1412 = vmatprep.subr.bf16.mxu0 0
        %1413 = vmatpush1.bf16.msra.mxu0 0
        %1414 = vmatprep.subr.bf16.mxu0 0
        %1415 = vmatpush1.bf16.msra.mxu0 0
        %1416 = vmatprep.subr.bf16.mxu0 0
        %1417 = vmatpush1.bf16.msra.mxu0 0
        %1418 = vmatprep.subr.bf16.mxu0 0
        %1419 = vmatpush1.bf16.msra.mxu0 0
        %1420 = vmatprep.subr.bf16.mxu0 0
        %1421 = vmatpush1.bf16.msra.mxu0 0
        %1422 = vmatprep.subr.bf16.mxu0 0
        %1423 = vmatpush1.bf16.msra.mxu0 0
        %1424 = vmatprep.subr.bf16.mxu0 0
        %1425 = vmatpush1.bf16.msra.mxu0 0
        %1426 = vmatprep.subr.bf16.mxu0 0
        %1427 = vmatpush1.bf16.msra.mxu0 0
        %1428 = vmatprep.mubr.bf16.mxu0 0
        %1429 = vmatmul.mubr.bf16.gmra.mrb[0].mxu0 %v501
        %v1430 = vpop.f32.mrb[0].mxu0
        %v1431 = vadd.f32 %v490, %v1430
        %v1432 = vpop.f32.mrb[0].mxu0
        %v1433 = vadd.f32 %v490, %v1432
        %v1434 = vpop.f32.mrb[0].mxu0
        %v1435 = vadd.f32 %v495, %v1434
        %v1436 = vpop.f32.mrb[0].mxu0
        %v1437 = vadd.f32 %v495, %v1436
        %1438 = vdwg.mxu0
        %1439 = vmatprep.subr.bf16.mxu0 0
        %1440 = vmatpush1.bf16.msra.mxu0 %v1350
        %1441 = vmatprep.subr.bf16.mxu0 0
        %1442 = vmatpush1.bf16.msra.mxu0 %v1353
        %1443 = vmatprep.subr.bf16.mxu0 0
        %1444 = vmatpush1.bf16.msra.mxu0 %v1356
        %1445 = vmatprep.subr.bf16.mxu0 0
        %1446 = vmatpush1.bf16.msra.mxu0 %v1359
        %1447 = vmatprep.subr.bf16.mxu0 0
        %1448 = vmatpush1.bf16.msra.mxu0 %v1362
        %1449 = vmatprep.subr.bf16.mxu0 0
        %1450 = vmatpush1.bf16.msra.mxu0 %v1365
        %1451 = vmatprep.subr.bf16.mxu0 0
        %1452 = vmatpush1.bf16.msra.mxu0 %v1368
        %1453 = vmatprep.subr.bf16.mxu0 0
        %1454 = vmatpush1.bf16.msra.mxu0 %v1371
        %1455 = vmatprep.subr.bf16.mxu0 0
        %1456 = vmatpush1.bf16.msra.mxu0 0
        %1457 = vmatprep.subr.bf16.mxu0 0
        %1458 = vmatpush1.bf16.msra.mxu0 0
        %1459 = vmatprep.subr.bf16.mxu0 0
        %1460 = vmatpush1.bf16.msra.mxu0 0
        %1461 = vmatprep.subr.bf16.mxu0 0
        %1462 = vmatpush1.bf16.msra.mxu0 0
        %1463 = vmatprep.subr.bf16.mxu0 0
        %1464 = vmatpush1.bf16.msra.mxu0 0
        %1465 = vmatprep.subr.bf16.mxu0 0
        %1466 = vmatpush1.bf16.msra.mxu0 0
        %1467 = vmatprep.subr.bf16.mxu0 0
        %1468 = vmatpush1.bf16.msra.mxu0 0
        %1469 = vmatprep.subr.bf16.mxu0 0
        %1470 = vmatpush1.bf16.msra.mxu0 0
        %1471 = vmatprep.mubr.bf16.mxu0 0
        %1472 = vmatmul.mubr.bf16.gmra.mrb[0].mxu0 %v501
        %v1473 = vpop.f32.mrb[0].mxu0
        %v1474 = vadd.f32 %v490, %v1473
        %v1475 = vpop.f32.mrb[0].mxu0
        %v1476 = vpop.f32.mrb[0].mxu0
        %v1477 = vadd.f32 %v495, %v1476
        %v1478 = vpop.f32.mrb[0].mxu0
        %1479 = vdwg.mxu0
        %v1480 = vmax.f32 %v1431, 0.0
        %v1481 = vmax.f32 %v1433, 0.0
        %v1482 = vmax.f32 %v1474, 0.0
        %v1483 = vmax.f32 %v1435, 0.0
        %v1484 = vmax.f32 %v1437, 0.0
        %v1485 = vmax.f32 %v1477, 0.0
        %v1486 = vmax.f32 %v1229, %v1480
        %v1487 = vmax.f32 %v1230, %v1481
        %v1488 = vmax.f32 %v1231, %v1482
        %v1489 = vmax.f32 %v1232, %v1483
        %v1490 = vmax.f32 %v1233, %v1484
        %v1491 = vmax.f32 %v1234, %v1485
        %1492 = vst [vmem:[%s447] sm:$0xff] %v1486
        %1493 = vst [vmem:[%s447 + $0x8] sm:$0xff] %v1487
        %1494 = vst [vmem:[%s447 + $0x10] sm:$0xff] %v1488
        %1495 = vst [vmem:[%s447 + $0x18] sm:$0xff] %v1489
        %1496 = vst [vmem:[%s447 + $0x20] sm:$0xff] %v1490
        %1497 = vst [vmem:[%s447 + $0x28] sm:$0xff] %v1491
        %s1498 = sand.u32 %s90, 1
        %s1499 = sand.u32 %s90, 1
        %s1500 = smul.addr %s1499, 48
        %s1501 = scalar_lea.vmem [#allocation3], %s1500
        // Predicated region
        $region59: #{conv_classifier_forward.6} parent=53 // pred_check
          %p1502 = pneg %p100
        $region60: #{conv_classifier_forward.6} parent=53 // pred_check_branch
          %1504 = sbr.rel (%p1502) target = $region62
        $region61: #{conv_classifier_forward.6} parent=53 // pred_region
          %s1505 = smul.u32 3, %s14
          %s1506 = smul.addr %s1505, 8
          %s1507 = scalar_lea.vmem %s3, %s1506
          // Predicated region
          $region63: #{conv_classifier_forward.6} parent=61 // pred_check
            _
          $region64: #{conv_classifier_forward.6} parent=61 // pred_check_branch
            %1509 = sbr.rel (0) target = $region66
          $region65: #{conv_classifier_forward.6} parent=61 // pred_region
            // Predicated region
            $region67: #{conv_classifier_forward.6} parent=65 // pred_check
              _
            $region68: #{conv_classifier_forward.6} parent=65 // pred_check_branch
              %1511 = sbr.rel (0) target = $region70
            $region69: #{conv_classifier_forward.6} parent=65 // pred_region
              loop: start=0, step=1, limit=1
              $region71: #{conv_classifier_forward.6} parent=69 // loop_pre_header
                _
              $region72: #{conv_classifier_forward.6} parent=69 // loop_header
                %s1513 = sphi 0, %s1517
                %p1514 = scmp.ge.s32.totalorder %s1513, 1
                %s1518 = sphi %s1501, %s1501
                %s1519 = sphi %s1507, %s1507
              $region73: #{conv_classifier_forward.6} parent=69 // loop_header_branch
                %1516 = sbr.rel (%p1514) target = $region77
              $region74: #{conv_classifier_forward.6} parent=69 // loop_body
                %v1520 = vld [vmem:[%s1518] sm:$0xff]
                %1521 = vst [vmem:[%s1519] sm:$0xff] %v1520
                %v1522 = vld [vmem:[%s1518 + $0x8] sm:$0xff]
                %1523 = vst [vmem:[%s1519 + $0x8] sm:$0xff] %v1522
                %v1524 = vld [vmem:[%s1518 + $0x10] sm:$0xff]
                %1525 = vst [vmem:[%s1519 + $0x10] sm:$0xff] %v1524
                %v1526 = vld [vmem:[%s1518 + $0x18] sm:$0xff]
                %1527 = vst [vmem:[%s1519 + $0x48] sm:$0xff] %v1526
                %v1528 = vld [vmem:[%s1518 + $0x20] sm:$0xff]
                %1529 = vst [vmem:[%s1519 + $0x50] sm:$0xff] %v1528
                %v1530 = vld [vmem:[%s1518 + $0x28] sm:$0xff]
                %1531 = vst [vmem:[%s1519 + $0x58] sm:$0xff] %v1530
              $region75: #{conv_classifier_forward.6} parent=69 // loop_footer
                %s1517 = sadd.s32 1, %s1513
              $region76: #{conv_classifier_forward.6} parent=69 // loop_footer_branch
                %1512 = sbr.rel target = $region72
              $region77: #{conv_classifier_forward.6} parent=69 // loop_exit
                _
            $region70: #{conv_classifier_forward.6} parent=65 // pred_fallthru
              _
            // Predicated region
            $region78: #{conv_classifier_forward.6} parent=65 // pred_check
              _
            $region79: #{conv_classifier_forward.6} parent=65 // pred_check_branch
              %1533 = sbr.rel target = $region81
            $region80: #{conv_classifier_forward.6} parent=65 // pred_region
              _
            $region81: #{conv_classifier_forward.6} parent=65 // pred_fallthru
              _
          $region66: #{conv_classifier_forward.6} parent=61 // pred_fallthru
            _
          %1534 = vnop
        $region62: #{conv_classifier_forward.6} parent=53 // pred_fallthru
          _
      $region54: #{conv_classifier_forward.6} parent=5 // pred_fallthru
        _
      %p1535 = scmp.le.s32.totalorder 2, %s9
      // Predicated region
      $region82: #{conv_classifier_forward.6} parent=5 // pred_check
        %p1536 = pneg %p1535
      $region83: #{conv_classifier_forward.6} parent=5 // pred_check_branch
        %1538 = sbr.rel (%p1536) target = $region85
      $region84: #{conv_classifier_forward.6} parent=5 // pred_region
        %s1539 = ssub.s32 %s9, 2
        // Predicated region
        $region86: #{conv_classifier_forward.6} parent=84 // pred_check
          %p1540 = pneg %p106
        $region87: #{conv_classifier_forward.6} parent=84 // pred_check_branch
          %1542 = sbr.rel (%p1540) target = $region89
        $region88: #{conv_classifier_forward.6} parent=84 // pred_region
          %s1543 = sand.u32 %s91, 1
          %s1544 = sand.u32 %s91, 1
          %s1545 = smul.addr %s1544, 48
          %s1546 = scalar_lea.vmem [#allocation3], %s1545
        $region89: #{conv_classifier_forward.6} parent=84 // pred_fallthru
          _
      $region85: #{conv_classifier_forward.6} parent=5 // pred_fallthru
        _
    $region6: #{conv_classifier_forward.6} parent=1 // loop_footer
      %s13 = sadd.s32 1, %s9
    $region7: #{conv_classifier_forward.6} parent=1 // loop_footer_branch
      %8 = sbr.rel target = $region3
    $region8: #{conv_classifier_forward.6} parent=1 // loop_exit
      _

// kernel: conv_classifier_forward.7
$region0: #{conv_classifier_forward.7}
  #allocation0 [shape = 'u32[]', space=smem, size = 0x4, offset = 0x4, fixed_abs, tag = 'smem constant byte address 0x4 - core index']
  #allocation1 [shape = 'u32[144,128]{1,0:T(1,128)}', space=vmem, size = 0x12000, scoped, tag = 'internal scratch']
  %s0 = inlined_call_operand.vmem [shape: bf16[4,256,288], index: 0, kind: input, shape index: {}]
  %s1 = inlined_call_operand.vmem [shape: bf16[32,256], index: 1, kind: input, shape index: {}]
  %s2 = inlined_call_operand.vmem [shape: f32[32,1], index: 2, kind: input, shape index: {}]
  %s3 = inlined_call_operand.vmem [shape: f32[32,288], index: 3, kind: output, shape index: {}]
  %s4 = sld [smem:[#allocation0]]
  $region22: #{conv_classifier_forward.7} parent=0
    _
  %s6 = ssub.s32 1, %s4
  %s7 = scalar_select 0, %s6, %s4
  // Predicated region
  $region2: #{conv_classifier_forward.7} parent=0 // pred_check
    _
  $region3: #{conv_classifier_forward.7} parent=0 // pred_check_branch
    %9 = sbr.rel (0) target = $region5
  $region4: #{conv_classifier_forward.7} parent=0 // pred_region
    _
  $region5: #{conv_classifier_forward.7} parent=0 // pred_fallthru
    _
  // Predicated region
  $region6: #{conv_classifier_forward.7} parent=0 // pred_check
    _
  $region7: #{conv_classifier_forward.7} parent=0 // pred_check_branch
    %11 = sbr.rel (0) target = $region9
  $region8: #{conv_classifier_forward.7} parent=0 // pred_region
    _
  $region9: #{conv_classifier_forward.7} parent=0 // pred_fallthru
    _
  // Predicated region
  $region10: #{conv_classifier_forward.7} parent=0 // pred_check
    _
  $region11: #{conv_classifier_forward.7} parent=0 // pred_check_branch
    %13 = sbr.rel (0) target = $region13
  $region12: #{conv_classifier_forward.7} parent=0 // pred_region
    _
  $region13: #{conv_classifier_forward.7} parent=0 // pred_fallthru
    _
  %v15 = vld [vmem:[%s1] sm:$0xff]
  %v16 = vld [vmem:[%s1 + $0x8] sm:$0xff]
  %v17 = vld [vmem:[%s1 + $0x10] sm:$0xff]
  %v18 = vld [vmem:[%s1 + $0x18] sm:$0xff]
  %v19 = vld [vmem:[%s2] sm:$0xff]
  %v20 = vld [vmem:[%s2 + $0x8] sm:$0xff]
  %v21 = vld [vmem:[%s2 + $0x10] sm:$0xff]
  %v22 = vld [vmem:[%s2 + $0x18] sm:$0xff]
  %v23 = vld [vmem:[%s0] sm:$0xff]
  %v24 = vld [vmem:[%s0 + $0x8] sm:$0xf]
  %v25 = vld [vmem:[%s0 + $0xc] sm:$0xff]
  %v26 = vld [vmem:[%s0 + $0x14] sm:$0xf]
  %v27 = vld [vmem:[%s0 + $0x18] sm:$0xff]
  %v28 = vld [vmem:[%s0 + $0x20] sm:$0xf]
  %v29 = vld [vmem:[%s0 + $0x24] sm:$0xff]
  %v30 = vld [vmem:[%s0 + $0x2c] sm:$0xf]
  %v31 = vld [vmem:[%s0 + $0x30] sm:$0xff]
  %v32 = vld [vmem:[%s0 + $0x38] sm:$0xf]
  %v33 = vld [vmem:[%s0 + $0x3c] sm:$0xff]
  %v34 = vld [vmem:[%s0 + $0x44] sm:$0xf]
  %v35 = vld [vmem:[%s0 + $0x48] sm:$0xff]
  %v36 = vld [vmem:[%s0 + $0x50] sm:$0xf]
  %v37 = vld [vmem:[%s0 + $0x54] sm:$0xff]
  %v38 = vld [vmem:[%s0 + $0x5c] sm:$0xf]
  %v39 = vld [vmem:[%s0 + $0x60] sm:$0xff]
  %v40 = vld [vmem:[%s0 + $0x68] sm:$0xf]
  %v41 = vld [vmem:[%s0 + $0x6c] sm:$0xff]
  %v42 = vld [vmem:[%s0 + $0x74] sm:$0xf]
  %v43 = vld [vmem:[%s0 + $0x78] sm:$0xff]
  %v44 = vld [vmem:[%s0 + $0x80] sm:$0xf]
  %v45 = vld [vmem:[%s0 + $0x84] sm:$0xff]
  %v46 = vld [vmem:[%s0 + $0x8c] sm:$0xf]
  %v47 = vld [vmem:[%s0 + $0x90] sm:$0xff]
  %v48 = vld [vmem:[%s0 + $0x98] sm:$0xf]
  %v49 = vld [vmem:[%s0 + $0x9c] sm:$0xff]
  %v50 = vld [vmem:[%s0 + $0xa4] sm:$0xf]
  %v51 = vld [vmem:[%s0 + $0xa8] sm:$0xff]
  %v52 = vld [vmem:[%s0 + $0xb0] sm:$0xf]
  %v53 = vld [vmem:[%s0 + $0xb4] sm:$0xff]
  %v54 = vld [vmem:[%s0 + $0xbc] sm:$0xf]
  %v55 = vld [vmem:[%s0 + $0xc0] sm:$0xff]
  %v56 = vld [vmem:[%s0 + $0xc8] sm:$0xf]
  %v57 = vld [vmem:[%s0 + $0xcc] sm:$0xff]
  %v58 = vld [vmem:[%s0 + $0xd4] sm:$0xf]
  %v59 = vld [vmem:[%s0 + $0xd8] sm:$0xff]
  %v60 = vld [vmem:[%s0 + $0xe0] sm:$0xf]
  %v61 = vld [vmem:[%s0 + $0xe4] sm:$0xff]
  %v62 = vld [vmem:[%s0 + $0xec] sm:$0xf]
  %v63 = vld [vmem:[%s0 + $0xf0] sm:$0xff]
  %v64 = vld [vmem:[%s0 + $0xf8] sm:$0xf]
  %v65 = vld [vmem:[%s0 + $0xfc] sm:$0xff]
  %v66 = vld [vmem:[%s0 + $0x104] sm:$0xf]
  %v67 = vld [vmem:[%s0 + $0x108] sm:$0xff]
  %v68 = vld [vmem:[%s0 + $0x110] sm:$0xf]
  %v69 = vld [vmem:[%s0 + $0x114] sm:$0xff]
  %v70 = vld [vmem:[%s0 + $0x11c] sm:$0xf]
  %v71 = vld [vmem:[%s0 + $0x120] sm:$0xff]
  %v72 = vld [vmem:[%s0 + $0x128] sm:$0xf]
  %v73 = vld [vmem:[%s0 + $0x12c] sm:$0xff]
  %v74 = vld [vmem:[%s0 + $0x134] sm:$0xf]
  %v75 = vld [vmem:[%s0 + $0x138] sm:$0xff]
  %v76 = vld [vmem:[%s0 + $0x140] sm:$0xf]
  %v77 = vld [vmem:[%s0 + $0x144] sm:$0xff]
  %v78 = vld [vmem:[%s0 + $0x14c] sm:$0xf]
  %v79 = vld [vmem:[%s0 + $0x150] sm:$0xff]
  %v80 = vld [vmem:[%s0 + $0x158] sm:$0xf]
  %v81 = vld [vmem:[%s0 + $0x15c] sm:$0xff]
  %v82 = vld [vmem:[%s0 + $0x164] sm:$0xf]
  %v83 = vld [vmem:[%s0 + $0x168] sm:$0xff]
  %v84 = vld [vmem:[%s0 + $0x170] sm:$0xf]
  %v85 = vld [vmem:[%s0 + $0x174] sm:$0xff]
  %v86 = vld [vmem:[%s0 + $0x17c] sm:$0xf]
  %88 = vset.pattern.permute.xlu0 0
  %89 = vperm.xlu0 %88, %v19
  %v90 = vpop.permute.xlu0 %89
  %93 = vset.pattern.permute.xlu0 0
  %94 = vperm.xlu0 %93, %v20
  %v95 = vpop.permute.xlu0 %94
  %98 = vset.pattern.permute.xlu0 0
  %99 = vperm.xlu0 %98, %v21
  %v100 = vpop.permute.xlu0 %99
  %103 = vset.pattern.permute.xlu0 0
  %104 = vperm.xlu0 %103, %v22
  %v105 = vpop.permute.xlu0 %104
  %v111 = vunpack.c.l.b16 %v15
  %v112 = vunpack.c.h.b16 %v15
  %v113 = vunpack.c.l.b16 %v16
  %v114 = vunpack.c.h.b16 %v16
  %v115 = vunpack.c.l.b16 %v17
  %v116 = vunpack.c.h.b16 %v17
  %v117 = vunpack.c.l.b16 %v18
  %v118 = vunpack.c.h.b16 %v18
  %v119 = vpack.c.b16 %v113, %v111
  %v120 = vpack.c.b16 %v114, %v112
  %v121 = vpack.c.b16 %v117, %v115
  %v122 = vpack.c.b16 %v118, %v116
  %v191 = vunpack.c.l.b16 %v23
  %v192 = vunpack.c.h.b16 %v23
  %v193 = vunpack.c.l.b16 %v24
  %v194 = vunpack.c.l.b16 %v25
  %v195 = vunpack.c.h.b16 %v25
  %v196 = vunpack.c.l.b16 %v26
  %v197 = vunpack.c.l.b16 %v27
  %v198 = vunpack.c.h.b16 %v27
  %v199 = vunpack.c.l.b16 %v28
  %v200 = vunpack.c.l.b16 %v29
  %v201 = vunpack.c.h.b16 %v29
  %v202 = vunpack.c.l.b16 %v30
  %v203 = vunpack.c.l.b16 %v31
  %v204 = vunpack.c.h.b16 %v31
  %v205 = vunpack.c.l.b16 %v32
  %v206 = vunpack.c.l.b16 %v33
  %v207 = vunpack.c.h.b16 %v33
  %v208 = vunpack.c.l.b16 %v34
  %v209 = vunpack.c.l.b16 %v35
  %v210 = vunpack.c.h.b16 %v35
  %v211 = vunpack.c.l.b16 %v36
  %v212 = vunpack.c.l.b16 %v37
  %v213 = vunpack.c.h.b16 %v37
  %v214 = vunpack.c.l.b16 %v38
  %v215 = vunpack.c.l.b16 %v39
  %v216 = vunpack.c.h.b16 %v39
  %v217 = vunpack.c.l.b16 %v40
  %v218 = vunpack.c.l.b16 %v41
  %v219 = vunpack.c.h.b16 %v41
  %v220 = vunpack.c.l.b16 %v42
  %v221 = vunpack.c.l.b16 %v43
  %v222 = vunpack.c.h.b16 %v43
  %v223 = vunpack.c.l.b16 %v44
  %v224 = vunpack.c.l.b16 %v45
  %v225 = vunpack.c.h.b16 %v45
  %v226 = vunpack.c.l.b16 %v46
  %v227 = vunpack.c.l.b16 %v47
  %v228 = vunpack.c.h.b16 %v47
  %v229 = vunpack.c.l.b16 %v48
  %v230 = vunpack.c.l.b16 %v49
  %v231 = vunpack.c.h.b16 %v49
  %v232 = vunpack.c.l.b16 %v50
  %v233 = vunpack.c.l.b16 %v51
  %v234 = vunpack.c.h.b16 %v51
  %v235 = vunpack.c.l.b16 %v52
  %v236 = vunpack.c.l.b16 %v53
  %v237 = vunpack.c.h.b16 %v53
  %v238 = vunpack.c.l.b16 %v54
  %v239 = vunpack.c.l.b16 %v55
  %v240 = vunpack.c.h.b16 %v55
  %v241 = vunpack.c.l.b16 %v56
  %v242 = vunpack.c.l.b16 %v57
  %v243 = vunpack.c.h.b16 %v57
  %v244 = vunpack.c.l.b16 %v58
  %v245 = vunpack.c.l.b16 %v59
  %v246 = vunpack.c.h.b16 %v59
  %v247 = vunpack.c.l.b16 %v60
  %v248 = vunpack.c.l.b16 %v61
  %v249 = vunpack.c.h.b16 %v61
  %v250 = vunpack.c.l.b16 %v62
  %v251 = vunpack.c.l.b16 %v63
  %v252 = vunpack.c.h.b16 %v63
  %v253 = vunpack.c.l.b16 %v64
  %v254 = vunpack.c.l.b16 %v65
  %v255 = vunpack.c.h.b16 %v65
  %v256 = vunpack.c.l.b16 %v66
  %v257 = vunpack.c.l.b16 %v67
  %v258 = vunpack.c.h.b16 %v67
  %v259 = vunpack.c.l.b16 %v68
  %v260 = vunpack.c.l.b16 %v69
  %v261 = vunpack.c.h.b16 %v69
  %v262 = vunpack.c.l.b16 %v70
  %v263 = vunpack.c.l.b16 %v71
  %v264 = vunpack.c.h.b16 %v71
  %v265 = vunpack.c.l.b16 %v72
  %v266 = vunpack.c.l.b16 %v73
  %v267 = vunpack.c.h.b16 %v73
  %v268 = vunpack.c.l.b16 %v74
  %v269 = vunpack.c.l.b16 %v75
  %v270 = vunpack.c.h.b16 %v75
  %v271 = vunpack.c.l.b16 %v76
  %v272 = vunpack.c.l.b16 %v77
  %v273 = vunpack.c.h.b16 %v77
  %v274 = vunpack.c.l.b16 %v78
  %v275 = vunpack.c.l.b16 %v79
  %v276 = vunpack.c.h.b16 %v79
  %v277 = vunpack.c.l.b16 %v80
  %v278 = vunpack.c.l.b16 %v81
  %v279 = vunpack.c.h.b16 %v81
  %v280 = vunpack.c.l.b16 %v82
  %v281 = vunpack.c.l.b16 %v83
  %v282 = vunpack.c.h.b16 %v83
  %v283 = vunpack.c.l.b16 %v84
  %v284 = vunpack.c.l.b16 %v85
  %v285 = vunpack.c.h.b16 %v85
  %v286 = vunpack.c.l.b16 %v86
  %v287 = vpack.c.b16 %v194, %v191
  %v288 = vpack.c.b16 %v195, %v192
  %v289 = vpack.c.b16 %v196, %v193
  %v290 = vpack.c.b16 %v200, %v197
  %v291 = vpack.c.b16 %v201, %v198
  %v292 = vpack.c.b16 %v202, %v199
  %v293 = vpack.c.b16 %v206, %v203
  %v294 = vpack.c.b16 %v207, %v204
  %v295 = vpack.c.b16 %v208, %v205
  %v296 = vpack.c.b16 %v212, %v209
  %v297 = vpack.c.b16 %v213, %v210
  %v298 = vpack.c.b16 %v214, %v211
  %v299 = vpack.c.b16 %v218, %v215
  %v300 = vpack.c.b16 %v219, %v216
  %v301 = vpack.c.b16 %v220, %v217
  %v302 = vpack.c.b16 %v224, %v221
  %v303 = vpack.c.b16 %v225, %v222
  %v304 = vpack.c.b16 %v226, %v223
  %v305 = vpack.c.b16 %v230, %v227
  %v306 = vpack.c.b16 %v231, %v228
  %v307 = vpack.c.b16 %v232, %v229
  %v308 = vpack.c.b16 %v236, %v233
  %v309 = vpack.c.b16 %v237, %v234
  %v310 = vpack.c.b16 %v238, %v235
  %v311 = vpack.c.b16 %v242, %v239
  %v312 = vpack.c.b16 %v243, %v240
  %v313 = vpack.c.b16 %v244, %v241
  %v314 = vpack.c.b16 %v248, %v245
  %v315 = vpack.c.b16 %v249, %v246
  %v316 = vpack.c.b16 %v250, %v247
  %v317 = vpack.c.b16 %v254, %v251
  %v318 = vpack.c.b16 %v255, %v252
  %v319 = vpack.c.b16 %v256, %v253
  %v320 = vpack.c.b16 %v260, %v257
  %v321 = vpack.c.b16 %v261, %v258
  %v322 = vpack.c.b16 %v262, %v259
  %v323 = vpack.c.b16 %v266, %v263
  %v324 = vpack.c.b16 %v267, %v264
  %v325 = vpack.c.b16 %v268, %v265
  %v326 = vpack.c.b16 %v272, %v269
  %v327 = vpack.c.b16 %v273, %v270
  %v328 = vpack.c.b16 %v274, %v271
  %v329 = vpack.c.b16 %v278, %v275
  %v330 = vpack.c.b16 %v279, %v276
  %v331 = vpack.c.b16 %v280, %v277
  %v332 = vpack.c.b16 %v284, %v281
  %v333 = vpack.c.b16 %v285, %v282
  %v334 = vpack.c.b16 %v286, %v283
  %383 = vmatprep.subr.bf16.mxu0 %v288
  %384 = vmatpush1.bf16.msra.mxu0 %v287
  %385 = vmatprep.subr.bf16.mxu0 %v291
  %386 = vmatpush1.bf16.msra.mxu0 %v290
  %387 = vmatprep.subr.bf16.mxu0 %v294
  %388 = vmatpush1.bf16.msra.mxu0 %v293
  %389 = vmatprep.subr.bf16.mxu0 %v297
  %390 = vmatpush1.bf16.msra.mxu0 %v296
  %391 = vmatprep.subr.bf16.mxu0 %v300
  %392 = vmatpush1.bf16.msra.mxu0 %v299
  %393 = vmatprep.subr.bf16.mxu0 %v303
  %394 = vmatpush1.bf16.msra.mxu0 %v302
  %395 = vmatprep.subr.bf16.mxu0 %v306
  %396 = vmatpush1.bf16.msra.mxu0 %v305
  %397 = vmatprep.subr.bf16.mxu0 %v309
  %398 = vmatpush1.bf16.msra.mxu0 %v308
  %399 = vmatprep.subr.bf16.mxu0 %v312
  %400 = vmatpush1.bf16.msra.mxu0 %v311
  %401 = vmatprep.subr.bf16.mxu0 %v315
  %402 = vmatpush1.bf16.msra.mxu0 %v314
  %403 = vmatprep.subr.bf16.mxu0 %v318
  %404 = vmatpush1.bf16.msra.mxu0 %v317
  %405 = vmatprep.subr.bf16.mxu0 %v321
  %406 = vmatpush1.bf16.msra.mxu0 %v320
  %407 = vmatprep.subr.bf16.mxu0 %v324
  %408 = vmatpush1.bf16.msra.mxu0 %v323
  %409 = vmatprep.subr.bf16.mxu0 %v327
  %410 = vmatpush1.bf16.msra.mxu0 %v326
  %411 = vmatprep.subr.bf16.mxu0 %v330
  %412 = vmatpush1.bf16.msra.mxu0 %v329
  %413 = vmatprep.subr.bf16.mxu0 %v333
  %414 = vmatpush1.bf16.msra.mxu0 %v332
  %415 = vmatprep.mubr.bf16.mxu0 %v120
  %416 = vmatmul.mubr.bf16.gmra.mrb[0].mxu0 %v119
  %v417 = vpop.f32.mrb[0].mxu0
  %v418 = vadd.f32 %v90, %v417
  %v419 = vpop.f32.mrb[0].mxu0
  %v420 = vadd.f32 %v90, %v419
  %v421 = vpop.f32.mrb[0].mxu0
  %v422 = vadd.f32 %v95, %v421
  %v423 = vpop.f32.mrb[0].mxu0
  %v424 = vadd.f32 %v95, %v423
  %425 = vmatprep.mubr.bf16.mxu0 %v122
  %426 = vmatmul.mubr.bf16.gmra.mrb[0].mxu0 %v121
  %v427 = vpop.f32.mrb[0].mxu0
  %v428 = vadd.f32 %v100, %v427
  %v429 = vpop.f32.mrb[0].mxu0
  %v430 = vadd.f32 %v100, %v429
  %v431 = vpop.f32.mrb[0].mxu0
  %v432 = vadd.f32 %v105, %v431
  %v433 = vpop.f32.mrb[0].mxu0
  %v434 = vadd.f32 %v105, %v433
  %435 = vdwg.mxu0
  %436 = vmatprep.subr.bf16.mxu0 0
  %437 = vmatpush1.bf16.msra.mxu0 %v289
  %438 = vmatprep.subr.bf16.mxu0 0
  %439 = vmatpush1.bf16.msra.mxu0 %v292
  %440 = vmatprep.subr.bf16.mxu0 0
  %441 = vmatpush1.bf16.msra.mxu0 %v295
  %442 = vmatprep.subr.bf16.mxu0 0
  %443 = vmatpush1.bf16.msra.mxu0 %v298
  %444 = vmatprep.subr.bf16.mxu0 0
  %445 = vmatpush1.bf16.msra.mxu0 %v301
  %446 = vmatprep.subr.bf16.mxu0 0
  %447 = vmatpush1.bf16.msra.mxu0 %v304
  %448 = vmatprep.subr.bf16.mxu0 0
  %449 = vmatpush1.bf16.msra.mxu0 %v307
  %450 = vmatprep.subr.bf16.mxu0 0
  %451 = vmatpush1.bf16.msra.mxu0 %v310
  %452 = vmatprep.subr.bf16.mxu0 0
  %453 = vmatpush1.bf16.msra.mxu0 %v313
  %454 = vmatprep.subr.bf16.mxu0 0
  %455 = vmatpush1.bf16.msra.mxu0 %v316
  %456 = vmatprep.subr.bf16.mxu0 0
  %457 = vmatpush1.bf16.msra.mxu0 %v319
  %458 = vmatprep.subr.bf16.mxu0 0
  %459 = vmatpush1.bf16.msra.mxu0 %v322
  %460 = vmatprep.subr.bf16.mxu0 0
  %461 = vmatpush1.bf16.msra.mxu0 %v325
  %462 = vmatprep.subr.bf16.mxu0 0
  %463 = vmatpush1.bf16.msra.mxu0 %v328
  %464 = vmatprep.subr.bf16.mxu0 0
  %465 = vmatpush1.bf16.msra.mxu0 %v331
  %466 = vmatprep.subr.bf16.mxu0 0
  %467 = vmatpush1.bf16.msra.mxu0 %v334
  %468 = vmatprep.mubr.bf16.mxu0 %v120
  %469 = vmatmul.mubr.bf16.gmra.mrb[0].mxu0 %v119
  %v470 = vpop.f32.mrb[0].mxu0
  %v471 = vadd.f32 %v90, %v470
  %v472 = vpop.f32.mrb[0].mxu0
  %v473 = vpop.f32.mrb[0].mxu0
  %v474 = vadd.f32 %v95, %v473
  %v475 = vpop.f32.mrb[0].mxu0
  %476 = vmatprep.mubr.bf16.mxu0 %v122
  %477 = vmatmul.mubr.bf16.gmra.mrb[0].mxu0 %v121
  %v478 = vpop.f32.mrb[0].mxu0
  %v479 = vadd.f32 %v100, %v478
  %v480 = vpop.f32.mrb[0].mxu0
  %v481 = vpop.f32.mrb[0].mxu0
  %v482 = vadd.f32 %v105, %v481
  %v483 = vpop.f32.mrb[0].mxu0
  %484 = vdwg.mxu0
  %v485 = vmax.f32 %v418, 0.0
  %v486 = vmax.f32 %v420, 0.0
  %v487 = vmax.f32 %v471, 0.0
  %v488 = vmax.f32 %v422, 0.0
  %v489 = vmax.f32 %v424, 0.0
  %v490 = vmax.f32 %v474, 0.0
  %v491 = vmax.f32 %v428, 0.0
  %v492 = vmax.f32 %v430, 0.0
  %v493 = vmax.f32 %v479, 0.0
  %v494 = vmax.f32 %v432, 0.0
  %v495 = vmax.f32 %v434, 0.0
  %v496 = vmax.f32 %v482, 0.0
  %s497 = scalar_lea.vmem %s0, 384
  %v498 = vld [vmem:[%s497] sm:$0xff]
  %v499 = vld [vmem:[%s497 + $0x8] sm:$0xf]
  %v500 = vld [vmem:[%s497 + $0xc] sm:$0xff]
  %v501 = vld [vmem:[%s497 + $0x14] sm:$0xf]
  %v502 = vld [vmem:[%s497 + $0x18] sm:$0xff]
  %v503 = vld [vmem:[%s497 + $0x20] sm:$0xf]
  %v504 = vld [vmem:[%s497 + $0x24] sm:$0xff]
  %v505 = vld [vmem:[%s497 + $0x2c] sm:$0xf]
  %v506 = vld [vmem:[%s497 + $0x30] sm:$0xff]
  %v507 = vld [vmem:[%s497 + $0x38] sm:$0xf]
  %v508 = vld [vmem:[%s497 + $0x3c] sm:$0xff]
  %v509 = vld [vmem:[%s497 + $0x44] sm:$0xf]
  %v510 = vld [vmem:[%s497 + $0x48] sm:$0xff]
  %v511 = vld [vmem:[%s497 + $0x50] sm:$0xf]
  %v512 = vld [vmem:[%s497 + $0x54] sm:$0xff]
  %v513 = vld [vmem:[%s497 + $0x5c] sm:$0xf]
  %v514 = vld [vmem:[%s497 + $0x60] sm:$0xff]
  %v515 = vld [vmem:[%s497 + $0x68] sm:$0xf]
  %v516 = vld [vmem:[%s497 + $0x6c] sm:$0xff]
  %v517 = vld [vmem:[%s497 + $0x74] sm:$0xf]
  %v518 = vld [vmem:[%s497 + $0x78] sm:$0xff]
  %v519 = vld [vmem:[%s497 + $0x80] sm:$0xf]
  %v520 = vld [vmem:[%s497 + $0x84] sm:$0xff]
  %v521 = vld [vmem:[%s497 + $0x8c] sm:$0xf]
  %v522 = vld [vmem:[%s497 + $0x90] sm:$0xff]
  %v523 = vld [vmem:[%s497 + $0x98] sm:$0xf]
  %v524 = vld [vmem:[%s497 + $0x9c] sm:$0xff]
  %v525 = vld [vmem:[%s497 + $0xa4] sm:$0xf]
  %v526 = vld [vmem:[%s497 + $0xa8] sm:$0xff]
  %v527 = vld [vmem:[%s497 + $0xb0] sm:$0xf]
  %v528 = vld [vmem:[%s497 + $0xb4] sm:$0xff]
  %v529 = vld [vmem:[%s497 + $0xbc] sm:$0xf]
  %v530 = vld [vmem:[%s497 + $0xc0] sm:$0xff]
  %v531 = vld [vmem:[%s497 + $0xc8] sm:$0xf]
  %v532 = vld [vmem:[%s497 + $0xcc] sm:$0xff]
  %v533 = vld [vmem:[%s497 + $0xd4] sm:$0xf]
  %v534 = vld [vmem:[%s497 + $0xd8] sm:$0xff]
  %v535 = vld [vmem:[%s497 + $0xe0] sm:$0xf]
  %v536 = vld [vmem:[%s497 + $0xe4] sm:$0xff]
  %v537 = vld [vmem:[%s497 + $0xec] sm:$0xf]
  %v538 = vld [vmem:[%s497 + $0xf0] sm:$0xff]
  %v539 = vld [vmem:[%s497 + $0xf8] sm:$0xf]
  %v540 = vld [vmem:[%s497 + $0xfc] sm:$0xff]
  %v541 = vld [vmem:[%s497 + $0x104] sm:$0xf]
  %v542 = vld [vmem:[%s497 + $0x108] sm:$0xff]
  %v543 = vld [vmem:[%s497 + $0x110] sm:$0xf]
  %v544 = vld [vmem:[%s497 + $0x114] sm:$0xff]
  %v545 = vld [vmem:[%s497 + $0x11c] sm:$0xf]
  %v546 = vld [vmem:[%s497 + $0x120] sm:$0xff]
  %v547 = vld [vmem:[%s497 + $0x128] sm:$0xf]
  %v548 = vld [vmem:[%s497 + $0x12c] sm:$0xff]
  %v549 = vld [vmem:[%s497 + $0x134] sm:$0xf]
  %v550 = vld [vmem:[%s497 + $0x138] sm:$0xff]
  %v551 = vld [vmem:[%s497 + $0x140] sm:$0xf]
  %v552 = vld [vmem:[%s497 + $0x144] sm:$0xff]
  %v553 = vld [vmem:[%s497 + $0x14c] sm:$0xf]
  %v554 = vld [vmem:[%s497 + $0x150] sm:$0xff]
  %v555 = vld [vmem:[%s497 + $0x158] sm:$0xf]
  %v556 = vld [vmem:[%s497 + $0x15c] sm:$0xff]
  %v557 = vld [vmem:[%s497 + $0x164] sm:$0xf]
  %v558 = vld [vmem:[%s497 + $0x168] sm:$0xff]
  %v559 = vld [vmem:[%s497 + $0x170] sm:$0xf]
  %v560 = vld [vmem:[%s497 + $0x174] sm:$0xff]
  %v561 = vld [vmem:[%s497 + $0x17c] sm:$0xf]
  %v626 = vunpack.c.l.b16 %v498
  %v627 = vunpack.c.h.b16 %v498
  %v628 = vunpack.c.l.b16 %v499
  %v629 = vunpack.c.l.b16 %v500
  %v630 = vunpack.c.h.b16 %v500
  %v631 = vunpack.c.l.b16 %v501
  %v632 = vunpack.c.l.b16 %v502
  %v633 = vunpack.c.h.b16 %v502
  %v634 = vunpack.c.l.b16 %v503
  %v635 = vunpack.c.l.b16 %v504
  %v636 = vunpack.c.h.b16 %v504
  %v637 = vunpack.c.l.b16 %v505
  %v638 = vunpack.c.l.b16 %v506
  %v639 = vunpack.c.h.b16 %v506
  %v640 = vunpack.c.l.b16 %v507
  %v641 = vunpack.c.l.b16 %v508
  %v642 = vunpack.c.h.b16 %v508
  %v643 = vunpack.c.l.b16 %v509
  %v644 = vunpack.c.l.b16 %v510
  %v645 = vunpack.c.h.b16 %v510
  %v646 = vunpack.c.l.b16 %v511
  %v647 = vunpack.c.l.b16 %v512
  %v648 = vunpack.c.h.b16 %v512
  %v649 = vunpack.c.l.b16 %v513
  %v650 = vunpack.c.l.b16 %v514
  %v651 = vunpack.c.h.b16 %v514
  %v652 = vunpack.c.l.b16 %v515
  %v653 = vunpack.c.l.b16 %v516
  %v654 = vunpack.c.h.b16 %v516
  %v655 = vunpack.c.l.b16 %v517
  %v656 = vunpack.c.l.b16 %v518
  %v657 = vunpack.c.h.b16 %v518
  %v658 = vunpack.c.l.b16 %v519
  %v659 = vunpack.c.l.b16 %v520
  %v660 = vunpack.c.h.b16 %v520
  %v661 = vunpack.c.l.b16 %v521
  %v662 = vunpack.c.l.b16 %v522
  %v663 = vunpack.c.h.b16 %v522
  %v664 = vunpack.c.l.b16 %v523
  %v665 = vunpack.c.l.b16 %v524
  %v666 = vunpack.c.h.b16 %v524
  %v667 = vunpack.c.l.b16 %v525
  %v668 = vunpack.c.l.b16 %v526
  %v669 = vunpack.c.h.b16 %v526
  %v670 = vunpack.c.l.b16 %v527
  %v671 = vunpack.c.l.b16 %v528
  %v672 = vunpack.c.h.b16 %v528
  %v673 = vunpack.c.l.b16 %v529
  %v674 = vunpack.c.l.b16 %v530
  %v675 = vunpack.c.h.b16 %v530
  %v676 = vunpack.c.l.b16 %v531
  %v677 = vunpack.c.l.b16 %v532
  %v678 = vunpack.c.h.b16 %v532
  %v679 = vunpack.c.l.b16 %v533
  %v680 = vunpack.c.l.b16 %v534
  %v681 = vunpack.c.h.b16 %v534
  %v682 = vunpack.c.l.b16 %v535
  %v683 = vunpack.c.l.b16 %v536
  %v684 = vunpack.c.h.b16 %v536
  %v685 = vunpack.c.l.b16 %v537
  %v686 = vunpack.c.l.b16 %v538
  %v687 = vunpack.c.h.b16 %v538
  %v688 = vunpack.c.l.b16 %v539
  %v689 = vunpack.c.l.b16 %v540
  %v690 = vunpack.c.h.b16 %v540
  %v691 = vunpack.c.l.b16 %v541
  %v692 = vunpack.c.l.b16 %v542
  %v693 = vunpack.c.h.b16 %v542
  %v694 = vunpack.c.l.b16 %v543
  %v695 = vunpack.c.l.b16 %v544
  %v696 = vunpack.c.h.b16 %v544
  %v697 = vunpack.c.l.b16 %v545
  %v698 = vunpack.c.l.b16 %v546
  %v699 = vunpack.c.h.b16 %v546
  %v700 = vunpack.c.l.b16 %v547
  %v701 = vunpack.c.l.b16 %v548
  %v702 = vunpack.c.h.b16 %v548
  %v703 = vunpack.c.l.b16 %v549
  %v704 = vunpack.c.l.b16 %v550
  %v705 = vunpack.c.h.b16 %v550
  %v706 = vunpack.c.l.b16 %v551
  %v707 = vunpack.c.l.b16 %v552
  %v708 = vunpack.c.h.b16 %v552
  %v709 = vunpack.c.l.b16 %v553
  %v710 = vunpack.c.l.b16 %v554
  %v711 = vunpack.c.h.b16 %v554
  %v712 = vunpack.c.l.b16 %v555
  %v713 = vunpack.c.l.b16 %v556
  %v714 = vunpack.c.h.b16 %v556
  %v715 = vunpack.c.l.b16 %v557
  %v716 = vunpack.c.l.b16 %v558
  %v717 = vunpack.c.h.b16 %v558
  %v718 = vunpack.c.l.b16 %v559
  %v719 = vunpack.c.l.b16 %v560
  %v720 = vunpack.c.h.b16 %v560
  %v721 = vunpack.c.l.b16 %v561
  %v722 = vpack.c.b16 %v629, %v626
  %v723 = vpack.c.b16 %v630, %v627
  %v724 = vpack.c.b16 %v631, %v628
  %v725 = vpack.c.b16 %v635, %v632
  %v726 = vpack.c.b16 %v636, %v633
  %v727 = vpack.c.b16 %v637, %v634
  %v728 = vpack.c.b16 %v641, %v638
  %v729 = vpack.c.b16 %v642, %v639
  %v730 = vpack.c.b16 %v643, %v640
  %v731 = vpack.c.b16 %v647, %v644
  %v732 = vpack.c.b16 %v648, %v645
  %v733 = vpack.c.b16 %v649, %v646
  %v734 = vpack.c.b16 %v653, %v650
  %v735 = vpack.c.b16 %v654, %v651
  %v736 = vpack.c.b16 %v655, %v652
  %v737 = vpack.c.b16 %v659, %v656
  %v738 = vpack.c.b16 %v660, %v657
  %v739 = vpack.c.b16 %v661, %v658
  %v740 = vpack.c.b16 %v665, %v662
  %v741 = vpack.c.b16 %v666, %v663
  %v742 = vpack.c.b16 %v667, %v664
  %v743 = vpack.c.b16 %v671, %v668
  %v744 = vpack.c.b16 %v672, %v669
  %v745 = vpack.c.b16 %v673, %v670
  %v746 = vpack.c.b16 %v677, %v674
  %v747 = vpack.c.b16 %v678, %v675
  %v748 = vpack.c.b16 %v679, %v676
  %v749 = vpack.c.b16 %v683, %v680
  %v750 = vpack.c.b16 %v684, %v681
  %v751 = vpack.c.b16 %v685, %v682
  %v752 = vpack.c.b16 %v689, %v686
  %v753 = vpack.c.b16 %v690, %v687
  %v754 = vpack.c.b16 %v691, %v688
  %v755 = vpack.c.b16 %v695, %v692
  %v756 = vpack.c.b16 %v696, %v693
  %v757 = vpack.c.b16 %v697, %v694
  %v758 = vpack.c.b16 %v701, %v698
  %v759 = vpack.c.b16 %v702, %v699
  %v760 = vpack.c.b16 %v703, %v700
  %v761 = vpack.c.b16 %v707, %v704
  %v762 = vpack.c.b16 %v708, %v705
  %v763 = vpack.c.b16 %v709, %v706
  %v764 = vpack.c.b16 %v713, %v710
  %v765 = vpack.c.b16 %v714, %v711
  %v766 = vpack.c.b16 %v715, %v712
  %v767 = vpack.c.b16 %v719, %v716
  %v768 = vpack.c.b16 %v720, %v717
  %v769 = vpack.c.b16 %v721, %v718
  %818 = vmatprep.subr.bf16.mxu0 %v723
  %819 = vmatpush1.bf16.msra.mxu0 %v722
  %820 = vmatprep.subr.bf16.mxu0 %v726
  %821 = vmatpush1.bf16.msra.mxu0 %v725
  %822 = vmatprep.subr.bf16.mxu0 %v729
  %823 = vmatpush1.bf16.msra.mxu0 %v728
  %824 = vmatprep.subr.bf16.mxu0 %v732
  %825 = vmatpush1.bf16.msra.mxu0 %v731
  %826 = vmatprep.subr.bf16.mxu0 %v735
  %827 = vmatpush1.bf16.msra.mxu0 %v734
  %828 = vmatprep.subr.bf16.mxu0 %v738
  %829 = vmatpush1.bf16.msra.mxu0 %v737
  %830 = vmatprep.subr.bf16.mxu0 %v741
  %831 = vmatpush1.bf16.msra.mxu0 %v740
  %832 = vmatprep.subr.bf16.mxu0 %v744
  %833 = vmatpush1.bf16.msra.mxu0 %v743
  %834 = vmatprep.subr.bf16.mxu0 %v747
  %835 = vmatpush1.bf16.msra.mxu0 %v746
  %836 = vmatprep.subr.bf16.mxu0 %v750
  %837 = vmatpush1.bf16.msra.mxu0 %v749
  %838 = vmatprep.subr.bf16.mxu0 %v753
  %839 = vmatpush1.bf16.msra.mxu0 %v752
  %840 = vmatprep.subr.bf16.mxu0 %v756
  %841 = vmatpush1.bf16.msra.mxu0 %v755
  %842 = vmatprep.subr.bf16.mxu0 %v759
  %843 = vmatpush1.bf16.msra.mxu0 %v758
  %844 = vmatprep.subr.bf16.mxu0 %v762
  %845 = vmatpush1.bf16.msra.mxu0 %v761
  %846 = vmatprep.subr.bf16.mxu0 %v765
  %847 = vmatpush1.bf16.msra.mxu0 %v764
  %848 = vmatprep.subr.bf16.mxu0 %v768
  %849 = vmatpush1.bf16.msra.mxu0 %v767
  %850 = vmatprep.mubr.bf16.mxu0 %v120
  %851 = vmatmul.mubr.bf16.gmra.mrb[0].mxu0 %v119
  %v852 = vpop.f32.mrb[0].mxu0
  %v853 = vadd.f32 %v90, %v852
  %v854 = vpop.f32.mrb[0].mxu0
  %v855 = vadd.f32 %v90, %v854
  %v856 = vpop.f32.mrb[0].mxu0
  %v857 = vadd.f32 %v95, %v856
  %v858 = vpop.f32.mrb[0].mxu0
  %v859 = vadd.f32 %v95, %v858
  %860 = vmatprep.mubr.bf16.mxu0 %v122
  %861 = vmatmul.mubr.bf16.gmra.mrb[0].mxu0 %v121
  %v862 = vpop.f32.mrb[0].mxu0
  %v863 = vadd.f32 %v100, %v862
  %v864 = vpop.f32.mrb[0].mxu0
  %v865 = vadd.f32 %v100, %v864
  %v866 = vpop.f32.mrb[0].mxu0
  %v867 = vadd.f32 %v105, %v866
  %v868 = vpop.f32.mrb[0].mxu0
  %v869 = vadd.f32 %v105, %v868
  %870 = vdwg.mxu0
  %871 = vmatprep.subr.bf16.mxu0 0
  %872 = vmatpush1.bf16.msra.mxu0 %v724
  %873 = vmatprep.subr.bf16.mxu0 0
  %874 = vmatpush1.bf16.msra.mxu0 %v727
  %875 = vmatprep.subr.bf16.mxu0 0
  %876 = vmatpush1.bf16.msra.mxu0 %v730
  %877 = vmatprep.subr.bf16.mxu0 0
  %878 = vmatpush1.bf16.msra.mxu0 %v733
  %879 = vmatprep.subr.bf16.mxu0 0
  %880 = vmatpush1.bf16.msra.mxu0 %v736
  %881 = vmatprep.subr.bf16.mxu0 0
  %882 = vmatpush1.bf16.msra.mxu0 %v739
  %883 = vmatprep.subr.bf16.mxu0 0
  %884 = vmatpush1.bf16.msra.mxu0 %v742
  %885 = vmatprep.subr.bf16.mxu0 0
  %886 = vmatpush1.bf16.msra.mxu0 %v745
  %887 = vmatprep.subr.bf16.mxu0 0
  %888 = vmatpush1.bf16.msra.mxu0 %v748
  %889 = vmatprep.subr.bf16.mxu0 0
  %890 = vmatpush1.bf16.msra.mxu0 %v751
  %891 = vmatprep.subr.bf16.mxu0 0
  %892 = vmatpush1.bf16.msra.mxu0 %v754
  %893 = vmatprep.subr.bf16.mxu0 0
  %894 = vmatpush1.bf16.msra.mxu0 %v757
  %895 = vmatprep.subr.bf16.mxu0 0
  %896 = vmatpush1.bf16.msra.mxu0 %v760
  %897 = vmatprep.subr.bf16.mxu0 0
  %898 = vmatpush1.bf16.msra.mxu0 %v763
  %899 = vmatprep.subr.bf16.mxu0 0
  %900 = vmatpush1.bf16.msra.mxu0 %v766
  %901 = vmatprep.subr.bf16.mxu0 0
  %902 = vmatpush1.bf16.msra.mxu0 %v769
  %903 = vmatprep.mubr.bf16.mxu0 %v120
  %904 = vmatmul.mubr.bf16.gmra.mrb[0].mxu0 %v119
  %v905 = vpop.f32.mrb[0].mxu0
  %v906 = vadd.f32 %v90, %v905
  %v907 = vpop.f32.mrb[0].mxu0
  %v908 = vpop.f32.mrb[0].mxu0
  %v909 = vadd.f32 %v95, %v908
  %v910 = vpop.f32.mrb[0].mxu0
  %911 = vmatprep.mubr.bf16.mxu0 %v122
  %912 = vmatmul.mubr.bf16.gmra.mrb[0].mxu0 %v121
  %v913 = vpop.f32.mrb[0].mxu0
  %v914 = vadd.f32 %v100, %v913
  %v915 = vpop.f32.mrb[0].mxu0
  %v916 = vpop.f32.mrb[0].mxu0
  %v917 = vadd.f32 %v105, %v916
  %v918 = vpop.f32.mrb[0].mxu0
  %919 = vdwg.mxu0
  %v920 = vmax.f32 %v853, 0.0
  %v921 = vmax.f32 %v855, 0.0
  %v922 = vmax.f32 %v906, 0.0
  %v923 = vmax.f32 %v857, 0.0
  %v924 = vmax.f32 %v859, 0.0
  %v925 = vmax.f32 %v909, 0.0
  %v926 = vmax.f32 %v863, 0.0
  %v927 = vmax.f32 %v865, 0.0
  %v928 = vmax.f32 %v914, 0.0
  %v929 = vmax.f32 %v867, 0.0
  %v930 = vmax.f32 %v869, 0.0
  %v931 = vmax.f32 %v917, 0.0
  %v932 = vmax.f32 %v485, %v920
  %v933 = vmax.f32 %v486, %v921
  %v934 = vmax.f32 %v487, %v922
  %v935 = vmax.f32 %v488, %v923
  %v936 = vmax.f32 %v489, %v924
  %v937 = vmax.f32 %v490, %v925
  %v938 = vmax.f32 %v491, %v926
  %v939 = vmax.f32 %v492, %v927
  %v940 = vmax.f32 %v493, %v928
  %v941 = vmax.f32 %v494, %v929
  %v942 = vmax.f32 %v495, %v930
  %v943 = vmax.f32 %v496, %v931
  %s944 = scalar_lea.vmem %s0, 768
  %v945 = vld [vmem:[%s944] sm:$0xff]
  %v946 = vld [vmem:[%s944 + $0x8] sm:$0xf]
  %v947 = vld [vmem:[%s944 + $0xc] sm:$0xff]
  %v948 = vld [vmem:[%s944 + $0x14] sm:$0xf]
  %v949 = vld [vmem:[%s944 + $0x18] sm:$0xff]
  %v950 = vld [vmem:[%s944 + $0x20] sm:$0xf]
  %v951 = vld [vmem:[%s944 + $0x24] sm:$0xff]
  %v952 = vld [vmem:[%s944 + $0x2c] sm:$0xf]
  %v953 = vld [vmem:[%s944 + $0x30] sm:$0xff]
  %v954 = vld [vmem:[%s944 + $0x38] sm:$0xf]
  %v955 = vld [vmem:[%s944 + $0x3c] sm:$0xff]
  %v956 = vld [vmem:[%s944 + $0x44] sm:$0xf]
  %v957 = vld [vmem:[%s944 + $0x48] sm:$0xff]
  %v958 = vld [vmem:[%s944 + $0x50] sm:$0xf]
  %v959 = vld [vmem:[%s944 + $0x54] sm:$0xff]
  %v960 = vld [vmem:[%s944 + $0x5c] sm:$0xf]
  %v961 = vld [vmem:[%s944 + $0x60] sm:$0xff]
  %v962 = vld [vmem:[%s944 + $0x68] sm:$0xf]
  %v963 = vld [vmem:[%s944 + $0x6c] sm:$0xff]
  %v964 = vld [vmem:[%s944 + $0x74] sm:$0xf]
  %v965 = vld [vmem:[%s944 + $0x78] sm:$0xff]
  %v966 = vld [vmem:[%s944 + $0x80] sm:$0xf]
  %v967 = vld [vmem:[%s944 + $0x84] sm:$0xff]
  %v968 = vld [vmem:[%s944 + $0x8c] sm:$0xf]
  %v969 = vld [vmem:[%s944 + $0x90] sm:$0xff]
  %v970 = vld [vmem:[%s944 + $0x98] sm:$0xf]
  %v971 = vld [vmem:[%s944 + $0x9c] sm:$0xff]
  %v972 = vld [vmem:[%s944 + $0xa4] sm:$0xf]
  %v973 = vld [vmem:[%s944 + $0xa8] sm:$0xff]
  %v974 = vld [vmem:[%s944 + $0xb0] sm:$0xf]
  %v975 = vld [vmem:[%s944 + $0xb4] sm:$0xff]
  %v976 = vld [vmem:[%s944 + $0xbc] sm:$0xf]
  %v977 = vld [vmem:[%s944 + $0xc0] sm:$0xff]
  %v978 = vld [vmem:[%s944 + $0xc8] sm:$0xf]
  %v979 = vld [vmem:[%s944 + $0xcc] sm:$0xff]
  %v980 = vld [vmem:[%s944 + $0xd4] sm:$0xf]
  %v981 = vld [vmem:[%s944 + $0xd8] sm:$0xff]
  %v982 = vld [vmem:[%s944 + $0xe0] sm:$0xf]
  %v983 = vld [vmem:[%s944 + $0xe4] sm:$0xff]
  %v984 = vld [vmem:[%s944 + $0xec] sm:$0xf]
  %v985 = vld [vmem:[%s944 + $0xf0] sm:$0xff]
  %v986 = vld [vmem:[%s944 + $0xf8] sm:$0xf]
  %v987 = vld [vmem:[%s944 + $0xfc] sm:$0xff]
  %v988 = vld [vmem:[%s944 + $0x104] sm:$0xf]
  %v989 = vld [vmem:[%s944 + $0x108] sm:$0xff]
  %v990 = vld [vmem:[%s944 + $0x110] sm:$0xf]
  %v991 = vld [vmem:[%s944 + $0x114] sm:$0xff]
  %v992 = vld [vmem:[%s944 + $0x11c] sm:$0xf]
  %v993 = vld [vmem:[%s944 + $0x120] sm:$0xff]
  %v994 = vld [vmem:[%s944 + $0x128] sm:$0xf]
  %v995 = vld [vmem:[%s944 + $0x12c] sm:$0xff]
  %v996 = vld [vmem:[%s944 + $0x134] sm:$0xf]
  %v997 = vld [vmem:[%s944 + $0x138] sm:$0xff]
  %v998 = vld [vmem:[%s944 + $0x140] sm:$0xf]
  %v999 = vld [vmem:[%s944 + $0x144] sm:$0xff]
  %v1000 = vld [vmem:[%s944 + $0x14c] sm:$0xf]
  %v1001 = vld [vmem:[%s944 + $0x150] sm:$0xff]
  %v1002 = vld [vmem:[%s944 + $0x158] sm:$0xf]
  %v1003 = vld [vmem:[%s944 + $0x15c] sm:$0xff]
  %v1004 = vld [vmem:[%s944 + $0x164] sm:$0xf]
  %v1005 = vld [vmem:[%s944 + $0x168] sm:$0xff]
  %v1006 = vld [vmem:[%s944 + $0x170] sm:$0xf]
  %v1007 = vld [vmem:[%s944 + $0x174] sm:$0xff]
  %v1008 = vld [vmem:[%s944 + $0x17c] sm:$0xf]
  %v1073 = vunpack.c.l.b16 %v945
  %v1074 = vunpack.c.h.b16 %v945
  %v1075 = vunpack.c.l.b16 %v946
  %v1076 = vunpack.c.l.b16 %v947
  %v1077 = vunpack.c.h.b16 %v947
  %v1078 = vunpack.c.l.b16 %v948
  %v1079 = vunpack.c.l.b16 %v949
  %v1080 = vunpack.c.h.b16 %v949
  %v1081 = vunpack.c.l.b16 %v950
  %v1082 = vunpack.c.l.b16 %v951
  %v1083 = vunpack.c.h.b16 %v951
  %v1084 = vunpack.c.l.b16 %v952
  %v1085 = vunpack.c.l.b16 %v953
  %v1086 = vunpack.c.h.b16 %v953
  %v1087 = vunpack.c.l.b16 %v954
  %v1088 = vunpack.c.l.b16 %v955
  %v1089 = vunpack.c.h.b16 %v955
  %v1090 = vunpack.c.l.b16 %v956
  %v1091 = vunpack.c.l.b16 %v957
  %v1092 = vunpack.c.h.b16 %v957
  %v1093 = vunpack.c.l.b16 %v958
  %v1094 = vunpack.c.l.b16 %v959
  %v1095 = vunpack.c.h.b16 %v959
  %v1096 = vunpack.c.l.b16 %v960
  %v1097 = vunpack.c.l.b16 %v961
  %v1098 = vunpack.c.h.b16 %v961
  %v1099 = vunpack.c.l.b16 %v962
  %v1100 = vunpack.c.l.b16 %v963
  %v1101 = vunpack.c.h.b16 %v963
  %v1102 = vunpack.c.l.b16 %v964
  %v1103 = vunpack.c.l.b16 %v965
  %v1104 = vunpack.c.h.b16 %v965
  %v1105 = vunpack.c.l.b16 %v966
  %v1106 = vunpack.c.l.b16 %v967
  %v1107 = vunpack.c.h.b16 %v967
  %v1108 = vunpack.c.l.b16 %v968
  %v1109 = vunpack.c.l.b16 %v969
  %v1110 = vunpack.c.h.b16 %v969
  %v1111 = vunpack.c.l.b16 %v970
  %v1112 = vunpack.c.l.b16 %v971
  %v1113 = vunpack.c.h.b16 %v971
  %v1114 = vunpack.c.l.b16 %v972
  %v1115 = vunpack.c.l.b16 %v973
  %v1116 = vunpack.c.h.b16 %v973
  %v1117 = vunpack.c.l.b16 %v974
  %v1118 = vunpack.c.l.b16 %v975
  %v1119 = vunpack.c.h.b16 %v975
  %v1120 = vunpack.c.l.b16 %v976
  %v1121 = vunpack.c.l.b16 %v977
  %v1122 = vunpack.c.h.b16 %v977
  %v1123 = vunpack.c.l.b16 %v978
  %v1124 = vunpack.c.l.b16 %v979
  %v1125 = vunpack.c.h.b16 %v979
  %v1126 = vunpack.c.l.b16 %v980
  %v1127 = vunpack.c.l.b16 %v981
  %v1128 = vunpack.c.h.b16 %v981
  %v1129 = vunpack.c.l.b16 %v982
  %v1130 = vunpack.c.l.b16 %v983
  %v1131 = vunpack.c.h.b16 %v983
  %v1132 = vunpack.c.l.b16 %v984
  %v1133 = vunpack.c.l.b16 %v985
  %v1134 = vunpack.c.h.b16 %v985
  %v1135 = vunpack.c.l.b16 %v986
  %v1136 = vunpack.c.l.b16 %v987
  %v1137 = vunpack.c.h.b16 %v987
  %v1138 = vunpack.c.l.b16 %v988
  %v1139 = vunpack.c.l.b16 %v989
  %v1140 = vunpack.c.h.b16 %v989
  %v1141 = vunpack.c.l.b16 %v990
  %v1142 = vunpack.c.l.b16 %v991
  %v1143 = vunpack.c.h.b16 %v991
  %v1144 = vunpack.c.l.b16 %v992
  %v1145 = vunpack.c.l.b16 %v993
  %v1146 = vunpack.c.h.b16 %v993
  %v1147 = vunpack.c.l.b16 %v994
  %v1148 = vunpack.c.l.b16 %v995
  %v1149 = vunpack.c.h.b16 %v995
  %v1150 = vunpack.c.l.b16 %v996
  %v1151 = vunpack.c.l.b16 %v997
  %v1152 = vunpack.c.h.b16 %v997
  %v1153 = vunpack.c.l.b16 %v998
  %v1154 = vunpack.c.l.b16 %v999
  %v1155 = vunpack.c.h.b16 %v999
  %v1156 = vunpack.c.l.b16 %v1000
  %v1157 = vunpack.c.l.b16 %v1001
  %v1158 = vunpack.c.h.b16 %v1001
  %v1159 = vunpack.c.l.b16 %v1002
  %v1160 = vunpack.c.l.b16 %v1003
  %v1161 = vunpack.c.h.b16 %v1003
  %v1162 = vunpack.c.l.b16 %v1004
  %v1163 = vunpack.c.l.b16 %v1005
  %v1164 = vunpack.c.h.b16 %v1005
  %v1165 = vunpack.c.l.b16 %v1006
  %v1166 = vunpack.c.l.b16 %v1007
  %v1167 = vunpack.c.h.b16 %v1007
  %v1168 = vunpack.c.l.b16 %v1008
  %v1169 = vpack.c.b16 %v1076, %v1073
  %v1170 = vpack.c.b16 %v1077, %v1074
  %v1171 = vpack.c.b16 %v1078, %v1075
  %v1172 = vpack.c.b16 %v1082, %v1079
  %v1173 = vpack.c.b16 %v1083, %v1080
  %v1174 = vpack.c.b16 %v1084, %v1081
  %v1175 = vpack.c.b16 %v1088, %v1085
  %v1176 = vpack.c.b16 %v1089, %v1086
  %v1177 = vpack.c.b16 %v1090, %v1087
  %v1178 = vpack.c.b16 %v1094, %v1091
  %v1179 = vpack.c.b16 %v1095, %v1092
  %v1180 = vpack.c.b16 %v1096, %v1093
  %v1181 = vpack.c.b16 %v1100, %v1097
  %v1182 = vpack.c.b16 %v1101, %v1098
  %v1183 = vpack.c.b16 %v1102, %v1099
  %v1184 = vpack.c.b16 %v1106, %v1103
  %v1185 = vpack.c.b16 %v1107, %v1104
  %v1186 = vpack.c.b16 %v1108, %v1105
  %v1187 = vpack.c.b16 %v1112, %v1109
  %v1188 = vpack.c.b16 %v1113, %v1110
  %v1189 = vpack.c.b16 %v1114, %v1111
  %v1190 = vpack.c.b16 %v1118, %v1115
  %v1191 = vpack.c.b16 %v1119, %v1116
  %v1192 = vpack.c.b16 %v1120, %v1117
  %v1193 = vpack.c.b16 %v1124, %v1121
  %v1194 = vpack.c.b16 %v1125, %v1122
  %v1195 = vpack.c.b16 %v1126, %v1123
  %v1196 = vpack.c.b16 %v1130, %v1127
  %v1197 = vpack.c.b16 %v1131, %v1128
  %v1198 = vpack.c.b16 %v1132, %v1129
  %v1199 = vpack.c.b16 %v1136, %v1133
  %v1200 = vpack.c.b16 %v1137, %v1134
  %v1201 = vpack.c.b16 %v1138, %v1135
  %v1202 = vpack.c.b16 %v1142, %v1139
  %v1203 = vpack.c.b16 %v1143, %v1140
  %v1204 = vpack.c.b16 %v1144, %v1141
  %v1205 = vpack.c.b16 %v1148, %v1145
  %v1206 = vpack.c.b16 %v1149, %v1146
  %v1207 = vpack.c.b16 %v1150, %v1147
  %v1208 = vpack.c.b16 %v1154, %v1151
  %v1209 = vpack.c.b16 %v1155, %v1152
  %v1210 = vpack.c.b16 %v1156, %v1153
  %v1211 = vpack.c.b16 %v1160, %v1157
  %v1212 = vpack.c.b16 %v1161, %v1158
  %v1213 = vpack.c.b16 %v1162, %v1159
  %v1214 = vpack.c.b16 %v1166, %v1163
  %v1215 = vpack.c.b16 %v1167, %v1164
  %v1216 = vpack.c.b16 %v1168, %v1165
  %1265 = vmatprep.subr.bf16.mxu0 %v1170
  %1266 = vmatpush1.bf16.msra.mxu0 %v1169
  %1267 = vmatprep.subr.bf16.mxu0 %v1173
  %1268 = vmatpush1.bf16.msra.mxu0 %v1172
  %1269 = vmatprep.subr.bf16.mxu0 %v1176
  %1270 = vmatpush1.bf16.msra.mxu0 %v1175
  %1271 = vmatprep.subr.bf16.mxu0 %v1179
  %1272 = vmatpush1.bf16.msra.mxu0 %v1178
  %1273 = vmatprep.subr.bf16.mxu0 %v1182
  %1274 = vmatpush1.bf16.msra.mxu0 %v1181
  %1275 = vmatprep.subr.bf16.mxu0 %v1185
  %1276 = vmatpush1.bf16.msra.mxu0 %v1184
  %1277 = vmatprep.subr.bf16.mxu0 %v1188
  %1278 = vmatpush1.bf16.msra.mxu0 %v1187
  %1279 = vmatprep.subr.bf16.mxu0 %v1191
  %1280 = vmatpush1.bf16.msra.mxu0 %v1190
  %1281 = vmatprep.subr.bf16.mxu0 %v1194
  %1282 = vmatpush1.bf16.msra.mxu0 %v1193
  %1283 = vmatprep.subr.bf16.mxu0 %v1197
  %1284 = vmatpush1.bf16.msra.mxu0 %v1196
  %1285 = vmatprep.subr.bf16.mxu0 %v1200
  %1286 = vmatpush1.bf16.msra.mxu0 %v1199
  %1287 = vmatprep.subr.bf16.mxu0 %v1203
  %1288 = vmatpush1.bf16.msra.mxu0 %v1202
  %1289 = vmatprep.subr.bf16.mxu0 %v1206
  %1290 = vmatpush1.bf16.msra.mxu0 %v1205
  %1291 = vmatprep.subr.bf16.mxu0 %v1209
  %1292 = vmatpush1.bf16.msra.mxu0 %v1208
  %1293 = vmatprep.subr.bf16.mxu0 %v1212
  %1294 = vmatpush1.bf16.msra.mxu0 %v1211
  %1295 = vmatprep.subr.bf16.mxu0 %v1215
  %1296 = vmatpush1.bf16.msra.mxu0 %v1214
  %1297 = vmatprep.mubr.bf16.mxu0 %v120
  %1298 = vmatmul.mubr.bf16.gmra.mrb[0].mxu0 %v119
  %v1299 = vpop.f32.mrb[0].mxu0
  %v1300 = vadd.f32 %v90, %v1299
  %v1301 = vpop.f32.mrb[0].mxu0
  %v1302 = vadd.f32 %v90, %v1301
  %v1303 = vpop.f32.mrb[0].mxu0
  %v1304 = vadd.f32 %v95, %v1303
  %v1305 = vpop.f32.mrb[0].mxu0
  %v1306 = vadd.f32 %v95, %v1305
  %1307 = vmatprep.mubr.bf16.mxu0 %v122
  %1308 = vmatmul.mubr.bf16.gmra.mrb[0].mxu0 %v121
  %v1309 = vpop.f32.mrb[0].mxu0
  %v1310 = vadd.f32 %v100, %v1309
  %v1311 = vpop.f32.mrb[0].mxu0
  %v1312 = vadd.f32 %v100, %v1311
  %v1313 = vpop.f32.mrb[0].mxu0
  %v1314 = vadd.f32 %v105, %v1313
  %v1315 = vpop.f32.mrb[0].mxu0
  %v1316 = vadd.f32 %v105, %v1315
  %1317 = vdwg.mxu0
  %1318 = vmatprep.subr.bf16.mxu0 0
  %1319 = vmatpush1.bf16.msra.mxu0 %v1171
  %1320 = vmatprep.subr.bf16.mxu0 0
  %1321 = vmatpush1.bf16.msra.mxu0 %v1174
  %1322 = vmatprep.subr.bf16.mxu0 0
  %1323 = vmatpush1.bf16.msra.mxu0 %v1177
  %1324 = vmatprep.subr.bf16.mxu0 0
  %1325 = vmatpush1.bf16.msra.mxu0 %v1180
  %1326 = vmatprep.subr.bf16.mxu0 0
  %1327 = vmatpush1.bf16.msra.mxu0 %v1183
  %1328 = vmatprep.subr.bf16.mxu0 0
  %1329 = vmatpush1.bf16.msra.mxu0 %v1186
  %1330 = vmatprep.subr.bf16.mxu0 0
  %1331 = vmatpush1.bf16.msra.mxu0 %v1189
  %1332 = vmatprep.subr.bf16.mxu0 0
  %1333 = vmatpush1.bf16.msra.mxu0 %v1192
  %1334 = vmatprep.subr.bf16.mxu0 0
  %1335 = vmatpush1.bf16.msra.mxu0 %v1195
  %1336 = vmatprep.subr.bf16.mxu0 0
  %1337 = vmatpush1.bf16.msra.mxu0 %v1198
  %1338 = vmatprep.subr.bf16.mxu0 0
  %1339 = vmatpush1.bf16.msra.mxu0 %v1201
  %1340 = vmatprep.subr.bf16.mxu0 0
  %1341 = vmatpush1.bf16.msra.mxu0 %v1204
  %1342 = vmatprep.subr.bf16.mxu0 0
  %1343 = vmatpush1.bf16.msra.mxu0 %v1207
  %1344 = vmatprep.subr.bf16.mxu0 0
  %1345 = vmatpush1.bf16.msra.mxu0 %v1210
  %1346 = vmatprep.subr.bf16.mxu0 0
  %1347 = vmatpush1.bf16.msra.mxu0 %v1213
  %1348 = vmatprep.subr.bf16.mxu0 0
  %1349 = vmatpush1.bf16.msra.mxu0 %v1216
  %1350 = vmatprep.mubr.bf16.mxu0 %v120
  %1351 = vmatmul.mubr.bf16.gmra.mrb[0].mxu0 %v119
  %v1352 = vpop.f32.mrb[0].mxu0
  %v1353 = vadd.f32 %v90, %v1352
  %v1354 = vpop.f32.mrb[0].mxu0
  %v1355 = vpop.f32.mrb[0].mxu0
  %v1356 = vadd.f32 %v95, %v1355
  %v1357 = vpop.f32.mrb[0].mxu0
  %1358 = vmatprep.mubr.bf16.mxu0 %v122
  %1359 = vmatmul.mubr.bf16.gmra.mrb[0].mxu0 %v121
  %v1360 = vpop.f32.mrb[0].mxu0
  %v1361 = vadd.f32 %v100, %v1360
  %v1362 = vpop.f32.mrb[0].mxu0
  %v1363 = vpop.f32.mrb[0].mxu0
  %v1364 = vadd.f32 %v105, %v1363
  %v1365 = vpop.f32.mrb[0].mxu0
  %1366 = vdwg.mxu0
  %v1367 = vmax.f32 %v1300, 0.0
  %v1368 = vmax.f32 %v1302, 0.0
  %v1369 = vmax.f32 %v1353, 0.0
  %v1370 = vmax.f32 %v1304, 0.0
  %v1371 = vmax.f32 %v1306, 0.0
  %v1372 = vmax.f32 %v1356, 0.0
  %v1373 = vmax.f32 %v1310, 0.0
  %v1374 = vmax.f32 %v1312, 0.0
  %v1375 = vmax.f32 %v1361, 0.0
  %v1376 = vmax.f32 %v1314, 0.0
  %v1377 = vmax.f32 %v1316, 0.0
  %v1378 = vmax.f32 %v1364, 0.0
  %v1379 = vmax.f32 %v932, %v1367
  %v1380 = vmax.f32 %v933, %v1368
  %v1381 = vmax.f32 %v934, %v1369
  %v1382 = vmax.f32 %v935, %v1370
  %v1383 = vmax.f32 %v936, %v1371
  %v1384 = vmax.f32 %v937, %v1372
  %v1385 = vmax.f32 %v938, %v1373
  %v1386 = vmax.f32 %v939, %v1374
  %v1387 = vmax.f32 %v940, %v1375
  %v1388 = vmax.f32 %v941, %v1376
  %v1389 = vmax.f32 %v942, %v1377
  %v1390 = vmax.f32 %v943, %v1378
  %s1391 = scalar_lea.vmem %s0, 1152
  %v1392 = vld [vmem:[%s1391] sm:$0xff]
  %v1393 = vld [vmem:[%s1391 + $0x8] sm:$0xf]
  %v1394 = vld [vmem:[%s1391 + $0xc] sm:$0xff]
  %v1395 = vld [vmem:[%s1391 + $0x14] sm:$0xf]
  %v1396 = vld [vmem:[%s1391 + $0x18] sm:$0xff]
  %v1397 = vld [vmem:[%s1391 + $0x20] sm:$0xf]
  %v1398 = vld [vmem:[%s1391 + $0x24] sm:$0xff]
  %v1399 = vld [vmem:[%s1391 + $0x2c] sm:$0xf]
  %v1400 = vld [vmem:[%s1391 + $0x30] sm:$0xff]
  %v1401 = vld [vmem:[%s1391 + $0x38] sm:$0xf]
  %v1402 = vld [vmem:[%s1391 + $0x3c] sm:$0xff]
  %v1403 = vld [vmem:[%s1391 + $0x44] sm:$0xf]
  %v1404 = vld [vmem:[%s1391 + $0x48] sm:$0xff]
  %v1405 = vld [vmem:[%s1391 + $0x50] sm:$0xf]
  %v1406 = vld [vmem:[%s1391 + $0x54] sm:$0xff]
  %v1407 = vld [vmem:[%s1391 + $0x5c] sm:$0xf]
  %v1408 = vld [vmem:[%s1391 + $0x60] sm:$0xff]
  %v1409 = vld [vmem:[%s1391 + $0x68] sm:$0xf]
  %v1410 = vld [vmem:[%s1391 + $0x6c] sm:$0xff]
  %v1411 = vld [vmem:[%s1391 + $0x74] sm:$0xf]
  %v1412 = vld [vmem:[%s1391 + $0x78] sm:$0xff]
  %v1413 = vld [vmem:[%s1391 + $0x80] sm:$0xf]
  %v1414 = vld [vmem:[%s1391 + $0x84] sm:$0xff]
  %v1415 = vld [vmem:[%s1391 + $0x8c] sm:$0xf]
  %v1416 = vld [vmem:[%s1391 + $0x90] sm:$0xff]
  %v1417 = vld [vmem:[%s1391 + $0x98] sm:$0xf]
  %v1418 = vld [vmem:[%s1391 + $0x9c] sm:$0xff]
  %v1419 = vld [vmem:[%s1391 + $0xa4] sm:$0xf]
  %v1420 = vld [vmem:[%s1391 + $0xa8] sm:$0xff]
  %v1421 = vld [vmem:[%s1391 + $0xb0] sm:$0xf]
  %v1422 = vld [vmem:[%s1391 + $0xb4] sm:$0xff]
  %v1423 = vld [vmem:[%s1391 + $0xbc] sm:$0xf]
  %v1424 = vld [vmem:[%s1391 + $0xc0] sm:$0xff]
  %v1425 = vld [vmem:[%s1391 + $0xc8] sm:$0xf]
  %v1426 = vld [vmem:[%s1391 + $0xcc] sm:$0xff]
  %v1427 = vld [vmem:[%s1391 + $0xd4] sm:$0xf]
  %v1428 = vld [vmem:[%s1391 + $0xd8] sm:$0xff]
  %v1429 = vld [vmem:[%s1391 + $0xe0] sm:$0xf]
  %v1430 = vld [vmem:[%s1391 + $0xe4] sm:$0xff]
  %v1431 = vld [vmem:[%s1391 + $0xec] sm:$0xf]
  %v1432 = vld [vmem:[%s1391 + $0xf0] sm:$0xff]
  %v1433 = vld [vmem:[%s1391 + $0xf8] sm:$0xf]
  %v1434 = vld [vmem:[%s1391 + $0xfc] sm:$0xff]
  %v1435 = vld [vmem:[%s1391 + $0x104] sm:$0xf]
  %v1436 = vld [vmem:[%s1391 + $0x108] sm:$0xff]
  %v1437 = vld [vmem:[%s1391 + $0x110] sm:$0xf]
  %v1438 = vld [vmem:[%s1391 + $0x114] sm:$0xff]
  %v1439 = vld [vmem:[%s1391 + $0x11c] sm:$0xf]
  %v1440 = vld [vmem:[%s1391 + $0x120] sm:$0xff]
  %v1441 = vld [vmem:[%s1391 + $0x128] sm:$0xf]
  %v1442 = vld [vmem:[%s1391 + $0x12c] sm:$0xff]
  %v1443 = vld [vmem:[%s1391 + $0x134] sm:$0xf]
  %v1444 = vld [vmem:[%s1391 + $0x138] sm:$0xff]
  %v1445 = vld [vmem:[%s1391 + $0x140] sm:$0xf]
  %v1446 = vld [vmem:[%s1391 + $0x144] sm:$0xff]
  %v1447 = vld [vmem:[%s1391 + $0x14c] sm:$0xf]
  %v1448 = vld [vmem:[%s1391 + $0x150] sm:$0xff]
  %v1449 = vld [vmem:[%s1391 + $0x158] sm:$0xf]
  %v1450 = vld [vmem:[%s1391 + $0x15c] sm:$0xff]
  %v1451 = vld [vmem:[%s1391 + $0x164] sm:$0xf]
  %v1452 = vld [vmem:[%s1391 + $0x168] sm:$0xff]
  %v1453 = vld [vmem:[%s1391 + $0x170] sm:$0xf]
  %v1454 = vld [vmem:[%s1391 + $0x174] sm:$0xff]
  %v1455 = vld [vmem:[%s1391 + $0x17c] sm:$0xf]
  %v1520 = vunpack.c.l.b16 %v1392
  %v1521 = vunpack.c.h.b16 %v1392
  %v1522 = vunpack.c.l.b16 %v1393
  %v1523 = vunpack.c.l.b16 %v1394
  %v1524 = vunpack.c.h.b16 %v1394
  %v1525 = vunpack.c.l.b16 %v1395
  %v1526 = vunpack.c.l.b16 %v1396
  %v1527 = vunpack.c.h.b16 %v1396
  %v1528 = vunpack.c.l.b16 %v1397
  %v1529 = vunpack.c.l.b16 %v1398
  %v1530 = vunpack.c.h.b16 %v1398
  %v1531 = vunpack.c.l.b16 %v1399
  %v1532 = vunpack.c.l.b16 %v1400
  %v1533 = vunpack.c.h.b16 %v1400
  %v1534 = vunpack.c.l.b16 %v1401
  %v1535 = vunpack.c.l.b16 %v1402
  %v1536 = vunpack.c.h.b16 %v1402
  %v1537 = vunpack.c.l.b16 %v1403
  %v1538 = vunpack.c.l.b16 %v1404
  %v1539 = vunpack.c.h.b16 %v1404
  %v1540 = vunpack.c.l.b16 %v1405
  %v1541 = vunpack.c.l.b16 %v1406
  %v1542 = vunpack.c.h.b16 %v1406
  %v1543 = vunpack.c.l.b16 %v1407
  %v1544 = vunpack.c.l.b16 %v1408
  %v1545 = vunpack.c.h.b16 %v1408
  %v1546 = vunpack.c.l.b16 %v1409
  %v1547 = vunpack.c.l.b16 %v1410
  %v1548 = vunpack.c.h.b16 %v1410
  %v1549 = vunpack.c.l.b16 %v1411
  %v1550 = vunpack.c.l.b16 %v1412
  %v1551 = vunpack.c.h.b16 %v1412
  %v1552 = vunpack.c.l.b16 %v1413
  %v1553 = vunpack.c.l.b16 %v1414
  %v1554 = vunpack.c.h.b16 %v1414
  %v1555 = vunpack.c.l.b16 %v1415
  %v1556 = vunpack.c.l.b16 %v1416
  %v1557 = vunpack.c.h.b16 %v1416
  %v1558 = vunpack.c.l.b16 %v1417
  %v1559 = vunpack.c.l.b16 %v1418
  %v1560 = vunpack.c.h.b16 %v1418
  %v1561 = vunpack.c.l.b16 %v1419
  %v1562 = vunpack.c.l.b16 %v1420
  %v1563 = vunpack.c.h.b16 %v1420
  %v1564 = vunpack.c.l.b16 %v1421
  %v1565 = vunpack.c.l.b16 %v1422
  %v1566 = vunpack.c.h.b16 %v1422
  %v1567 = vunpack.c.l.b16 %v1423
  %v1568 = vunpack.c.l.b16 %v1424
  %v1569 = vunpack.c.h.b16 %v1424
  %v1570 = vunpack.c.l.b16 %v1425
  %v1571 = vunpack.c.l.b16 %v1426
  %v1572 = vunpack.c.h.b16 %v1426
  %v1573 = vunpack.c.l.b16 %v1427
  %v1574 = vunpack.c.l.b16 %v1428
  %v1575 = vunpack.c.h.b16 %v1428
  %v1576 = vunpack.c.l.b16 %v1429
  %v1577 = vunpack.c.l.b16 %v1430
  %v1578 = vunpack.c.h.b16 %v1430
  %v1579 = vunpack.c.l.b16 %v1431
  %v1580 = vunpack.c.l.b16 %v1432
  %v1581 = vunpack.c.h.b16 %v1432
  %v1582 = vunpack.c.l.b16 %v1433
  %v1583 = vunpack.c.l.b16 %v1434
  %v1584 = vunpack.c.h.b16 %v1434
  %v1585 = vunpack.c.l.b16 %v1435
  %v1586 = vunpack.c.l.b16 %v1436
  %v1587 = vunpack.c.h.b16 %v1436
  %v1588 = vunpack.c.l.b16 %v1437
  %v1589 = vunpack.c.l.b16 %v1438
  %v1590 = vunpack.c.h.b16 %v1438
  %v1591 = vunpack.c.l.b16 %v1439
  %v1592 = vunpack.c.l.b16 %v1440
  %v1593 = vunpack.c.h.b16 %v1440
  %v1594 = vunpack.c.l.b16 %v1441
  %v1595 = vunpack.c.l.b16 %v1442
  %v1596 = vunpack.c.h.b16 %v1442
  %v1597 = vunpack.c.l.b16 %v1443
  %v1598 = vunpack.c.l.b16 %v1444
  %v1599 = vunpack.c.h.b16 %v1444
  %v1600 = vunpack.c.l.b16 %v1445
  %v1601 = vunpack.c.l.b16 %v1446
  %v1602 = vunpack.c.h.b16 %v1446
  %v1603 = vunpack.c.l.b16 %v1447
  %v1604 = vunpack.c.l.b16 %v1448
  %v1605 = vunpack.c.h.b16 %v1448
  %v1606 = vunpack.c.l.b16 %v1449
  %v1607 = vunpack.c.l.b16 %v1450
  %v1608 = vunpack.c.h.b16 %v1450
  %v1609 = vunpack.c.l.b16 %v1451
  %v1610 = vunpack.c.l.b16 %v1452
  %v1611 = vunpack.c.h.b16 %v1452
  %v1612 = vunpack.c.l.b16 %v1453
  %v1613 = vunpack.c.l.b16 %v1454
  %v1614 = vunpack.c.h.b16 %v1454
  %v1615 = vunpack.c.l.b16 %v1455
  %v1616 = vpack.c.b16 %v1523, %v1520
  %v1617 = vpack.c.b16 %v1524, %v1521
  %v1618 = vpack.c.b16 %v1525, %v1522
  %v1619 = vpack.c.b16 %v1529, %v1526
  %v1620 = vpack.c.b16 %v1530, %v1527
  %v1621 = vpack.c.b16 %v1531, %v1528
  %v1622 = vpack.c.b16 %v1535, %v1532
  %v1623 = vpack.c.b16 %v1536, %v1533
  %v1624 = vpack.c.b16 %v1537, %v1534
  %v1625 = vpack.c.b16 %v1541, %v1538
  %v1626 = vpack.c.b16 %v1542, %v1539
  %v1627 = vpack.c.b16 %v1543, %v1540
  %v1628 = vpack.c.b16 %v1547, %v1544
  %v1629 = vpack.c.b16 %v1548, %v1545
  %v1630 = vpack.c.b16 %v1549, %v1546
  %v1631 = vpack.c.b16 %v1553, %v1550
  %v1632 = vpack.c.b16 %v1554, %v1551
  %v1633 = vpack.c.b16 %v1555, %v1552
  %v1634 = vpack.c.b16 %v1559, %v1556
  %v1635 = vpack.c.b16 %v1560, %v1557
  %v1636 = vpack.c.b16 %v1561, %v1558
  %v1637 = vpack.c.b16 %v1565, %v1562
  %v1638 = vpack.c.b16 %v1566, %v1563
  %v1639 = vpack.c.b16 %v1567, %v1564
  %v1640 = vpack.c.b16 %v1571, %v1568
  %v1641 = vpack.c.b16 %v1572, %v1569
  %v1642 = vpack.c.b16 %v1573, %v1570
  %v1643 = vpack.c.b16 %v1577, %v1574
  %v1644 = vpack.c.b16 %v1578, %v1575
  %v1645 = vpack.c.b16 %v1579, %v1576
  %v1646 = vpack.c.b16 %v1583, %v1580
  %v1647 = vpack.c.b16 %v1584, %v1581
  %v1648 = vpack.c.b16 %v1585, %v1582
  %v1649 = vpack.c.b16 %v1589, %v1586
  %v1650 = vpack.c.b16 %v1590, %v1587
  %v1651 = vpack.c.b16 %v1591, %v1588
  %v1652 = vpack.c.b16 %v1595, %v1592
  %v1653 = vpack.c.b16 %v1596, %v1593
  %v1654 = vpack.c.b16 %v1597, %v1594
  %v1655 = vpack.c.b16 %v1601, %v1598
  %v1656 = vpack.c.b16 %v1602, %v1599
  %v1657 = vpack.c.b16 %v1603, %v1600
  %v1658 = vpack.c.b16 %v1607, %v1604
  %v1659 = vpack.c.b16 %v1608, %v1605
  %v1660 = vpack.c.b16 %v1609, %v1606
  %v1661 = vpack.c.b16 %v1613, %v1610
  %v1662 = vpack.c.b16 %v1614, %v1611
  %v1663 = vpack.c.b16 %v1615, %v1612
  %1712 = vmatprep.subr.bf16.mxu0 %v1617
  %1713 = vmatpush1.bf16.msra.mxu0 %v1616
  %1714 = vmatprep.subr.bf16.mxu0 %v1620
  %1715 = vmatpush1.bf16.msra.mxu0 %v1619
  %1716 = vmatprep.subr.bf16.mxu0 %v1623
  %1717 = vmatpush1.bf16.msra.mxu0 %v1622
  %1718 = vmatprep.subr.bf16.mxu0 %v1626
  %1719 = vmatpush1.bf16.msra.mxu0 %v1625
  %1720 = vmatprep.subr.bf16.mxu0 %v1629
  %1721 = vmatpush1.bf16.msra.mxu0 %v1628
  %1722 = vmatprep.subr.bf16.mxu0 %v1632
  %1723 = vmatpush1.bf16.msra.mxu0 %v1631
  %1724 = vmatprep.subr.bf16.mxu0 %v1635
  %1725 = vmatpush1.bf16.msra.mxu0 %v1634
  %1726 = vmatprep.subr.bf16.mxu0 %v1638
  %1727 = vmatpush1.bf16.msra.mxu0 %v1637
  %1728 = vmatprep.subr.bf16.mxu0 %v1641
  %1729 = vmatpush1.bf16.msra.mxu0 %v1640
  %1730 = vmatprep.subr.bf16.mxu0 %v1644
  %1731 = vmatpush1.bf16.msra.mxu0 %v1643
  %1732 = vmatprep.subr.bf16.mxu0 %v1647
  %1733 = vmatpush1.bf16.msra.mxu0 %v1646
  %1734 = vmatprep.subr.bf16.mxu0 %v1650
  %1735 = vmatpush1.bf16.msra.mxu0 %v1649
  %1736 = vmatprep.subr.bf16.mxu0 %v1653
  %1737 = vmatpush1.bf16.msra.mxu0 %v1652
  %1738 = vmatprep.subr.bf16.mxu0 %v1656
  %1739 = vmatpush1.bf16.msra.mxu0 %v1655
  %1740 = vmatprep.subr.bf16.mxu0 %v1659
  %1741 = vmatpush1.bf16.msra.mxu0 %v1658
  %1742 = vmatprep.subr.bf16.mxu0 %v1662
  %1743 = vmatpush1.bf16.msra.mxu0 %v1661
  %1744 = vmatprep.mubr.bf16.mxu0 %v120
  %1745 = vmatmul.mubr.bf16.gmra.mrb[0].mxu0 %v119
  %v1746 = vpop.f32.mrb[0].mxu0
  %v1747 = vadd.f32 %v90, %v1746
  %v1748 = vpop.f32.mrb[0].mxu0
  %v1749 = vadd.f32 %v90, %v1748
  %v1750 = vpop.f32.mrb[0].mxu0
  %v1751 = vadd.f32 %v95, %v1750
  %v1752 = vpop.f32.mrb[0].mxu0
  %v1753 = vadd.f32 %v95, %v1752
  %1754 = vmatprep.mubr.bf16.mxu0 %v122
  %1755 = vmatmul.mubr.bf16.gmra.mrb[0].mxu0 %v121
  %v1756 = vpop.f32.mrb[0].mxu0
  %v1757 = vadd.f32 %v100, %v1756
  %v1758 = vpop.f32.mrb[0].mxu0
  %v1759 = vadd.f32 %v100, %v1758
  %v1760 = vpop.f32.mrb[0].mxu0
  %v1761 = vadd.f32 %v105, %v1760
  %v1762 = vpop.f32.mrb[0].mxu0
  %v1763 = vadd.f32 %v105, %v1762
  %1764 = vdwg.mxu0
  %1765 = vmatprep.subr.bf16.mxu0 0
  %1766 = vmatpush1.bf16.msra.mxu0 %v1618
  %1767 = vmatprep.subr.bf16.mxu0 0
  %1768 = vmatpush1.bf16.msra.mxu0 %v1621
  %1769 = vmatprep.subr.bf16.mxu0 0
  %1770 = vmatpush1.bf16.msra.mxu0 %v1624
  %1771 = vmatprep.subr.bf16.mxu0 0
  %1772 = vmatpush1.bf16.msra.mxu0 %v1627
  %1773 = vmatprep.subr.bf16.mxu0 0
  %1774 = vmatpush1.bf16.msra.mxu0 %v1630
  %1775 = vmatprep.subr.bf16.mxu0 0
  %1776 = vmatpush1.bf16.msra.mxu0 %v1633
  %1777 = vmatprep.subr.bf16.mxu0 0
  %1778 = vmatpush1.bf16.msra.mxu0 %v1636
  %1779 = vmatprep.subr.bf16.mxu0 0
  %1780 = vmatpush1.bf16.msra.mxu0 %v1639
  %1781 = vmatprep.subr.bf16.mxu0 0
  %1782 = vmatpush1.bf16.msra.mxu0 %v1642
  %1783 = vmatprep.subr.bf16.mxu0 0
  %1784 = vmatpush1.bf16.msra.mxu0 %v1645
  %1785 = vmatprep.subr.bf16.mxu0 0
  %1786 = vmatpush1.bf16.msra.mxu0 %v1648
  %1787 = vmatprep.subr.bf16.mxu0 0
  %1788 = vmatpush1.bf16.msra.mxu0 %v1651
  %1789 = vmatprep.subr.bf16.mxu0 0
  %1790 = vmatpush1.bf16.msra.mxu0 %v1654
  %1791 = vmatprep.subr.bf16.mxu0 0
  %1792 = vmatpush1.bf16.msra.mxu0 %v1657
  %1793 = vmatprep.subr.bf16.mxu0 0
  %1794 = vmatpush1.bf16.msra.mxu0 %v1660
  %1795 = vmatprep.subr.bf16.mxu0 0
  %1796 = vmatpush1.bf16.msra.mxu0 %v1663
  %1797 = vmatprep.mubr.bf16.mxu0 %v120
  %1798 = vmatmul.mubr.bf16.gmra.mrb[0].mxu0 %v119
  %v1799 = vpop.f32.mrb[0].mxu0
  %v1800 = vadd.f32 %v90, %v1799
  %v1801 = vpop.f32.mrb[0].mxu0
  %v1802 = vpop.f32.mrb[0].mxu0
  %v1803 = vadd.f32 %v95, %v1802
  %v1804 = vpop.f32.mrb[0].mxu0
  %1805 = vmatprep.mubr.bf16.mxu0 %v122
  %1806 = vmatmul.mubr.bf16.gmra.mrb[0].mxu0 %v121
  %v1807 = vpop.f32.mrb[0].mxu0
  %v1808 = vadd.f32 %v100, %v1807
  %v1809 = vpop.f32.mrb[0].mxu0
  %v1810 = vpop.f32.mrb[0].mxu0
  %v1811 = vadd.f32 %v105, %v1810
  %v1812 = vpop.f32.mrb[0].mxu0
  %1813 = vdwg.mxu0
  %v1814 = vmax.f32 %v1747, 0.0
  %v1815 = vmax.f32 %v1749, 0.0
  %v1816 = vmax.f32 %v1800, 0.0
  %v1817 = vmax.f32 %v1751, 0.0
  %v1818 = vmax.f32 %v1753, 0.0
  %v1819 = vmax.f32 %v1803, 0.0
  %v1820 = vmax.f32 %v1757, 0.0
  %v1821 = vmax.f32 %v1759, 0.0
  %v1822 = vmax.f32 %v1808, 0.0
  %v1823 = vmax.f32 %v1761, 0.0
  %v1824 = vmax.f32 %v1763, 0.0
  %v1825 = vmax.f32 %v1811, 0.0
  %v1826 = vmax.f32 %v1379, %v1814
  %v1827 = vmax.f32 %v1380, %v1815
  %v1828 = vmax.f32 %v1381, %v1816
  %v1829 = vmax.f32 %v1382, %v1817
  %v1830 = vmax.f32 %v1383, %v1818
  %v1831 = vmax.f32 %v1384, %v1819
  %v1832 = vmax.f32 %v1385, %v1820
  %v1833 = vmax.f32 %v1386, %v1821
  %v1834 = vmax.f32 %v1387, %v1822
  %v1835 = vmax.f32 %v1388, %v1823
  %v1836 = vmax.f32 %v1389, %v1824
  %v1837 = vmax.f32 %v1390, %v1825
  %1838 = vst [vmem:[%s3] sm:$0xff] %v1826
  %1839 = vst [vmem:[%s3 + $0x8] sm:$0xff] %v1827
  %vm1840 = vcmask 261120
  %1841 = vst.msk [vmem:[%s3 + $0x10] sm:$0xff] %vm1840, %v1828
  %1842 = vst [vmem:[%s3 + $0x18] sm:$0xff] %v1829
  %1843 = vst [vmem:[%s3 + $0x20] sm:$0xff] %v1830
  %1844 = vst.msk [vmem:[%s3 + $0x28] sm:$0xff] %vm1840, %v1831
  %1845 = vst [vmem:[%s3 + $0x30] sm:$0xff] %v1832
  %1846 = vst [vmem:[%s3 + $0x38] sm:$0xff] %v1833
  %1847 = vst.msk [vmem:[%s3 + $0x40] sm:$0xff] %vm1840, %v1834
  %1848 = vst [vmem:[%s3 + $0x48] sm:$0xff] %v1835
  %1849 = vst [vmem:[%s3 + $0x50] sm:$0xff] %v1836
  %1850 = vst.msk [vmem:[%s3 + $0x58] sm:$0xff] %vm1840, %v1837
  // Predicated region
  $region14: #{conv_classifier_forward.7} parent=0 // pred_check
    _
  $region15: #{conv_classifier_forward.7} parent=0 // pred_check_branch
    %1852 = sbr.rel (0) target = $region17
  $region16: #{conv_classifier_forward.7} parent=0 // pred_region
    _
  $region17: #{conv_classifier_forward.7} parent=0 // pred_fallthru
    _
  // Predicated region
  $region18: #{conv_classifier_forward.7} parent=0 // pred_check
    _
  $region19: #{conv_classifier_forward.7} parent=0 // pred_check_branch
    %1854 = sbr.rel (0) target = $region21
  $region20: #{conv_classifier_forward.7} parent=0 // pred_region
    _
  $region21: #{conv_classifier_forward.7} parent=0 // pred_fallthru
    _

// kernel: conv_classifier_forward.8
$region0: #{conv_classifier_forward.8}
  #allocation0 [shape = 'u32[]', space=smem, size = 0x4, offset = 0x4, fixed_abs, tag = 'smem constant byte address 0x4 - core index']
  #allocation1 [shape = 'u32[144,128]{1,0:T(1,128)}', space=vmem, size = 0x12000, scoped, tag = 'internal scratch']
  %s0 = inlined_call_operand.vmem [shape: bf16[4,512,50], index: 0, kind: input, shape index: {}]
  %s1 = inlined_call_operand.vmem [shape: bf16[64,512], index: 1, kind: input, shape index: {}]
  %s2 = inlined_call_operand.vmem [shape: f32[64,1], index: 2, kind: input, shape index: {}]
  %s3 = inlined_call_operand.vmem [shape: f32[64,50], index: 3, kind: output, shape index: {}]
  %s4 = sld [smem:[#allocation0]]
  $region22: #{conv_classifier_forward.8} parent=0
    _
  %s6 = ssub.s32 1, %s4
  %s7 = scalar_select 0, %s6, %s4
  // Predicated region
  $region2: #{conv_classifier_forward.8} parent=0 // pred_check
    _
  $region3: #{conv_classifier_forward.8} parent=0 // pred_check_branch
    %9 = sbr.rel (0) target = $region5
  $region4: #{conv_classifier_forward.8} parent=0 // pred_region
    _
  $region5: #{conv_classifier_forward.8} parent=0 // pred_fallthru
    _
  // Predicated region
  $region6: #{conv_classifier_forward.8} parent=0 // pred_check
    _
  $region7: #{conv_classifier_forward.8} parent=0 // pred_check_branch
    %11 = sbr.rel (0) target = $region9
  $region8: #{conv_classifier_forward.8} parent=0 // pred_region
    _
  $region9: #{conv_classifier_forward.8} parent=0 // pred_fallthru
    _
  // Predicated region
  $region10: #{conv_classifier_forward.8} parent=0 // pred_check
    _
  $region11: #{conv_classifier_forward.8} parent=0 // pred_check_branch
    %13 = sbr.rel (0) target = $region13
  $region12: #{conv_classifier_forward.8} parent=0 // pred_region
    _
  $region13: #{conv_classifier_forward.8} parent=0 // pred_fallthru
    _
  %v15 = vld [vmem:[%s1] sm:$0xff]
  %v16 = vld [vmem:[%s1 + $0x8] sm:$0xff]
  %v17 = vld [vmem:[%s1 + $0x10] sm:$0xff]
  %v18 = vld [vmem:[%s1 + $0x18] sm:$0xff]
  %v19 = vld [vmem:[%s1 + $0x20] sm:$0xff]
  %v20 = vld [vmem:[%s1 + $0x28] sm:$0xff]
  %v21 = vld [vmem:[%s1 + $0x30] sm:$0xff]
  %v22 = vld [vmem:[%s1 + $0x38] sm:$0xff]
  %v23 = vld [vmem:[%s1 + $0x40] sm:$0xff]
  %v24 = vld [vmem:[%s1 + $0x48] sm:$0xff]
  %v25 = vld [vmem:[%s1 + $0x50] sm:$0xff]
  %v26 = vld [vmem:[%s1 + $0x58] sm:$0xff]
  %v27 = vld [vmem:[%s1 + $0x60] sm:$0xff]
  %v28 = vld [vmem:[%s1 + $0x68] sm:$0xff]
  %v29 = vld [vmem:[%s1 + $0x70] sm:$0xff]
  %v30 = vld [vmem:[%s1 + $0x78] sm:$0xff]
  %v31 = vld [vmem:[%s2] sm:$0xff]
  %v32 = vld [vmem:[%s2 + $0x8] sm:$0xff]
  %v33 = vld [vmem:[%s2 + $0x10] sm:$0xff]
  %v34 = vld [vmem:[%s2 + $0x18] sm:$0xff]
  %v35 = vld [vmem:[%s2 + $0x20] sm:$0xff]
  %v36 = vld [vmem:[%s2 + $0x28] sm:$0xff]
  %v37 = vld [vmem:[%s2 + $0x30] sm:$0xff]
  %v38 = vld [vmem:[%s2 + $0x38] sm:$0xff]
  %v39 = vld [vmem:[%s0] sm:$0xf]
  %v40 = vld [vmem:[%s0 + $0x4] sm:$0xf]
  %v41 = vld [vmem:[%s0 + $0x8] sm:$0xf]
  %v42 = vld [vmem:[%s0 + $0xc] sm:$0xf]
  %v43 = vld [vmem:[%s0 + $0x10] sm:$0xf]
  %v44 = vld [vmem:[%s0 + $0x14] sm:$0xf]
  %v45 = vld [vmem:[%s0 + $0x18] sm:$0xf]
  %v46 = vld [vmem:[%s0 + $0x1c] sm:$0xf]
  %v47 = vld [vmem:[%s0 + $0x20] sm:$0xf]
  %v48 = vld [vmem:[%s0 + $0x24] sm:$0xf]
  %v49 = vld [vmem:[%s0 + $0x28] sm:$0xf]
  %v50 = vld [vmem:[%s0 + $0x2c] sm:$0xf]
  %v51 = vld [vmem:[%s0 + $0x30] sm:$0xf]
  %v52 = vld [vmem:[%s0 + $0x34] sm:$0xf]
  %v53 = vld [vmem:[%s0 + $0x38] sm:$0xf]
  %v54 = vld [vmem:[%s0 + $0x3c] sm:$0xf]
  %v55 = vld [vmem:[%s0 + $0x40] sm:$0xf]
  %v56 = vld [vmem:[%s0 + $0x44] sm:$0xf]
  %v57 = vld [vmem:[%s0 + $0x48] sm:$0xf]
  %v58 = vld [vmem:[%s0 + $0x4c] sm:$0xf]
  %v59 = vld [vmem:[%s0 + $0x50] sm:$0xf]
  %v60 = vld [vmem:[%s0 + $0x54] sm:$0xf]
  %v61 = vld [vmem:[%s0 + $0x58] sm:$0xf]
  %v62 = vld [vmem:[%s0 + $0x5c] sm:$0xf]
  %v63 = vld [vmem:[%s0 + $0x60] sm:$0xf]
  %v64 = vld [vmem:[%s0 + $0x64] sm:$0xf]
  %v65 = vld [vmem:[%s0 + $0x68] sm:$0xf]
  %v66 = vld [vmem:[%s0 + $0x6c] sm:$0xf]
  %v67 = vld [vmem:[%s0 + $0x70] sm:$0xf]
  %v68 = vld [vmem:[%s0 + $0x74] sm:$0xf]
  %v69 = vld [vmem:[%s0 + $0x78] sm:$0xf]
  %v70 = vld [vmem:[%s0 + $0x7c] sm:$0xf]
  %v71 = vld [vmem:[%s0 + $0x80] sm:$0xf]
  %v72 = vld [vmem:[%s0 + $0x84] sm:$0xf]
  %v73 = vld [vmem:[%s0 + $0x88] sm:$0xf]
  %v74 = vld [vmem:[%s0 + $0x8c] sm:$0xf]
  %v75 = vld [vmem:[%s0 + $0x90] sm:$0xf]
  %v76 = vld [vmem:[%s0 + $0x94] sm:$0xf]
  %v77 = vld [vmem:[%s0 + $0x98] sm:$0xf]
  %v78 = vld [vmem:[%s0 + $0x9c] sm:$0xf]
  %v79 = vld [vmem:[%s0 + $0xa0] sm:$0xf]
  %v80 = vld [vmem:[%s0 + $0xa4] sm:$0xf]
  %v81 = vld [vmem:[%s0 + $0xa8] sm:$0xf]
  %v82 = vld [vmem:[%s0 + $0xac] sm:$0xf]
  %v83 = vld [vmem:[%s0 + $0xb0] sm:$0xf]
  %v84 = vld [vmem:[%s0 + $0xb4] sm:$0xf]
  %v85 = vld [vmem:[%s0 + $0xb8] sm:$0xf]
  %v86 = vld [vmem:[%s0 + $0xbc] sm:$0xf]
  %v87 = vld [vmem:[%s0 + $0xc0] sm:$0xf]
  %v88 = vld [vmem:[%s0 + $0xc4] sm:$0xf]
  %v89 = vld [vmem:[%s0 + $0xc8] sm:$0xf]
  %v90 = vld [vmem:[%s0 + $0xcc] sm:$0xf]
  %v91 = vld [vmem:[%s0 + $0xd0] sm:$0xf]
  %v92 = vld [vmem:[%s0 + $0xd4] sm:$0xf]
  %v93 = vld [vmem:[%s0 + $0xd8] sm:$0xf]
  %v94 = vld [vmem:[%s0 + $0xdc] sm:$0xf]
  %v95 = vld [vmem:[%s0 + $0xe0] sm:$0xf]
  %v96 = vld [vmem:[%s0 + $0xe4] sm:$0xf]
  %v97 = vld [vmem:[%s0 + $0xe8] sm:$0xf]
  %v98 = vld [vmem:[%s0 + $0xec] sm:$0xf]
  %v99 = vld [vmem:[%s0 + $0xf0] sm:$0xf]
  %v100 = vld [vmem:[%s0 + $0xf4] sm:$0xf]
  %v101 = vld [vmem:[%s0 + $0xf8] sm:$0xf]
  %v102 = vld [vmem:[%s0 + $0xfc] sm:$0xf]
  %104 = vset.pattern.permute.xlu0 0
  %105 = vperm.xlu0 %104, %v31
  %v106 = vpop.permute.xlu0 %105
  %109 = vset.pattern.permute.xlu0 0
  %110 = vperm.xlu0 %109, %v32
  %v111 = vpop.permute.xlu0 %110
  %114 = vset.pattern.permute.xlu0 0
  %115 = vperm.xlu0 %114, %v33
  %v116 = vpop.permute.xlu0 %115
  %119 = vset.pattern.permute.xlu0 0
  %120 = vperm.xlu0 %119, %v34
  %v121 = vpop.permute.xlu0 %120
  %124 = vset.pattern.permute.xlu0 0
  %125 = vperm.xlu0 %124, %v35
  %v126 = vpop.permute.xlu0 %125
  %129 = vset.pattern.permute.xlu0 0
  %130 = vperm.xlu0 %129, %v36
  %v131 = vpop.permute.xlu0 %130
  %134 = vset.pattern.permute.xlu0 0
  %135 = vperm.xlu0 %134, %v37
  %v136 = vpop.permute.xlu0 %135
  %139 = vset.pattern.permute.xlu0 0
  %140 = vperm.xlu0 %139, %v38
  %v141 = vpop.permute.xlu0 %140
  %v159 = vunpack.c.l.b16 %v15
  %v160 = vunpack.c.h.b16 %v15
  %v161 = vunpack.c.l.b16 %v16
  %v162 = vunpack.c.h.b16 %v16
  %v163 = vunpack.c.l.b16 %v17
  %v164 = vunpack.c.h.b16 %v17
  %v165 = vunpack.c.l.b16 %v18
  %v166 = vunpack.c.h.b16 %v18
  %v167 = vunpack.c.l.b16 %v19
  %v168 = vunpack.c.h.b16 %v19
  %v169 = vunpack.c.l.b16 %v20
  %v170 = vunpack.c.h.b16 %v20
  %v171 = vunpack.c.l.b16 %v21
  %v172 = vunpack.c.h.b16 %v21
  %v173 = vunpack.c.l.b16 %v22
  %v174 = vunpack.c.h.b16 %v22
  %v175 = vunpack.c.l.b16 %v23
  %v176 = vunpack.c.h.b16 %v23
  %v177 = vunpack.c.l.b16 %v24
  %v178 = vunpack.c.h.b16 %v24
  %v179 = vunpack.c.l.b16 %v25
  %v180 = vunpack.c.h.b16 %v25
  %v181 = vunpack.c.l.b16 %v26
  %v182 = vunpack.c.h.b16 %v26
  %v183 = vunpack.c.l.b16 %v27
  %v184 = vunpack.c.h.b16 %v27
  %v185 = vunpack.c.l.b16 %v28
  %v186 = vunpack.c.h.b16 %v28
  %v187 = vunpack.c.l.b16 %v29
  %v188 = vunpack.c.h.b16 %v29
  %v189 = vunpack.c.l.b16 %v30
  %v190 = vunpack.c.h.b16 %v30
  %v191 = vpack.c.b16 %v163, %v159
  %v192 = vpack.c.b16 %v164, %v160
  %v193 = vpack.c.b16 %v165, %v161
  %v194 = vpack.c.b16 %v166, %v162
  %v195 = vpack.c.b16 %v171, %v167
  %v196 = vpack.c.b16 %v172, %v168
  %v197 = vpack.c.b16 %v173, %v169
  %v198 = vpack.c.b16 %v174, %v170
  %v199 = vpack.c.b16 %v179, %v175
  %v200 = vpack.c.b16 %v180, %v176
  %v201 = vpack.c.b16 %v181, %v177
  %v202 = vpack.c.b16 %v182, %v178
  %v203 = vpack.c.b16 %v187, %v183
  %v204 = vpack.c.b16 %v188, %v184
  %v205 = vpack.c.b16 %v189, %v185
  %v206 = vpack.c.b16 %v190, %v186
  %v287 = vunpack.c.l.b16 %v39
  %v288 = vunpack.c.l.b16 %v40
  %v289 = vunpack.c.l.b16 %v41
  %v290 = vunpack.c.l.b16 %v42
  %v291 = vunpack.c.l.b16 %v43
  %v292 = vunpack.c.l.b16 %v44
  %v293 = vunpack.c.l.b16 %v45
  %v294 = vunpack.c.l.b16 %v46
  %v295 = vunpack.c.l.b16 %v47
  %v296 = vunpack.c.l.b16 %v48
  %v297 = vunpack.c.l.b16 %v49
  %v298 = vunpack.c.l.b16 %v50
  %v299 = vunpack.c.l.b16 %v51
  %v300 = vunpack.c.l.b16 %v52
  %v301 = vunpack.c.l.b16 %v53
  %v302 = vunpack.c.l.b16 %v54
  %v303 = vunpack.c.l.b16 %v55
  %v304 = vunpack.c.l.b16 %v56
  %v305 = vunpack.c.l.b16 %v57
  %v306 = vunpack.c.l.b16 %v58
  %v307 = vunpack.c.l.b16 %v59
  %v308 = vunpack.c.l.b16 %v60
  %v309 = vunpack.c.l.b16 %v61
  %v310 = vunpack.c.l.b16 %v62
  %v311 = vunpack.c.l.b16 %v63
  %v312 = vunpack.c.l.b16 %v64
  %v313 = vunpack.c.l.b16 %v65
  %v314 = vunpack.c.l.b16 %v66
  %v315 = vunpack.c.l.b16 %v67
  %v316 = vunpack.c.l.b16 %v68
  %v317 = vunpack.c.l.b16 %v69
  %v318 = vunpack.c.l.b16 %v70
  %v319 = vunpack.c.l.b16 %v71
  %v320 = vunpack.c.l.b16 %v72
  %v321 = vunpack.c.l.b16 %v73
  %v322 = vunpack.c.l.b16 %v74
  %v323 = vunpack.c.l.b16 %v75
  %v324 = vunpack.c.l.b16 %v76
  %v325 = vunpack.c.l.b16 %v77
  %v326 = vunpack.c.l.b16 %v78
  %v327 = vunpack.c.l.b16 %v79
  %v328 = vunpack.c.l.b16 %v80
  %v329 = vunpack.c.l.b16 %v81
  %v330 = vunpack.c.l.b16 %v82
  %v331 = vunpack.c.l.b16 %v83
  %v332 = vunpack.c.l.b16 %v84
  %v333 = vunpack.c.l.b16 %v85
  %v334 = vunpack.c.l.b16 %v86
  %v335 = vunpack.c.l.b16 %v87
  %v336 = vunpack.c.l.b16 %v88
  %v337 = vunpack.c.l.b16 %v89
  %v338 = vunpack.c.l.b16 %v90
  %v339 = vunpack.c.l.b16 %v91
  %v340 = vunpack.c.l.b16 %v92
  %v341 = vunpack.c.l.b16 %v93
  %v342 = vunpack.c.l.b16 %v94
  %v343 = vunpack.c.l.b16 %v95
  %v344 = vunpack.c.l.b16 %v96
  %v345 = vunpack.c.l.b16 %v97
  %v346 = vunpack.c.l.b16 %v98
  %v347 = vunpack.c.l.b16 %v99
  %v348 = vunpack.c.l.b16 %v100
  %v349 = vunpack.c.l.b16 %v101
  %v350 = vunpack.c.l.b16 %v102
  %v351 = vpack.c.b16 %v288, %v287
  %v352 = vpack.c.b16 %v290, %v289
  %v353 = vpack.c.b16 %v292, %v291
  %v354 = vpack.c.b16 %v294, %v293
  %v355 = vpack.c.b16 %v296, %v295
  %v356 = vpack.c.b16 %v298, %v297
  %v357 = vpack.c.b16 %v300, %v299
  %v358 = vpack.c.b16 %v302, %v301
  %v359 = vpack.c.b16 %v304, %v303
  %v360 = vpack.c.b16 %v306, %v305
  %v361 = vpack.c.b16 %v308, %v307
  %v362 = vpack.c.b16 %v310, %v309
  %v363 = vpack.c.b16 %v312, %v311
  %v364 = vpack.c.b16 %v314, %v313
  %v365 = vpack.c.b16 %v316, %v315
  %v366 = vpack.c.b16 %v318, %v317
  %v367 = vpack.c.b16 %v320, %v319
  %v368 = vpack.c.b16 %v322, %v321
  %v369 = vpack.c.b16 %v324, %v323
  %v370 = vpack.c.b16 %v326, %v325
  %v371 = vpack.c.b16 %v328, %v327
  %v372 = vpack.c.b16 %v330, %v329
  %v373 = vpack.c.b16 %v332, %v331
  %v374 = vpack.c.b16 %v334, %v333
  %v375 = vpack.c.b16 %v336, %v335
  %v376 = vpack.c.b16 %v338, %v337
  %v377 = vpack.c.b16 %v340, %v339
  %v378 = vpack.c.b16 %v342, %v341
  %v379 = vpack.c.b16 %v344, %v343
  %v380 = vpack.c.b16 %v346, %v345
  %v381 = vpack.c.b16 %v348, %v347
  %v382 = vpack.c.b16 %v350, %v349
  %415 = vmatprep.subr.bf16.mxu0 0
  %416 = vmatpush1.bf16.msra.mxu0 %v351
  %417 = vmatprep.subr.bf16.mxu0 0
  %418 = vmatpush1.bf16.msra.mxu0 %v352
  %419 = vmatprep.subr.bf16.mxu0 0
  %420 = vmatpush1.bf16.msra.mxu0 %v353
  %421 = vmatprep.subr.bf16.mxu0 0
  %422 = vmatpush1.bf16.msra.mxu0 %v354
  %423 = vmatprep.subr.bf16.mxu0 0
  %424 = vmatpush1.bf16.msra.mxu0 %v355
  %425 = vmatprep.subr.bf16.mxu0 0
  %426 = vmatpush1.bf16.msra.mxu0 %v356
  %427 = vmatprep.subr.bf16.mxu0 0
  %428 = vmatpush1.bf16.msra.mxu0 %v357
  %429 = vmatprep.subr.bf16.mxu0 0
  %430 = vmatpush1.bf16.msra.mxu0 %v358
  %431 = vmatprep.subr.bf16.mxu0 0
  %432 = vmatpush1.bf16.msra.mxu0 %v359
  %433 = vmatprep.subr.bf16.mxu0 0
  %434 = vmatpush1.bf16.msra.mxu0 %v360
  %435 = vmatprep.subr.bf16.mxu0 0
  %436 = vmatpush1.bf16.msra.mxu0 %v361
  %437 = vmatprep.subr.bf16.mxu0 0
  %438 = vmatpush1.bf16.msra.mxu0 %v362
  %439 = vmatprep.subr.bf16.mxu0 0
  %440 = vmatpush1.bf16.msra.mxu0 %v363
  %441 = vmatprep.subr.bf16.mxu0 0
  %442 = vmatpush1.bf16.msra.mxu0 %v364
  %443 = vmatprep.subr.bf16.mxu0 0
  %444 = vmatpush1.bf16.msra.mxu0 %v365
  %445 = vmatprep.subr.bf16.mxu0 0
  %446 = vmatpush1.bf16.msra.mxu0 %v366
  %447 = vmatprep.mubr.bf16.mxu0 %v192
  %448 = vmatmul.mubr.bf16.gmra.mrb[0].mxu0 %v191
  %v449 = vpop.f32.mrb[0].mxu0
  %v450 = vadd.f32 %v106, %v449
  %v451 = vpop.f32.mrb[0].mxu0
  %v452 = vpop.f32.mrb[0].mxu0
  %v453 = vadd.f32 %v111, %v452
  %v454 = vpop.f32.mrb[0].mxu0
  %455 = vmatprep.mubr.bf16.mxu0 %v196
  %456 = vmatmul.mubr.bf16.gmra.mrb[0].mxu0 %v195
  %v457 = vpop.f32.mrb[0].mxu0
  %v458 = vadd.f32 %v116, %v457
  %v459 = vpop.f32.mrb[0].mxu0
  %v460 = vpop.f32.mrb[0].mxu0
  %v461 = vadd.f32 %v121, %v460
  %v462 = vpop.f32.mrb[0].mxu0
  %463 = vmatprep.mubr.bf16.mxu0 %v200
  %464 = vmatmul.mubr.bf16.gmra.mrb[0].mxu0 %v199
  %v465 = vpop.f32.mrb[0].mxu0
  %v466 = vadd.f32 %v126, %v465
  %v467 = vpop.f32.mrb[0].mxu0
  %v468 = vpop.f32.mrb[0].mxu0
  %v469 = vadd.f32 %v131, %v468
  %v470 = vpop.f32.mrb[0].mxu0
  %471 = vmatprep.mubr.bf16.mxu0 %v204
  %472 = vmatmul.mubr.bf16.gmra.mrb[0].mxu0 %v203
  %v473 = vpop.f32.mrb[0].mxu0
  %v474 = vadd.f32 %v136, %v473
  %v475 = vpop.f32.mrb[0].mxu0
  %v476 = vpop.f32.mrb[0].mxu0
  %v477 = vadd.f32 %v141, %v476
  %v478 = vpop.f32.mrb[0].mxu0
  %479 = vdwg.mxu0
  %480 = vmatprep.subr.bf16.mxu0 0
  %481 = vmatpush1.bf16.msra.mxu0 %v367
  %482 = vmatprep.subr.bf16.mxu0 0
  %483 = vmatpush1.bf16.msra.mxu0 %v368
  %484 = vmatprep.subr.bf16.mxu0 0
  %485 = vmatpush1.bf16.msra.mxu0 %v369
  %486 = vmatprep.subr.bf16.mxu0 0
  %487 = vmatpush1.bf16.msra.mxu0 %v370
  %488 = vmatprep.subr.bf16.mxu0 0
  %489 = vmatpush1.bf16.msra.mxu0 %v371
  %490 = vmatprep.subr.bf16.mxu0 0
  %491 = vmatpush1.bf16.msra.mxu0 %v372
  %492 = vmatprep.subr.bf16.mxu0 0
  %493 = vmatpush1.bf16.msra.mxu0 %v373
  %494 = vmatprep.subr.bf16.mxu0 0
  %495 = vmatpush1.bf16.msra.mxu0 %v374
  %496 = vmatprep.subr.bf16.mxu0 0
  %497 = vmatpush1.bf16.msra.mxu0 %v375
  %498 = vmatprep.subr.bf16.mxu0 0
  %499 = vmatpush1.bf16.msra.mxu0 %v376
  %500 = vmatprep.subr.bf16.mxu0 0
  %501 = vmatpush1.bf16.msra.mxu0 %v377
  %502 = vmatprep.subr.bf16.mxu0 0
  %503 = vmatpush1.bf16.msra.mxu0 %v378
  %504 = vmatprep.subr.bf16.mxu0 0
  %505 = vmatpush1.bf16.msra.mxu0 %v379
  %506 = vmatprep.subr.bf16.mxu0 0
  %507 = vmatpush1.bf16.msra.mxu0 %v380
  %508 = vmatprep.subr.bf16.mxu0 0
  %509 = vmatpush1.bf16.msra.mxu0 %v381
  %510 = vmatprep.subr.bf16.mxu0 0
  %511 = vmatpush1.bf16.msra.mxu0 %v382
  %512 = vmatprep.mubr.bf16.mxu0 %v194
  %513 = vmatmul.mubr.bf16.gmra.mrb[0].mxu0 %v193
  %v514 = vpop.f32.mrb[0].mxu0
  %v515 = vadd.f32 %v450, %v514
  %v516 = vpop.f32.mrb[0].mxu0
  %v517 = vpop.f32.mrb[0].mxu0
  %v518 = vadd.f32 %v453, %v517
  %v519 = vpop.f32.mrb[0].mxu0
  %520 = vmatprep.mubr.bf16.mxu0 %v198
  %521 = vmatmul.mubr.bf16.gmra.mrb[0].mxu0 %v197
  %v522 = vpop.f32.mrb[0].mxu0
  %v523 = vadd.f32 %v458, %v522
  %v524 = vpop.f32.mrb[0].mxu0
  %v525 = vpop.f32.mrb[0].mxu0
  %v526 = vadd.f32 %v461, %v525
  %v527 = vpop.f32.mrb[0].mxu0
  %528 = vmatprep.mubr.bf16.mxu0 %v202
  %529 = vmatmul.mubr.bf16.gmra.mrb[0].mxu0 %v201
  %v530 = vpop.f32.mrb[0].mxu0
  %v531 = vadd.f32 %v466, %v530
  %v532 = vpop.f32.mrb[0].mxu0
  %v533 = vpop.f32.mrb[0].mxu0
  %v534 = vadd.f32 %v469, %v533
  %v535 = vpop.f32.mrb[0].mxu0
  %536 = vmatprep.mubr.bf16.mxu0 %v206
  %537 = vmatmul.mubr.bf16.gmra.mrb[0].mxu0 %v205
  %v538 = vpop.f32.mrb[0].mxu0
  %v539 = vadd.f32 %v474, %v538
  %v540 = vpop.f32.mrb[0].mxu0
  %v541 = vpop.f32.mrb[0].mxu0
  %v542 = vadd.f32 %v477, %v541
  %v543 = vpop.f32.mrb[0].mxu0
  %544 = vdwg.mxu0
  %v545 = vmax.f32 %v515, 0.0
  %v546 = vmax.f32 %v518, 0.0
  %v547 = vmax.f32 %v523, 0.0
  %v548 = vmax.f32 %v526, 0.0
  %v549 = vmax.f32 %v531, 0.0
  %v550 = vmax.f32 %v534, 0.0
  %v551 = vmax.f32 %v539, 0.0
  %v552 = vmax.f32 %v542, 0.0
  %s553 = scalar_lea.vmem %s0, 256
  %v554 = vld [vmem:[%s553] sm:$0xf]
  %v555 = vld [vmem:[%s553 + $0x4] sm:$0xf]
  %v556 = vld [vmem:[%s553 + $0x8] sm:$0xf]
  %v557 = vld [vmem:[%s553 + $0xc] sm:$0xf]
  %v558 = vld [vmem:[%s553 + $0x10] sm:$0xf]
  %v559 = vld [vmem:[%s553 + $0x14] sm:$0xf]
  %v560 = vld [vmem:[%s553 + $0x18] sm:$0xf]
  %v561 = vld [vmem:[%s553 + $0x1c] sm:$0xf]
  %v562 = vld [vmem:[%s553 + $0x20] sm:$0xf]
  %v563 = vld [vmem:[%s553 + $0x24] sm:$0xf]
  %v564 = vld [vmem:[%s553 + $0x28] sm:$0xf]
  %v565 = vld [vmem:[%s553 + $0x2c] sm:$0xf]
  %v566 = vld [vmem:[%s553 + $0x30] sm:$0xf]
  %v567 = vld [vmem:[%s553 + $0x34] sm:$0xf]
  %v568 = vld [vmem:[%s553 + $0x38] sm:$0xf]
  %v569 = vld [vmem:[%s553 + $0x3c] sm:$0xf]
  %v570 = vld [vmem:[%s553 + $0x40] sm:$0xf]
  %v571 = vld [vmem:[%s553 + $0x44] sm:$0xf]
  %v572 = vld [vmem:[%s553 + $0x48] sm:$0xf]
  %v573 = vld [vmem:[%s553 + $0x4c] sm:$0xf]
  %v574 = vld [vmem:[%s553 + $0x50] sm:$0xf]
  %v575 = vld [vmem:[%s553 + $0x54] sm:$0xf]
  %v576 = vld [vmem:[%s553 + $0x58] sm:$0xf]
  %v577 = vld [vmem:[%s553 + $0x5c] sm:$0xf]
  %v578 = vld [vmem:[%s553 + $0x60] sm:$0xf]
  %v579 = vld [vmem:[%s553 + $0x64] sm:$0xf]
  %v580 = vld [vmem:[%s553 + $0x68] sm:$0xf]
  %v581 = vld [vmem:[%s553 + $0x6c] sm:$0xf]
  %v582 = vld [vmem:[%s553 + $0x70] sm:$0xf]
  %v583 = vld [vmem:[%s553 + $0x74] sm:$0xf]
  %v584 = vld [vmem:[%s553 + $0x78] sm:$0xf]
  %v585 = vld [vmem:[%s553 + $0x7c] sm:$0xf]
  %v586 = vld [vmem:[%s553 + $0x80] sm:$0xf]
  %v587 = vld [vmem:[%s553 + $0x84] sm:$0xf]
  %v588 = vld [vmem:[%s553 + $0x88] sm:$0xf]
  %v589 = vld [vmem:[%s553 + $0x8c] sm:$0xf]
  %v590 = vld [vmem:[%s553 + $0x90] sm:$0xf]
  %v591 = vld [vmem:[%s553 + $0x94] sm:$0xf]
  %v592 = vld [vmem:[%s553 + $0x98] sm:$0xf]
  %v593 = vld [vmem:[%s553 + $0x9c] sm:$0xf]
  %v594 = vld [vmem:[%s553 + $0xa0] sm:$0xf]
  %v595 = vld [vmem:[%s553 + $0xa4] sm:$0xf]
  %v596 = vld [vmem:[%s553 + $0xa8] sm:$0xf]
  %v597 = vld [vmem:[%s553 + $0xac] sm:$0xf]
  %v598 = vld [vmem:[%s553 + $0xb0] sm:$0xf]
  %v599 = vld [vmem:[%s553 + $0xb4] sm:$0xf]
  %v600 = vld [vmem:[%s553 + $0xb8] sm:$0xf]
  %v601 = vld [vmem:[%s553 + $0xbc] sm:$0xf]
  %v602 = vld [vmem:[%s553 + $0xc0] sm:$0xf]
  %v603 = vld [vmem:[%s553 + $0xc4] sm:$0xf]
  %v604 = vld [vmem:[%s553 + $0xc8] sm:$0xf]
  %v605 = vld [vmem:[%s553 + $0xcc] sm:$0xf]
  %v606 = vld [vmem:[%s553 + $0xd0] sm:$0xf]
  %v607 = vld [vmem:[%s553 + $0xd4] sm:$0xf]
  %v608 = vld [vmem:[%s553 + $0xd8] sm:$0xf]
  %v609 = vld [vmem:[%s553 + $0xdc] sm:$0xf]
  %v610 = vld [vmem:[%s553 + $0xe0] sm:$0xf]
  %v611 = vld [vmem:[%s553 + $0xe4] sm:$0xf]
  %v612 = vld [vmem:[%s553 + $0xe8] sm:$0xf]
  %v613 = vld [vmem:[%s553 + $0xec] sm:$0xf]
  %v614 = vld [vmem:[%s553 + $0xf0] sm:$0xf]
  %v615 = vld [vmem:[%s553 + $0xf4] sm:$0xf]
  %v616 = vld [vmem:[%s553 + $0xf8] sm:$0xf]
  %v617 = vld [vmem:[%s553 + $0xfc] sm:$0xf]
  %v682 = vunpack.c.l.b16 %v554
  %v683 = vunpack.c.l.b16 %v555
  %v684 = vunpack.c.l.b16 %v556
  %v685 = vunpack.c.l.b16 %v557
  %v686 = vunpack.c.l.b16 %v558
  %v687 = vunpack.c.l.b16 %v559
  %v688 = vunpack.c.l.b16 %v560
  %v689 = vunpack.c.l.b16 %v561
  %v690 = vunpack.c.l.b16 %v562
  %v691 = vunpack.c.l.b16 %v563
  %v692 = vunpack.c.l.b16 %v564
  %v693 = vunpack.c.l.b16 %v565
  %v694 = vunpack.c.l.b16 %v566
  %v695 = vunpack.c.l.b16 %v567
  %v696 = vunpack.c.l.b16 %v568
  %v697 = vunpack.c.l.b16 %v569
  %v698 = vunpack.c.l.b16 %v570
  %v699 = vunpack.c.l.b16 %v571
  %v700 = vunpack.c.l.b16 %v572
  %v701 = vunpack.c.l.b16 %v573
  %v702 = vunpack.c.l.b16 %v574
  %v703 = vunpack.c.l.b16 %v575
  %v704 = vunpack.c.l.b16 %v576
  %v705 = vunpack.c.l.b16 %v577
  %v706 = vunpack.c.l.b16 %v578
  %v707 = vunpack.c.l.b16 %v579
  %v708 = vunpack.c.l.b16 %v580
  %v709 = vunpack.c.l.b16 %v581
  %v710 = vunpack.c.l.b16 %v582
  %v711 = vunpack.c.l.b16 %v583
  %v712 = vunpack.c.l.b16 %v584
  %v713 = vunpack.c.l.b16 %v585
  %v714 = vunpack.c.l.b16 %v586
  %v715 = vunpack.c.l.b16 %v587
  %v716 = vunpack.c.l.b16 %v588
  %v717 = vunpack.c.l.b16 %v589
  %v718 = vunpack.c.l.b16 %v590
  %v719 = vunpack.c.l.b16 %v591
  %v720 = vunpack.c.l.b16 %v592
  %v721 = vunpack.c.l.b16 %v593
  %v722 = vunpack.c.l.b16 %v594
  %v723 = vunpack.c.l.b16 %v595
  %v724 = vunpack.c.l.b16 %v596
  %v725 = vunpack.c.l.b16 %v597
  %v726 = vunpack.c.l.b16 %v598
  %v727 = vunpack.c.l.b16 %v599
  %v728 = vunpack.c.l.b16 %v600
  %v729 = vunpack.c.l.b16 %v601
  %v730 = vunpack.c.l.b16 %v602
  %v731 = vunpack.c.l.b16 %v603
  %v732 = vunpack.c.l.b16 %v604
  %v733 = vunpack.c.l.b16 %v605
  %v734 = vunpack.c.l.b16 %v606
  %v735 = vunpack.c.l.b16 %v607
  %v736 = vunpack.c.l.b16 %v608
  %v737 = vunpack.c.l.b16 %v609
  %v738 = vunpack.c.l.b16 %v610
  %v739 = vunpack.c.l.b16 %v611
  %v740 = vunpack.c.l.b16 %v612
  %v741 = vunpack.c.l.b16 %v613
  %v742 = vunpack.c.l.b16 %v614
  %v743 = vunpack.c.l.b16 %v615
  %v744 = vunpack.c.l.b16 %v616
  %v745 = vunpack.c.l.b16 %v617
  %v746 = vpack.c.b16 %v683, %v682
  %v747 = vpack.c.b16 %v685, %v684
  %v748 = vpack.c.b16 %v687, %v686
  %v749 = vpack.c.b16 %v689, %v688
  %v750 = vpack.c.b16 %v691, %v690
  %v751 = vpack.c.b16 %v693, %v692
  %v752 = vpack.c.b16 %v695, %v694
  %v753 = vpack.c.b16 %v697, %v696
  %v754 = vpack.c.b16 %v699, %v698
  %v755 = vpack.c.b16 %v701, %v700
  %v756 = vpack.c.b16 %v703, %v702
  %v757 = vpack.c.b16 %v705, %v704
  %v758 = vpack.c.b16 %v707, %v706
  %v759 = vpack.c.b16 %v709, %v708
  %v760 = vpack.c.b16 %v711, %v710
  %v761 = vpack.c.b16 %v713, %v712
  %v762 = vpack.c.b16 %v715, %v714
  %v763 = vpack.c.b16 %v717, %v716
  %v764 = vpack.c.b16 %v719, %v718
  %v765 = vpack.c.b16 %v721, %v720
  %v766 = vpack.c.b16 %v723, %v722
  %v767 = vpack.c.b16 %v725, %v724
  %v768 = vpack.c.b16 %v727, %v726
  %v769 = vpack.c.b16 %v729, %v728
  %v770 = vpack.c.b16 %v731, %v730
  %v771 = vpack.c.b16 %v733, %v732
  %v772 = vpack.c.b16 %v735, %v734
  %v773 = vpack.c.b16 %v737, %v736
  %v774 = vpack.c.b16 %v739, %v738
  %v775 = vpack.c.b16 %v741, %v740
  %v776 = vpack.c.b16 %v743, %v742
  %v777 = vpack.c.b16 %v745, %v744
  %810 = vmatprep.subr.bf16.mxu0 0
  %811 = vmatpush1.bf16.msra.mxu0 %v746
  %812 = vmatprep.subr.bf16.mxu0 0
  %813 = vmatpush1.bf16.msra.mxu0 %v747
  %814 = vmatprep.subr.bf16.mxu0 0
  %815 = vmatpush1.bf16.msra.mxu0 %v748
  %816 = vmatprep.subr.bf16.mxu0 0
  %817 = vmatpush1.bf16.msra.mxu0 %v749
  %818 = vmatprep.subr.bf16.mxu0 0
  %819 = vmatpush1.bf16.msra.mxu0 %v750
  %820 = vmatprep.subr.bf16.mxu0 0
  %821 = vmatpush1.bf16.msra.mxu0 %v751
  %822 = vmatprep.subr.bf16.mxu0 0
  %823 = vmatpush1.bf16.msra.mxu0 %v752
  %824 = vmatprep.subr.bf16.mxu0 0
  %825 = vmatpush1.bf16.msra.mxu0 %v753
  %826 = vmatprep.subr.bf16.mxu0 0
  %827 = vmatpush1.bf16.msra.mxu0 %v754
  %828 = vmatprep.subr.bf16.mxu0 0
  %829 = vmatpush1.bf16.msra.mxu0 %v755
  %830 = vmatprep.subr.bf16.mxu0 0
  %831 = vmatpush1.bf16.msra.mxu0 %v756
  %832 = vmatprep.subr.bf16.mxu0 0
  %833 = vmatpush1.bf16.msra.mxu0 %v757
  %834 = vmatprep.subr.bf16.mxu0 0
  %835 = vmatpush1.bf16.msra.mxu0 %v758
  %836 = vmatprep.subr.bf16.mxu0 0
  %837 = vmatpush1.bf16.msra.mxu0 %v759
  %838 = vmatprep.subr.bf16.mxu0 0
  %839 = vmatpush1.bf16.msra.mxu0 %v760
  %840 = vmatprep.subr.bf16.mxu0 0
  %841 = vmatpush1.bf16.msra.mxu0 %v761
  %842 = vmatprep.mubr.bf16.mxu0 %v192
  %843 = vmatmul.mubr.bf16.gmra.mrb[0].mxu0 %v191
  %v844 = vpop.f32.mrb[0].mxu0
  %v845 = vadd.f32 %v106, %v844
  %v846 = vpop.f32.mrb[0].mxu0
  %v847 = vpop.f32.mrb[0].mxu0
  %v848 = vadd.f32 %v111, %v847
  %v849 = vpop.f32.mrb[0].mxu0
  %850 = vmatprep.mubr.bf16.mxu0 %v196
  %851 = vmatmul.mubr.bf16.gmra.mrb[0].mxu0 %v195
  %v852 = vpop.f32.mrb[0].mxu0
  %v853 = vadd.f32 %v116, %v852
  %v854 = vpop.f32.mrb[0].mxu0
  %v855 = vpop.f32.mrb[0].mxu0
  %v856 = vadd.f32 %v121, %v855
  %v857 = vpop.f32.mrb[0].mxu0
  %858 = vmatprep.mubr.bf16.mxu0 %v200
  %859 = vmatmul.mubr.bf16.gmra.mrb[0].mxu0 %v199
  %v860 = vpop.f32.mrb[0].mxu0
  %v861 = vadd.f32 %v126, %v860
  %v862 = vpop.f32.mrb[0].mxu0
  %v863 = vpop.f32.mrb[0].mxu0
  %v864 = vadd.f32 %v131, %v863
  %v865 = vpop.f32.mrb[0].mxu0
  %866 = vmatprep.mubr.bf16.mxu0 %v204
  %867 = vmatmul.mubr.bf16.gmra.mrb[0].mxu0 %v203
  %v868 = vpop.f32.mrb[0].mxu0
  %v869 = vadd.f32 %v136, %v868
  %v870 = vpop.f32.mrb[0].mxu0
  %v871 = vpop.f32.mrb[0].mxu0
  %v872 = vadd.f32 %v141, %v871
  %v873 = vpop.f32.mrb[0].mxu0
  %874 = vdwg.mxu0
  %875 = vmatprep.subr.bf16.mxu0 0
  %876 = vmatpush1.bf16.msra.mxu0 %v762
  %877 = vmatprep.subr.bf16.mxu0 0
  %878 = vmatpush1.bf16.msra.mxu0 %v763
  %879 = vmatprep.subr.bf16.mxu0 0
  %880 = vmatpush1.bf16.msra.mxu0 %v764
  %881 = vmatprep.subr.bf16.mxu0 0
  %882 = vmatpush1.bf16.msra.mxu0 %v765
  %883 = vmatprep.subr.bf16.mxu0 0
  %884 = vmatpush1.bf16.msra.mxu0 %v766
  %885 = vmatprep.subr.bf16.mxu0 0
  %886 = vmatpush1.bf16.msra.mxu0 %v767
  %887 = vmatprep.subr.bf16.mxu0 0
  %888 = vmatpush1.bf16.msra.mxu0 %v768
  %889 = vmatprep.subr.bf16.mxu0 0
  %890 = vmatpush1.bf16.msra.mxu0 %v769
  %891 = vmatprep.subr.bf16.mxu0 0
  %892 = vmatpush1.bf16.msra.mxu0 %v770
  %893 = vmatprep.subr.bf16.mxu0 0
  %894 = vmatpush1.bf16.msra.mxu0 %v771
  %895 = vmatprep.subr.bf16.mxu0 0
  %896 = vmatpush1.bf16.msra.mxu0 %v772
  %897 = vmatprep.subr.bf16.mxu0 0
  %898 = vmatpush1.bf16.msra.mxu0 %v773
  %899 = vmatprep.subr.bf16.mxu0 0
  %900 = vmatpush1.bf16.msra.mxu0 %v774
  %901 = vmatprep.subr.bf16.mxu0 0
  %902 = vmatpush1.bf16.msra.mxu0 %v775
  %903 = vmatprep.subr.bf16.mxu0 0
  %904 = vmatpush1.bf16.msra.mxu0 %v776
  %905 = vmatprep.subr.bf16.mxu0 0
  %906 = vmatpush1.bf16.msra.mxu0 %v777
  %907 = vmatprep.mubr.bf16.mxu0 %v194
  %908 = vmatmul.mubr.bf16.gmra.mrb[0].mxu0 %v193
  %v909 = vpop.f32.mrb[0].mxu0
  %v910 = vadd.f32 %v845, %v909
  %v911 = vpop.f32.mrb[0].mxu0
  %v912 = vpop.f32.mrb[0].mxu0
  %v913 = vadd.f32 %v848, %v912
  %v914 = vpop.f32.mrb[0].mxu0
  %915 = vmatprep.mubr.bf16.mxu0 %v198
  %916 = vmatmul.mubr.bf16.gmra.mrb[0].mxu0 %v197
  %v917 = vpop.f32.mrb[0].mxu0
  %v918 = vadd.f32 %v853, %v917
  %v919 = vpop.f32.mrb[0].mxu0
  %v920 = vpop.f32.mrb[0].mxu0
  %v921 = vadd.f32 %v856, %v920
  %v922 = vpop.f32.mrb[0].mxu0
  %923 = vmatprep.mubr.bf16.mxu0 %v202
  %924 = vmatmul.mubr.bf16.gmra.mrb[0].mxu0 %v201
  %v925 = vpop.f32.mrb[0].mxu0
  %v926 = vadd.f32 %v861, %v925
  %v927 = vpop.f32.mrb[0].mxu0
  %v928 = vpop.f32.mrb[0].mxu0
  %v929 = vadd.f32 %v864, %v928
  %v930 = vpop.f32.mrb[0].mxu0
  %931 = vmatprep.mubr.bf16.mxu0 %v206
  %932 = vmatmul.mubr.bf16.gmra.mrb[0].mxu0 %v205
  %v933 = vpop.f32.mrb[0].mxu0
  %v934 = vadd.f32 %v869, %v933
  %v935 = vpop.f32.mrb[0].mxu0
  %v936 = vpop.f32.mrb[0].mxu0
  %v937 = vadd.f32 %v872, %v936
  %v938 = vpop.f32.mrb[0].mxu0
  %939 = vdwg.mxu0
  %v940 = vmax.f32 %v910, 0.0
  %v941 = vmax.f32 %v913, 0.0
  %v942 = vmax.f32 %v918, 0.0
  %v943 = vmax.f32 %v921, 0.0
  %v944 = vmax.f32 %v926, 0.0
  %v945 = vmax.f32 %v929, 0.0
  %v946 = vmax.f32 %v934, 0.0
  %v947 = vmax.f32 %v937, 0.0
  %v948 = vmax.f32 %v545, %v940
  %v949 = vmax.f32 %v546, %v941
  %v950 = vmax.f32 %v547, %v942
  %v951 = vmax.f32 %v548, %v943
  %v952 = vmax.f32 %v549, %v944
  %v953 = vmax.f32 %v550, %v945
  %v954 = vmax.f32 %v551, %v946
  %v955 = vmax.f32 %v552, %v947
  %s956 = scalar_lea.vmem %s0, 512
  %v957 = vld [vmem:[%s956] sm:$0xf]
  %v958 = vld [vmem:[%s956 + $0x4] sm:$0xf]
  %v959 = vld [vmem:[%s956 + $0x8] sm:$0xf]
  %v960 = vld [vmem:[%s956 + $0xc] sm:$0xf]
  %v961 = vld [vmem:[%s956 + $0x10] sm:$0xf]
  %v962 = vld [vmem:[%s956 + $0x14] sm:$0xf]
  %v963 = vld [vmem:[%s956 + $0x18] sm:$0xf]
  %v964 = vld [vmem:[%s956 + $0x1c] sm:$0xf]
  %v965 = vld [vmem:[%s956 + $0x20] sm:$0xf]
  %v966 = vld [vmem:[%s956 + $0x24] sm:$0xf]
  %v967 = vld [vmem:[%s956 + $0x28] sm:$0xf]
  %v968 = vld [vmem:[%s956 + $0x2c] sm:$0xf]
  %v969 = vld [vmem:[%s956 + $0x30] sm:$0xf]
  %v970 = vld [vmem:[%s956 + $0x34] sm:$0xf]
  %v971 = vld [vmem:[%s956 + $0x38] sm:$0xf]
  %v972 = vld [vmem:[%s956 + $0x3c] sm:$0xf]
  %v973 = vld [vmem:[%s956 + $0x40] sm:$0xf]
  %v974 = vld [vmem:[%s956 + $0x44] sm:$0xf]
  %v975 = vld [vmem:[%s956 + $0x48] sm:$0xf]
  %v976 = vld [vmem:[%s956 + $0x4c] sm:$0xf]
  %v977 = vld [vmem:[%s956 + $0x50] sm:$0xf]
  %v978 = vld [vmem:[%s956 + $0x54] sm:$0xf]
  %v979 = vld [vmem:[%s956 + $0x58] sm:$0xf]
  %v980 = vld [vmem:[%s956 + $0x5c] sm:$0xf]
  %v981 = vld [vmem:[%s956 + $0x60] sm:$0xf]
  %v982 = vld [vmem:[%s956 + $0x64] sm:$0xf]
  %v983 = vld [vmem:[%s956 + $0x68] sm:$0xf]
  %v984 = vld [vmem:[%s956 + $0x6c] sm:$0xf]
  %v985 = vld [vmem:[%s956 + $0x70] sm:$0xf]
  %v986 = vld [vmem:[%s956 + $0x74] sm:$0xf]
  %v987 = vld [vmem:[%s956 + $0x78] sm:$0xf]
  %v988 = vld [vmem:[%s956 + $0x7c] sm:$0xf]
  %v989 = vld [vmem:[%s956 + $0x80] sm:$0xf]
  %v990 = vld [vmem:[%s956 + $0x84] sm:$0xf]
  %v991 = vld [vmem:[%s956 + $0x88] sm:$0xf]
  %v992 = vld [vmem:[%s956 + $0x8c] sm:$0xf]
  %v993 = vld [vmem:[%s956 + $0x90] sm:$0xf]
  %v994 = vld [vmem:[%s956 + $0x94] sm:$0xf]
  %v995 = vld [vmem:[%s956 + $0x98] sm:$0xf]
  %v996 = vld [vmem:[%s956 + $0x9c] sm:$0xf]
  %v997 = vld [vmem:[%s956 + $0xa0] sm:$0xf]
  %v998 = vld [vmem:[%s956 + $0xa4] sm:$0xf]
  %v999 = vld [vmem:[%s956 + $0xa8] sm:$0xf]
  %v1000 = vld [vmem:[%s956 + $0xac] sm:$0xf]
  %v1001 = vld [vmem:[%s956 + $0xb0] sm:$0xf]
  %v1002 = vld [vmem:[%s956 + $0xb4] sm:$0xf]
  %v1003 = vld [vmem:[%s956 + $0xb8] sm:$0xf]
  %v1004 = vld [vmem:[%s956 + $0xbc] sm:$0xf]
  %v1005 = vld [vmem:[%s956 + $0xc0] sm:$0xf]
  %v1006 = vld [vmem:[%s956 + $0xc4] sm:$0xf]
  %v1007 = vld [vmem:[%s956 + $0xc8] sm:$0xf]
  %v1008 = vld [vmem:[%s956 + $0xcc] sm:$0xf]
  %v1009 = vld [vmem:[%s956 + $0xd0] sm:$0xf]
  %v1010 = vld [vmem:[%s956 + $0xd4] sm:$0xf]
  %v1011 = vld [vmem:[%s956 + $0xd8] sm:$0xf]
  %v1012 = vld [vmem:[%s956 + $0xdc] sm:$0xf]
  %v1013 = vld [vmem:[%s956 + $0xe0] sm:$0xf]
  %v1014 = vld [vmem:[%s956 + $0xe4] sm:$0xf]
  %v1015 = vld [vmem:[%s956 + $0xe8] sm:$0xf]
  %v1016 = vld [vmem:[%s956 + $0xec] sm:$0xf]
  %v1017 = vld [vmem:[%s956 + $0xf0] sm:$0xf]
  %v1018 = vld [vmem:[%s956 + $0xf4] sm:$0xf]
  %v1019 = vld [vmem:[%s956 + $0xf8] sm:$0xf]
  %v1020 = vld [vmem:[%s956 + $0xfc] sm:$0xf]
  %v1085 = vunpack.c.l.b16 %v957
  %v1086 = vunpack.c.l.b16 %v958
  %v1087 = vunpack.c.l.b16 %v959
  %v1088 = vunpack.c.l.b16 %v960
  %v1089 = vunpack.c.l.b16 %v961
  %v1090 = vunpack.c.l.b16 %v962
  %v1091 = vunpack.c.l.b16 %v963
  %v1092 = vunpack.c.l.b16 %v964
  %v1093 = vunpack.c.l.b16 %v965
  %v1094 = vunpack.c.l.b16 %v966
  %v1095 = vunpack.c.l.b16 %v967
  %v1096 = vunpack.c.l.b16 %v968
  %v1097 = vunpack.c.l.b16 %v969
  %v1098 = vunpack.c.l.b16 %v970
  %v1099 = vunpack.c.l.b16 %v971
  %v1100 = vunpack.c.l.b16 %v972
  %v1101 = vunpack.c.l.b16 %v973
  %v1102 = vunpack.c.l.b16 %v974
  %v1103 = vunpack.c.l.b16 %v975
  %v1104 = vunpack.c.l.b16 %v976
  %v1105 = vunpack.c.l.b16 %v977
  %v1106 = vunpack.c.l.b16 %v978
  %v1107 = vunpack.c.l.b16 %v979
  %v1108 = vunpack.c.l.b16 %v980
  %v1109 = vunpack.c.l.b16 %v981
  %v1110 = vunpack.c.l.b16 %v982
  %v1111 = vunpack.c.l.b16 %v983
  %v1112 = vunpack.c.l.b16 %v984
  %v1113 = vunpack.c.l.b16 %v985
  %v1114 = vunpack.c.l.b16 %v986
  %v1115 = vunpack.c.l.b16 %v987
  %v1116 = vunpack.c.l.b16 %v988
  %v1117 = vunpack.c.l.b16 %v989
  %v1118 = vunpack.c.l.b16 %v990
  %v1119 = vunpack.c.l.b16 %v991
  %v1120 = vunpack.c.l.b16 %v992
  %v1121 = vunpack.c.l.b16 %v993
  %v1122 = vunpack.c.l.b16 %v994
  %v1123 = vunpack.c.l.b16 %v995
  %v1124 = vunpack.c.l.b16 %v996
  %v1125 = vunpack.c.l.b16 %v997
  %v1126 = vunpack.c.l.b16 %v998
  %v1127 = vunpack.c.l.b16 %v999
  %v1128 = vunpack.c.l.b16 %v1000
  %v1129 = vunpack.c.l.b16 %v1001
  %v1130 = vunpack.c.l.b16 %v1002
  %v1131 = vunpack.c.l.b16 %v1003
  %v1132 = vunpack.c.l.b16 %v1004
  %v1133 = vunpack.c.l.b16 %v1005
  %v1134 = vunpack.c.l.b16 %v1006
  %v1135 = vunpack.c.l.b16 %v1007
  %v1136 = vunpack.c.l.b16 %v1008
  %v1137 = vunpack.c.l.b16 %v1009
  %v1138 = vunpack.c.l.b16 %v1010
  %v1139 = vunpack.c.l.b16 %v1011
  %v1140 = vunpack.c.l.b16 %v1012
  %v1141 = vunpack.c.l.b16 %v1013
  %v1142 = vunpack.c.l.b16 %v1014
  %v1143 = vunpack.c.l.b16 %v1015
  %v1144 = vunpack.c.l.b16 %v1016
  %v1145 = vunpack.c.l.b16 %v1017
  %v1146 = vunpack.c.l.b16 %v1018
  %v1147 = vunpack.c.l.b16 %v1019
  %v1148 = vunpack.c.l.b16 %v1020
  %v1149 = vpack.c.b16 %v1086, %v1085
  %v1150 = vpack.c.b16 %v1088, %v1087
  %v1151 = vpack.c.b16 %v1090, %v1089
  %v1152 = vpack.c.b16 %v1092, %v1091
  %v1153 = vpack.c.b16 %v1094, %v1093
  %v1154 = vpack.c.b16 %v1096, %v1095
  %v1155 = vpack.c.b16 %v1098, %v1097
  %v1156 = vpack.c.b16 %v1100, %v1099
  %v1157 = vpack.c.b16 %v1102, %v1101
  %v1158 = vpack.c.b16 %v1104, %v1103
  %v1159 = vpack.c.b16 %v1106, %v1105
  %v1160 = vpack.c.b16 %v1108, %v1107
  %v1161 = vpack.c.b16 %v1110, %v1109
  %v1162 = vpack.c.b16 %v1112, %v1111
  %v1163 = vpack.c.b16 %v1114, %v1113
  %v1164 = vpack.c.b16 %v1116, %v1115
  %v1165 = vpack.c.b16 %v1118, %v1117
  %v1166 = vpack.c.b16 %v1120, %v1119
  %v1167 = vpack.c.b16 %v1122, %v1121
  %v1168 = vpack.c.b16 %v1124, %v1123
  %v1169 = vpack.c.b16 %v1126, %v1125
  %v1170 = vpack.c.b16 %v1128, %v1127
  %v1171 = vpack.c.b16 %v1130, %v1129
  %v1172 = vpack.c.b16 %v1132, %v1131
  %v1173 = vpack.c.b16 %v1134, %v1133
  %v1174 = vpack.c.b16 %v1136, %v1135
  %v1175 = vpack.c.b16 %v1138, %v1137
  %v1176 = vpack.c.b16 %v1140, %v1139
  %v1177 = vpack.c.b16 %v1142, %v1141
  %v1178 = vpack.c.b16 %v1144, %v1143
  %v1179 = vpack.c.b16 %v1146, %v1145
  %v1180 = vpack.c.b16 %v1148, %v1147
  %1213 = vmatprep.subr.bf16.mxu0 0
  %1214 = vmatpush1.bf16.msra.mxu0 %v1149
  %1215 = vmatprep.subr.bf16.mxu0 0
  %1216 = vmatpush1.bf16.msra.mxu0 %v1150
  %1217 = vmatprep.subr.bf16.mxu0 0
  %1218 = vmatpush1.bf16.msra.mxu0 %v1151
  %1219 = vmatprep.subr.bf16.mxu0 0
  %1220 = vmatpush1.bf16.msra.mxu0 %v1152
  %1221 = vmatprep.subr.bf16.mxu0 0
  %1222 = vmatpush1.bf16.msra.mxu0 %v1153
  %1223 = vmatprep.subr.bf16.mxu0 0
  %1224 = vmatpush1.bf16.msra.mxu0 %v1154
  %1225 = vmatprep.subr.bf16.mxu0 0
  %1226 = vmatpush1.bf16.msra.mxu0 %v1155
  %1227 = vmatprep.subr.bf16.mxu0 0
  %1228 = vmatpush1.bf16.msra.mxu0 %v1156
  %1229 = vmatprep.subr.bf16.mxu0 0
  %1230 = vmatpush1.bf16.msra.mxu0 %v1157
  %1231 = vmatprep.subr.bf16.mxu0 0
  %1232 = vmatpush1.bf16.msra.mxu0 %v1158
  %1233 = vmatprep.subr.bf16.mxu0 0
  %1234 = vmatpush1.bf16.msra.mxu0 %v1159
  %1235 = vmatprep.subr.bf16.mxu0 0
  %1236 = vmatpush1.bf16.msra.mxu0 %v1160
  %1237 = vmatprep.subr.bf16.mxu0 0
  %1238 = vmatpush1.bf16.msra.mxu0 %v1161
  %1239 = vmatprep.subr.bf16.mxu0 0
  %1240 = vmatpush1.bf16.msra.mxu0 %v1162
  %1241 = vmatprep.subr.bf16.mxu0 0
  %1242 = vmatpush1.bf16.msra.mxu0 %v1163
  %1243 = vmatprep.subr.bf16.mxu0 0
  %1244 = vmatpush1.bf16.msra.mxu0 %v1164
  %1245 = vmatprep.mubr.bf16.mxu0 %v192
  %1246 = vmatmul.mubr.bf16.gmra.mrb[0].mxu0 %v191
  %v1247 = vpop.f32.mrb[0].mxu0
  %v1248 = vadd.f32 %v106, %v1247
  %v1249 = vpop.f32.mrb[0].mxu0
  %v1250 = vpop.f32.mrb[0].mxu0
  %v1251 = vadd.f32 %v111, %v1250
  %v1252 = vpop.f32.mrb[0].mxu0
  %1253 = vmatprep.mubr.bf16.mxu0 %v196
  %1254 = vmatmul.mubr.bf16.gmra.mrb[0].mxu0 %v195
  %v1255 = vpop.f32.mrb[0].mxu0
  %v1256 = vadd.f32 %v116, %v1255
  %v1257 = vpop.f32.mrb[0].mxu0
  %v1258 = vpop.f32.mrb[0].mxu0
  %v1259 = vadd.f32 %v121, %v1258
  %v1260 = vpop.f32.mrb[0].mxu0
  %1261 = vmatprep.mubr.bf16.mxu0 %v200
  %1262 = vmatmul.mubr.bf16.gmra.mrb[0].mxu0 %v199
  %v1263 = vpop.f32.mrb[0].mxu0
  %v1264 = vadd.f32 %v126, %v1263
  %v1265 = vpop.f32.mrb[0].mxu0
  %v1266 = vpop.f32.mrb[0].mxu0
  %v1267 = vadd.f32 %v131, %v1266
  %v1268 = vpop.f32.mrb[0].mxu0
  %1269 = vmatprep.mubr.bf16.mxu0 %v204
  %1270 = vmatmul.mubr.bf16.gmra.mrb[0].mxu0 %v203
  %v1271 = vpop.f32.mrb[0].mxu0
  %v1272 = vadd.f32 %v136, %v1271
  %v1273 = vpop.f32.mrb[0].mxu0
  %v1274 = vpop.f32.mrb[0].mxu0
  %v1275 = vadd.f32 %v141, %v1274
  %v1276 = vpop.f32.mrb[0].mxu0
  %1277 = vdwg.mxu0
  %1278 = vmatprep.subr.bf16.mxu0 0
  %1279 = vmatpush1.bf16.msra.mxu0 %v1165
  %1280 = vmatprep.subr.bf16.mxu0 0
  %1281 = vmatpush1.bf16.msra.mxu0 %v1166
  %1282 = vmatprep.subr.bf16.mxu0 0
  %1283 = vmatpush1.bf16.msra.mxu0 %v1167
  %1284 = vmatprep.subr.bf16.mxu0 0
  %1285 = vmatpush1.bf16.msra.mxu0 %v1168
  %1286 = vmatprep.subr.bf16.mxu0 0
  %1287 = vmatpush1.bf16.msra.mxu0 %v1169
  %1288 = vmatprep.subr.bf16.mxu0 0
  %1289 = vmatpush1.bf16.msra.mxu0 %v1170
  %1290 = vmatprep.subr.bf16.mxu0 0
  %1291 = vmatpush1.bf16.msra.mxu0 %v1171
  %1292 = vmatprep.subr.bf16.mxu0 0
  %1293 = vmatpush1.bf16.msra.mxu0 %v1172
  %1294 = vmatprep.subr.bf16.mxu0 0
  %1295 = vmatpush1.bf16.msra.mxu0 %v1173
  %1296 = vmatprep.subr.bf16.mxu0 0
  %1297 = vmatpush1.bf16.msra.mxu0 %v1174
  %1298 = vmatprep.subr.bf16.mxu0 0
  %1299 = vmatpush1.bf16.msra.mxu0 %v1175
  %1300 = vmatprep.subr.bf16.mxu0 0
  %1301 = vmatpush1.bf16.msra.mxu0 %v1176
  %1302 = vmatprep.subr.bf16.mxu0 0
  %1303 = vmatpush1.bf16.msra.mxu0 %v1177
  %1304 = vmatprep.subr.bf16.mxu0 0
  %1305 = vmatpush1.bf16.msra.mxu0 %v1178
  %1306 = vmatprep.subr.bf16.mxu0 0
  %1307 = vmatpush1.bf16.msra.mxu0 %v1179
  %1308 = vmatprep.subr.bf16.mxu0 0
  %1309 = vmatpush1.bf16.msra.mxu0 %v1180
  %1310 = vmatprep.mubr.bf16.mxu0 %v194
  %1311 = vmatmul.mubr.bf16.gmra.mrb[0].mxu0 %v193
  %v1312 = vpop.f32.mrb[0].mxu0
  %v1313 = vadd.f32 %v1248, %v1312
  %v1314 = vpop.f32.mrb[0].mxu0
  %v1315 = vpop.f32.mrb[0].mxu0
  %v1316 = vadd.f32 %v1251, %v1315
  %v1317 = vpop.f32.mrb[0].mxu0
  %1318 = vmatprep.mubr.bf16.mxu0 %v198
  %1319 = vmatmul.mubr.bf16.gmra.mrb[0].mxu0 %v197
  %v1320 = vpop.f32.mrb[0].mxu0
  %v1321 = vadd.f32 %v1256, %v1320
  %v1322 = vpop.f32.mrb[0].mxu0
  %v1323 = vpop.f32.mrb[0].mxu0
  %v1324 = vadd.f32 %v1259, %v1323
  %v1325 = vpop.f32.mrb[0].mxu0
  %1326 = vmatprep.mubr.bf16.mxu0 %v202
  %1327 = vmatmul.mubr.bf16.gmra.mrb[0].mxu0 %v201
  %v1328 = vpop.f32.mrb[0].mxu0
  %v1329 = vadd.f32 %v1264, %v1328
  %v1330 = vpop.f32.mrb[0].mxu0
  %v1331 = vpop.f32.mrb[0].mxu0
  %v1332 = vadd.f32 %v1267, %v1331
  %v1333 = vpop.f32.mrb[0].mxu0
  %1334 = vmatprep.mubr.bf16.mxu0 %v206
  %1335 = vmatmul.mubr.bf16.gmra.mrb[0].mxu0 %v205
  %v1336 = vpop.f32.mrb[0].mxu0
  %v1337 = vadd.f32 %v1272, %v1336
  %v1338 = vpop.f32.mrb[0].mxu0
  %v1339 = vpop.f32.mrb[0].mxu0
  %v1340 = vadd.f32 %v1275, %v1339
  %v1341 = vpop.f32.mrb[0].mxu0
  %1342 = vdwg.mxu0
  %v1343 = vmax.f32 %v1313, 0.0
  %v1344 = vmax.f32 %v1316, 0.0
  %v1345 = vmax.f32 %v1321, 0.0
  %v1346 = vmax.f32 %v1324, 0.0
  %v1347 = vmax.f32 %v1329, 0.0
  %v1348 = vmax.f32 %v1332, 0.0
  %v1349 = vmax.f32 %v1337, 0.0
  %v1350 = vmax.f32 %v1340, 0.0
  %v1351 = vmax.f32 %v948, %v1343
  %v1352 = vmax.f32 %v949, %v1344
  %v1353 = vmax.f32 %v950, %v1345
  %v1354 = vmax.f32 %v951, %v1346
  %v1355 = vmax.f32 %v952, %v1347
  %v1356 = vmax.f32 %v953, %v1348
  %v1357 = vmax.f32 %v954, %v1349
  %v1358 = vmax.f32 %v955, %v1350
  %s1359 = scalar_lea.vmem %s0, 768
  %v1360 = vld [vmem:[%s1359] sm:$0xf]
  %v1361 = vld [vmem:[%s1359 + $0x4] sm:$0xf]
  %v1362 = vld [vmem:[%s1359 + $0x8] sm:$0xf]
  %v1363 = vld [vmem:[%s1359 + $0xc] sm:$0xf]
  %v1364 = vld [vmem:[%s1359 + $0x10] sm:$0xf]
  %v1365 = vld [vmem:[%s1359 + $0x14] sm:$0xf]
  %v1366 = vld [vmem:[%s1359 + $0x18] sm:$0xf]
  %v1367 = vld [vmem:[%s1359 + $0x1c] sm:$0xf]
  %v1368 = vld [vmem:[%s1359 + $0x20] sm:$0xf]
  %v1369 = vld [vmem:[%s1359 + $0x24] sm:$0xf]
  %v1370 = vld [vmem:[%s1359 + $0x28] sm:$0xf]
  %v1371 = vld [vmem:[%s1359 + $0x2c] sm:$0xf]
  %v1372 = vld [vmem:[%s1359 + $0x30] sm:$0xf]
  %v1373 = vld [vmem:[%s1359 + $0x34] sm:$0xf]
  %v1374 = vld [vmem:[%s1359 + $0x38] sm:$0xf]
  %v1375 = vld [vmem:[%s1359 + $0x3c] sm:$0xf]
  %v1376 = vld [vmem:[%s1359 + $0x40] sm:$0xf]
  %v1377 = vld [vmem:[%s1359 + $0x44] sm:$0xf]
  %v1378 = vld [vmem:[%s1359 + $0x48] sm:$0xf]
  %v1379 = vld [vmem:[%s1359 + $0x4c] sm:$0xf]
  %v1380 = vld [vmem:[%s1359 + $0x50] sm:$0xf]
  %v1381 = vld [vmem:[%s1359 + $0x54] sm:$0xf]
  %v1382 = vld [vmem:[%s1359 + $0x58] sm:$0xf]
  %v1383 = vld [vmem:[%s1359 + $0x5c] sm:$0xf]
  %v1384 = vld [vmem:[%s1359 + $0x60] sm:$0xf]
  %v1385 = vld [vmem:[%s1359 + $0x64] sm:$0xf]
  %v1386 = vld [vmem:[%s1359 + $0x68] sm:$0xf]
  %v1387 = vld [vmem:[%s1359 + $0x6c] sm:$0xf]
  %v1388 = vld [vmem:[%s1359 + $0x70] sm:$0xf]
  %v1389 = vld [vmem:[%s1359 + $0x74] sm:$0xf]
  %v1390 = vld [vmem:[%s1359 + $0x78] sm:$0xf]
  %v1391 = vld [vmem:[%s1359 + $0x7c] sm:$0xf]
  %v1392 = vld [vmem:[%s1359 + $0x80] sm:$0xf]
  %v1393 = vld [vmem:[%s1359 + $0x84] sm:$0xf]
  %v1394 = vld [vmem:[%s1359 + $0x88] sm:$0xf]
  %v1395 = vld [vmem:[%s1359 + $0x8c] sm:$0xf]
  %v1396 = vld [vmem:[%s1359 + $0x90] sm:$0xf]
  %v1397 = vld [vmem:[%s1359 + $0x94] sm:$0xf]
  %v1398 = vld [vmem:[%s1359 + $0x98] sm:$0xf]
  %v1399 = vld [vmem:[%s1359 + $0x9c] sm:$0xf]
  %v1400 = vld [vmem:[%s1359 + $0xa0] sm:$0xf]
  %v1401 = vld [vmem:[%s1359 + $0xa4] sm:$0xf]
  %v1402 = vld [vmem:[%s1359 + $0xa8] sm:$0xf]
  %v1403 = vld [vmem:[%s1359 + $0xac] sm:$0xf]
  %v1404 = vld [vmem:[%s1359 + $0xb0] sm:$0xf]
  %v1405 = vld [vmem:[%s1359 + $0xb4] sm:$0xf]
  %v1406 = vld [vmem:[%s1359 + $0xb8] sm:$0xf]
  %v1407 = vld [vmem:[%s1359 + $0xbc] sm:$0xf]
  %v1408 = vld [vmem:[%s1359 + $0xc0] sm:$0xf]
  %v1409 = vld [vmem:[%s1359 + $0xc4] sm:$0xf]
  %v1410 = vld [vmem:[%s1359 + $0xc8] sm:$0xf]
  %v1411 = vld [vmem:[%s1359 + $0xcc] sm:$0xf]
  %v1412 = vld [vmem:[%s1359 + $0xd0] sm:$0xf]
  %v1413 = vld [vmem:[%s1359 + $0xd4] sm:$0xf]
  %v1414 = vld [vmem:[%s1359 + $0xd8] sm:$0xf]
  %v1415 = vld [vmem:[%s1359 + $0xdc] sm:$0xf]
  %v1416 = vld [vmem:[%s1359 + $0xe0] sm:$0xf]
  %v1417 = vld [vmem:[%s1359 + $0xe4] sm:$0xf]
  %v1418 = vld [vmem:[%s1359 + $0xe8] sm:$0xf]
  %v1419 = vld [vmem:[%s1359 + $0xec] sm:$0xf]
  %v1420 = vld [vmem:[%s1359 + $0xf0] sm:$0xf]
  %v1421 = vld [vmem:[%s1359 + $0xf4] sm:$0xf]
  %v1422 = vld [vmem:[%s1359 + $0xf8] sm:$0xf]
  %v1423 = vld [vmem:[%s1359 + $0xfc] sm:$0xf]
  %v1488 = vunpack.c.l.b16 %v1360
  %v1489 = vunpack.c.l.b16 %v1361
  %v1490 = vunpack.c.l.b16 %v1362
  %v1491 = vunpack.c.l.b16 %v1363
  %v1492 = vunpack.c.l.b16 %v1364
  %v1493 = vunpack.c.l.b16 %v1365
  %v1494 = vunpack.c.l.b16 %v1366
  %v1495 = vunpack.c.l.b16 %v1367
  %v1496 = vunpack.c.l.b16 %v1368
  %v1497 = vunpack.c.l.b16 %v1369
  %v1498 = vunpack.c.l.b16 %v1370
  %v1499 = vunpack.c.l.b16 %v1371
  %v1500 = vunpack.c.l.b16 %v1372
  %v1501 = vunpack.c.l.b16 %v1373
  %v1502 = vunpack.c.l.b16 %v1374
  %v1503 = vunpack.c.l.b16 %v1375
  %v1504 = vunpack.c.l.b16 %v1376
  %v1505 = vunpack.c.l.b16 %v1377
  %v1506 = vunpack.c.l.b16 %v1378
  %v1507 = vunpack.c.l.b16 %v1379
  %v1508 = vunpack.c.l.b16 %v1380
  %v1509 = vunpack.c.l.b16 %v1381
  %v1510 = vunpack.c.l.b16 %v1382
  %v1511 = vunpack.c.l.b16 %v1383
  %v1512 = vunpack.c.l.b16 %v1384
  %v1513 = vunpack.c.l.b16 %v1385
  %v1514 = vunpack.c.l.b16 %v1386
  %v1515 = vunpack.c.l.b16 %v1387
  %v1516 = vunpack.c.l.b16 %v1388
  %v1517 = vunpack.c.l.b16 %v1389
  %v1518 = vunpack.c.l.b16 %v1390
  %v1519 = vunpack.c.l.b16 %v1391
  %v1520 = vunpack.c.l.b16 %v1392
  %v1521 = vunpack.c.l.b16 %v1393
  %v1522 = vunpack.c.l.b16 %v1394
  %v1523 = vunpack.c.l.b16 %v1395
  %v1524 = vunpack.c.l.b16 %v1396
  %v1525 = vunpack.c.l.b16 %v1397
  %v1526 = vunpack.c.l.b16 %v1398
  %v1527 = vunpack.c.l.b16 %v1399
  %v1528 = vunpack.c.l.b16 %v1400
  %v1529 = vunpack.c.l.b16 %v1401
  %v1530 = vunpack.c.l.b16 %v1402
  %v1531 = vunpack.c.l.b16 %v1403
  %v1532 = vunpack.c.l.b16 %v1404
  %v1533 = vunpack.c.l.b16 %v1405
  %v1534 = vunpack.c.l.b16 %v1406
  %v1535 = vunpack.c.l.b16 %v1407
  %v1536 = vunpack.c.l.b16 %v1408
  %v1537 = vunpack.c.l.b16 %v1409
  %v1538 = vunpack.c.l.b16 %v1410
  %v1539 = vunpack.c.l.b16 %v1411
  %v1540 = vunpack.c.l.b16 %v1412
  %v1541 = vunpack.c.l.b16 %v1413
  %v1542 = vunpack.c.l.b16 %v1414
  %v1543 = vunpack.c.l.b16 %v1415
  %v1544 = vunpack.c.l.b16 %v1416
  %v1545 = vunpack.c.l.b16 %v1417
  %v1546 = vunpack.c.l.b16 %v1418
  %v1547 = vunpack.c.l.b16 %v1419
  %v1548 = vunpack.c.l.b16 %v1420
  %v1549 = vunpack.c.l.b16 %v1421
  %v1550 = vunpack.c.l.b16 %v1422
  %v1551 = vunpack.c.l.b16 %v1423
  %v1552 = vpack.c.b16 %v1489, %v1488
  %v1553 = vpack.c.b16 %v1491, %v1490
  %v1554 = vpack.c.b16 %v1493, %v1492
  %v1555 = vpack.c.b16 %v1495, %v1494
  %v1556 = vpack.c.b16 %v1497, %v1496
  %v1557 = vpack.c.b16 %v1499, %v1498
  %v1558 = vpack.c.b16 %v1501, %v1500
  %v1559 = vpack.c.b16 %v1503, %v1502
  %v1560 = vpack.c.b16 %v1505, %v1504
  %v1561 = vpack.c.b16 %v1507, %v1506
  %v1562 = vpack.c.b16 %v1509, %v1508
  %v1563 = vpack.c.b16 %v1511, %v1510
  %v1564 = vpack.c.b16 %v1513, %v1512
  %v1565 = vpack.c.b16 %v1515, %v1514
  %v1566 = vpack.c.b16 %v1517, %v1516
  %v1567 = vpack.c.b16 %v1519, %v1518
  %v1568 = vpack.c.b16 %v1521, %v1520
  %v1569 = vpack.c.b16 %v1523, %v1522
  %v1570 = vpack.c.b16 %v1525, %v1524
  %v1571 = vpack.c.b16 %v1527, %v1526
  %v1572 = vpack.c.b16 %v1529, %v1528
  %v1573 = vpack.c.b16 %v1531, %v1530
  %v1574 = vpack.c.b16 %v1533, %v1532
  %v1575 = vpack.c.b16 %v1535, %v1534
  %v1576 = vpack.c.b16 %v1537, %v1536
  %v1577 = vpack.c.b16 %v1539, %v1538
  %v1578 = vpack.c.b16 %v1541, %v1540
  %v1579 = vpack.c.b16 %v1543, %v1542
  %v1580 = vpack.c.b16 %v1545, %v1544
  %v1581 = vpack.c.b16 %v1547, %v1546
  %v1582 = vpack.c.b16 %v1549, %v1548
  %v1583 = vpack.c.b16 %v1551, %v1550
  %1616 = vmatprep.subr.bf16.mxu0 0
  %1617 = vmatpush1.bf16.msra.mxu0 %v1552
  %1618 = vmatprep.subr.bf16.mxu0 0
  %1619 = vmatpush1.bf16.msra.mxu0 %v1553
  %1620 = vmatprep.subr.bf16.mxu0 0
  %1621 = vmatpush1.bf16.msra.mxu0 %v1554
  %1622 = vmatprep.subr.bf16.mxu0 0
  %1623 = vmatpush1.bf16.msra.mxu0 %v1555
  %1624 = vmatprep.subr.bf16.mxu0 0
  %1625 = vmatpush1.bf16.msra.mxu0 %v1556
  %1626 = vmatprep.subr.bf16.mxu0 0
  %1627 = vmatpush1.bf16.msra.mxu0 %v1557
  %1628 = vmatprep.subr.bf16.mxu0 0
  %1629 = vmatpush1.bf16.msra.mxu0 %v1558
  %1630 = vmatprep.subr.bf16.mxu0 0
  %1631 = vmatpush1.bf16.msra.mxu0 %v1559
  %1632 = vmatprep.subr.bf16.mxu0 0
  %1633 = vmatpush1.bf16.msra.mxu0 %v1560
  %1634 = vmatprep.subr.bf16.mxu0 0
  %1635 = vmatpush1.bf16.msra.mxu0 %v1561
  %1636 = vmatprep.subr.bf16.mxu0 0
  %1637 = vmatpush1.bf16.msra.mxu0 %v1562
  %1638 = vmatprep.subr.bf16.mxu0 0
  %1639 = vmatpush1.bf16.msra.mxu0 %v1563
  %1640 = vmatprep.subr.bf16.mxu0 0
  %1641 = vmatpush1.bf16.msra.mxu0 %v1564
  %1642 = vmatprep.subr.bf16.mxu0 0
  %1643 = vmatpush1.bf16.msra.mxu0 %v1565
  %1644 = vmatprep.subr.bf16.mxu0 0
  %1645 = vmatpush1.bf16.msra.mxu0 %v1566
  %1646 = vmatprep.subr.bf16.mxu0 0
  %1647 = vmatpush1.bf16.msra.mxu0 %v1567
  %1648 = vmatprep.mubr.bf16.mxu0 %v192
  %1649 = vmatmul.mubr.bf16.gmra.mrb[0].mxu0 %v191
  %v1650 = vpop.f32.mrb[0].mxu0
  %v1651 = vadd.f32 %v106, %v1650
  %v1652 = vpop.f32.mrb[0].mxu0
  %v1653 = vpop.f32.mrb[0].mxu0
  %v1654 = vadd.f32 %v111, %v1653
  %v1655 = vpop.f32.mrb[0].mxu0
  %1656 = vmatprep.mubr.bf16.mxu0 %v196
  %1657 = vmatmul.mubr.bf16.gmra.mrb[0].mxu0 %v195
  %v1658 = vpop.f32.mrb[0].mxu0
  %v1659 = vadd.f32 %v116, %v1658
  %v1660 = vpop.f32.mrb[0].mxu0
  %v1661 = vpop.f32.mrb[0].mxu0
  %v1662 = vadd.f32 %v121, %v1661
  %v1663 = vpop.f32.mrb[0].mxu0
  %1664 = vmatprep.mubr.bf16.mxu0 %v200
  %1665 = vmatmul.mubr.bf16.gmra.mrb[0].mxu0 %v199
  %v1666 = vpop.f32.mrb[0].mxu0
  %v1667 = vadd.f32 %v126, %v1666
  %v1668 = vpop.f32.mrb[0].mxu0
  %v1669 = vpop.f32.mrb[0].mxu0
  %v1670 = vadd.f32 %v131, %v1669
  %v1671 = vpop.f32.mrb[0].mxu0
  %1672 = vmatprep.mubr.bf16.mxu0 %v204
  %1673 = vmatmul.mubr.bf16.gmra.mrb[0].mxu0 %v203
  %v1674 = vpop.f32.mrb[0].mxu0
  %v1675 = vadd.f32 %v136, %v1674
  %v1676 = vpop.f32.mrb[0].mxu0
  %v1677 = vpop.f32.mrb[0].mxu0
  %v1678 = vadd.f32 %v141, %v1677
  %v1679 = vpop.f32.mrb[0].mxu0
  %1680 = vdwg.mxu0
  %1681 = vmatprep.subr.bf16.mxu0 0
  %1682 = vmatpush1.bf16.msra.mxu0 %v1568
  %1683 = vmatprep.subr.bf16.mxu0 0
  %1684 = vmatpush1.bf16.msra.mxu0 %v1569
  %1685 = vmatprep.subr.bf16.mxu0 0
  %1686 = vmatpush1.bf16.msra.mxu0 %v1570
  %1687 = vmatprep.subr.bf16.mxu0 0
  %1688 = vmatpush1.bf16.msra.mxu0 %v1571
  %1689 = vmatprep.subr.bf16.mxu0 0
  %1690 = vmatpush1.bf16.msra.mxu0 %v1572
  %1691 = vmatprep.subr.bf16.mxu0 0
  %1692 = vmatpush1.bf16.msra.mxu0 %v1573
  %1693 = vmatprep.subr.bf16.mxu0 0
  %1694 = vmatpush1.bf16.msra.mxu0 %v1574
  %1695 = vmatprep.subr.bf16.mxu0 0
  %1696 = vmatpush1.bf16.msra.mxu0 %v1575
  %1697 = vmatprep.subr.bf16.mxu0 0
  %1698 = vmatpush1.bf16.msra.mxu0 %v1576
  %1699 = vmatprep.subr.bf16.mxu0 0
  %1700 = vmatpush1.bf16.msra.mxu0 %v1577
  %1701 = vmatprep.subr.bf16.mxu0 0
  %1702 = vmatpush1.bf16.msra.mxu0 %v1578
  %1703 = vmatprep.subr.bf16.mxu0 0
  %1704 = vmatpush1.bf16.msra.mxu0 %v1579
  %1705 = vmatprep.subr.bf16.mxu0 0
  %1706 = vmatpush1.bf16.msra.mxu0 %v1580
  %1707 = vmatprep.subr.bf16.mxu0 0
  %1708 = vmatpush1.bf16.msra.mxu0 %v1581
  %1709 = vmatprep.subr.bf16.mxu0 0
  %1710 = vmatpush1.bf16.msra.mxu0 %v1582
  %1711 = vmatprep.subr.bf16.mxu0 0
  %1712 = vmatpush1.bf16.msra.mxu0 %v1583
  %1713 = vmatprep.mubr.bf16.mxu0 %v194
  %1714 = vmatmul.mubr.bf16.gmra.mrb[0].mxu0 %v193
  %v1715 = vpop.f32.mrb[0].mxu0
  %v1716 = vadd.f32 %v1651, %v1715
  %v1717 = vpop.f32.mrb[0].mxu0
  %v1718 = vpop.f32.mrb[0].mxu0
  %v1719 = vadd.f32 %v1654, %v1718
  %v1720 = vpop.f32.mrb[0].mxu0
  %1721 = vmatprep.mubr.bf16.mxu0 %v198
  %1722 = vmatmul.mubr.bf16.gmra.mrb[0].mxu0 %v197
  %v1723 = vpop.f32.mrb[0].mxu0
  %v1724 = vadd.f32 %v1659, %v1723
  %v1725 = vpop.f32.mrb[0].mxu0
  %v1726 = vpop.f32.mrb[0].mxu0
  %v1727 = vadd.f32 %v1662, %v1726
  %v1728 = vpop.f32.mrb[0].mxu0
  %1729 = vmatprep.mubr.bf16.mxu0 %v202
  %1730 = vmatmul.mubr.bf16.gmra.mrb[0].mxu0 %v201
  %v1731 = vpop.f32.mrb[0].mxu0
  %v1732 = vadd.f32 %v1667, %v1731
  %v1733 = vpop.f32.mrb[0].mxu0
  %v1734 = vpop.f32.mrb[0].mxu0
  %v1735 = vadd.f32 %v1670, %v1734
  %v1736 = vpop.f32.mrb[0].mxu0
  %1737 = vmatprep.mubr.bf16.mxu0 %v206
  %1738 = vmatmul.mubr.bf16.gmra.mrb[0].mxu0 %v205
  %v1739 = vpop.f32.mrb[0].mxu0
  %v1740 = vadd.f32 %v1675, %v1739
  %v1741 = vpop.f32.mrb[0].mxu0
  %v1742 = vpop.f32.mrb[0].mxu0
  %v1743 = vadd.f32 %v1678, %v1742
  %v1744 = vpop.f32.mrb[0].mxu0
  %1745 = vdwg.mxu0
  %v1746 = vmax.f32 %v1716, 0.0
  %v1747 = vmax.f32 %v1719, 0.0
  %v1748 = vmax.f32 %v1724, 0.0
  %v1749 = vmax.f32 %v1727, 0.0
  %v1750 = vmax.f32 %v1732, 0.0
  %v1751 = vmax.f32 %v1735, 0.0
  %v1752 = vmax.f32 %v1740, 0.0
  %v1753 = vmax.f32 %v1743, 0.0
  %v1754 = vmax.f32 %v1351, %v1746
  %v1755 = vmax.f32 %v1352, %v1747
  %v1756 = vmax.f32 %v1353, %v1748
  %v1757 = vmax.f32 %v1354, %v1749
  %v1758 = vmax.f32 %v1355, %v1750
  %v1759 = vmax.f32 %v1356, %v1751
  %v1760 = vmax.f32 %v1357, %v1752
  %v1761 = vmax.f32 %v1358, %v1753
  %vm1762 = vcmask 408576
  %1763 = vst.msk [vmem:[%s3] sm:$0xff] %vm1762, %v1754
  %1764 = vst.msk [vmem:[%s3 + $0x8] sm:$0xff] %vm1762, %v1755
  %1765 = vst.msk [vmem:[%s3 + $0x10] sm:$0xff] %vm1762, %v1756
  %1766 = vst.msk [vmem:[%s3 + $0x18] sm:$0xff] %vm1762, %v1757
  %1767 = vst.msk [vmem:[%s3 + $0x20] sm:$0xff] %vm1762, %v1758
  %1768 = vst.msk [vmem:[%s3 + $0x28] sm:$0xff] %vm1762, %v1759
  %1769 = vst.msk [vmem:[%s3 + $0x30] sm:$0xff] %vm1762, %v1760
  %1770 = vst.msk [vmem:[%s3 + $0x38] sm:$0xff] %vm1762, %v1761
  // Predicated region
  $region14: #{conv_classifier_forward.8} parent=0 // pred_check
    _
  $region15: #{conv_classifier_forward.8} parent=0 // pred_check_branch
    %1772 = sbr.rel (0) target = $region17
  $region16: #{conv_classifier_forward.8} parent=0 // pred_region
    _
  $region17: #{conv_classifier_forward.8} parent=0 // pred_fallthru
    _
  // Predicated region
  $region18: #{conv_classifier_forward.8} parent=0 // pred_check
    _
  $region19: #{conv_classifier_forward.8} parent=0 // pred_check_branch
    %1774 = sbr.rel (0) target = $region21
  $region20: #{conv_classifier_forward.8} parent=0 // pred_region
    _
  $region21: #{conv_classifier_forward.8} parent=0 // pred_fallthru
    _

// kernel: conv_classifier_forward.9
$region0: #{conv_classifier_forward.9}
  #allocation0 [shape = 'u32[]', space=smem, size = 0x4, offset = 0x4, fixed_abs, tag = 'smem constant byte address 0x4 - core index']
  #allocation1 [shape = 'u32[144,128]{1,0:T(1,128)}', space=vmem, size = 0x12000, scoped, tag = 'internal scratch']
  %s0 = inlined_call_operand.vmem [shape: bf16[2,1600], index: 0, kind: input, shape index: {}]
  %s1 = inlined_call_operand.vmem [shape: bf16[1600,400], index: 1, kind: input, shape index: {}]
  %s2 = inlined_call_operand.vmem [shape: f32[1,400], index: 2, kind: input, shape index: {}]
  %s3 = inlined_call_operand.vmem [shape: f32[1,400], index: 3, kind: input, shape index: {}]
  %s4 = inlined_call_operand.vmem [shape: f32[1,400], index: 4, kind: input, shape index: {}]
  %s5 = inlined_call_operand.vmem [shape: bf16[400,200], index: 5, kind: input, shape index: {}]
  %s6 = inlined_call_operand.vmem [shape: f32[1,200], index: 6, kind: input, shape index: {}]
  %s7 = inlined_call_operand.vmem [shape: f32[1,200], index: 7, kind: input, shape index: {}]
  %s8 = inlined_call_operand.vmem [shape: f32[1,200], index: 8, kind: input, shape index: {}]
  %s9 = inlined_call_operand.vmem [shape: bf16[200,136], index: 9, kind: input, shape index: {}]
  %s10 = inlined_call_operand.vmem [shape: f32[1,136], index: 10, kind: input, shape index: {}]
  %s11 = inlined_call_operand.hbm [shape: f32[2,136], index: 11, kind: output, shape index: {}]
  %s12 = sld [smem:[#allocation0]]
  $region54: #{conv_classifier_forward.9} parent=0
    _
  %s14 = ssub.s32 1, %s12
  %s15 = scalar_select 0, %s14, %s12
  $region1: #{conv_classifier_forward.9} parent=0
    #allocation2 [shape = 'u8[2048]{0}', space=vmem, size = 0x800, scoped, tag = 'output window, operand 0, single buffered']
    #allocation3 [shape = 's32[1]{0}', space=sflag, size = 0x4, scoped, tag = 'scoped memory for conv_classifier_forward.9']
    %16 = vsyncpa [#allocation3], 0
    // Predicated region
    $region2: #{conv_classifier_forward.9} parent=1 // pred_check
      _
    $region3: #{conv_classifier_forward.9} parent=1 // pred_check_branch
      %18 = sbr.rel (0) target = $region5
    $region4: #{conv_classifier_forward.9} parent=1 // pred_region
      _
    $region5: #{conv_classifier_forward.9} parent=1 // pred_fallthru
      _
    // Predicated region
    $region6: #{conv_classifier_forward.9} parent=1 // pred_check
      _
    $region7: #{conv_classifier_forward.9} parent=1 // pred_check_branch
      %20 = sbr.rel (0) target = $region9
    $region8: #{conv_classifier_forward.9} parent=1 // pred_region
      _
    $region9: #{conv_classifier_forward.9} parent=1 // pred_fallthru
      _
    // Predicated region
    $region10: #{conv_classifier_forward.9} parent=1 // pred_check
      _
    $region11: #{conv_classifier_forward.9} parent=1 // pred_check_branch
      %22 = sbr.rel (0) target = $region13
    $region12: #{conv_classifier_forward.9} parent=1 // pred_region
      _
    $region13: #{conv_classifier_forward.9} parent=1 // pred_fallthru
      _
    // Predicated region
    $region14: #{conv_classifier_forward.9} parent=1 // pred_check
      _
    $region15: #{conv_classifier_forward.9} parent=1 // pred_check_branch
      %24 = sbr.rel (0) target = $region17
    $region16: #{conv_classifier_forward.9} parent=1 // pred_region
      _
    $region17: #{conv_classifier_forward.9} parent=1 // pred_fallthru
      _
    // Predicated region
    $region18: #{conv_classifier_forward.9} parent=1 // pred_check
      _
    $region19: #{conv_classifier_forward.9} parent=1 // pred_check_branch
      %26 = sbr.rel (0) target = $region21
    $region20: #{conv_classifier_forward.9} parent=1 // pred_region
      _
    $region21: #{conv_classifier_forward.9} parent=1 // pred_fallthru
      _
    // Predicated region
    $region22: #{conv_classifier_forward.9} parent=1 // pred_check
      _
    $region23: #{conv_classifier_forward.9} parent=1 // pred_check_branch
      %28 = sbr.rel (0) target = $region25
    $region24: #{conv_classifier_forward.9} parent=1 // pred_region
      _
    $region25: #{conv_classifier_forward.9} parent=1 // pred_fallthru
      _
    // Predicated region
    $region26: #{conv_classifier_forward.9} parent=1 // pred_check
      _
    $region27: #{conv_classifier_forward.9} parent=1 // pred_check_branch
      %30 = sbr.rel (0) target = $region29
    $region28: #{conv_classifier_forward.9} parent=1 // pred_region
      _
    $region29: #{conv_classifier_forward.9} parent=1 // pred_fallthru
      _
    // Predicated region
    $region30: #{conv_classifier_forward.9} parent=1 // pred_check
      _
    $region31: #{conv_classifier_forward.9} parent=1 // pred_check_branch
      %32 = sbr.rel (0) target = $region33
    $region32: #{conv_classifier_forward.9} parent=1 // pred_region
      _
    $region33: #{conv_classifier_forward.9} parent=1 // pred_fallthru
      _
    // Predicated region
    $region34: #{conv_classifier_forward.9} parent=1 // pred_check
      _
    $region35: #{conv_classifier_forward.9} parent=1 // pred_check_branch
      %34 = sbr.rel (0) target = $region37
    $region36: #{conv_classifier_forward.9} parent=1 // pred_region
      _
    $region37: #{conv_classifier_forward.9} parent=1 // pred_fallthru
      _
    // Predicated region
    $region38: #{conv_classifier_forward.9} parent=1 // pred_check
      _
    $region39: #{conv_classifier_forward.9} parent=1 // pred_check_branch
      %36 = sbr.rel (0) target = $region41
    $region40: #{conv_classifier_forward.9} parent=1 // pred_region
      _
    $region41: #{conv_classifier_forward.9} parent=1 // pred_fallthru
      _
    // Predicated region
    $region42: #{conv_classifier_forward.9} parent=1 // pred_check
      _
    $region43: #{conv_classifier_forward.9} parent=1 // pred_check_branch
      %38 = sbr.rel (0) target = $region45
    $region44: #{conv_classifier_forward.9} parent=1 // pred_region
      _
    $region45: #{conv_classifier_forward.9} parent=1 // pred_fallthru
      _
    %v40 = vld [vmem:[%s0] sm:$0xff]
    %v41 = vld [vmem:[%s0 + $0x8] sm:$0x1f]
    %v42 = vld [vmem:[%s1] sm:$0xff]
    %v43 = vld [vmem:[%s1 + $0x8] sm:$0xff]
    %v44 = vld [vmem:[%s1 + $0x10] sm:$0xff]
    %v45 = vld [vmem:[%s1 + $0x18] sm:$0xff]
    %v46 = vld [vmem:[%s1 + $0x20] sm:$0xff]
    %v47 = vld [vmem:[%s1 + $0x28] sm:$0xff]
    %v48 = vld [vmem:[%s1 + $0x30] sm:$0xff]
    %v49 = vld [vmem:[%s1 + $0x38] sm:$0xff]
    %v50 = vld [vmem:[%s1 + $0x40] sm:$0xff]
    %v51 = vld [vmem:[%s1 + $0x48] sm:$0xff]
    %v52 = vld [vmem:[%s1 + $0x50] sm:$0xff]
    %v53 = vld [vmem:[%s1 + $0x58] sm:$0xff]
    %v54 = vld [vmem:[%s1 + $0x60] sm:$0xff]
    %v55 = vld [vmem:[%s1 + $0x68] sm:$0xff]
    %v56 = vld [vmem:[%s1 + $0x70] sm:$0xff]
    %v57 = vld [vmem:[%s1 + $0x78] sm:$0xff]
    %v58 = vld [vmem:[%s1 + $0x80] sm:$0xff]
    %v59 = vld [vmem:[%s1 + $0x88] sm:$0xff]
    %v60 = vld [vmem:[%s1 + $0x90] sm:$0xff]
    %v61 = vld [vmem:[%s1 + $0x98] sm:$0xff]
    %v62 = vld [vmem:[%s1 + $0xa0] sm:$0xff]
    %v63 = vld [vmem:[%s1 + $0xa8] sm:$0xff]
    %v64 = vld [vmem:[%s1 + $0xb0] sm:$0xff]
    %v65 = vld [vmem:[%s1 + $0xb8] sm:$0xff]
    %v66 = vld [vmem:[%s1 + $0xc0] sm:$0xff]
    %v67 = vld [vmem:[%s1 + $0xc8] sm:$0xff]
    %v68 = vld [vmem:[%s1 + $0xd0] sm:$0xff]
    %v69 = vld [vmem:[%s1 + $0xd8] sm:$0xff]
    %v70 = vld [vmem:[%s1 + $0xe0] sm:$0xff]
    %v71 = vld [vmem:[%s1 + $0xe8] sm:$0xff]
    %v72 = vld [vmem:[%s1 + $0xf0] sm:$0xff]
    %v73 = vld [vmem:[%s1 + $0xf8] sm:$0xff]
    %v74 = vld [vmem:[%s1 + $0x100] sm:$0xff]
    %v75 = vld [vmem:[%s1 + $0x108] sm:$0xff]
    %v76 = vld [vmem:[%s1 + $0x110] sm:$0xff]
    %v77 = vld [vmem:[%s1 + $0x118] sm:$0xff]
    %v78 = vld [vmem:[%s1 + $0x120] sm:$0xff]
    %v79 = vld [vmem:[%s1 + $0x128] sm:$0xff]
    %v80 = vld [vmem:[%s1 + $0x130] sm:$0xff]
    %v81 = vld [vmem:[%s1 + $0x138] sm:$0xff]
    %v82 = vld [vmem:[%s1 + $0x140] sm:$0xff]
    %v83 = vld [vmem:[%s1 + $0x148] sm:$0xff]
    %v84 = vld [vmem:[%s1 + $0x150] sm:$0xff]
    %v85 = vld [vmem:[%s1 + $0x158] sm:$0xff]
    %v86 = vld [vmem:[%s1 + $0x160] sm:$0xff]
    %v87 = vld [vmem:[%s1 + $0x168] sm:$0xff]
    %v88 = vld [vmem:[%s1 + $0x170] sm:$0xff]
    %v89 = vld [vmem:[%s1 + $0x178] sm:$0xff]
    %v90 = vld [vmem:[%s1 + $0x180] sm:$0xff]
    %v91 = vld [vmem:[%s1 + $0x188] sm:$0xff]
    %v92 = vld [vmem:[%s1 + $0x190] sm:$0xff]
    %v93 = vld [vmem:[%s1 + $0x198] sm:$0xff]
    %v94 = vld [vmem:[%s1 + $0x1a0] sm:$0xff]
    %v95 = vld [vmem:[%s1 + $0x1a8] sm:$0xff]
    %v96 = vld [vmem:[%s1 + $0x1b0] sm:$0xff]
    %v97 = vld [vmem:[%s1 + $0x1b8] sm:$0xff]
    %v98 = vld [vmem:[%s1 + $0x1c0] sm:$0xff]
    %v99 = vld [vmem:[%s1 + $0x1c8] sm:$0xff]
    %v100 = vld [vmem:[%s1 + $0x1d0] sm:$0xff]
    %v101 = vld [vmem:[%s1 + $0x1d8] sm:$0xff]
    %v102 = vld [vmem:[%s1 + $0x1e0] sm:$0xff]
    %v103 = vld [vmem:[%s1 + $0x1e8] sm:$0xff]
    %v104 = vld [vmem:[%s1 + $0x1f0] sm:$0xff]
    %v105 = vld [vmem:[%s1 + $0x1f8] sm:$0xff]
    %v106 = vld [vmem:[%s1 + $0x200] sm:$0xff]
    %v107 = vld [vmem:[%s1 + $0x208] sm:$0xff]
    %v108 = vld [vmem:[%s1 + $0x210] sm:$0xff]
    %v109 = vld [vmem:[%s1 + $0x218] sm:$0xff]
    %v110 = vld [vmem:[%s1 + $0x220] sm:$0xff]
    %v111 = vld [vmem:[%s1 + $0x228] sm:$0xff]
    %v112 = vld [vmem:[%s1 + $0x230] sm:$0xff]
    %v113 = vld [vmem:[%s1 + $0x238] sm:$0xff]
    %v114 = vld [vmem:[%s1 + $0x240] sm:$0xff]
    %v115 = vld [vmem:[%s1 + $0x248] sm:$0xff]
    %v116 = vld [vmem:[%s1 + $0x250] sm:$0xff]
    %v117 = vld [vmem:[%s1 + $0x258] sm:$0xff]
    %v118 = vld [vmem:[%s1 + $0x260] sm:$0xff]
    %v119 = vld [vmem:[%s1 + $0x268] sm:$0xff]
    %v120 = vld [vmem:[%s1 + $0x270] sm:$0xff]
    %v121 = vld [vmem:[%s1 + $0x278] sm:$0xff]
    %v122 = vld [vmem:[%s1 + $0x280] sm:$0xff]
    %v123 = vld [vmem:[%s1 + $0x288] sm:$0xff]
    %v124 = vld [vmem:[%s1 + $0x290] sm:$0xff]
    %v125 = vld [vmem:[%s1 + $0x298] sm:$0xff]
    %v126 = vld [vmem:[%s1 + $0x2a0] sm:$0xff]
    %v127 = vld [vmem:[%s1 + $0x2a8] sm:$0xff]
    %v128 = vld [vmem:[%s1 + $0x2b0] sm:$0xff]
    %v129 = vld [vmem:[%s1 + $0x2b8] sm:$0xff]
    %v130 = vld [vmem:[%s1 + $0x2c0] sm:$0xff]
    %v131 = vld [vmem:[%s1 + $0x2c8] sm:$0xff]
    %v132 = vld [vmem:[%s1 + $0x2d0] sm:$0xff]
    %v133 = vld [vmem:[%s1 + $0x2d8] sm:$0xff]
    %v134 = vld [vmem:[%s1 + $0x2e0] sm:$0xff]
    %v135 = vld [vmem:[%s1 + $0x2e8] sm:$0xff]
    %v136 = vld [vmem:[%s1 + $0x2f0] sm:$0xff]
    %v137 = vld [vmem:[%s1 + $0x2f8] sm:$0xff]
    %v138 = vld [vmem:[%s1 + $0x300] sm:$0xff]
    %v139 = vld [vmem:[%s1 + $0x308] sm:$0xff]
    %v140 = vld [vmem:[%s1 + $0x310] sm:$0xff]
    %v141 = vld [vmem:[%s1 + $0x318] sm:$0xff]
    %v142 = vld [vmem:[%s1 + $0x320] sm:$0xff]
    %v143 = vld [vmem:[%s1 + $0x328] sm:$0xff]
    %v144 = vld [vmem:[%s1 + $0x330] sm:$0xff]
    %v145 = vld [vmem:[%s1 + $0x338] sm:$0xff]
    %v146 = vld [vmem:[%s1 + $0x340] sm:$0xff]
    %v147 = vld [vmem:[%s1 + $0x348] sm:$0xff]
    %v148 = vld [vmem:[%s1 + $0x350] sm:$0xff]
    %v149 = vld [vmem:[%s1 + $0x358] sm:$0xff]
    %v150 = vld [vmem:[%s1 + $0x360] sm:$0xff]
    %v151 = vld [vmem:[%s1 + $0x368] sm:$0xff]
    %v152 = vld [vmem:[%s1 + $0x370] sm:$0xff]
    %v153 = vld [vmem:[%s1 + $0x378] sm:$0xff]
    %v154 = vld [vmem:[%s1 + $0x380] sm:$0xff]
    %v155 = vld [vmem:[%s1 + $0x388] sm:$0xff]
    %v156 = vld [vmem:[%s1 + $0x390] sm:$0xff]
    %v157 = vld [vmem:[%s1 + $0x398] sm:$0xff]
    %v158 = vld [vmem:[%s1 + $0x3a0] sm:$0xff]
    %v159 = vld [vmem:[%s1 + $0x3a8] sm:$0xff]
    %v160 = vld [vmem:[%s1 + $0x3b0] sm:$0xff]
    %v161 = vld [vmem:[%s1 + $0x3b8] sm:$0xff]
    %v162 = vld [vmem:[%s1 + $0x3c0] sm:$0xff]
    %v163 = vld [vmem:[%s1 + $0x3c8] sm:$0xff]
    %v164 = vld [vmem:[%s1 + $0x3d0] sm:$0xff]
    %v165 = vld [vmem:[%s1 + $0x3d8] sm:$0xff]
    %v166 = vld [vmem:[%s1 + $0x3e0] sm:$0xff]
    %v167 = vld [vmem:[%s1 + $0x3e8] sm:$0xff]
    %v168 = vld [vmem:[%s1 + $0x3f0] sm:$0xff]
    %v169 = vld [vmem:[%s1 + $0x3f8] sm:$0xff]
    %v170 = vld [vmem:[%s1 + $0x400] sm:$0xff]
    %v171 = vld [vmem:[%s1 + $0x408] sm:$0xff]
    %v172 = vld [vmem:[%s1 + $0x410] sm:$0xff]
    %v173 = vld [vmem:[%s1 + $0x418] sm:$0xff]
    %v174 = vld [vmem:[%s1 + $0x420] sm:$0xff]
    %v175 = vld [vmem:[%s1 + $0x428] sm:$0xff]
    %v176 = vld [vmem:[%s1 + $0x430] sm:$0xff]
    %v177 = vld [vmem:[%s1 + $0x438] sm:$0xff]
    %v178 = vld [vmem:[%s1 + $0x440] sm:$0xff]
    %v179 = vld [vmem:[%s1 + $0x448] sm:$0xff]
    %v180 = vld [vmem:[%s1 + $0x450] sm:$0xff]
    %v181 = vld [vmem:[%s1 + $0x458] sm:$0xff]
    %v182 = vld [vmem:[%s1 + $0x460] sm:$0xff]
    %v183 = vld [vmem:[%s1 + $0x468] sm:$0xff]
    %v184 = vld [vmem:[%s1 + $0x470] sm:$0xff]
    %v185 = vld [vmem:[%s1 + $0x478] sm:$0xff]
    %v186 = vld [vmem:[%s1 + $0x480] sm:$0xff]
    %v187 = vld [vmem:[%s1 + $0x488] sm:$0xff]
    %v188 = vld [vmem:[%s1 + $0x490] sm:$0xff]
    %v189 = vld [vmem:[%s1 + $0x498] sm:$0xff]
    %v190 = vld [vmem:[%s1 + $0x4a0] sm:$0xff]
    %v191 = vld [vmem:[%s1 + $0x4a8] sm:$0xff]
    %v192 = vld [vmem:[%s1 + $0x4b0] sm:$0xff]
    %v193 = vld [vmem:[%s1 + $0x4b8] sm:$0xff]
    %v194 = vld [vmem:[%s1 + $0x4c0] sm:$0xff]
    %v195 = vld [vmem:[%s1 + $0x4c8] sm:$0xff]
    %v196 = vld [vmem:[%s1 + $0x4d0] sm:$0xff]
    %v197 = vld [vmem:[%s1 + $0x4d8] sm:$0xff]
    %v198 = vld [vmem:[%s1 + $0x4e0] sm:$0xff]
    %v199 = vld [vmem:[%s1 + $0x4e8] sm:$0xff]
    %v200 = vld [vmem:[%s1 + $0x4f0] sm:$0xff]
    %v201 = vld [vmem:[%s1 + $0x4f8] sm:$0xff]
    %v202 = vld [vmem:[%s1 + $0x500] sm:$0xff]
    %v203 = vld [vmem:[%s1 + $0x508] sm:$0xff]
    %v204 = vld [vmem:[%s1 + $0x510] sm:$0xff]
    %v205 = vld [vmem:[%s1 + $0x518] sm:$0xff]
    %v206 = vld [vmem:[%s1 + $0x520] sm:$0xff]
    %v207 = vld [vmem:[%s1 + $0x528] sm:$0xff]
    %v208 = vld [vmem:[%s1 + $0x530] sm:$0xff]
    %v209 = vld [vmem:[%s1 + $0x538] sm:$0xff]
    %v210 = vld [vmem:[%s1 + $0x540] sm:$0xff]
    %v211 = vld [vmem:[%s1 + $0x548] sm:$0xff]
    %v212 = vld [vmem:[%s1 + $0x550] sm:$0xff]
    %v213 = vld [vmem:[%s1 + $0x558] sm:$0xff]
    %v214 = vld [vmem:[%s1 + $0x560] sm:$0xff]
    %v215 = vld [vmem:[%s1 + $0x568] sm:$0xff]
    %v216 = vld [vmem:[%s1 + $0x570] sm:$0xff]
    %v217 = vld [vmem:[%s1 + $0x578] sm:$0xff]
    %v218 = vld [vmem:[%s1 + $0x580] sm:$0xff]
    %v219 = vld [vmem:[%s1 + $0x588] sm:$0xff]
    %v220 = vld [vmem:[%s1 + $0x590] sm:$0xff]
    %v221 = vld [vmem:[%s1 + $0x598] sm:$0xff]
    %v222 = vld [vmem:[%s1 + $0x5a0] sm:$0xff]
    %v223 = vld [vmem:[%s1 + $0x5a8] sm:$0xff]
    %v224 = vld [vmem:[%s1 + $0x5b0] sm:$0xff]
    %v225 = vld [vmem:[%s1 + $0x5b8] sm:$0xff]
    %v226 = vld [vmem:[%s1 + $0x5c0] sm:$0xff]
    %v227 = vld [vmem:[%s1 + $0x5c8] sm:$0xff]
    %v228 = vld [vmem:[%s1 + $0x5d0] sm:$0xff]
    %v229 = vld [vmem:[%s1 + $0x5d8] sm:$0xff]
    %v230 = vld [vmem:[%s1 + $0x5e0] sm:$0xff]
    %v231 = vld [vmem:[%s1 + $0x5e8] sm:$0xff]
    %v232 = vld [vmem:[%s1 + $0x5f0] sm:$0xff]
    %v233 = vld [vmem:[%s1 + $0x5f8] sm:$0xff]
    %v234 = vld [vmem:[%s1 + $0x600] sm:$0xff]
    %v235 = vld [vmem:[%s1 + $0x608] sm:$0xff]
    %v236 = vld [vmem:[%s1 + $0x610] sm:$0xff]
    %v237 = vld [vmem:[%s1 + $0x618] sm:$0xff]
    %v238 = vld [vmem:[%s1 + $0x620] sm:$0xff]
    %v239 = vld [vmem:[%s1 + $0x628] sm:$0xff]
    %v240 = vld [vmem:[%s1 + $0x630] sm:$0xff]
    %v241 = vld [vmem:[%s1 + $0x638] sm:$0xff]
    %v242 = vld [vmem:[%s1 + $0x640] sm:$0xff]
    %v243 = vld [vmem:[%s1 + $0x648] sm:$0xff]
    %v244 = vld [vmem:[%s1 + $0x650] sm:$0xff]
    %v245 = vld [vmem:[%s1 + $0x658] sm:$0xff]
    %v246 = vld [vmem:[%s1 + $0x660] sm:$0xff]
    %v247 = vld [vmem:[%s1 + $0x668] sm:$0xff]
    %v248 = vld [vmem:[%s1 + $0x670] sm:$0xff]
    %v249 = vld [vmem:[%s1 + $0x678] sm:$0xff]
    %v250 = vld [vmem:[%s1 + $0x680] sm:$0xff]
    %v251 = vld [vmem:[%s1 + $0x688] sm:$0xff]
    %v252 = vld [vmem:[%s1 + $0x690] sm:$0xff]
    %v253 = vld [vmem:[%s1 + $0x698] sm:$0xff]
    %v254 = vld [vmem:[%s1 + $0x6a0] sm:$0xff]
    %v255 = vld [vmem:[%s1 + $0x6a8] sm:$0xff]
    %v256 = vld [vmem:[%s1 + $0x6b0] sm:$0xff]
    %v257 = vld [vmem:[%s1 + $0x6b8] sm:$0xff]
    %v258 = vld [vmem:[%s1 + $0x6c0] sm:$0xff]
    %v259 = vld [vmem:[%s1 + $0x6c8] sm:$0xff]
    %v260 = vld [vmem:[%s1 + $0x6d0] sm:$0xff]
    %v261 = vld [vmem:[%s1 + $0x6d8] sm:$0xff]
    %v262 = vld [vmem:[%s1 + $0x6e0] sm:$0xff]
    %v263 = vld [vmem:[%s1 + $0x6e8] sm:$0xff]
    %v264 = vld [vmem:[%s1 + $0x6f0] sm:$0xff]
    %v265 = vld [vmem:[%s1 + $0x6f8] sm:$0xff]
    %v266 = vld [vmem:[%s1 + $0x700] sm:$0xff]
    %v267 = vld [vmem:[%s1 + $0x708] sm:$0xff]
    %v268 = vld [vmem:[%s1 + $0x710] sm:$0xff]
    %v269 = vld [vmem:[%s1 + $0x718] sm:$0xff]
    %v270 = vld [vmem:[%s1 + $0x720] sm:$0xff]
    %v271 = vld [vmem:[%s1 + $0x728] sm:$0xff]
    %v272 = vld [vmem:[%s1 + $0x730] sm:$0xff]
    %v273 = vld [vmem:[%s1 + $0x738] sm:$0xff]
    %v274 = vld [vmem:[%s1 + $0x740] sm:$0xff]
    %v275 = vld [vmem:[%s1 + $0x748] sm:$0xff]
    %v276 = vld [vmem:[%s1 + $0x750] sm:$0xff]
    %v277 = vld [vmem:[%s1 + $0x758] sm:$0xff]
    %v278 = vld [vmem:[%s1 + $0x760] sm:$0xff]
    %v279 = vld [vmem:[%s1 + $0x768] sm:$0xff]
    %v280 = vld [vmem:[%s1 + $0x770] sm:$0xff]
    %v281 = vld [vmem:[%s1 + $0x778] sm:$0xff]
    %v282 = vld [vmem:[%s1 + $0x780] sm:$0xff]
    %v283 = vld [vmem:[%s1 + $0x788] sm:$0xff]
    %v284 = vld [vmem:[%s1 + $0x790] sm:$0xff]
    %v285 = vld [vmem:[%s1 + $0x798] sm:$0xff]
    %v286 = vld [vmem:[%s1 + $0x7a0] sm:$0xff]
    %v287 = vld [vmem:[%s1 + $0x7a8] sm:$0xff]
    %v288 = vld [vmem:[%s1 + $0x7b0] sm:$0xff]
    %v289 = vld [vmem:[%s1 + $0x7b8] sm:$0xff]
    %v290 = vld [vmem:[%s1 + $0x7c0] sm:$0xff]
    %v291 = vld [vmem:[%s1 + $0x7c8] sm:$0xff]
    %v292 = vld [vmem:[%s1 + $0x7d0] sm:$0xff]
    %v293 = vld [vmem:[%s1 + $0x7d8] sm:$0xff]
    %v294 = vld [vmem:[%s1 + $0x7e0] sm:$0xff]
    %v295 = vld [vmem:[%s1 + $0x7e8] sm:$0xff]
    %v296 = vld [vmem:[%s1 + $0x7f0] sm:$0xff]
    %v297 = vld [vmem:[%s1 + $0x7f8] sm:$0xff]
    %v298 = vld [vmem:[%s1 + $0x800] sm:$0xff]
    %v299 = vld [vmem:[%s1 + $0x808] sm:$0xff]
    %v300 = vld [vmem:[%s1 + $0x810] sm:$0xff]
    %v301 = vld [vmem:[%s1 + $0x818] sm:$0xff]
    %v302 = vld [vmem:[%s1 + $0x820] sm:$0xff]
    %v303 = vld [vmem:[%s1 + $0x828] sm:$0xff]
    %v304 = vld [vmem:[%s1 + $0x830] sm:$0xff]
    %v305 = vld [vmem:[%s1 + $0x838] sm:$0xff]
    %v306 = vld [vmem:[%s1 + $0x840] sm:$0xff]
    %v307 = vld [vmem:[%s1 + $0x848] sm:$0xff]
    %v308 = vld [vmem:[%s1 + $0x850] sm:$0xff]
    %v309 = vld [vmem:[%s1 + $0x858] sm:$0xff]
    %v310 = vld [vmem:[%s1 + $0x860] sm:$0xff]
    %v311 = vld [vmem:[%s1 + $0x868] sm:$0xff]
    %v312 = vld [vmem:[%s1 + $0x870] sm:$0xff]
    %v313 = vld [vmem:[%s1 + $0x878] sm:$0xff]
    %v314 = vld [vmem:[%s1 + $0x880] sm:$0xff]
    %v315 = vld [vmem:[%s1 + $0x888] sm:$0xff]
    %v316 = vld [vmem:[%s1 + $0x890] sm:$0xff]
    %v317 = vld [vmem:[%s1 + $0x898] sm:$0xff]
    %v318 = vld [vmem:[%s1 + $0x8a0] sm:$0xff]
    %v319 = vld [vmem:[%s1 + $0x8a8] sm:$0xff]
    %v320 = vld [vmem:[%s1 + $0x8b0] sm:$0xff]
    %v321 = vld [vmem:[%s1 + $0x8b8] sm:$0xff]
    %v322 = vld [vmem:[%s1 + $0x8c0] sm:$0xff]
    %v323 = vld [vmem:[%s1 + $0x8c8] sm:$0xff]
    %v324 = vld [vmem:[%s1 + $0x8d0] sm:$0xff]
    %v325 = vld [vmem:[%s1 + $0x8d8] sm:$0xff]
    %v326 = vld [vmem:[%s1 + $0x8e0] sm:$0xff]
    %v327 = vld [vmem:[%s1 + $0x8e8] sm:$0xff]
    %v328 = vld [vmem:[%s1 + $0x8f0] sm:$0xff]
    %v329 = vld [vmem:[%s1 + $0x8f8] sm:$0xff]
    %v330 = vld [vmem:[%s1 + $0x900] sm:$0xff]
    %v331 = vld [vmem:[%s1 + $0x908] sm:$0xff]
    %v332 = vld [vmem:[%s1 + $0x910] sm:$0xff]
    %v333 = vld [vmem:[%s1 + $0x918] sm:$0xff]
    %v334 = vld [vmem:[%s1 + $0x920] sm:$0xff]
    %v335 = vld [vmem:[%s1 + $0x928] sm:$0xff]
    %v336 = vld [vmem:[%s1 + $0x930] sm:$0xff]
    %v337 = vld [vmem:[%s1 + $0x938] sm:$0xff]
    %v338 = vld [vmem:[%s1 + $0x940] sm:$0xff]
    %v339 = vld [vmem:[%s1 + $0x948] sm:$0xff]
    %v340 = vld [vmem:[%s1 + $0x950] sm:$0xff]
    %v341 = vld [vmem:[%s1 + $0x958] sm:$0xff]
    %v342 = vld [vmem:[%s1 + $0x960] sm:$0xff]
    %v343 = vld [vmem:[%s1 + $0x968] sm:$0xff]
    %v344 = vld [vmem:[%s1 + $0x970] sm:$0xff]
    %v345 = vld [vmem:[%s1 + $0x978] sm:$0xff]
    %v346 = vld [vmem:[%s1 + $0x980] sm:$0xff]
    %v347 = vld [vmem:[%s1 + $0x988] sm:$0xff]
    %v348 = vld [vmem:[%s1 + $0x990] sm:$0xff]
    %v349 = vld [vmem:[%s1 + $0x998] sm:$0xff]
    %v350 = vld [vmem:[%s1 + $0x9a0] sm:$0xff]
    %v351 = vld [vmem:[%s1 + $0x9a8] sm:$0xff]
    %v352 = vld [vmem:[%s1 + $0x9b0] sm:$0xff]
    %v353 = vld [vmem:[%s1 + $0x9b8] sm:$0xff]
    %v354 = vld [vmem:[%s1 + $0x9c0] sm:$0xff]
    %v355 = vld [vmem:[%s1 + $0x9c8] sm:$0xff]
    %v356 = vld [vmem:[%s1 + $0x9d0] sm:$0xff]
    %v357 = vld [vmem:[%s1 + $0x9d8] sm:$0xff]
    %v358 = vld [vmem:[%s1 + $0x9e0] sm:$0xff]
    %v359 = vld [vmem:[%s1 + $0x9e8] sm:$0xff]
    %v360 = vld [vmem:[%s1 + $0x9f0] sm:$0xff]
    %v361 = vld [vmem:[%s1 + $0x9f8] sm:$0xff]
    %v362 = vld [vmem:[%s1 + $0xa00] sm:$0xff]
    %v363 = vld [vmem:[%s1 + $0xa08] sm:$0xff]
    %v364 = vld [vmem:[%s1 + $0xa10] sm:$0xff]
    %v365 = vld [vmem:[%s1 + $0xa18] sm:$0xff]
    %v366 = vld [vmem:[%s1 + $0xa20] sm:$0xff]
    %v367 = vld [vmem:[%s1 + $0xa28] sm:$0xff]
    %v368 = vld [vmem:[%s1 + $0xa30] sm:$0xff]
    %v369 = vld [vmem:[%s1 + $0xa38] sm:$0xff]
    %v370 = vld [vmem:[%s1 + $0xa40] sm:$0xff]
    %v371 = vld [vmem:[%s1 + $0xa48] sm:$0xff]
    %v372 = vld [vmem:[%s1 + $0xa50] sm:$0xff]
    %v373 = vld [vmem:[%s1 + $0xa58] sm:$0xff]
    %v374 = vld [vmem:[%s1 + $0xa60] sm:$0xff]
    %v375 = vld [vmem:[%s1 + $0xa68] sm:$0xff]
    %v376 = vld [vmem:[%s1 + $0xa70] sm:$0xff]
    %v377 = vld [vmem:[%s1 + $0xa78] sm:$0xff]
    %v378 = vld [vmem:[%s1 + $0xa80] sm:$0xff]
    %v379 = vld [vmem:[%s1 + $0xa88] sm:$0xff]
    %v380 = vld [vmem:[%s1 + $0xa90] sm:$0xff]
    %v381 = vld [vmem:[%s1 + $0xa98] sm:$0xff]
    %v382 = vld [vmem:[%s1 + $0xaa0] sm:$0xff]
    %v383 = vld [vmem:[%s1 + $0xaa8] sm:$0xff]
    %v384 = vld [vmem:[%s1 + $0xab0] sm:$0xff]
    %v385 = vld [vmem:[%s1 + $0xab8] sm:$0xff]
    %v386 = vld [vmem:[%s1 + $0xac0] sm:$0xff]
    %v387 = vld [vmem:[%s1 + $0xac8] sm:$0xff]
    %v388 = vld [vmem:[%s1 + $0xad0] sm:$0xff]
    %v389 = vld [vmem:[%s1 + $0xad8] sm:$0xff]
    %v390 = vld [vmem:[%s1 + $0xae0] sm:$0xff]
    %v391 = vld [vmem:[%s1 + $0xae8] sm:$0xff]
    %v392 = vld [vmem:[%s1 + $0xaf0] sm:$0xff]
    %v393 = vld [vmem:[%s1 + $0xaf8] sm:$0xff]
    %v394 = vld [vmem:[%s1 + $0xb00] sm:$0xff]
    %v395 = vld [vmem:[%s1 + $0xb08] sm:$0xff]
    %v396 = vld [vmem:[%s1 + $0xb10] sm:$0xff]
    %v397 = vld [vmem:[%s1 + $0xb18] sm:$0xff]
    %v398 = vld [vmem:[%s1 + $0xb20] sm:$0xff]
    %v399 = vld [vmem:[%s1 + $0xb28] sm:$0xff]
    %v400 = vld [vmem:[%s1 + $0xb30] sm:$0xff]
    %v401 = vld [vmem:[%s1 + $0xb38] sm:$0xff]
    %v402 = vld [vmem:[%s1 + $0xb40] sm:$0xff]
    %v403 = vld [vmem:[%s1 + $0xb48] sm:$0xff]
    %v404 = vld [vmem:[%s1 + $0xb50] sm:$0xff]
    %v405 = vld [vmem:[%s1 + $0xb58] sm:$0xff]
    %v406 = vld [vmem:[%s1 + $0xb60] sm:$0xff]
    %v407 = vld [vmem:[%s1 + $0xb68] sm:$0xff]
    %v408 = vld [vmem:[%s1 + $0xb70] sm:$0xff]
    %v409 = vld [vmem:[%s1 + $0xb78] sm:$0xff]
    %v410 = vld [vmem:[%s1 + $0xb80] sm:$0xff]
    %v411 = vld [vmem:[%s1 + $0xb88] sm:$0xff]
    %v412 = vld [vmem:[%s1 + $0xb90] sm:$0xff]
    %v413 = vld [vmem:[%s1 + $0xb98] sm:$0xff]
    %v414 = vld [vmem:[%s1 + $0xba0] sm:$0xff]
    %v415 = vld [vmem:[%s1 + $0xba8] sm:$0xff]
    %v416 = vld [vmem:[%s1 + $0xbb0] sm:$0xff]
    %v417 = vld [vmem:[%s1 + $0xbb8] sm:$0xff]
    %v418 = vld [vmem:[%s1 + $0xbc0] sm:$0xff]
    %v419 = vld [vmem:[%s1 + $0xbc8] sm:$0xff]
    %v420 = vld [vmem:[%s1 + $0xbd0] sm:$0xff]
    %v421 = vld [vmem:[%s1 + $0xbd8] sm:$0xff]
    %v422 = vld [vmem:[%s1 + $0xbe0] sm:$0xff]
    %v423 = vld [vmem:[%s1 + $0xbe8] sm:$0xff]
    %v424 = vld [vmem:[%s1 + $0xbf0] sm:$0xff]
    %v425 = vld [vmem:[%s1 + $0xbf8] sm:$0xff]
    %v426 = vld [vmem:[%s1 + $0xc00] sm:$0xff]
    %v427 = vld [vmem:[%s1 + $0xc08] sm:$0xff]
    %v428 = vld [vmem:[%s1 + $0xc10] sm:$0xff]
    %v429 = vld [vmem:[%s1 + $0xc18] sm:$0xff]
    %v430 = vld [vmem:[%s1 + $0xc20] sm:$0xff]
    %v431 = vld [vmem:[%s1 + $0xc28] sm:$0xff]
    %v432 = vld [vmem:[%s1 + $0xc30] sm:$0xff]
    %v433 = vld [vmem:[%s1 + $0xc38] sm:$0xff]
    %v434 = vld [vmem:[%s1 + $0xc40] sm:$0xff]
    %v435 = vld [vmem:[%s1 + $0xc48] sm:$0xff]
    %v436 = vld [vmem:[%s1 + $0xc50] sm:$0xff]
    %v437 = vld [vmem:[%s1 + $0xc58] sm:$0xff]
    %v438 = vld [vmem:[%s1 + $0xc60] sm:$0xff]
    %v439 = vld [vmem:[%s1 + $0xc68] sm:$0xff]
    %v440 = vld [vmem:[%s1 + $0xc70] sm:$0xff]
    %v441 = vld [vmem:[%s1 + $0xc78] sm:$0xff]
    %v442 = vld [vmem:[%s2] sm:$0xf]
    %v444 = vlaneseq
    %v445 = vshrl.u32 %v444, 7
    %v446 = vsub.s32 0, %v445
    %v447 = vrot.slane %v442, %v446
    %v448 = vlaneseq
    %v449 = vshrl.u32 %v448, 7
    %v450 = vsub.s32 1, %v449
    %v451 = vrot.slane %v442, %v450
    %v452 = vlaneseq
    %v453 = vshrl.u32 %v452, 7
    %v454 = vsub.s32 2, %v453
    %v455 = vrot.slane %v442, %v454
    %v456 = vlaneseq
    %v457 = vshrl.u32 %v456, 7
    %v458 = vsub.s32 3, %v457
    %v459 = vrot.slane %v442, %v458
    %v466 = vcombine.high %v40, %v40
    %v468 = vunpack.c.l.s4 1966171168
    %v469 = vunpack.c.0.s8 %v468
    %v470 = vlaneseq
    %v471 = vshrl.u32 %v470, 7
    %v472 = vsub.s32 %v469, %v471
    %v473 = vrot.slane %v40, %v472
    %v475 = vunpack.c.l.s4 1966171168
    %v476 = vunpack.c.0.s8 %v475
    %v477 = vlaneseq
    %v478 = vshrl.u32 %v477, 7
    %v479 = vsub.s32 %v476, %v478
    %v480 = vrot.slane %v466, %v479
    %v481 = vcombine.high %v473, %v473
    %v482 = vcombine.high %v480, %v480
    %v484 = vunpack.c.l.s4 1966171168
    %v485 = vunpack.c.0.s8 %v484
    %v486 = vlaneseq
    %v487 = vshrl.u32 %v486, 7
    %v488 = vsub.s32 %v485, %v487
    %v489 = vrot.slane %v473, %v488
    %v491 = vunpack.c.l.s4 1966171168
    %v492 = vunpack.c.0.s8 %v491
    %v493 = vlaneseq
    %v494 = vshrl.u32 %v493, 7
    %v495 = vsub.s32 %v492, %v494
    %v496 = vrot.slane %v480, %v495
    %v498 = vunpack.c.l.s4 1966171168
    %v499 = vunpack.c.0.s8 %v498
    %v500 = vlaneseq
    %v501 = vshrl.u32 %v500, 7
    %v502 = vsub.s32 %v499, %v501
    %v503 = vrot.slane %v481, %v502
    %v505 = vunpack.c.l.s4 1966171168
    %v506 = vunpack.c.0.s8 %v505
    %v507 = vlaneseq
    %v508 = vshrl.u32 %v507, 7
    %v509 = vsub.s32 %v506, %v508
    %v510 = vrot.slane %v482, %v509
    %v511 = vcombine.high %v489, %v489
    %v512 = vcombine.high %v496, %v496
    %v513 = vcombine.high %v503, %v503
    %v514 = vcombine.high %v510, %v510
    %v515 = vcombine.high %v41, %v41
    %v517 = vunpack.c.l.s4 1966171168
    %v518 = vunpack.c.0.s8 %v517
    %v519 = vlaneseq
    %v520 = vshrl.u32 %v519, 7
    %v521 = vsub.s32 %v518, %v520
    %v522 = vrot.slane %v41, %v521
    %v524 = vunpack.c.l.s4 1966171168
    %v525 = vunpack.c.0.s8 %v524
    %v526 = vlaneseq
    %v527 = vshrl.u32 %v526, 7
    %v528 = vsub.s32 %v525, %v527
    %v529 = vrot.slane %v515, %v528
    %v530 = vcombine.high %v522, %v522
    %v532 = vunpack.c.l.s4 1966171168
    %v533 = vunpack.c.0.s8 %v532
    %v534 = vlaneseq
    %v535 = vshrl.u32 %v534, 7
    %v536 = vsub.s32 %v533, %v535
    %v537 = vrot.slane %v522, %v536
    %v539 = vunpack.c.l.s4 1966171168
    %v540 = vunpack.c.0.s8 %v539
    %v541 = vlaneseq
    %v542 = vshrl.u32 %v541, 7
    %v543 = vsub.s32 %v540, %v542
    %v544 = vrot.slane %v529, %v543
    %v546 = vunpack.c.l.s4 1966171168
    %v547 = vunpack.c.0.s8 %v546
    %v548 = vlaneseq
    %v549 = vshrl.u32 %v548, 7
    %v550 = vsub.s32 %v547, %v549
    %v551 = vrot.slane %v530, %v550
    %v552 = vcombine.high %v537, %v537
    %v553 = vcombine.high %v551, %v551
    %v966 = vunpack.c.l.b16 %v42
    %v967 = vunpack.c.h.b16 %v42
    %v968 = vunpack.c.l.b16 %v43
    %v969 = vunpack.c.h.b16 %v43
    %v970 = vunpack.c.l.b16 %v44
    %v971 = vunpack.c.h.b16 %v44
    %v972 = vunpack.c.l.b16 %v45
    %v973 = vunpack.c.h.b16 %v45
    %v974 = vunpack.c.l.b16 %v46
    %v975 = vunpack.c.h.b16 %v46
    %v976 = vunpack.c.l.b16 %v47
    %v977 = vunpack.c.h.b16 %v47
    %v978 = vunpack.c.l.b16 %v48
    %v979 = vunpack.c.h.b16 %v48
    %v980 = vunpack.c.l.b16 %v49
    %v981 = vunpack.c.h.b16 %v49
    %v982 = vunpack.c.l.b16 %v50
    %v983 = vunpack.c.h.b16 %v50
    %v984 = vunpack.c.l.b16 %v51
    %v985 = vunpack.c.h.b16 %v51
    %v986 = vunpack.c.l.b16 %v52
    %v987 = vunpack.c.h.b16 %v52
    %v988 = vunpack.c.l.b16 %v53
    %v989 = vunpack.c.h.b16 %v53
    %v990 = vunpack.c.l.b16 %v54
    %v991 = vunpack.c.h.b16 %v54
    %v992 = vunpack.c.l.b16 %v55
    %v993 = vunpack.c.h.b16 %v55
    %v994 = vunpack.c.l.b16 %v56
    %v995 = vunpack.c.h.b16 %v56
    %v996 = vunpack.c.l.b16 %v57
    %v997 = vunpack.c.h.b16 %v57
    %v998 = vunpack.c.l.b16 %v58
    %v999 = vunpack.c.h.b16 %v58
    %v1000 = vunpack.c.l.b16 %v59
    %v1001 = vunpack.c.h.b16 %v59
    %v1002 = vunpack.c.l.b16 %v60
    %v1003 = vunpack.c.h.b16 %v60
    %v1004 = vunpack.c.l.b16 %v61
    %v1005 = vunpack.c.h.b16 %v61
    %v1006 = vunpack.c.l.b16 %v62
    %v1007 = vunpack.c.h.b16 %v62
    %v1008 = vunpack.c.l.b16 %v63
    %v1009 = vunpack.c.h.b16 %v63
    %v1010 = vunpack.c.l.b16 %v64
    %v1011 = vunpack.c.h.b16 %v64
    %v1012 = vunpack.c.l.b16 %v65
    %v1013 = vunpack.c.h.b16 %v65
    %v1014 = vunpack.c.l.b16 %v66
    %v1015 = vunpack.c.h.b16 %v66
    %v1016 = vunpack.c.l.b16 %v67
    %v1017 = vunpack.c.h.b16 %v67
    %v1018 = vunpack.c.l.b16 %v68
    %v1019 = vunpack.c.h.b16 %v68
    %v1020 = vunpack.c.l.b16 %v69
    %v1021 = vunpack.c.h.b16 %v69
    %v1022 = vunpack.c.l.b16 %v70
    %v1023 = vunpack.c.h.b16 %v70
    %v1024 = vunpack.c.l.b16 %v71
    %v1025 = vunpack.c.h.b16 %v71
    %v1026 = vunpack.c.l.b16 %v72
    %v1027 = vunpack.c.h.b16 %v72
    %v1028 = vunpack.c.l.b16 %v73
    %v1029 = vunpack.c.h.b16 %v73
    %v1030 = vunpack.c.l.b16 %v74
    %v1031 = vunpack.c.h.b16 %v74
    %v1032 = vunpack.c.l.b16 %v75
    %v1033 = vunpack.c.h.b16 %v75
    %v1034 = vunpack.c.l.b16 %v76
    %v1035 = vunpack.c.h.b16 %v76
    %v1036 = vunpack.c.l.b16 %v77
    %v1037 = vunpack.c.h.b16 %v77
    %v1038 = vunpack.c.l.b16 %v78
    %v1039 = vunpack.c.h.b16 %v78
    %v1040 = vunpack.c.l.b16 %v79
    %v1041 = vunpack.c.h.b16 %v79
    %v1042 = vunpack.c.l.b16 %v80
    %v1043 = vunpack.c.h.b16 %v80
    %v1044 = vunpack.c.l.b16 %v81
    %v1045 = vunpack.c.h.b16 %v81
    %v1046 = vunpack.c.l.b16 %v82
    %v1047 = vunpack.c.h.b16 %v82
    %v1048 = vunpack.c.l.b16 %v83
    %v1049 = vunpack.c.h.b16 %v83
    %v1050 = vunpack.c.l.b16 %v84
    %v1051 = vunpack.c.h.b16 %v84
    %v1052 = vunpack.c.l.b16 %v85
    %v1053 = vunpack.c.h.b16 %v85
    %v1054 = vunpack.c.l.b16 %v86
    %v1055 = vunpack.c.h.b16 %v86
    %v1056 = vunpack.c.l.b16 %v87
    %v1057 = vunpack.c.h.b16 %v87
    %v1058 = vunpack.c.l.b16 %v88
    %v1059 = vunpack.c.h.b16 %v88
    %v1060 = vunpack.c.l.b16 %v89
    %v1061 = vunpack.c.h.b16 %v89
    %v1062 = vunpack.c.l.b16 %v90
    %v1063 = vunpack.c.h.b16 %v90
    %v1064 = vunpack.c.l.b16 %v91
    %v1065 = vunpack.c.h.b16 %v91
    %v1066 = vunpack.c.l.b16 %v92
    %v1067 = vunpack.c.h.b16 %v92
    %v1068 = vunpack.c.l.b16 %v93
    %v1069 = vunpack.c.h.b16 %v93
    %v1070 = vunpack.c.l.b16 %v94
    %v1071 = vunpack.c.h.b16 %v94
    %v1072 = vunpack.c.l.b16 %v95
    %v1073 = vunpack.c.h.b16 %v95
    %v1074 = vunpack.c.l.b16 %v96
    %v1075 = vunpack.c.h.b16 %v96
    %v1076 = vunpack.c.l.b16 %v97
    %v1077 = vunpack.c.h.b16 %v97
    %v1078 = vunpack.c.l.b16 %v98
    %v1079 = vunpack.c.h.b16 %v98
    %v1080 = vunpack.c.l.b16 %v99
    %v1081 = vunpack.c.h.b16 %v99
    %v1082 = vunpack.c.l.b16 %v100
    %v1083 = vunpack.c.h.b16 %v100
    %v1084 = vunpack.c.l.b16 %v101
    %v1085 = vunpack.c.h.b16 %v101
    %v1086 = vunpack.c.l.b16 %v102
    %v1087 = vunpack.c.h.b16 %v102
    %v1088 = vunpack.c.l.b16 %v103
    %v1089 = vunpack.c.h.b16 %v103
    %v1090 = vunpack.c.l.b16 %v104
    %v1091 = vunpack.c.h.b16 %v104
    %v1092 = vunpack.c.l.b16 %v105
    %v1093 = vunpack.c.h.b16 %v105
    %v1094 = vunpack.c.l.b16 %v106
    %v1095 = vunpack.c.h.b16 %v106
    %v1096 = vunpack.c.l.b16 %v107
    %v1097 = vunpack.c.h.b16 %v107
    %v1098 = vunpack.c.l.b16 %v108
    %v1099 = vunpack.c.h.b16 %v108
    %v1100 = vunpack.c.l.b16 %v109
    %v1101 = vunpack.c.h.b16 %v109
    %v1102 = vunpack.c.l.b16 %v110
    %v1103 = vunpack.c.h.b16 %v110
    %v1104 = vunpack.c.l.b16 %v111
    %v1105 = vunpack.c.h.b16 %v111
    %v1106 = vunpack.c.l.b16 %v112
    %v1107 = vunpack.c.h.b16 %v112
    %v1108 = vunpack.c.l.b16 %v113
    %v1109 = vunpack.c.h.b16 %v113
    %v1110 = vunpack.c.l.b16 %v114
    %v1111 = vunpack.c.h.b16 %v114
    %v1112 = vunpack.c.l.b16 %v115
    %v1113 = vunpack.c.h.b16 %v115
    %v1114 = vunpack.c.l.b16 %v116
    %v1115 = vunpack.c.h.b16 %v116
    %v1116 = vunpack.c.l.b16 %v117
    %v1117 = vunpack.c.h.b16 %v117
    %v1118 = vunpack.c.l.b16 %v118
    %v1119 = vunpack.c.h.b16 %v118
    %v1120 = vunpack.c.l.b16 %v119
    %v1121 = vunpack.c.h.b16 %v119
    %v1122 = vunpack.c.l.b16 %v120
    %v1123 = vunpack.c.h.b16 %v120
    %v1124 = vunpack.c.l.b16 %v121
    %v1125 = vunpack.c.h.b16 %v121
    %v1126 = vunpack.c.l.b16 %v122
    %v1127 = vunpack.c.h.b16 %v122
    %v1128 = vunpack.c.l.b16 %v123
    %v1129 = vunpack.c.h.b16 %v123
    %v1130 = vunpack.c.l.b16 %v124
    %v1131 = vunpack.c.h.b16 %v124
    %v1132 = vunpack.c.l.b16 %v125
    %v1133 = vunpack.c.h.b16 %v125
    %v1134 = vunpack.c.l.b16 %v126
    %v1135 = vunpack.c.h.b16 %v126
    %v1136 = vunpack.c.l.b16 %v127
    %v1137 = vunpack.c.h.b16 %v127
    %v1138 = vunpack.c.l.b16 %v128
    %v1139 = vunpack.c.h.b16 %v128
    %v1140 = vunpack.c.l.b16 %v129
    %v1141 = vunpack.c.h.b16 %v129
    %v1142 = vunpack.c.l.b16 %v130
    %v1143 = vunpack.c.h.b16 %v130
    %v1144 = vunpack.c.l.b16 %v131
    %v1145 = vunpack.c.h.b16 %v131
    %v1146 = vunpack.c.l.b16 %v132
    %v1147 = vunpack.c.h.b16 %v132
    %v1148 = vunpack.c.l.b16 %v133
    %v1149 = vunpack.c.h.b16 %v133
    %v1150 = vunpack.c.l.b16 %v134
    %v1151 = vunpack.c.h.b16 %v134
    %v1152 = vunpack.c.l.b16 %v135
    %v1153 = vunpack.c.h.b16 %v135
    %v1154 = vunpack.c.l.b16 %v136
    %v1155 = vunpack.c.h.b16 %v136
    %v1156 = vunpack.c.l.b16 %v137
    %v1157 = vunpack.c.h.b16 %v137
    %v1158 = vunpack.c.l.b16 %v138
    %v1159 = vunpack.c.h.b16 %v138
    %v1160 = vunpack.c.l.b16 %v139
    %v1161 = vunpack.c.h.b16 %v139
    %v1162 = vunpack.c.l.b16 %v140
    %v1163 = vunpack.c.h.b16 %v140
    %v1164 = vunpack.c.l.b16 %v141
    %v1165 = vunpack.c.h.b16 %v141
    %v1166 = vunpack.c.l.b16 %v142
    %v1167 = vunpack.c.h.b16 %v142
    %v1168 = vunpack.c.l.b16 %v143
    %v1169 = vunpack.c.h.b16 %v143
    %v1170 = vunpack.c.l.b16 %v144
    %v1171 = vunpack.c.h.b16 %v144
    %v1172 = vunpack.c.l.b16 %v145
    %v1173 = vunpack.c.h.b16 %v145
    %v1174 = vunpack.c.l.b16 %v146
    %v1175 = vunpack.c.h.b16 %v146
    %v1176 = vunpack.c.l.b16 %v147
    %v1177 = vunpack.c.h.b16 %v147
    %v1178 = vunpack.c.l.b16 %v148
    %v1179 = vunpack.c.h.b16 %v148
    %v1180 = vunpack.c.l.b16 %v149
    %v1181 = vunpack.c.h.b16 %v149
    %v1182 = vunpack.c.l.b16 %v150
    %v1183 = vunpack.c.h.b16 %v150
    %v1184 = vunpack.c.l.b16 %v151
    %v1185 = vunpack.c.h.b16 %v151
    %v1186 = vunpack.c.l.b16 %v152
    %v1187 = vunpack.c.h.b16 %v152
    %v1188 = vunpack.c.l.b16 %v153
    %v1189 = vunpack.c.h.b16 %v153
    %v1190 = vunpack.c.l.b16 %v154
    %v1191 = vunpack.c.h.b16 %v154
    %v1192 = vunpack.c.l.b16 %v155
    %v1193 = vunpack.c.h.b16 %v155
    %v1194 = vunpack.c.l.b16 %v156
    %v1195 = vunpack.c.h.b16 %v156
    %v1196 = vunpack.c.l.b16 %v157
    %v1197 = vunpack.c.h.b16 %v157
    %v1198 = vunpack.c.l.b16 %v158
    %v1199 = vunpack.c.h.b16 %v158
    %v1200 = vunpack.c.l.b16 %v159
    %v1201 = vunpack.c.h.b16 %v159
    %v1202 = vunpack.c.l.b16 %v160
    %v1203 = vunpack.c.h.b16 %v160
    %v1204 = vunpack.c.l.b16 %v161
    %v1205 = vunpack.c.h.b16 %v161
    %v1206 = vunpack.c.l.b16 %v162
    %v1207 = vunpack.c.h.b16 %v162
    %v1208 = vunpack.c.l.b16 %v163
    %v1209 = vunpack.c.h.b16 %v163
    %v1210 = vunpack.c.l.b16 %v164
    %v1211 = vunpack.c.h.b16 %v164
    %v1212 = vunpack.c.l.b16 %v165
    %v1213 = vunpack.c.h.b16 %v165
    %v1214 = vunpack.c.l.b16 %v166
    %v1215 = vunpack.c.h.b16 %v166
    %v1216 = vunpack.c.l.b16 %v167
    %v1217 = vunpack.c.h.b16 %v167
    %v1218 = vunpack.c.l.b16 %v168
    %v1219 = vunpack.c.h.b16 %v168
    %v1220 = vunpack.c.l.b16 %v169
    %v1221 = vunpack.c.h.b16 %v169
    %v1222 = vunpack.c.l.b16 %v170
    %v1223 = vunpack.c.h.b16 %v170
    %v1224 = vunpack.c.l.b16 %v171
    %v1225 = vunpack.c.h.b16 %v171
    %v1226 = vunpack.c.l.b16 %v172
    %v1227 = vunpack.c.h.b16 %v172
    %v1228 = vunpack.c.l.b16 %v173
    %v1229 = vunpack.c.h.b16 %v173
    %v1230 = vunpack.c.l.b16 %v174
    %v1231 = vunpack.c.h.b16 %v174
    %v1232 = vunpack.c.l.b16 %v175
    %v1233 = vunpack.c.h.b16 %v175
    %v1234 = vunpack.c.l.b16 %v176
    %v1235 = vunpack.c.h.b16 %v176
    %v1236 = vunpack.c.l.b16 %v177
    %v1237 = vunpack.c.h.b16 %v177
    %v1238 = vunpack.c.l.b16 %v178
    %v1239 = vunpack.c.h.b16 %v178
    %v1240 = vunpack.c.l.b16 %v179
    %v1241 = vunpack.c.h.b16 %v179
    %v1242 = vunpack.c.l.b16 %v180
    %v1243 = vunpack.c.h.b16 %v180
    %v1244 = vunpack.c.l.b16 %v181
    %v1245 = vunpack.c.h.b16 %v181
    %v1246 = vunpack.c.l.b16 %v182
    %v1247 = vunpack.c.h.b16 %v182
    %v1248 = vunpack.c.l.b16 %v183
    %v1249 = vunpack.c.h.b16 %v183
    %v1250 = vunpack.c.l.b16 %v184
    %v1251 = vunpack.c.h.b16 %v184
    %v1252 = vunpack.c.l.b16 %v185
    %v1253 = vunpack.c.h.b16 %v185
    %v1254 = vunpack.c.l.b16 %v186
    %v1255 = vunpack.c.h.b16 %v186
    %v1256 = vunpack.c.l.b16 %v187
    %v1257 = vunpack.c.h.b16 %v187
    %v1258 = vunpack.c.l.b16 %v188
    %v1259 = vunpack.c.h.b16 %v188
    %v1260 = vunpack.c.l.b16 %v189
    %v1261 = vunpack.c.h.b16 %v189
    %v1262 = vunpack.c.l.b16 %v190
    %v1263 = vunpack.c.h.b16 %v190
    %v1264 = vunpack.c.l.b16 %v191
    %v1265 = vunpack.c.h.b16 %v191
    %v1266 = vunpack.c.l.b16 %v192
    %v1267 = vunpack.c.h.b16 %v192
    %v1268 = vunpack.c.l.b16 %v193
    %v1269 = vunpack.c.h.b16 %v193
    %v1270 = vunpack.c.l.b16 %v194
    %v1271 = vunpack.c.h.b16 %v194
    %v1272 = vunpack.c.l.b16 %v195
    %v1273 = vunpack.c.h.b16 %v195
    %v1274 = vunpack.c.l.b16 %v196
    %v1275 = vunpack.c.h.b16 %v196
    %v1276 = vunpack.c.l.b16 %v197
    %v1277 = vunpack.c.h.b16 %v197
    %v1278 = vunpack.c.l.b16 %v198
    %v1279 = vunpack.c.h.b16 %v198
    %v1280 = vunpack.c.l.b16 %v199
    %v1281 = vunpack.c.h.b16 %v199
    %v1282 = vunpack.c.l.b16 %v200
    %v1283 = vunpack.c.h.b16 %v200
    %v1284 = vunpack.c.l.b16 %v201
    %v1285 = vunpack.c.h.b16 %v201
    %v1286 = vunpack.c.l.b16 %v202
    %v1287 = vunpack.c.h.b16 %v202
    %v1288 = vunpack.c.l.b16 %v203
    %v1289 = vunpack.c.h.b16 %v203
    %v1290 = vunpack.c.l.b16 %v204
    %v1291 = vunpack.c.h.b16 %v204
    %v1292 = vunpack.c.l.b16 %v205
    %v1293 = vunpack.c.h.b16 %v205
    %v1294 = vunpack.c.l.b16 %v206
    %v1295 = vunpack.c.h.b16 %v206
    %v1296 = vunpack.c.l.b16 %v207
    %v1297 = vunpack.c.h.b16 %v207
    %v1298 = vunpack.c.l.b16 %v208
    %v1299 = vunpack.c.h.b16 %v208
    %v1300 = vunpack.c.l.b16 %v209
    %v1301 = vunpack.c.h.b16 %v209
    %v1302 = vunpack.c.l.b16 %v210
    %v1303 = vunpack.c.h.b16 %v210
    %v1304 = vunpack.c.l.b16 %v211
    %v1305 = vunpack.c.h.b16 %v211
    %v1306 = vunpack.c.l.b16 %v212
    %v1307 = vunpack.c.h.b16 %v212
    %v1308 = vunpack.c.l.b16 %v213
    %v1309 = vunpack.c.h.b16 %v213
    %v1310 = vunpack.c.l.b16 %v214
    %v1311 = vunpack.c.h.b16 %v214
    %v1312 = vunpack.c.l.b16 %v215
    %v1313 = vunpack.c.h.b16 %v215
    %v1314 = vunpack.c.l.b16 %v216
    %v1315 = vunpack.c.h.b16 %v216
    %v1316 = vunpack.c.l.b16 %v217
    %v1317 = vunpack.c.h.b16 %v217
    %v1318 = vunpack.c.l.b16 %v218
    %v1319 = vunpack.c.h.b16 %v218
    %v1320 = vunpack.c.l.b16 %v219
    %v1321 = vunpack.c.h.b16 %v219
    %v1322 = vunpack.c.l.b16 %v220
    %v1323 = vunpack.c.h.b16 %v220
    %v1324 = vunpack.c.l.b16 %v221
    %v1325 = vunpack.c.h.b16 %v221
    %v1326 = vunpack.c.l.b16 %v222
    %v1327 = vunpack.c.h.b16 %v222
    %v1328 = vunpack.c.l.b16 %v223
    %v1329 = vunpack.c.h.b16 %v223
    %v1330 = vunpack.c.l.b16 %v224
    %v1331 = vunpack.c.h.b16 %v224
    %v1332 = vunpack.c.l.b16 %v225
    %v1333 = vunpack.c.h.b16 %v225
    %v1334 = vunpack.c.l.b16 %v226
    %v1335 = vunpack.c.h.b16 %v226
    %v1336 = vunpack.c.l.b16 %v227
    %v1337 = vunpack.c.h.b16 %v227
    %v1338 = vunpack.c.l.b16 %v228
    %v1339 = vunpack.c.h.b16 %v228
    %v1340 = vunpack.c.l.b16 %v229
    %v1341 = vunpack.c.h.b16 %v229
    %v1342 = vunpack.c.l.b16 %v230
    %v1343 = vunpack.c.h.b16 %v230
    %v1344 = vunpack.c.l.b16 %v231
    %v1345 = vunpack.c.h.b16 %v231
    %v1346 = vunpack.c.l.b16 %v232
    %v1347 = vunpack.c.h.b16 %v232
    %v1348 = vunpack.c.l.b16 %v233
    %v1349 = vunpack.c.h.b16 %v233
    %v1350 = vunpack.c.l.b16 %v234
    %v1351 = vunpack.c.h.b16 %v234
    %v1352 = vunpack.c.l.b16 %v235
    %v1353 = vunpack.c.h.b16 %v235
    %v1354 = vunpack.c.l.b16 %v236
    %v1355 = vunpack.c.h.b16 %v236
    %v1356 = vunpack.c.l.b16 %v237
    %v1357 = vunpack.c.h.b16 %v237
    %v1358 = vunpack.c.l.b16 %v238
    %v1359 = vunpack.c.h.b16 %v238
    %v1360 = vunpack.c.l.b16 %v239
    %v1361 = vunpack.c.h.b16 %v239
    %v1362 = vunpack.c.l.b16 %v240
    %v1363 = vunpack.c.h.b16 %v240
    %v1364 = vunpack.c.l.b16 %v241
    %v1365 = vunpack.c.h.b16 %v241
    %v1366 = vunpack.c.l.b16 %v242
    %v1367 = vunpack.c.h.b16 %v242
    %v1368 = vunpack.c.l.b16 %v243
    %v1369 = vunpack.c.h.b16 %v243
    %v1370 = vunpack.c.l.b16 %v244
    %v1371 = vunpack.c.h.b16 %v244
    %v1372 = vunpack.c.l.b16 %v245
    %v1373 = vunpack.c.h.b16 %v245
    %v1374 = vunpack.c.l.b16 %v246
    %v1375 = vunpack.c.h.b16 %v246
    %v1376 = vunpack.c.l.b16 %v247
    %v1377 = vunpack.c.h.b16 %v247
    %v1378 = vunpack.c.l.b16 %v248
    %v1379 = vunpack.c.h.b16 %v248
    %v1380 = vunpack.c.l.b16 %v249
    %v1381 = vunpack.c.h.b16 %v249
    %v1382 = vunpack.c.l.b16 %v250
    %v1383 = vunpack.c.h.b16 %v250
    %v1384 = vunpack.c.l.b16 %v251
    %v1385 = vunpack.c.h.b16 %v251
    %v1386 = vunpack.c.l.b16 %v252
    %v1387 = vunpack.c.h.b16 %v252
    %v1388 = vunpack.c.l.b16 %v253
    %v1389 = vunpack.c.h.b16 %v253
    %v1390 = vunpack.c.l.b16 %v254
    %v1391 = vunpack.c.h.b16 %v254
    %v1392 = vunpack.c.l.b16 %v255
    %v1393 = vunpack.c.h.b16 %v255
    %v1394 = vunpack.c.l.b16 %v256
    %v1395 = vunpack.c.h.b16 %v256
    %v1396 = vunpack.c.l.b16 %v257
    %v1397 = vunpack.c.h.b16 %v257
    %v1398 = vunpack.c.l.b16 %v258
    %v1399 = vunpack.c.h.b16 %v258
    %v1400 = vunpack.c.l.b16 %v259
    %v1401 = vunpack.c.h.b16 %v259
    %v1402 = vunpack.c.l.b16 %v260
    %v1403 = vunpack.c.h.b16 %v260
    %v1404 = vunpack.c.l.b16 %v261
    %v1405 = vunpack.c.h.b16 %v261
    %v1406 = vunpack.c.l.b16 %v262
    %v1407 = vunpack.c.h.b16 %v262
    %v1408 = vunpack.c.l.b16 %v263
    %v1409 = vunpack.c.h.b16 %v263
    %v1410 = vunpack.c.l.b16 %v264
    %v1411 = vunpack.c.h.b16 %v264
    %v1412 = vunpack.c.l.b16 %v265
    %v1413 = vunpack.c.h.b16 %v265
    %v1414 = vunpack.c.l.b16 %v266
    %v1415 = vunpack.c.h.b16 %v266
    %v1416 = vunpack.c.l.b16 %v267
    %v1417 = vunpack.c.h.b16 %v267
    %v1418 = vunpack.c.l.b16 %v268
    %v1419 = vunpack.c.h.b16 %v268
    %v1420 = vunpack.c.l.b16 %v269
    %v1421 = vunpack.c.h.b16 %v269
    %v1422 = vunpack.c.l.b16 %v270
    %v1423 = vunpack.c.h.b16 %v270
    %v1424 = vunpack.c.l.b16 %v271
    %v1425 = vunpack.c.h.b16 %v271
    %v1426 = vunpack.c.l.b16 %v272
    %v1427 = vunpack.c.h.b16 %v272
    %v1428 = vunpack.c.l.b16 %v273
    %v1429 = vunpack.c.h.b16 %v273
    %v1430 = vunpack.c.l.b16 %v274
    %v1431 = vunpack.c.h.b16 %v274
    %v1432 = vunpack.c.l.b16 %v275
    %v1433 = vunpack.c.h.b16 %v275
    %v1434 = vunpack.c.l.b16 %v276
    %v1435 = vunpack.c.h.b16 %v276
    %v1436 = vunpack.c.l.b16 %v277
    %v1437 = vunpack.c.h.b16 %v277
    %v1438 = vunpack.c.l.b16 %v278
    %v1439 = vunpack.c.h.b16 %v278
    %v1440 = vunpack.c.l.b16 %v279
    %v1441 = vunpack.c.h.b16 %v279
    %v1442 = vunpack.c.l.b16 %v280
    %v1443 = vunpack.c.h.b16 %v280
    %v1444 = vunpack.c.l.b16 %v281
    %v1445 = vunpack.c.h.b16 %v281
    %v1446 = vunpack.c.l.b16 %v282
    %v1447 = vunpack.c.h.b16 %v282
    %v1448 = vunpack.c.l.b16 %v283
    %v1449 = vunpack.c.h.b16 %v283
    %v1450 = vunpack.c.l.b16 %v284
    %v1451 = vunpack.c.h.b16 %v284
    %v1452 = vunpack.c.l.b16 %v285
    %v1453 = vunpack.c.h.b16 %v285
    %v1454 = vunpack.c.l.b16 %v286
    %v1455 = vunpack.c.h.b16 %v286
    %v1456 = vunpack.c.l.b16 %v287
    %v1457 = vunpack.c.h.b16 %v287
    %v1458 = vunpack.c.l.b16 %v288
    %v1459 = vunpack.c.h.b16 %v288
    %v1460 = vunpack.c.l.b16 %v289
    %v1461 = vunpack.c.h.b16 %v289
    %v1462 = vunpack.c.l.b16 %v290
    %v1463 = vunpack.c.h.b16 %v290
    %v1464 = vunpack.c.l.b16 %v291
    %v1465 = vunpack.c.h.b16 %v291
    %v1466 = vunpack.c.l.b16 %v292
    %v1467 = vunpack.c.h.b16 %v292
    %v1468 = vunpack.c.l.b16 %v293
    %v1469 = vunpack.c.h.b16 %v293
    %v1470 = vunpack.c.l.b16 %v294
    %v1471 = vunpack.c.h.b16 %v294
    %v1472 = vunpack.c.l.b16 %v295
    %v1473 = vunpack.c.h.b16 %v295
    %v1474 = vunpack.c.l.b16 %v296
    %v1475 = vunpack.c.h.b16 %v296
    %v1476 = vunpack.c.l.b16 %v297
    %v1477 = vunpack.c.h.b16 %v297
    %v1478 = vunpack.c.l.b16 %v298
    %v1479 = vunpack.c.h.b16 %v298
    %v1480 = vunpack.c.l.b16 %v299
    %v1481 = vunpack.c.h.b16 %v299
    %v1482 = vunpack.c.l.b16 %v300
    %v1483 = vunpack.c.h.b16 %v300
    %v1484 = vunpack.c.l.b16 %v301
    %v1485 = vunpack.c.h.b16 %v301
    %v1486 = vunpack.c.l.b16 %v302
    %v1487 = vunpack.c.h.b16 %v302
    %v1488 = vunpack.c.l.b16 %v303
    %v1489 = vunpack.c.h.b16 %v303
    %v1490 = vunpack.c.l.b16 %v304
    %v1491 = vunpack.c.h.b16 %v304
    %v1492 = vunpack.c.l.b16 %v305
    %v1493 = vunpack.c.h.b16 %v305
    %v1494 = vunpack.c.l.b16 %v306
    %v1495 = vunpack.c.h.b16 %v306
    %v1496 = vunpack.c.l.b16 %v307
    %v1497 = vunpack.c.h.b16 %v307
    %v1498 = vunpack.c.l.b16 %v308
    %v1499 = vunpack.c.h.b16 %v308
    %v1500 = vunpack.c.l.b16 %v309
    %v1501 = vunpack.c.h.b16 %v309
    %v1502 = vunpack.c.l.b16 %v310
    %v1503 = vunpack.c.h.b16 %v310
    %v1504 = vunpack.c.l.b16 %v311
    %v1505 = vunpack.c.h.b16 %v311
    %v1506 = vunpack.c.l.b16 %v312
    %v1507 = vunpack.c.h.b16 %v312
    %v1508 = vunpack.c.l.b16 %v313
    %v1509 = vunpack.c.h.b16 %v313
    %v1510 = vunpack.c.l.b16 %v314
    %v1511 = vunpack.c.h.b16 %v314
    %v1512 = vunpack.c.l.b16 %v315
    %v1513 = vunpack.c.h.b16 %v315
    %v1514 = vunpack.c.l.b16 %v316
    %v1515 = vunpack.c.h.b16 %v316
    %v1516 = vunpack.c.l.b16 %v317
    %v1517 = vunpack.c.h.b16 %v317
    %v1518 = vunpack.c.l.b16 %v318
    %v1519 = vunpack.c.h.b16 %v318
    %v1520 = vunpack.c.l.b16 %v319
    %v1521 = vunpack.c.h.b16 %v319
    %v1522 = vunpack.c.l.b16 %v320
    %v1523 = vunpack.c.h.b16 %v320
    %v1524 = vunpack.c.l.b16 %v321
    %v1525 = vunpack.c.h.b16 %v321
    %v1526 = vunpack.c.l.b16 %v322
    %v1527 = vunpack.c.h.b16 %v322
    %v1528 = vunpack.c.l.b16 %v323
    %v1529 = vunpack.c.h.b16 %v323
    %v1530 = vunpack.c.l.b16 %v324
    %v1531 = vunpack.c.h.b16 %v324
    %v1532 = vunpack.c.l.b16 %v325
    %v1533 = vunpack.c.h.b16 %v325
    %v1534 = vunpack.c.l.b16 %v326
    %v1535 = vunpack.c.h.b16 %v326
    %v1536 = vunpack.c.l.b16 %v327
    %v1537 = vunpack.c.h.b16 %v327
    %v1538 = vunpack.c.l.b16 %v328
    %v1539 = vunpack.c.h.b16 %v328
    %v1540 = vunpack.c.l.b16 %v329
    %v1541 = vunpack.c.h.b16 %v329
    %v1542 = vunpack.c.l.b16 %v330
    %v1543 = vunpack.c.h.b16 %v330
    %v1544 = vunpack.c.l.b16 %v331
    %v1545 = vunpack.c.h.b16 %v331
    %v1546 = vunpack.c.l.b16 %v332
    %v1547 = vunpack.c.h.b16 %v332
    %v1548 = vunpack.c.l.b16 %v333
    %v1549 = vunpack.c.h.b16 %v333
    %v1550 = vunpack.c.l.b16 %v334
    %v1551 = vunpack.c.h.b16 %v334
    %v1552 = vunpack.c.l.b16 %v335
    %v1553 = vunpack.c.h.b16 %v335
    %v1554 = vunpack.c.l.b16 %v336
    %v1555 = vunpack.c.h.b16 %v336
    %v1556 = vunpack.c.l.b16 %v337
    %v1557 = vunpack.c.h.b16 %v337
    %v1558 = vunpack.c.l.b16 %v338
    %v1559 = vunpack.c.h.b16 %v338
    %v1560 = vunpack.c.l.b16 %v339
    %v1561 = vunpack.c.h.b16 %v339
    %v1562 = vunpack.c.l.b16 %v340
    %v1563 = vunpack.c.h.b16 %v340
    %v1564 = vunpack.c.l.b16 %v341
    %v1565 = vunpack.c.h.b16 %v341
    %v1566 = vunpack.c.l.b16 %v342
    %v1567 = vunpack.c.h.b16 %v342
    %v1568 = vunpack.c.l.b16 %v343
    %v1569 = vunpack.c.h.b16 %v343
    %v1570 = vunpack.c.l.b16 %v344
    %v1571 = vunpack.c.h.b16 %v344
    %v1572 = vunpack.c.l.b16 %v345
    %v1573 = vunpack.c.h.b16 %v345
    %v1574 = vunpack.c.l.b16 %v346
    %v1575 = vunpack.c.h.b16 %v346
    %v1576 = vunpack.c.l.b16 %v347
    %v1577 = vunpack.c.h.b16 %v347
    %v1578 = vunpack.c.l.b16 %v348
    %v1579 = vunpack.c.h.b16 %v348
    %v1580 = vunpack.c.l.b16 %v349
    %v1581 = vunpack.c.h.b16 %v349
    %v1582 = vunpack.c.l.b16 %v350
    %v1583 = vunpack.c.h.b16 %v350
    %v1584 = vunpack.c.l.b16 %v351
    %v1585 = vunpack.c.h.b16 %v351
    %v1586 = vunpack.c.l.b16 %v352
    %v1587 = vunpack.c.h.b16 %v352
    %v1588 = vunpack.c.l.b16 %v353
    %v1589 = vunpack.c.h.b16 %v353
    %v1590 = vunpack.c.l.b16 %v354
    %v1591 = vunpack.c.h.b16 %v354
    %v1592 = vunpack.c.l.b16 %v355
    %v1593 = vunpack.c.h.b16 %v355
    %v1594 = vunpack.c.l.b16 %v356
    %v1595 = vunpack.c.h.b16 %v356
    %v1596 = vunpack.c.l.b16 %v357
    %v1597 = vunpack.c.h.b16 %v357
    %v1598 = vunpack.c.l.b16 %v358
    %v1599 = vunpack.c.h.b16 %v358
    %v1600 = vunpack.c.l.b16 %v359
    %v1601 = vunpack.c.h.b16 %v359
    %v1602 = vunpack.c.l.b16 %v360
    %v1603 = vunpack.c.h.b16 %v360
    %v1604 = vunpack.c.l.b16 %v361
    %v1605 = vunpack.c.h.b16 %v361
    %v1606 = vunpack.c.l.b16 %v362
    %v1607 = vunpack.c.h.b16 %v362
    %v1608 = vunpack.c.l.b16 %v363
    %v1609 = vunpack.c.h.b16 %v363
    %v1610 = vunpack.c.l.b16 %v364
    %v1611 = vunpack.c.h.b16 %v364
    %v1612 = vunpack.c.l.b16 %v365
    %v1613 = vunpack.c.h.b16 %v365
    %v1614 = vunpack.c.l.b16 %v366
    %v1615 = vunpack.c.h.b16 %v366
    %v1616 = vunpack.c.l.b16 %v367
    %v1617 = vunpack.c.h.b16 %v367
    %v1618 = vunpack.c.l.b16 %v368
    %v1619 = vunpack.c.h.b16 %v368
    %v1620 = vunpack.c.l.b16 %v369
    %v1621 = vunpack.c.h.b16 %v369
    %v1622 = vunpack.c.l.b16 %v370
    %v1623 = vunpack.c.h.b16 %v370
    %v1624 = vunpack.c.l.b16 %v371
    %v1625 = vunpack.c.h.b16 %v371
    %v1626 = vunpack.c.l.b16 %v372
    %v1627 = vunpack.c.h.b16 %v372
    %v1628 = vunpack.c.l.b16 %v373
    %v1629 = vunpack.c.h.b16 %v373
    %v1630 = vunpack.c.l.b16 %v374
    %v1631 = vunpack.c.h.b16 %v374
    %v1632 = vunpack.c.l.b16 %v375
    %v1633 = vunpack.c.h.b16 %v375
    %v1634 = vunpack.c.l.b16 %v376
    %v1635 = vunpack.c.h.b16 %v376
    %v1636 = vunpack.c.l.b16 %v377
    %v1637 = vunpack.c.h.b16 %v377
    %v1638 = vunpack.c.l.b16 %v378
    %v1639 = vunpack.c.h.b16 %v378
    %v1640 = vunpack.c.l.b16 %v379
    %v1641 = vunpack.c.h.b16 %v379
    %v1642 = vunpack.c.l.b16 %v380
    %v1643 = vunpack.c.h.b16 %v380
    %v1644 = vunpack.c.l.b16 %v381
    %v1645 = vunpack.c.h.b16 %v381
    %v1646 = vunpack.c.l.b16 %v382
    %v1647 = vunpack.c.h.b16 %v382
    %v1648 = vunpack.c.l.b16 %v383
    %v1649 = vunpack.c.h.b16 %v383
    %v1650 = vunpack.c.l.b16 %v384
    %v1651 = vunpack.c.h.b16 %v384
    %v1652 = vunpack.c.l.b16 %v385
    %v1653 = vunpack.c.h.b16 %v385
    %v1654 = vunpack.c.l.b16 %v386
    %v1655 = vunpack.c.h.b16 %v386
    %v1656 = vunpack.c.l.b16 %v387
    %v1657 = vunpack.c.h.b16 %v387
    %v1658 = vunpack.c.l.b16 %v388
    %v1659 = vunpack.c.h.b16 %v388
    %v1660 = vunpack.c.l.b16 %v389
    %v1661 = vunpack.c.h.b16 %v389
    %v1662 = vunpack.c.l.b16 %v390
    %v1663 = vunpack.c.h.b16 %v390
    %v1664 = vunpack.c.l.b16 %v391
    %v1665 = vunpack.c.h.b16 %v391
    %v1666 = vunpack.c.l.b16 %v392
    %v1667 = vunpack.c.h.b16 %v392
    %v1668 = vunpack.c.l.b16 %v393
    %v1669 = vunpack.c.h.b16 %v393
    %v1670 = vunpack.c.l.b16 %v394
    %v1671 = vunpack.c.h.b16 %v394
    %v1672 = vunpack.c.l.b16 %v395
    %v1673 = vunpack.c.h.b16 %v395
    %v1674 = vunpack.c.l.b16 %v396
    %v1675 = vunpack.c.h.b16 %v396
    %v1676 = vunpack.c.l.b16 %v397
    %v1677 = vunpack.c.h.b16 %v397
    %v1678 = vunpack.c.l.b16 %v398
    %v1679 = vunpack.c.h.b16 %v398
    %v1680 = vunpack.c.l.b16 %v399
    %v1681 = vunpack.c.h.b16 %v399
    %v1682 = vunpack.c.l.b16 %v400
    %v1683 = vunpack.c.h.b16 %v400
    %v1684 = vunpack.c.l.b16 %v401
    %v1685 = vunpack.c.h.b16 %v401
    %v1686 = vunpack.c.l.b16 %v402
    %v1687 = vunpack.c.h.b16 %v402
    %v1688 = vunpack.c.l.b16 %v403
    %v1689 = vunpack.c.h.b16 %v403
    %v1690 = vunpack.c.l.b16 %v404
    %v1691 = vunpack.c.h.b16 %v404
    %v1692 = vunpack.c.l.b16 %v405
    %v1693 = vunpack.c.h.b16 %v405
    %v1694 = vunpack.c.l.b16 %v406
    %v1695 = vunpack.c.h.b16 %v406
    %v1696 = vunpack.c.l.b16 %v407
    %v1697 = vunpack.c.h.b16 %v407
    %v1698 = vunpack.c.l.b16 %v408
    %v1699 = vunpack.c.h.b16 %v408
    %v1700 = vunpack.c.l.b16 %v409
    %v1701 = vunpack.c.h.b16 %v409
    %v1702 = vunpack.c.l.b16 %v410
    %v1703 = vunpack.c.h.b16 %v410
    %v1704 = vunpack.c.l.b16 %v411
    %v1705 = vunpack.c.h.b16 %v411
    %v1706 = vunpack.c.l.b16 %v412
    %v1707 = vunpack.c.h.b16 %v412
    %v1708 = vunpack.c.l.b16 %v413
    %v1709 = vunpack.c.h.b16 %v413
    %v1710 = vunpack.c.l.b16 %v414
    %v1711 = vunpack.c.h.b16 %v414
    %v1712 = vunpack.c.l.b16 %v415
    %v1713 = vunpack.c.h.b16 %v415
    %v1714 = vunpack.c.l.b16 %v416
    %v1715 = vunpack.c.h.b16 %v416
    %v1716 = vunpack.c.l.b16 %v417
    %v1717 = vunpack.c.h.b16 %v417
    %v1718 = vunpack.c.l.b16 %v418
    %v1719 = vunpack.c.h.b16 %v418
    %v1720 = vunpack.c.l.b16 %v419
    %v1721 = vunpack.c.h.b16 %v419
    %v1722 = vunpack.c.l.b16 %v420
    %v1723 = vunpack.c.h.b16 %v420
    %v1724 = vunpack.c.l.b16 %v421
    %v1725 = vunpack.c.h.b16 %v421
    %v1726 = vunpack.c.l.b16 %v422
    %v1727 = vunpack.c.h.b16 %v422
    %v1728 = vunpack.c.l.b16 %v423
    %v1729 = vunpack.c.h.b16 %v423
    %v1730 = vunpack.c.l.b16 %v424
    %v1731 = vunpack.c.h.b16 %v424
    %v1732 = vunpack.c.l.b16 %v425
    %v1733 = vunpack.c.h.b16 %v425
    %v1734 = vunpack.c.l.b16 %v426
    %v1735 = vunpack.c.h.b16 %v426
    %v1736 = vunpack.c.l.b16 %v427
    %v1737 = vunpack.c.h.b16 %v427
    %v1738 = vunpack.c.l.b16 %v428
    %v1739 = vunpack.c.h.b16 %v428
    %v1740 = vunpack.c.l.b16 %v429
    %v1741 = vunpack.c.h.b16 %v429
    %v1742 = vunpack.c.l.b16 %v430
    %v1743 = vunpack.c.h.b16 %v430
    %v1744 = vunpack.c.l.b16 %v431
    %v1745 = vunpack.c.h.b16 %v431
    %v1746 = vunpack.c.l.b16 %v432
    %v1747 = vunpack.c.h.b16 %v432
    %v1748 = vunpack.c.l.b16 %v433
    %v1749 = vunpack.c.h.b16 %v433
    %v1750 = vunpack.c.l.b16 %v434
    %v1751 = vunpack.c.h.b16 %v434
    %v1752 = vunpack.c.l.b16 %v435
    %v1753 = vunpack.c.h.b16 %v435
    %v1754 = vunpack.c.l.b16 %v436
    %v1755 = vunpack.c.h.b16 %v436
    %v1756 = vunpack.c.l.b16 %v437
    %v1757 = vunpack.c.h.b16 %v437
    %v1758 = vunpack.c.l.b16 %v438
    %v1759 = vunpack.c.h.b16 %v438
    %v1760 = vunpack.c.l.b16 %v439
    %v1761 = vunpack.c.h.b16 %v439
    %v1762 = vunpack.c.l.b16 %v440
    %v1763 = vunpack.c.h.b16 %v440
    %v1764 = vunpack.c.l.b16 %v441
    %v1765 = vunpack.c.h.b16 %v441
    %v1766 = vpack.c.b16 %v970, %v966
    %v1767 = vpack.c.b16 %v971, %v967
    %v1768 = vpack.c.b16 %v972, %v968
    %v1769 = vpack.c.b16 %v973, %v969
    %v1770 = vpack.c.b16 %v978, %v974
    %v1771 = vpack.c.b16 %v979, %v975
    %v1772 = vpack.c.b16 %v980, %v976
    %v1773 = vpack.c.b16 %v981, %v977
    %v1774 = vpack.c.b16 %v986, %v982
    %v1775 = vpack.c.b16 %v987, %v983
    %v1776 = vpack.c.b16 %v988, %v984
    %v1777 = vpack.c.b16 %v989, %v985
    %v1778 = vpack.c.b16 %v994, %v990
    %v1779 = vpack.c.b16 %v995, %v991
    %v1780 = vpack.c.b16 %v996, %v992
    %v1781 = vpack.c.b16 %v997, %v993
    %v1782 = vpack.c.b16 %v1002, %v998
    %v1783 = vpack.c.b16 %v1003, %v999
    %v1784 = vpack.c.b16 %v1004, %v1000
    %v1785 = vpack.c.b16 %v1005, %v1001
    %v1786 = vpack.c.b16 %v1010, %v1006
    %v1787 = vpack.c.b16 %v1011, %v1007
    %v1788 = vpack.c.b16 %v1012, %v1008
    %v1789 = vpack.c.b16 %v1013, %v1009
    %v1790 = vpack.c.b16 %v1018, %v1014
    %v1791 = vpack.c.b16 %v1019, %v1015
    %v1792 = vpack.c.b16 %v1020, %v1016
    %v1793 = vpack.c.b16 %v1021, %v1017
    %v1794 = vpack.c.b16 %v1026, %v1022
    %v1795 = vpack.c.b16 %v1027, %v1023
    %v1796 = vpack.c.b16 %v1028, %v1024
    %v1797 = vpack.c.b16 %v1029, %v1025
    %v1798 = vpack.c.b16 %v1034, %v1030
    %v1799 = vpack.c.b16 %v1035, %v1031
    %v1800 = vpack.c.b16 %v1036, %v1032
    %v1801 = vpack.c.b16 %v1037, %v1033
    %v1802 = vpack.c.b16 %v1042, %v1038
    %v1803 = vpack.c.b16 %v1043, %v1039
    %v1804 = vpack.c.b16 %v1044, %v1040
    %v1805 = vpack.c.b16 %v1045, %v1041
    %v1806 = vpack.c.b16 %v1050, %v1046
    %v1807 = vpack.c.b16 %v1051, %v1047
    %v1808 = vpack.c.b16 %v1052, %v1048
    %v1809 = vpack.c.b16 %v1053, %v1049
    %v1810 = vpack.c.b16 %v1058, %v1054
    %v1811 = vpack.c.b16 %v1059, %v1055
    %v1812 = vpack.c.b16 %v1060, %v1056
    %v1813 = vpack.c.b16 %v1061, %v1057
    %v1814 = vpack.c.b16 %v1066, %v1062
    %v1815 = vpack.c.b16 %v1067, %v1063
    %v1816 = vpack.c.b16 %v1068, %v1064
    %v1817 = vpack.c.b16 %v1069, %v1065
    %v1818 = vpack.c.b16 %v1074, %v1070
    %v1819 = vpack.c.b16 %v1075, %v1071
    %v1820 = vpack.c.b16 %v1076, %v1072
    %v1821 = vpack.c.b16 %v1077, %v1073
    %v1822 = vpack.c.b16 %v1082, %v1078
    %v1823 = vpack.c.b16 %v1083, %v1079
    %v1824 = vpack.c.b16 %v1084, %v1080
    %v1825 = vpack.c.b16 %v1085, %v1081
    %v1826 = vpack.c.b16 %v1090, %v1086
    %v1827 = vpack.c.b16 %v1091, %v1087
    %v1828 = vpack.c.b16 %v1092, %v1088
    %v1829 = vpack.c.b16 %v1093, %v1089
    %v1830 = vpack.c.b16 %v1098, %v1094
    %v1831 = vpack.c.b16 %v1099, %v1095
    %v1832 = vpack.c.b16 %v1100, %v1096
    %v1833 = vpack.c.b16 %v1101, %v1097
    %v1834 = vpack.c.b16 %v1106, %v1102
    %v1835 = vpack.c.b16 %v1107, %v1103
    %v1836 = vpack.c.b16 %v1108, %v1104
    %v1837 = vpack.c.b16 %v1109, %v1105
    %v1838 = vpack.c.b16 %v1114, %v1110
    %v1839 = vpack.c.b16 %v1115, %v1111
    %v1840 = vpack.c.b16 %v1116, %v1112
    %v1841 = vpack.c.b16 %v1117, %v1113
    %v1842 = vpack.c.b16 %v1122, %v1118
    %v1843 = vpack.c.b16 %v1123, %v1119
    %v1844 = vpack.c.b16 %v1124, %v1120
    %v1845 = vpack.c.b16 %v1125, %v1121
    %v1846 = vpack.c.b16 %v1130, %v1126
    %v1847 = vpack.c.b16 %v1131, %v1127
    %v1848 = vpack.c.b16 %v1132, %v1128
    %v1849 = vpack.c.b16 %v1133, %v1129
    %v1850 = vpack.c.b16 %v1138, %v1134
    %v1851 = vpack.c.b16 %v1139, %v1135
    %v1852 = vpack.c.b16 %v1140, %v1136
    %v1853 = vpack.c.b16 %v1141, %v1137
    %v1854 = vpack.c.b16 %v1146, %v1142
    %v1855 = vpack.c.b16 %v1147, %v1143
    %v1856 = vpack.c.b16 %v1148, %v1144
    %v1857 = vpack.c.b16 %v1149, %v1145
    %v1858 = vpack.c.b16 %v1154, %v1150
    %v1859 = vpack.c.b16 %v1155, %v1151
    %v1860 = vpack.c.b16 %v1156, %v1152
    %v1861 = vpack.c.b16 %v1157, %v1153
    %v1862 = vpack.c.b16 %v1162, %v1158
    %v1863 = vpack.c.b16 %v1163, %v1159
    %v1864 = vpack.c.b16 %v1164, %v1160
    %v1865 = vpack.c.b16 %v1165, %v1161
    %v1866 = vpack.c.b16 %v1170, %v1166
    %v1867 = vpack.c.b16 %v1171, %v1167
    %v1868 = vpack.c.b16 %v1172, %v1168
    %v1869 = vpack.c.b16 %v1173, %v1169
    %v1870 = vpack.c.b16 %v1178, %v1174
    %v1871 = vpack.c.b16 %v1179, %v1175
    %v1872 = vpack.c.b16 %v1180, %v1176
    %v1873 = vpack.c.b16 %v1181, %v1177
    %v1874 = vpack.c.b16 %v1186, %v1182
    %v1875 = vpack.c.b16 %v1187, %v1183
    %v1876 = vpack.c.b16 %v1188, %v1184
    %v1877 = vpack.c.b16 %v1189, %v1185
    %v1878 = vpack.c.b16 %v1194, %v1190
    %v1879 = vpack.c.b16 %v1195, %v1191
    %v1880 = vpack.c.b16 %v1196, %v1192
    %v1881 = vpack.c.b16 %v1197, %v1193
    %v1882 = vpack.c.b16 %v1202, %v1198
    %v1883 = vpack.c.b16 %v1203, %v1199
    %v1884 = vpack.c.b16 %v1204, %v1200
    %v1885 = vpack.c.b16 %v1205, %v1201
    %v1886 = vpack.c.b16 %v1210, %v1206
    %v1887 = vpack.c.b16 %v1211, %v1207
    %v1888 = vpack.c.b16 %v1212, %v1208
    %v1889 = vpack.c.b16 %v1213, %v1209
    %v1890 = vpack.c.b16 %v1218, %v1214
    %v1891 = vpack.c.b16 %v1219, %v1215
    %v1892 = vpack.c.b16 %v1220, %v1216
    %v1893 = vpack.c.b16 %v1221, %v1217
    %v1894 = vpack.c.b16 %v1226, %v1222
    %v1895 = vpack.c.b16 %v1227, %v1223
    %v1896 = vpack.c.b16 %v1228, %v1224
    %v1897 = vpack.c.b16 %v1229, %v1225
    %v1898 = vpack.c.b16 %v1234, %v1230
    %v1899 = vpack.c.b16 %v1235, %v1231
    %v1900 = vpack.c.b16 %v1236, %v1232
    %v1901 = vpack.c.b16 %v1237, %v1233
    %v1902 = vpack.c.b16 %v1242, %v1238
    %v1903 = vpack.c.b16 %v1243, %v1239
    %v1904 = vpack.c.b16 %v1244, %v1240
    %v1905 = vpack.c.b16 %v1245, %v1241
    %v1906 = vpack.c.b16 %v1250, %v1246
    %v1907 = vpack.c.b16 %v1251, %v1247
    %v1908 = vpack.c.b16 %v1252, %v1248
    %v1909 = vpack.c.b16 %v1253, %v1249
    %v1910 = vpack.c.b16 %v1258, %v1254
    %v1911 = vpack.c.b16 %v1259, %v1255
    %v1912 = vpack.c.b16 %v1260, %v1256
    %v1913 = vpack.c.b16 %v1261, %v1257
    %v1914 = vpack.c.b16 %v1266, %v1262
    %v1915 = vpack.c.b16 %v1267, %v1263
    %v1916 = vpack.c.b16 %v1268, %v1264
    %v1917 = vpack.c.b16 %v1269, %v1265
    %v1918 = vpack.c.b16 %v1274, %v1270
    %v1919 = vpack.c.b16 %v1275, %v1271
    %v1920 = vpack.c.b16 %v1276, %v1272
    %v1921 = vpack.c.b16 %v1277, %v1273
    %v1922 = vpack.c.b16 %v1282, %v1278
    %v1923 = vpack.c.b16 %v1283, %v1279
    %v1924 = vpack.c.b16 %v1284, %v1280
    %v1925 = vpack.c.b16 %v1285, %v1281
    %v1926 = vpack.c.b16 %v1290, %v1286
    %v1927 = vpack.c.b16 %v1291, %v1287
    %v1928 = vpack.c.b16 %v1292, %v1288
    %v1929 = vpack.c.b16 %v1293, %v1289
    %v1930 = vpack.c.b16 %v1298, %v1294
    %v1931 = vpack.c.b16 %v1299, %v1295
    %v1932 = vpack.c.b16 %v1300, %v1296
    %v1933 = vpack.c.b16 %v1301, %v1297
    %v1934 = vpack.c.b16 %v1306, %v1302
    %v1935 = vpack.c.b16 %v1307, %v1303
    %v1936 = vpack.c.b16 %v1308, %v1304
    %v1937 = vpack.c.b16 %v1309, %v1305
    %v1938 = vpack.c.b16 %v1314, %v1310
    %v1939 = vpack.c.b16 %v1315, %v1311
    %v1940 = vpack.c.b16 %v1316, %v1312
    %v1941 = vpack.c.b16 %v1317, %v1313
    %v1942 = vpack.c.b16 %v1322, %v1318
    %v1943 = vpack.c.b16 %v1323, %v1319
    %v1944 = vpack.c.b16 %v1324, %v1320
    %v1945 = vpack.c.b16 %v1325, %v1321
    %v1946 = vpack.c.b16 %v1330, %v1326
    %v1947 = vpack.c.b16 %v1331, %v1327
    %v1948 = vpack.c.b16 %v1332, %v1328
    %v1949 = vpack.c.b16 %v1333, %v1329
    %v1950 = vpack.c.b16 %v1338, %v1334
    %v1951 = vpack.c.b16 %v1339, %v1335
    %v1952 = vpack.c.b16 %v1340, %v1336
    %v1953 = vpack.c.b16 %v1341, %v1337
    %v1954 = vpack.c.b16 %v1346, %v1342
    %v1955 = vpack.c.b16 %v1347, %v1343
    %v1956 = vpack.c.b16 %v1348, %v1344
    %v1957 = vpack.c.b16 %v1349, %v1345
    %v1958 = vpack.c.b16 %v1354, %v1350
    %v1959 = vpack.c.b16 %v1355, %v1351
    %v1960 = vpack.c.b16 %v1356, %v1352
    %v1961 = vpack.c.b16 %v1357, %v1353
    %v1962 = vpack.c.b16 %v1362, %v1358
    %v1963 = vpack.c.b16 %v1363, %v1359
    %v1964 = vpack.c.b16 %v1364, %v1360
    %v1965 = vpack.c.b16 %v1365, %v1361
    %v1966 = vpack.c.b16 %v1370, %v1366
    %v1967 = vpack.c.b16 %v1371, %v1367
    %v1968 = vpack.c.b16 %v1372, %v1368
    %v1969 = vpack.c.b16 %v1373, %v1369
    %v1970 = vpack.c.b16 %v1378, %v1374
    %v1971 = vpack.c.b16 %v1379, %v1375
    %v1972 = vpack.c.b16 %v1380, %v1376
    %v1973 = vpack.c.b16 %v1381, %v1377
    %v1974 = vpack.c.b16 %v1386, %v1382
    %v1975 = vpack.c.b16 %v1387, %v1383
    %v1976 = vpack.c.b16 %v1388, %v1384
    %v1977 = vpack.c.b16 %v1389, %v1385
    %v1978 = vpack.c.b16 %v1394, %v1390
    %v1979 = vpack.c.b16 %v1395, %v1391
    %v1980 = vpack.c.b16 %v1396, %v1392
    %v1981 = vpack.c.b16 %v1397, %v1393
    %v1982 = vpack.c.b16 %v1402, %v1398
    %v1983 = vpack.c.b16 %v1403, %v1399
    %v1984 = vpack.c.b16 %v1404, %v1400
    %v1985 = vpack.c.b16 %v1405, %v1401
    %v1986 = vpack.c.b16 %v1410, %v1406
    %v1987 = vpack.c.b16 %v1411, %v1407
    %v1988 = vpack.c.b16 %v1412, %v1408
    %v1989 = vpack.c.b16 %v1413, %v1409
    %v1990 = vpack.c.b16 %v1418, %v1414
    %v1991 = vpack.c.b16 %v1419, %v1415
    %v1992 = vpack.c.b16 %v1420, %v1416
    %v1993 = vpack.c.b16 %v1421, %v1417
    %v1994 = vpack.c.b16 %v1426, %v1422
    %v1995 = vpack.c.b16 %v1427, %v1423
    %v1996 = vpack.c.b16 %v1428, %v1424
    %v1997 = vpack.c.b16 %v1429, %v1425
    %v1998 = vpack.c.b16 %v1434, %v1430
    %v1999 = vpack.c.b16 %v1435, %v1431
    %v2000 = vpack.c.b16 %v1436, %v1432
    %v2001 = vpack.c.b16 %v1437, %v1433
    %v2002 = vpack.c.b16 %v1442, %v1438
    %v2003 = vpack.c.b16 %v1443, %v1439
    %v2004 = vpack.c.b16 %v1444, %v1440
    %v2005 = vpack.c.b16 %v1445, %v1441
    %v2006 = vpack.c.b16 %v1450, %v1446
    %v2007 = vpack.c.b16 %v1451, %v1447
    %v2008 = vpack.c.b16 %v1452, %v1448
    %v2009 = vpack.c.b16 %v1453, %v1449
    %v2010 = vpack.c.b16 %v1458, %v1454
    %v2011 = vpack.c.b16 %v1459, %v1455
    %v2012 = vpack.c.b16 %v1460, %v1456
    %v2013 = vpack.c.b16 %v1461, %v1457
    %v2014 = vpack.c.b16 %v1466, %v1462
    %v2015 = vpack.c.b16 %v1467, %v1463
    %v2016 = vpack.c.b16 %v1468, %v1464
    %v2017 = vpack.c.b16 %v1469, %v1465
    %v2018 = vpack.c.b16 %v1474, %v1470
    %v2019 = vpack.c.b16 %v1475, %v1471
    %v2020 = vpack.c.b16 %v1476, %v1472
    %v2021 = vpack.c.b16 %v1477, %v1473
    %v2022 = vpack.c.b16 %v1482, %v1478
    %v2023 = vpack.c.b16 %v1483, %v1479
    %v2024 = vpack.c.b16 %v1484, %v1480
    %v2025 = vpack.c.b16 %v1485, %v1481
    %v2026 = vpack.c.b16 %v1490, %v1486
    %v2027 = vpack.c.b16 %v1491, %v1487
    %v2028 = vpack.c.b16 %v1492, %v1488
    %v2029 = vpack.c.b16 %v1493, %v1489
    %v2030 = vpack.c.b16 %v1498, %v1494
    %v2031 = vpack.c.b16 %v1499, %v1495
    %v2032 = vpack.c.b16 %v1500, %v1496
    %v2033 = vpack.c.b16 %v1501, %v1497
    %v2034 = vpack.c.b16 %v1506, %v1502
    %v2035 = vpack.c.b16 %v1507, %v1503
    %v2036 = vpack.c.b16 %v1508, %v1504
    %v2037 = vpack.c.b16 %v1509, %v1505
    %v2038 = vpack.c.b16 %v1514, %v1510
    %v2039 = vpack.c.b16 %v1515, %v1511
    %v2040 = vpack.c.b16 %v1516, %v1512
    %v2041 = vpack.c.b16 %v1517, %v1513
    %v2042 = vpack.c.b16 %v1522, %v1518
    %v2043 = vpack.c.b16 %v1523, %v1519
    %v2044 = vpack.c.b16 %v1524, %v1520
    %v2045 = vpack.c.b16 %v1525, %v1521
    %v2046 = vpack.c.b16 %v1530, %v1526
    %v2047 = vpack.c.b16 %v1531, %v1527
    %v2048 = vpack.c.b16 %v1532, %v1528
    %v2049 = vpack.c.b16 %v1533, %v1529
    %v2050 = vpack.c.b16 %v1538, %v1534
    %v2051 = vpack.c.b16 %v1539, %v1535
    %v2052 = vpack.c.b16 %v1540, %v1536
    %v2053 = vpack.c.b16 %v1541, %v1537
    %v2054 = vpack.c.b16 %v1546, %v1542
    %v2055 = vpack.c.b16 %v1547, %v1543
    %v2056 = vpack.c.b16 %v1548, %v1544
    %v2057 = vpack.c.b16 %v1549, %v1545
    %v2058 = vpack.c.b16 %v1554, %v1550
    %v2059 = vpack.c.b16 %v1555, %v1551
    %v2060 = vpack.c.b16 %v1556, %v1552
    %v2061 = vpack.c.b16 %v1557, %v1553
    %v2062 = vpack.c.b16 %v1562, %v1558
    %v2063 = vpack.c.b16 %v1563, %v1559
    %v2064 = vpack.c.b16 %v1564, %v1560
    %v2065 = vpack.c.b16 %v1565, %v1561
    %v2066 = vpack.c.b16 %v1570, %v1566
    %v2067 = vpack.c.b16 %v1571, %v1567
    %v2068 = vpack.c.b16 %v1572, %v1568
    %v2069 = vpack.c.b16 %v1573, %v1569
    %v2070 = vpack.c.b16 %v1578, %v1574
    %v2071 = vpack.c.b16 %v1579, %v1575
    %v2072 = vpack.c.b16 %v1580, %v1576
    %v2073 = vpack.c.b16 %v1581, %v1577
    %v2074 = vpack.c.b16 %v1586, %v1582
    %v2075 = vpack.c.b16 %v1587, %v1583
    %v2076 = vpack.c.b16 %v1588, %v1584
    %v2077 = vpack.c.b16 %v1589, %v1585
    %v2078 = vpack.c.b16 %v1594, %v1590
    %v2079 = vpack.c.b16 %v1595, %v1591
    %v2080 = vpack.c.b16 %v1596, %v1592
    %v2081 = vpack.c.b16 %v1597, %v1593
    %v2082 = vpack.c.b16 %v1602, %v1598
    %v2083 = vpack.c.b16 %v1603, %v1599
    %v2084 = vpack.c.b16 %v1604, %v1600
    %v2085 = vpack.c.b16 %v1605, %v1601
    %v2086 = vpack.c.b16 %v1610, %v1606
    %v2087 = vpack.c.b16 %v1611, %v1607
    %v2088 = vpack.c.b16 %v1612, %v1608
    %v2089 = vpack.c.b16 %v1613, %v1609
    %v2090 = vpack.c.b16 %v1618, %v1614
    %v2091 = vpack.c.b16 %v1619, %v1615
    %v2092 = vpack.c.b16 %v1620, %v1616
    %v2093 = vpack.c.b16 %v1621, %v1617
    %v2094 = vpack.c.b16 %v1626, %v1622
    %v2095 = vpack.c.b16 %v1627, %v1623
    %v2096 = vpack.c.b16 %v1628, %v1624
    %v2097 = vpack.c.b16 %v1629, %v1625
    %v2098 = vpack.c.b16 %v1634, %v1630
    %v2099 = vpack.c.b16 %v1635, %v1631
    %v2100 = vpack.c.b16 %v1636, %v1632
    %v2101 = vpack.c.b16 %v1637, %v1633
    %v2102 = vpack.c.b16 %v1642, %v1638
    %v2103 = vpack.c.b16 %v1643, %v1639
    %v2104 = vpack.c.b16 %v1644, %v1640
    %v2105 = vpack.c.b16 %v1645, %v1641
    %v2106 = vpack.c.b16 %v1650, %v1646
    %v2107 = vpack.c.b16 %v1651, %v1647
    %v2108 = vpack.c.b16 %v1652, %v1648
    %v2109 = vpack.c.b16 %v1653, %v1649
    %v2110 = vpack.c.b16 %v1658, %v1654
    %v2111 = vpack.c.b16 %v1659, %v1655
    %v2112 = vpack.c.b16 %v1660, %v1656
    %v2113 = vpack.c.b16 %v1661, %v1657
    %v2114 = vpack.c.b16 %v1666, %v1662
    %v2115 = vpack.c.b16 %v1667, %v1663
    %v2116 = vpack.c.b16 %v1668, %v1664
    %v2117 = vpack.c.b16 %v1669, %v1665
    %v2118 = vpack.c.b16 %v1674, %v1670
    %v2119 = vpack.c.b16 %v1675, %v1671
    %v2120 = vpack.c.b16 %v1676, %v1672
    %v2121 = vpack.c.b16 %v1677, %v1673
    %v2122 = vpack.c.b16 %v1682, %v1678
    %v2123 = vpack.c.b16 %v1683, %v1679
    %v2124 = vpack.c.b16 %v1684, %v1680
    %v2125 = vpack.c.b16 %v1685, %v1681
    %v2126 = vpack.c.b16 %v1690, %v1686
    %v2127 = vpack.c.b16 %v1691, %v1687
    %v2128 = vpack.c.b16 %v1692, %v1688
    %v2129 = vpack.c.b16 %v1693, %v1689
    %v2130 = vpack.c.b16 %v1698, %v1694
    %v2131 = vpack.c.b16 %v1699, %v1695
    %v2132 = vpack.c.b16 %v1700, %v1696
    %v2133 = vpack.c.b16 %v1701, %v1697
    %v2134 = vpack.c.b16 %v1706, %v1702
    %v2135 = vpack.c.b16 %v1707, %v1703
    %v2136 = vpack.c.b16 %v1708, %v1704
    %v2137 = vpack.c.b16 %v1709, %v1705
    %v2138 = vpack.c.b16 %v1714, %v1710
    %v2139 = vpack.c.b16 %v1715, %v1711
    %v2140 = vpack.c.b16 %v1716, %v1712
    %v2141 = vpack.c.b16 %v1717, %v1713
    %v2142 = vpack.c.b16 %v1722, %v1718
    %v2143 = vpack.c.b16 %v1723, %v1719
    %v2144 = vpack.c.b16 %v1724, %v1720
    %v2145 = vpack.c.b16 %v1725, %v1721
    %v2146 = vpack.c.b16 %v1730, %v1726
    %v2147 = vpack.c.b16 %v1731, %v1727
    %v2148 = vpack.c.b16 %v1732, %v1728
    %v2149 = vpack.c.b16 %v1733, %v1729
    %v2150 = vpack.c.b16 %v1738, %v1734
    %v2151 = vpack.c.b16 %v1739, %v1735
    %v2152 = vpack.c.b16 %v1740, %v1736
    %v2153 = vpack.c.b16 %v1741, %v1737
    %v2154 = vpack.c.b16 %v1746, %v1742
    %v2155 = vpack.c.b16 %v1747, %v1743
    %v2156 = vpack.c.b16 %v1748, %v1744
    %v2157 = vpack.c.b16 %v1749, %v1745
    %v2158 = vpack.c.b16 %v1754, %v1750
    %v2159 = vpack.c.b16 %v1755, %v1751
    %v2160 = vpack.c.b16 %v1756, %v1752
    %v2161 = vpack.c.b16 %v1757, %v1753
    %v2162 = vpack.c.b16 %v1762, %v1758
    %v2163 = vpack.c.b16 %v1763, %v1759
    %v2164 = vpack.c.b16 %v1764, %v1760
    %v2165 = vpack.c.b16 %v1765, %v1761
    %vm2566 = vcmask 523264
    %v2568 = vsel %vm2566, %v544, 0
    %2570 = vmatprep.subr.bf16.mxu0 %v1767
    %2571 = vmatpush1.bf16.msra.mxu0 %v1766
    %2572 = vmatprep.subr.bf16.mxu0 %v1771
    %2573 = vmatpush1.bf16.msra.mxu0 %v1770
    %2574 = vmatprep.subr.bf16.mxu0 %v1775
    %2575 = vmatpush1.bf16.msra.mxu0 %v1774
    %2576 = vmatprep.subr.bf16.mxu0 %v1779
    %2577 = vmatpush1.bf16.msra.mxu0 %v1778
    %2578 = vmatprep.subr.bf16.mxu0 %v1783
    %2579 = vmatpush1.bf16.msra.mxu0 %v1782
    %2580 = vmatprep.subr.bf16.mxu0 %v1787
    %2581 = vmatpush1.bf16.msra.mxu0 %v1786
    %2582 = vmatprep.subr.bf16.mxu0 %v1791
    %2583 = vmatpush1.bf16.msra.mxu0 %v1790
    %2584 = vmatprep.subr.bf16.mxu0 %v1795
    %2585 = vmatpush1.bf16.msra.mxu0 %v1794
    %2586 = vmatprep.subr.bf16.mxu0 %v1799
    %2587 = vmatpush1.bf16.msra.mxu0 %v1798
    %2588 = vmatprep.subr.bf16.mxu0 %v1803
    %2589 = vmatpush1.bf16.msra.mxu0 %v1802
    %2590 = vmatprep.subr.bf16.mxu0 %v1807
    %2591 = vmatpush1.bf16.msra.mxu0 %v1806
    %2592 = vmatprep.subr.bf16.mxu0 %v1811
    %2593 = vmatpush1.bf16.msra.mxu0 %v1810
    %2594 = vmatprep.subr.bf16.mxu0 %v1815
    %2595 = vmatpush1.bf16.msra.mxu0 %v1814
    %2596 = vmatprep.subr.bf16.mxu0 %v1819
    %2597 = vmatpush1.bf16.msra.mxu0 %v1818
    %2598 = vmatprep.subr.bf16.mxu0 %v1823
    %2599 = vmatpush1.bf16.msra.mxu0 %v1822
    %2600 = vmatprep.subr.bf16.mxu0 %v1827
    %2601 = vmatpush1.bf16.msra.mxu0 %v1826
    %2602 = vmatprep.mubr.bf16.mxu0 %v503
    %2603 = vmatmul.mubr.bf16.gmra.mrb[0].mxu0 %v489
    %v2604 = vpop.f32.mrb[0].mxu0
    %v2605 = vadd.f32 %v447, %v2604
    %v2606 = vpop.f32.mrb[0].mxu0
    %v2607 = vadd.f32 %v451, %v2606
    %v2608 = vpop.f32.mrb[0].mxu0
    %v2609 = vpop.f32.mrb[0].mxu0
    %2610 = vdwg.mxu0
    %2611 = vmatprep.subr.bf16.mxu0 %v1831
    %2612 = vmatpush1.bf16.msra.mxu0 %v1830
    %2613 = vmatprep.subr.bf16.mxu0 %v1835
    %2614 = vmatpush1.bf16.msra.mxu0 %v1834
    %2615 = vmatprep.subr.bf16.mxu0 %v1839
    %2616 = vmatpush1.bf16.msra.mxu0 %v1838
    %2617 = vmatprep.subr.bf16.mxu0 %v1843
    %2618 = vmatpush1.bf16.msra.mxu0 %v1842
    %2619 = vmatprep.subr.bf16.mxu0 %v1847
    %2620 = vmatpush1.bf16.msra.mxu0 %v1846
    %2621 = vmatprep.subr.bf16.mxu0 %v1851
    %2622 = vmatpush1.bf16.msra.mxu0 %v1850
    %2623 = vmatprep.subr.bf16.mxu0 %v1855
    %2624 = vmatpush1.bf16.msra.mxu0 %v1854
    %2625 = vmatprep.subr.bf16.mxu0 %v1859
    %2626 = vmatpush1.bf16.msra.mxu0 %v1858
    %2627 = vmatprep.subr.bf16.mxu0 %v1863
    %2628 = vmatpush1.bf16.msra.mxu0 %v1862
    %2629 = vmatprep.subr.bf16.mxu0 %v1867
    %2630 = vmatpush1.bf16.msra.mxu0 %v1866
    %2631 = vmatprep.subr.bf16.mxu0 %v1871
    %2632 = vmatpush1.bf16.msra.mxu0 %v1870
    %2633 = vmatprep.subr.bf16.mxu0 %v1875
    %2634 = vmatpush1.bf16.msra.mxu0 %v1874
    %2635 = vmatprep.subr.bf16.mxu0 %v1879
    %2636 = vmatpush1.bf16.msra.mxu0 %v1878
    %2637 = vmatprep.subr.bf16.mxu0 %v1883
    %2638 = vmatpush1.bf16.msra.mxu0 %v1882
    %2639 = vmatprep.subr.bf16.mxu0 %v1887
    %2640 = vmatpush1.bf16.msra.mxu0 %v1886
    %2641 = vmatprep.subr.bf16.mxu0 %v1891
    %2642 = vmatpush1.bf16.msra.mxu0 %v1890
    %2643 = vmatprep.mubr.bf16.mxu0 %v513
    %2644 = vmatmul.mubr.bf16.gmra.mrb[0].mxu0 %v511
    %v2645 = vpop.f32.mrb[0].mxu0
    %v2646 = vadd.f32 %v2605, %v2645
    %v2647 = vpop.f32.mrb[0].mxu0
    %v2648 = vadd.f32 %v2607, %v2647
    %v2649 = vpop.f32.mrb[0].mxu0
    %v2650 = vpop.f32.mrb[0].mxu0
    %2651 = vdwg.mxu0
    %2652 = vmatprep.subr.bf16.mxu0 %v1895
    %2653 = vmatpush1.bf16.msra.mxu0 %v1894
    %2654 = vmatprep.subr.bf16.mxu0 %v1899
    %2655 = vmatpush1.bf16.msra.mxu0 %v1898
    %2656 = vmatprep.subr.bf16.mxu0 %v1903
    %2657 = vmatpush1.bf16.msra.mxu0 %v1902
    %2658 = vmatprep.subr.bf16.mxu0 %v1907
    %2659 = vmatpush1.bf16.msra.mxu0 %v1906
    %2660 = vmatprep.subr.bf16.mxu0 %v1911
    %2661 = vmatpush1.bf16.msra.mxu0 %v1910
    %2662 = vmatprep.subr.bf16.mxu0 %v1915
    %2663 = vmatpush1.bf16.msra.mxu0 %v1914
    %2664 = vmatprep.subr.bf16.mxu0 %v1919
    %2665 = vmatpush1.bf16.msra.mxu0 %v1918
    %2666 = vmatprep.subr.bf16.mxu0 %v1923
    %2667 = vmatpush1.bf16.msra.mxu0 %v1922
    %2668 = vmatprep.subr.bf16.mxu0 %v1927
    %2669 = vmatpush1.bf16.msra.mxu0 %v1926
    %2670 = vmatprep.subr.bf16.mxu0 %v1931
    %2671 = vmatpush1.bf16.msra.mxu0 %v1930
    %2672 = vmatprep.subr.bf16.mxu0 %v1935
    %2673 = vmatpush1.bf16.msra.mxu0 %v1934
    %2674 = vmatprep.subr.bf16.mxu0 %v1939
    %2675 = vmatpush1.bf16.msra.mxu0 %v1938
    %2676 = vmatprep.subr.bf16.mxu0 %v1943
    %2677 = vmatpush1.bf16.msra.mxu0 %v1942
    %2678 = vmatprep.subr.bf16.mxu0 %v1947
    %2679 = vmatpush1.bf16.msra.mxu0 %v1946
    %2680 = vmatprep.subr.bf16.mxu0 %v1951
    %2681 = vmatpush1.bf16.msra.mxu0 %v1950
    %2682 = vmatprep.subr.bf16.mxu0 %v1955
    %2683 = vmatpush1.bf16.msra.mxu0 %v1954
    %2684 = vmatprep.mubr.bf16.mxu0 %v510
    %2685 = vmatmul.mubr.bf16.gmra.mrb[0].mxu0 %v496
    %v2686 = vpop.f32.mrb[0].mxu0
    %v2687 = vadd.f32 %v2646, %v2686
    %v2688 = vpop.f32.mrb[0].mxu0
    %v2689 = vadd.f32 %v2648, %v2688
    %v2690 = vpop.f32.mrb[0].mxu0
    %v2691 = vpop.f32.mrb[0].mxu0
    %2692 = vdwg.mxu0
    %2693 = vmatprep.subr.bf16.mxu0 %v1959
    %2694 = vmatpush1.bf16.msra.mxu0 %v1958
    %2695 = vmatprep.subr.bf16.mxu0 %v1963
    %2696 = vmatpush1.bf16.msra.mxu0 %v1962
    %2697 = vmatprep.subr.bf16.mxu0 %v1967
    %2698 = vmatpush1.bf16.msra.mxu0 %v1966
    %2699 = vmatprep.subr.bf16.mxu0 %v1971
    %2700 = vmatpush1.bf16.msra.mxu0 %v1970
    %2701 = vmatprep.subr.bf16.mxu0 %v1975
    %2702 = vmatpush1.bf16.msra.mxu0 %v1974
    %2703 = vmatprep.subr.bf16.mxu0 %v1979
    %2704 = vmatpush1.bf16.msra.mxu0 %v1978
    %2705 = vmatprep.subr.bf16.mxu0 %v1983
    %2706 = vmatpush1.bf16.msra.mxu0 %v1982
    %2707 = vmatprep.subr.bf16.mxu0 %v1987
    %2708 = vmatpush1.bf16.msra.mxu0 %v1986
    %2709 = vmatprep.subr.bf16.mxu0 %v1991
    %2710 = vmatpush1.bf16.msra.mxu0 %v1990
    %2711 = vmatprep.subr.bf16.mxu0 %v1995
    %2712 = vmatpush1.bf16.msra.mxu0 %v1994
    %2713 = vmatprep.subr.bf16.mxu0 %v1999
    %2714 = vmatpush1.bf16.msra.mxu0 %v1998
    %2715 = vmatprep.subr.bf16.mxu0 %v2003
    %2716 = vmatpush1.bf16.msra.mxu0 %v2002
    %2717 = vmatprep.subr.bf16.mxu0 %v2007
    %2718 = vmatpush1.bf16.msra.mxu0 %v2006
    %2719 = vmatprep.subr.bf16.mxu0 %v2011
    %2720 = vmatpush1.bf16.msra.mxu0 %v2010
    %2721 = vmatprep.subr.bf16.mxu0 %v2015
    %2722 = vmatpush1.bf16.msra.mxu0 %v2014
    %2723 = vmatprep.subr.bf16.mxu0 %v2019
    %2724 = vmatpush1.bf16.msra.mxu0 %v2018
    %2725 = vmatprep.mubr.bf16.mxu0 %v514
    %2726 = vmatmul.mubr.bf16.gmra.mrb[0].mxu0 %v512
    %v2727 = vpop.f32.mrb[0].mxu0
    %v2728 = vadd.f32 %v2687, %v2727
    %v2729 = vpop.f32.mrb[0].mxu0
    %v2730 = vadd.f32 %v2689, %v2729
    %v2731 = vpop.f32.mrb[0].mxu0
    %v2732 = vpop.f32.mrb[0].mxu0
    %2733 = vdwg.mxu0
    %2734 = vmatprep.subr.bf16.mxu0 %v2023
    %2735 = vmatpush1.bf16.msra.mxu0 %v2022
    %2736 = vmatprep.subr.bf16.mxu0 %v2027
    %2737 = vmatpush1.bf16.msra.mxu0 %v2026
    %2738 = vmatprep.subr.bf16.mxu0 %v2031
    %2739 = vmatpush1.bf16.msra.mxu0 %v2030
    %2740 = vmatprep.subr.bf16.mxu0 %v2035
    %2741 = vmatpush1.bf16.msra.mxu0 %v2034
    %2742 = vmatprep.subr.bf16.mxu0 %v2039
    %2743 = vmatpush1.bf16.msra.mxu0 %v2038
    %2744 = vmatprep.subr.bf16.mxu0 %v2043
    %2745 = vmatpush1.bf16.msra.mxu0 %v2042
    %2746 = vmatprep.subr.bf16.mxu0 %v2047
    %2747 = vmatpush1.bf16.msra.mxu0 %v2046
    %2748 = vmatprep.subr.bf16.mxu0 %v2051
    %2749 = vmatpush1.bf16.msra.mxu0 %v2050
    %2750 = vmatprep.subr.bf16.mxu0 %v2055
    %2751 = vmatpush1.bf16.msra.mxu0 %v2054
    %2752 = vmatprep.subr.bf16.mxu0 %v2059
    %2753 = vmatpush1.bf16.msra.mxu0 %v2058
    %2754 = vmatprep.subr.bf16.mxu0 %v2063
    %2755 = vmatpush1.bf16.msra.mxu0 %v2062
    %2756 = vmatprep.subr.bf16.mxu0 %v2067
    %2757 = vmatpush1.bf16.msra.mxu0 %v2066
    %2758 = vmatprep.subr.bf16.mxu0 %v2071
    %2759 = vmatpush1.bf16.msra.mxu0 %v2070
    %2760 = vmatprep.subr.bf16.mxu0 %v2075
    %2761 = vmatpush1.bf16.msra.mxu0 %v2074
    %2762 = vmatprep.subr.bf16.mxu0 %v2079
    %2763 = vmatpush1.bf16.msra.mxu0 %v2078
    %2764 = vmatprep.subr.bf16.mxu0 %v2083
    %2765 = vmatpush1.bf16.msra.mxu0 %v2082
    %2766 = vmatprep.mubr.bf16.mxu0 %v551
    %2767 = vmatmul.mubr.bf16.gmra.mrb[0].mxu0 %v537
    %v2768 = vpop.f32.mrb[0].mxu0
    %v2769 = vadd.f32 %v2728, %v2768
    %v2770 = vpop.f32.mrb[0].mxu0
    %v2771 = vadd.f32 %v2730, %v2770
    %v2772 = vpop.f32.mrb[0].mxu0
    %v2773 = vpop.f32.mrb[0].mxu0
    %2774 = vdwg.mxu0
    %2775 = vmatprep.subr.bf16.mxu0 %v2087
    %2776 = vmatpush1.bf16.msra.mxu0 %v2086
    %2777 = vmatprep.subr.bf16.mxu0 %v2091
    %2778 = vmatpush1.bf16.msra.mxu0 %v2090
    %2779 = vmatprep.subr.bf16.mxu0 %v2095
    %2780 = vmatpush1.bf16.msra.mxu0 %v2094
    %2781 = vmatprep.subr.bf16.mxu0 %v2099
    %2782 = vmatpush1.bf16.msra.mxu0 %v2098
    %2783 = vmatprep.subr.bf16.mxu0 %v2103
    %2784 = vmatpush1.bf16.msra.mxu0 %v2102
    %2785 = vmatprep.subr.bf16.mxu0 %v2107
    %2786 = vmatpush1.bf16.msra.mxu0 %v2106
    %2787 = vmatprep.subr.bf16.mxu0 %v2111
    %2788 = vmatpush1.bf16.msra.mxu0 %v2110
    %2789 = vmatprep.subr.bf16.mxu0 %v2115
    %2790 = vmatpush1.bf16.msra.mxu0 %v2114
    %2791 = vmatprep.subr.bf16.mxu0 %v2119
    %2792 = vmatpush1.bf16.msra.mxu0 %v2118
    %2793 = vmatprep.subr.bf16.mxu0 %v2123
    %2794 = vmatpush1.bf16.msra.mxu0 %v2122
    %2795 = vmatprep.subr.bf16.mxu0 %v2127
    %2796 = vmatpush1.bf16.msra.mxu0 %v2126
    %2797 = vmatprep.subr.bf16.mxu0 %v2131
    %2798 = vmatpush1.bf16.msra.mxu0 %v2130
    %2799 = vmatprep.subr.bf16.mxu0 %v2135
    %2800 = vmatpush1.bf16.msra.mxu0 %v2134
    %2801 = vmatprep.subr.bf16.mxu0 %v2139
    %2802 = vmatpush1.bf16.msra.mxu0 %v2138
    %2803 = vmatprep.subr.bf16.mxu0 %v2143
    %2804 = vmatpush1.bf16.msra.mxu0 %v2142
    %2805 = vmatprep.subr.bf16.mxu0 %v2147
    %2806 = vmatpush1.bf16.msra.mxu0 %v2146
    %2807 = vmatprep.mubr.bf16.mxu0 %v553
    %2808 = vmatmul.mubr.bf16.gmra.mrb[0].mxu0 %v552
    %v2809 = vpop.f32.mrb[0].mxu0
    %v2810 = vadd.f32 %v2769, %v2809
    %v2811 = vpop.f32.mrb[0].mxu0
    %v2812 = vadd.f32 %v2771, %v2811
    %v2813 = vpop.f32.mrb[0].mxu0
    %v2814 = vpop.f32.mrb[0].mxu0
    %2815 = vdwg.mxu0
    %2816 = vmatprep.subr.bf16.mxu0 %v2151
    %2817 = vmatpush1.bf16.msra.mxu0 %v2150
    %2818 = vmatprep.subr.bf16.mxu0 %v2155
    %2819 = vmatpush1.bf16.msra.mxu0 %v2154
    %2820 = vmatprep.subr.bf16.mxu0 %v2159
    %2821 = vmatpush1.bf16.msra.mxu0 %v2158
    %2822 = vmatprep.subr.bf16.mxu0 %v2163
    %2823 = vmatpush1.bf16.msra.mxu0 %v2162
    %2824 = vmatprep.subr.bf16.mxu0 0
    %2825 = vmatpush1.bf16.msra.mxu0 0
    %2826 = vmatprep.subr.bf16.mxu0 0
    %2827 = vmatpush1.bf16.msra.mxu0 0
    %2828 = vmatprep.subr.bf16.mxu0 0
    %2829 = vmatpush1.bf16.msra.mxu0 0
    %2830 = vmatprep.subr.bf16.mxu0 0
    %2831 = vmatpush1.bf16.msra.mxu0 0
    %2832 = vmatprep.subr.bf16.mxu0 0
    %2833 = vmatpush1.bf16.msra.mxu0 0
    %2834 = vmatprep.subr.bf16.mxu0 0
    %2835 = vmatpush1.bf16.msra.mxu0 0
    %2836 = vmatprep.subr.bf16.mxu0 0
    %2837 = vmatpush1.bf16.msra.mxu0 0
    %2838 = vmatprep.subr.bf16.mxu0 0
    %2839 = vmatpush1.bf16.msra.mxu0 0
    %2840 = vmatprep.subr.bf16.mxu0 0
    %2841 = vmatpush1.bf16.msra.mxu0 0
    %2842 = vmatprep.subr.bf16.mxu0 0
    %2843 = vmatpush1.bf16.msra.mxu0 0
    %2844 = vmatprep.subr.bf16.mxu0 0
    %2845 = vmatpush1.bf16.msra.mxu0 0
    %2846 = vmatprep.subr.bf16.mxu0 0
    %2847 = vmatpush1.bf16.msra.mxu0 0
    %2848 = vmatprep.mubr.bf16.mxu0 0
    %2849 = vmatmul.mubr.bf16.gmra.mrb[0].mxu0 %v2568
    %v2850 = vpop.f32.mrb[0].mxu0
    %v2851 = vadd.f32 %v2810, %v2850
    %v2852 = vpop.f32.mrb[0].mxu0
    %v2853 = vadd.f32 %v2812, %v2852
    %v2854 = vpop.f32.mrb[0].mxu0
    %v2855 = vpop.f32.mrb[0].mxu0
    %2856 = vdwg.mxu0
    %2857 = vmatprep.subr.bf16.mxu0 %v1769
    %2858 = vmatpush1.bf16.msra.mxu0 %v1768
    %2859 = vmatprep.subr.bf16.mxu0 %v1773
    %2860 = vmatpush1.bf16.msra.mxu0 %v1772
    %2861 = vmatprep.subr.bf16.mxu0 %v1777
    %2862 = vmatpush1.bf16.msra.mxu0 %v1776
    %2863 = vmatprep.subr.bf16.mxu0 %v1781
    %2864 = vmatpush1.bf16.msra.mxu0 %v1780
    %2865 = vmatprep.subr.bf16.mxu0 %v1785
    %2866 = vmatpush1.bf16.msra.mxu0 %v1784
    %2867 = vmatprep.subr.bf16.mxu0 %v1789
    %2868 = vmatpush1.bf16.msra.mxu0 %v1788
    %2869 = vmatprep.subr.bf16.mxu0 %v1793
    %2870 = vmatpush1.bf16.msra.mxu0 %v1792
    %2871 = vmatprep.subr.bf16.mxu0 %v1797
    %2872 = vmatpush1.bf16.msra.mxu0 %v1796
    %2873 = vmatprep.subr.bf16.mxu0 %v1801
    %2874 = vmatpush1.bf16.msra.mxu0 %v1800
    %2875 = vmatprep.subr.bf16.mxu0 %v1805
    %2876 = vmatpush1.bf16.msra.mxu0 %v1804
    %2877 = vmatprep.subr.bf16.mxu0 %v1809
    %2878 = vmatpush1.bf16.msra.mxu0 %v1808
    %2879 = vmatprep.subr.bf16.mxu0 %v1813
    %2880 = vmatpush1.bf16.msra.mxu0 %v1812
    %2881 = vmatprep.subr.bf16.mxu0 %v1817
    %2882 = vmatpush1.bf16.msra.mxu0 %v1816
    %2883 = vmatprep.subr.bf16.mxu0 %v1821
    %2884 = vmatpush1.bf16.msra.mxu0 %v1820
    %2885 = vmatprep.subr.bf16.mxu0 %v1825
    %2886 = vmatpush1.bf16.msra.mxu0 %v1824
    %2887 = vmatprep.subr.bf16.mxu0 %v1829
    %2888 = vmatpush1.bf16.msra.mxu0 %v1828
    %2889 = vmatprep.mubr.bf16.mxu0 %v503
    %2890 = vmatmul.mubr.bf16.gmra.mrb[0].mxu0 %v489
    %v2891 = vpop.f32.mrb[0].mxu0
    %v2892 = vadd.f32 %v455, %v2891
    %v2893 = vpop.f32.mrb[0].mxu0
    %v2894 = vadd.f32 %v459, %v2893
    %v2895 = vpop.f32.mrb[0].mxu0
    %v2896 = vpop.f32.mrb[0].mxu0
    %2897 = vdwg.mxu0
    %2898 = vmatprep.subr.bf16.mxu0 %v1833
    %2899 = vmatpush1.bf16.msra.mxu0 %v1832
    %2900 = vmatprep.subr.bf16.mxu0 %v1837
    %2901 = vmatpush1.bf16.msra.mxu0 %v1836
    %2902 = vmatprep.subr.bf16.mxu0 %v1841
    %2903 = vmatpush1.bf16.msra.mxu0 %v1840
    %2904 = vmatprep.subr.bf16.mxu0 %v1845
    %2905 = vmatpush1.bf16.msra.mxu0 %v1844
    %2906 = vmatprep.subr.bf16.mxu0 %v1849
    %2907 = vmatpush1.bf16.msra.mxu0 %v1848
    %2908 = vmatprep.subr.bf16.mxu0 %v1853
    %2909 = vmatpush1.bf16.msra.mxu0 %v1852
    %2910 = vmatprep.subr.bf16.mxu0 %v1857
    %2911 = vmatpush1.bf16.msra.mxu0 %v1856
    %2912 = vmatprep.subr.bf16.mxu0 %v1861
    %2913 = vmatpush1.bf16.msra.mxu0 %v1860
    %2914 = vmatprep.subr.bf16.mxu0 %v1865
    %2915 = vmatpush1.bf16.msra.mxu0 %v1864
    %2916 = vmatprep.subr.bf16.mxu0 %v1869
    %2917 = vmatpush1.bf16.msra.mxu0 %v1868
    %2918 = vmatprep.subr.bf16.mxu0 %v1873
    %2919 = vmatpush1.bf16.msra.mxu0 %v1872
    %2920 = vmatprep.subr.bf16.mxu0 %v1877
    %2921 = vmatpush1.bf16.msra.mxu0 %v1876
    %2922 = vmatprep.subr.bf16.mxu0 %v1881
    %2923 = vmatpush1.bf16.msra.mxu0 %v1880
    %2924 = vmatprep.subr.bf16.mxu0 %v1885
    %2925 = vmatpush1.bf16.msra.mxu0 %v1884
    %2926 = vmatprep.subr.bf16.mxu0 %v1889
    %2927 = vmatpush1.bf16.msra.mxu0 %v1888
    %2928 = vmatprep.subr.bf16.mxu0 %v1893
    %2929 = vmatpush1.bf16.msra.mxu0 %v1892
    %2930 = vmatprep.mubr.bf16.mxu0 %v513
    %2931 = vmatmul.mubr.bf16.gmra.mrb[0].mxu0 %v511
    %v2932 = vpop.f32.mrb[0].mxu0
    %v2933 = vadd.f32 %v2892, %v2932
    %v2934 = vpop.f32.mrb[0].mxu0
    %v2935 = vadd.f32 %v2894, %v2934
    %v2936 = vpop.f32.mrb[0].mxu0
    %v2937 = vpop.f32.mrb[0].mxu0
    %2938 = vdwg.mxu0
    %2939 = vmatprep.subr.bf16.mxu0 %v1897
    %2940 = vmatpush1.bf16.msra.mxu0 %v1896
    %2941 = vmatprep.subr.bf16.mxu0 %v1901
    %2942 = vmatpush1.bf16.msra.mxu0 %v1900
    %2943 = vmatprep.subr.bf16.mxu0 %v1905
    %2944 = vmatpush1.bf16.msra.mxu0 %v1904
    %2945 = vmatprep.subr.bf16.mxu0 %v1909
    %2946 = vmatpush1.bf16.msra.mxu0 %v1908
    %2947 = vmatprep.subr.bf16.mxu0 %v1913
    %2948 = vmatpush1.bf16.msra.mxu0 %v1912
    %2949 = vmatprep.subr.bf16.mxu0 %v1917
    %2950 = vmatpush1.bf16.msra.mxu0 %v1916
    %2951 = vmatprep.subr.bf16.mxu0 %v1921
    %2952 = vmatpush1.bf16.msra.mxu0 %v1920
    %2953 = vmatprep.subr.bf16.mxu0 %v1925
    %2954 = vmatpush1.bf16.msra.mxu0 %v1924
    %2955 = vmatprep.subr.bf16.mxu0 %v1929
    %2956 = vmatpush1.bf16.msra.mxu0 %v1928
    %2957 = vmatprep.subr.bf16.mxu0 %v1933
    %2958 = vmatpush1.bf16.msra.mxu0 %v1932
    %2959 = vmatprep.subr.bf16.mxu0 %v1937
    %2960 = vmatpush1.bf16.msra.mxu0 %v1936
    %2961 = vmatprep.subr.bf16.mxu0 %v1941
    %2962 = vmatpush1.bf16.msra.mxu0 %v1940
    %2963 = vmatprep.subr.bf16.mxu0 %v1945
    %2964 = vmatpush1.bf16.msra.mxu0 %v1944
    %2965 = vmatprep.subr.bf16.mxu0 %v1949
    %2966 = vmatpush1.bf16.msra.mxu0 %v1948
    %2967 = vmatprep.subr.bf16.mxu0 %v1953
    %2968 = vmatpush1.bf16.msra.mxu0 %v1952
    %2969 = vmatprep.subr.bf16.mxu0 %v1957
    %2970 = vmatpush1.bf16.msra.mxu0 %v1956
    %2971 = vmatprep.mubr.bf16.mxu0 %v510
    %2972 = vmatmul.mubr.bf16.gmra.mrb[0].mxu0 %v496
    %v2973 = vpop.f32.mrb[0].mxu0
    %v2974 = vadd.f32 %v2933, %v2973
    %v2975 = vpop.f32.mrb[0].mxu0
    %v2976 = vadd.f32 %v2935, %v2975
    %v2977 = vpop.f32.mrb[0].mxu0
    %v2978 = vpop.f32.mrb[0].mxu0
    %2979 = vdwg.mxu0
    %2980 = vmatprep.subr.bf16.mxu0 %v1961
    %2981 = vmatpush1.bf16.msra.mxu0 %v1960
    %2982 = vmatprep.subr.bf16.mxu0 %v1965
    %2983 = vmatpush1.bf16.msra.mxu0 %v1964
    %2984 = vmatprep.subr.bf16.mxu0 %v1969
    %2985 = vmatpush1.bf16.msra.mxu0 %v1968
    %2986 = vmatprep.subr.bf16.mxu0 %v1973
    %2987 = vmatpush1.bf16.msra.mxu0 %v1972
    %2988 = vmatprep.subr.bf16.mxu0 %v1977
    %2989 = vmatpush1.bf16.msra.mxu0 %v1976
    %2990 = vmatprep.subr.bf16.mxu0 %v1981
    %2991 = vmatpush1.bf16.msra.mxu0 %v1980
    %2992 = vmatprep.subr.bf16.mxu0 %v1985
    %2993 = vmatpush1.bf16.msra.mxu0 %v1984
    %2994 = vmatprep.subr.bf16.mxu0 %v1989
    %2995 = vmatpush1.bf16.msra.mxu0 %v1988
    %2996 = vmatprep.subr.bf16.mxu0 %v1993
    %2997 = vmatpush1.bf16.msra.mxu0 %v1992
    %2998 = vmatprep.subr.bf16.mxu0 %v1997
    %2999 = vmatpush1.bf16.msra.mxu0 %v1996
    %3000 = vmatprep.subr.bf16.mxu0 %v2001
    %3001 = vmatpush1.bf16.msra.mxu0 %v2000
    %3002 = vmatprep.subr.bf16.mxu0 %v2005
    %3003 = vmatpush1.bf16.msra.mxu0 %v2004
    %3004 = vmatprep.subr.bf16.mxu0 %v2009
    %3005 = vmatpush1.bf16.msra.mxu0 %v2008
    %3006 = vmatprep.subr.bf16.mxu0 %v2013
    %3007 = vmatpush1.bf16.msra.mxu0 %v2012
    %3008 = vmatprep.subr.bf16.mxu0 %v2017
    %3009 = vmatpush1.bf16.msra.mxu0 %v2016
    %3010 = vmatprep.subr.bf16.mxu0 %v2021
    %3011 = vmatpush1.bf16.msra.mxu0 %v2020
    %3012 = vmatprep.mubr.bf16.mxu0 %v514
    %3013 = vmatmul.mubr.bf16.gmra.mrb[0].mxu0 %v512
    %v3014 = vpop.f32.mrb[0].mxu0
    %v3015 = vadd.f32 %v2974, %v3014
    %v3016 = vpop.f32.mrb[0].mxu0
    %v3017 = vadd.f32 %v2976, %v3016
    %v3018 = vpop.f32.mrb[0].mxu0
    %v3019 = vpop.f32.mrb[0].mxu0
    %3020 = vdwg.mxu0
    %3021 = vmatprep.subr.bf16.mxu0 %v2025
    %3022 = vmatpush1.bf16.msra.mxu0 %v2024
    %3023 = vmatprep.subr.bf16.mxu0 %v2029
    %3024 = vmatpush1.bf16.msra.mxu0 %v2028
    %3025 = vmatprep.subr.bf16.mxu0 %v2033
    %3026 = vmatpush1.bf16.msra.mxu0 %v2032
    %3027 = vmatprep.subr.bf16.mxu0 %v2037
    %3028 = vmatpush1.bf16.msra.mxu0 %v2036
    %3029 = vmatprep.subr.bf16.mxu0 %v2041
    %3030 = vmatpush1.bf16.msra.mxu0 %v2040
    %3031 = vmatprep.subr.bf16.mxu0 %v2045
    %3032 = vmatpush1.bf16.msra.mxu0 %v2044
    %3033 = vmatprep.subr.bf16.mxu0 %v2049
    %3034 = vmatpush1.bf16.msra.mxu0 %v2048
    %3035 = vmatprep.subr.bf16.mxu0 %v2053
    %3036 = vmatpush1.bf16.msra.mxu0 %v2052
    %3037 = vmatprep.subr.bf16.mxu0 %v2057
    %3038 = vmatpush1.bf16.msra.mxu0 %v2056
    %3039 = vmatprep.subr.bf16.mxu0 %v2061
    %3040 = vmatpush1.bf16.msra.mxu0 %v2060
    %3041 = vmatprep.subr.bf16.mxu0 %v2065
    %3042 = vmatpush1.bf16.msra.mxu0 %v2064
    %3043 = vmatprep.subr.bf16.mxu0 %v2069
    %3044 = vmatpush1.bf16.msra.mxu0 %v2068
    %3045 = vmatprep.subr.bf16.mxu0 %v2073
    %3046 = vmatpush1.bf16.msra.mxu0 %v2072
    %3047 = vmatprep.subr.bf16.mxu0 %v2077
    %3048 = vmatpush1.bf16.msra.mxu0 %v2076
    %3049 = vmatprep.subr.bf16.mxu0 %v2081
    %3050 = vmatpush1.bf16.msra.mxu0 %v2080
    %3051 = vmatprep.subr.bf16.mxu0 %v2085
    %3052 = vmatpush1.bf16.msra.mxu0 %v2084
    %3053 = vmatprep.mubr.bf16.mxu0 %v551
    %3054 = vmatmul.mubr.bf16.gmra.mrb[0].mxu0 %v537
    %v3055 = vpop.f32.mrb[0].mxu0
    %v3056 = vadd.f32 %v3015, %v3055
    %v3057 = vpop.f32.mrb[0].mxu0
    %v3058 = vadd.f32 %v3017, %v3057
    %v3059 = vpop.f32.mrb[0].mxu0
    %v3060 = vpop.f32.mrb[0].mxu0
    %3061 = vdwg.mxu0
    %3062 = vmatprep.subr.bf16.mxu0 %v2089
    %3063 = vmatpush1.bf16.msra.mxu0 %v2088
    %3064 = vmatprep.subr.bf16.mxu0 %v2093
    %3065 = vmatpush1.bf16.msra.mxu0 %v2092
    %3066 = vmatprep.subr.bf16.mxu0 %v2097
    %3067 = vmatpush1.bf16.msra.mxu0 %v2096
    %3068 = vmatprep.subr.bf16.mxu0 %v2101
    %3069 = vmatpush1.bf16.msra.mxu0 %v2100
    %3070 = vmatprep.subr.bf16.mxu0 %v2105
    %3071 = vmatpush1.bf16.msra.mxu0 %v2104
    %3072 = vmatprep.subr.bf16.mxu0 %v2109
    %3073 = vmatpush1.bf16.msra.mxu0 %v2108
    %3074 = vmatprep.subr.bf16.mxu0 %v2113
    %3075 = vmatpush1.bf16.msra.mxu0 %v2112
    %3076 = vmatprep.subr.bf16.mxu0 %v2117
    %3077 = vmatpush1.bf16.msra.mxu0 %v2116
    %3078 = vmatprep.subr.bf16.mxu0 %v2121
    %3079 = vmatpush1.bf16.msra.mxu0 %v2120
    %3080 = vmatprep.subr.bf16.mxu0 %v2125
    %3081 = vmatpush1.bf16.msra.mxu0 %v2124
    %3082 = vmatprep.subr.bf16.mxu0 %v2129
    %3083 = vmatpush1.bf16.msra.mxu0 %v2128
    %3084 = vmatprep.subr.bf16.mxu0 %v2133
    %3085 = vmatpush1.bf16.msra.mxu0 %v2132
    %3086 = vmatprep.subr.bf16.mxu0 %v2137
    %3087 = vmatpush1.bf16.msra.mxu0 %v2136
    %3088 = vmatprep.subr.bf16.mxu0 %v2141
    %3089 = vmatpush1.bf16.msra.mxu0 %v2140
    %3090 = vmatprep.subr.bf16.mxu0 %v2145
    %3091 = vmatpush1.bf16.msra.mxu0 %v2144
    %3092 = vmatprep.subr.bf16.mxu0 %v2149
    %3093 = vmatpush1.bf16.msra.mxu0 %v2148
    %3094 = vmatprep.mubr.bf16.mxu0 %v553
    %3095 = vmatmul.mubr.bf16.gmra.mrb[0].mxu0 %v552
    %v3096 = vpop.f32.mrb[0].mxu0
    %v3097 = vadd.f32 %v3056, %v3096
    %v3098 = vpop.f32.mrb[0].mxu0
    %v3099 = vadd.f32 %v3058, %v3098
    %v3100 = vpop.f32.mrb[0].mxu0
    %v3101 = vpop.f32.mrb[0].mxu0
    %3102 = vdwg.mxu0
    %3103 = vmatprep.subr.bf16.mxu0 %v2153
    %3104 = vmatpush1.bf16.msra.mxu0 %v2152
    %3105 = vmatprep.subr.bf16.mxu0 %v2157
    %3106 = vmatpush1.bf16.msra.mxu0 %v2156
    %3107 = vmatprep.subr.bf16.mxu0 %v2161
    %3108 = vmatpush1.bf16.msra.mxu0 %v2160
    %3109 = vmatprep.subr.bf16.mxu0 %v2165
    %3110 = vmatpush1.bf16.msra.mxu0 %v2164
    %3111 = vmatprep.subr.bf16.mxu0 0
    %3112 = vmatpush1.bf16.msra.mxu0 0
    %3113 = vmatprep.subr.bf16.mxu0 0
    %3114 = vmatpush1.bf16.msra.mxu0 0
    %3115 = vmatprep.subr.bf16.mxu0 0
    %3116 = vmatpush1.bf16.msra.mxu0 0
    %3117 = vmatprep.subr.bf16.mxu0 0
    %3118 = vmatpush1.bf16.msra.mxu0 0
    %3119 = vmatprep.subr.bf16.mxu0 0
    %3120 = vmatpush1.bf16.msra.mxu0 0
    %3121 = vmatprep.subr.bf16.mxu0 0
    %3122 = vmatpush1.bf16.msra.mxu0 0
    %3123 = vmatprep.subr.bf16.mxu0 0
    %3124 = vmatpush1.bf16.msra.mxu0 0
    %3125 = vmatprep.subr.bf16.mxu0 0
    %3126 = vmatpush1.bf16.msra.mxu0 0
    %3127 = vmatprep.subr.bf16.mxu0 0
    %3128 = vmatpush1.bf16.msra.mxu0 0
    %3129 = vmatprep.subr.bf16.mxu0 0
    %3130 = vmatpush1.bf16.msra.mxu0 0
    %3131 = vmatprep.subr.bf16.mxu0 0
    %3132 = vmatpush1.bf16.msra.mxu0 0
    %3133 = vmatprep.subr.bf16.mxu0 0
    %3134 = vmatpush1.bf16.msra.mxu0 0
    %3135 = vmatprep.mubr.bf16.mxu0 0
    %3136 = vmatmul.mubr.bf16.gmra.mrb[0].mxu0 %v2568
    %v3137 = vpop.f32.mrb[0].mxu0
    %v3138 = vadd.f32 %v3097, %v3137
    %v3139 = vpop.f32.mrb[0].mxu0
    %v3140 = vadd.f32 %v3099, %v3139
    %v3141 = vpop.f32.mrb[0].mxu0
    %v3142 = vpop.f32.mrb[0].mxu0
    %3143 = vdwg.mxu0
    %v3144 = vld [vmem:[%s3] sm:$0xf]
    %v3145 = vld [vmem:[%s4] sm:$0xf]
    %vm3146 = vcmask 1041408
    %v3147 = vsel %vm3146, %v2851, 0.0
    %v3148 = vrot.slane %v3147, 4
    %v3149 = vadd.f32 %v3147, %v3148
    %v3150 = vrot.slane %v3149, 2
    %v3151 = vadd.f32 %v3149, %v3150
    %v3152 = vrot.slane %v3151, 1
    %v3153 = vadd.f32 %v3151, %v3152
    %v3154 = vsel %vm3146, %v2853, 0.0
    %v3155 = vrot.slane %v3154, 4
    %v3156 = vadd.f32 %v3154, %v3155
    %v3157 = vrot.slane %v3156, 2
    %v3158 = vadd.f32 %v3156, %v3157
    %v3159 = vrot.slane %v3158, 1
    %v3160 = vadd.f32 %v3158, %v3159
    %v3161 = vsel %vm3146, %v3138, 0.0
    %v3162 = vrot.slane %v3161, 4
    %v3163 = vadd.f32 %v3161, %v3162
    %v3164 = vrot.slane %v3163, 2
    %v3165 = vadd.f32 %v3163, %v3164
    %v3166 = vrot.slane %v3165, 1
    %v3167 = vadd.f32 %v3165, %v3166
    %vm3168 = vcmask 123904
    %v3169 = vsel %vm3168, %v3140, 0.0
    %v3170 = vrot.slane %v3169, 4
    %v3171 = vadd.f32 %v3169, %v3170
    %v3172 = vrot.slane %v3171, 2
    %v3173 = vadd.f32 %v3171, %v3172
    %v3174 = vrot.slane %v3173, 1
    %v3175 = vadd.f32 %v3173, %v3174
    %v3176 = vrcp.pop 2.0
    %v3177 = vmul.f32 %v3153, %v3176
    %v3178 = vmul.f32 %v3160, %v3176
    %v3179 = vmul.f32 %v3167, %v3176
    %v3180 = vmul.f32 %v3175, %v3176
    %v3181 = vmul.f32 %v2851, %v2851
    %v3182 = vmul.f32 %v2853, %v2853
    %v3183 = vmul.f32 %v3138, %v3138
    %v3184 = vmul.f32 %v3140, %v3140
    %v3185 = vsel %vm3146, %v3181, 0.0
    %v3186 = vrot.slane %v3185, 4
    %v3187 = vadd.f32 %v3185, %v3186
    %v3188 = vrot.slane %v3187, 2
    %v3189 = vadd.f32 %v3187, %v3188
    %v3190 = vrot.slane %v3189, 1
    %v3191 = vadd.f32 %v3189, %v3190
    %v3192 = vsel %vm3146, %v3182, 0.0
    %v3193 = vrot.slane %v3192, 4
    %v3194 = vadd.f32 %v3192, %v3193
    %v3195 = vrot.slane %v3194, 2
    %v3196 = vadd.f32 %v3194, %v3195
    %v3197 = vrot.slane %v3196, 1
    %v3198 = vadd.f32 %v3196, %v3197
    %v3199 = vsel %vm3146, %v3183, 0.0
    %v3200 = vrot.slane %v3199, 4
    %v3201 = vadd.f32 %v3199, %v3200
    %v3202 = vrot.slane %v3201, 2
    %v3203 = vadd.f32 %v3201, %v3202
    %v3204 = vrot.slane %v3203, 1
    %v3205 = vadd.f32 %v3203, %v3204
    %v3206 = vsel %vm3168, %v3184, 0.0
    %v3207 = vrot.slane %v3206, 4
    %v3208 = vadd.f32 %v3206, %v3207
    %v3209 = vrot.slane %v3208, 2
    %v3210 = vadd.f32 %v3208, %v3209
    %v3211 = vrot.slane %v3210, 1
    %v3212 = vadd.f32 %v3210, %v3211
    %v3213 = vmul.f32 %v3191, %v3176
    %v3214 = vmul.f32 %v3198, %v3176
    %v3215 = vmul.f32 %v3205, %v3176
    %v3216 = vmul.f32 %v3212, %v3176
    %v3217 = vmul.f32 %v3177, %v3177
    %v3218 = vmul.f32 %v3178, %v3178
    %v3219 = vmul.f32 %v3179, %v3179
    %v3220 = vmul.f32 %v3180, %v3180
    %v3221 = vsub.f32 %v3213, %v3217
    %v3222 = vsub.f32 %v3214, %v3218
    %v3223 = vsub.f32 %v3215, %v3219
    %v3224 = vsub.f32 %v3216, %v3220
    %v3225 = vsub.f32 %v2851, %v3177
    %v3226 = vsub.f32 %v2853, %v3178
    %v3227 = vsub.f32 %v3138, %v3179
    %v3228 = vsub.f32 %v3140, %v3180
    %v3229 = vadd.f32 %v3221, 1e-05
    %v3230 = vadd.f32 %v3222, 1e-05
    %v3231 = vadd.f32 %v3223, 1e-05
    %v3232 = vadd.f32 %v3224, 1e-05
    %v3233 = vrsqrt.pop %v3229
    %v3234 = vrsqrt.pop %v3230
    %v3235 = vrsqrt.pop %v3231
    %v3236 = vrsqrt.pop %v3232
    %v3237 = vmul.f32 %v3225, %v3233
    %v3238 = vmul.f32 %v3226, %v3234
    %v3239 = vmul.f32 %v3227, %v3235
    %v3240 = vmul.f32 %v3228, %v3236
    %v3242 = vlaneseq
    %v3243 = vshrl.u32 %v3242, 7
    %v3244 = vsub.s32 0, %v3243
    %v3245 = vrot.slane %v3144, %v3244
    %v3246 = vlaneseq
    %v3247 = vshrl.u32 %v3246, 7
    %v3248 = vsub.s32 1, %v3247
    %v3249 = vrot.slane %v3144, %v3248
    %v3250 = vlaneseq
    %v3251 = vshrl.u32 %v3250, 7
    %v3252 = vsub.s32 2, %v3251
    %v3253 = vrot.slane %v3144, %v3252
    %v3254 = vlaneseq
    %v3255 = vshrl.u32 %v3254, 7
    %v3256 = vsub.s32 3, %v3255
    %v3257 = vrot.slane %v3144, %v3256
    %v3262 = vmul.f32 %v3237, %v3245
    %v3263 = vmul.f32 %v3238, %v3249
    %v3264 = vmul.f32 %v3239, %v3253
    %v3265 = vmul.f32 %v3240, %v3257
    %v3267 = vlaneseq
    %v3268 = vshrl.u32 %v3267, 7
    %v3269 = vsub.s32 0, %v3268
    %v3270 = vrot.slane %v3145, %v3269
    %v3271 = vlaneseq
    %v3272 = vshrl.u32 %v3271, 7
    %v3273 = vsub.s32 1, %v3272
    %v3274 = vrot.slane %v3145, %v3273
    %v3275 = vlaneseq
    %v3276 = vshrl.u32 %v3275, 7
    %v3277 = vsub.s32 2, %v3276
    %v3278 = vrot.slane %v3145, %v3277
    %v3279 = vlaneseq
    %v3280 = vshrl.u32 %v3279, 7
    %v3281 = vsub.s32 3, %v3280
    %v3282 = vrot.slane %v3145, %v3281
    %v3287 = vadd.f32 %v3262, %v3270
    %v3288 = vadd.f32 %v3263, %v3274
    %v3289 = vadd.f32 %v3264, %v3278
    %v3290 = vadd.f32 %v3265, %v3282
    %v3291 = vmax.f32 %v3287, 0.0
    %v3292 = vmax.f32 %v3288, 0.0
    %v3293 = vmax.f32 %v3289, 0.0
    %v3294 = vmax.f32 %v3290, 0.0
    %v3295 = vpack.c.bf16 %v3291, %v3291
    %v3296 = vpack.c.bf16 %v3292, %v3292
    %v3297 = vpack.c.bf16 %v3293, %v3293
    %v3298 = vpack.c.bf16 %v3294, %v3294
    %v3299 = vld [vmem:[%s5] sm:$0xff]
    %v3300 = vld [vmem:[%s5 + $0x8] sm:$0xff]
    %v3301 = vld [vmem:[%s5 + $0x10] sm:$0xff]
    %v3302 = vld [vmem:[%s5 + $0x18] sm:$0xff]
    %v3303 = vld [vmem:[%s5 + $0x20] sm:$0xff]
    %v3304 = vld [vmem:[%s5 + $0x28] sm:$0xff]
    %v3305 = vld [vmem:[%s5 + $0x30] sm:$0xff]
    %v3306 = vld [vmem:[%s5 + $0x38] sm:$0xff]
    %v3307 = vld [vmem:[%s5 + $0x40] sm:$0xff]
    %v3308 = vld [vmem:[%s5 + $0x48] sm:$0xff]
    %v3309 = vld [vmem:[%s5 + $0x50] sm:$0xff]
    %v3310 = vld [vmem:[%s5 + $0x58] sm:$0xff]
    %v3311 = vld [vmem:[%s5 + $0x60] sm:$0xff]
    %v3312 = vld [vmem:[%s5 + $0x68] sm:$0xff]
    %v3313 = vld [vmem:[%s5 + $0x70] sm:$0xff]
    %v3314 = vld [vmem:[%s5 + $0x78] sm:$0xff]
    %v3315 = vld [vmem:[%s5 + $0x80] sm:$0xff]
    %v3316 = vld [vmem:[%s5 + $0x88] sm:$0xff]
    %v3317 = vld [vmem:[%s5 + $0x90] sm:$0xff]
    %v3318 = vld [vmem:[%s5 + $0x98] sm:$0xff]
    %v3319 = vld [vmem:[%s5 + $0xa0] sm:$0xff]
    %v3320 = vld [vmem:[%s5 + $0xa8] sm:$0xff]
    %v3321 = vld [vmem:[%s5 + $0xb0] sm:$0xff]
    %v3322 = vld [vmem:[%s5 + $0xb8] sm:$0xff]
    %v3323 = vld [vmem:[%s5 + $0xc0] sm:$0xff]
    %v3324 = vld [vmem:[%s5 + $0xc8] sm:$0xff]
    %v3325 = vld [vmem:[%s5 + $0xd0] sm:$0xff]
    %v3326 = vld [vmem:[%s5 + $0xd8] sm:$0xff]
    %v3327 = vld [vmem:[%s5 + $0xe0] sm:$0xff]
    %v3328 = vld [vmem:[%s5 + $0xe8] sm:$0xff]
    %v3329 = vld [vmem:[%s5 + $0xf0] sm:$0xff]
    %v3330 = vld [vmem:[%s5 + $0xf8] sm:$0xff]
    %v3331 = vld [vmem:[%s5 + $0x100] sm:$0xff]
    %v3332 = vld [vmem:[%s5 + $0x108] sm:$0xff]
    %v3333 = vld [vmem:[%s5 + $0x110] sm:$0xff]
    %v3334 = vld [vmem:[%s5 + $0x118] sm:$0xff]
    %v3335 = vld [vmem:[%s5 + $0x120] sm:$0xff]
    %v3336 = vld [vmem:[%s5 + $0x128] sm:$0xff]
    %v3337 = vld [vmem:[%s5 + $0x130] sm:$0xff]
    %v3338 = vld [vmem:[%s5 + $0x138] sm:$0xff]
    %v3339 = vld [vmem:[%s5 + $0x140] sm:$0xff]
    %v3340 = vld [vmem:[%s5 + $0x148] sm:$0xff]
    %v3341 = vld [vmem:[%s5 + $0x150] sm:$0xff]
    %v3342 = vld [vmem:[%s5 + $0x158] sm:$0xff]
    %v3343 = vld [vmem:[%s5 + $0x160] sm:$0xff]
    %v3344 = vld [vmem:[%s5 + $0x168] sm:$0xff]
    %v3345 = vld [vmem:[%s5 + $0x170] sm:$0xff]
    %v3346 = vld [vmem:[%s5 + $0x178] sm:$0xff]
    %v3347 = vld [vmem:[%s5 + $0x180] sm:$0xff]
    %v3348 = vld [vmem:[%s5 + $0x188] sm:$0xff]
    %v3349 = vld [vmem:[%s6] sm:$0x3]
    %v3351 = vlaneseq
    %v3352 = vshrl.u32 %v3351, 7
    %v3353 = vsub.s32 0, %v3352
    %v3354 = vrot.slane %v3349, %v3353
    %v3355 = vlaneseq
    %v3356 = vshrl.u32 %v3355, 7
    %v3357 = vsub.s32 1, %v3356
    %v3358 = vrot.slane %v3349, %v3357
    %v3411 = vunpack.c.l.b16 %v3299
    %v3412 = vunpack.c.h.b16 %v3299
    %v3413 = vunpack.c.l.b16 %v3300
    %v3414 = vunpack.c.h.b16 %v3300
    %v3415 = vunpack.c.l.b16 %v3301
    %v3416 = vunpack.c.h.b16 %v3301
    %v3417 = vunpack.c.l.b16 %v3302
    %v3418 = vunpack.c.h.b16 %v3302
    %v3419 = vunpack.c.l.b16 %v3303
    %v3420 = vunpack.c.h.b16 %v3303
    %v3421 = vunpack.c.l.b16 %v3304
    %v3422 = vunpack.c.h.b16 %v3304
    %v3423 = vunpack.c.l.b16 %v3305
    %v3424 = vunpack.c.h.b16 %v3305
    %v3425 = vunpack.c.l.b16 %v3306
    %v3426 = vunpack.c.h.b16 %v3306
    %v3427 = vunpack.c.l.b16 %v3307
    %v3428 = vunpack.c.h.b16 %v3307
    %v3429 = vunpack.c.l.b16 %v3308
    %v3430 = vunpack.c.h.b16 %v3308
    %v3431 = vunpack.c.l.b16 %v3309
    %v3432 = vunpack.c.h.b16 %v3309
    %v3433 = vunpack.c.l.b16 %v3310
    %v3434 = vunpack.c.h.b16 %v3310
    %v3435 = vunpack.c.l.b16 %v3311
    %v3436 = vunpack.c.h.b16 %v3311
    %v3437 = vunpack.c.l.b16 %v3312
    %v3438 = vunpack.c.h.b16 %v3312
    %v3439 = vunpack.c.l.b16 %v3313
    %v3440 = vunpack.c.h.b16 %v3313
    %v3441 = vunpack.c.l.b16 %v3314
    %v3442 = vunpack.c.h.b16 %v3314
    %v3443 = vunpack.c.l.b16 %v3315
    %v3444 = vunpack.c.h.b16 %v3315
    %v3445 = vunpack.c.l.b16 %v3316
    %v3446 = vunpack.c.h.b16 %v3316
    %v3447 = vunpack.c.l.b16 %v3317
    %v3448 = vunpack.c.h.b16 %v3317
    %v3449 = vunpack.c.l.b16 %v3318
    %v3450 = vunpack.c.h.b16 %v3318
    %v3451 = vunpack.c.l.b16 %v3319
    %v3452 = vunpack.c.h.b16 %v3319
    %v3453 = vunpack.c.l.b16 %v3320
    %v3454 = vunpack.c.h.b16 %v3320
    %v3455 = vunpack.c.l.b16 %v3321
    %v3456 = vunpack.c.h.b16 %v3321
    %v3457 = vunpack.c.l.b16 %v3322
    %v3458 = vunpack.c.h.b16 %v3322
    %v3459 = vunpack.c.l.b16 %v3323
    %v3460 = vunpack.c.h.b16 %v3323
    %v3461 = vunpack.c.l.b16 %v3324
    %v3462 = vunpack.c.h.b16 %v3324
    %v3463 = vunpack.c.l.b16 %v3325
    %v3464 = vunpack.c.h.b16 %v3325
    %v3465 = vunpack.c.l.b16 %v3326
    %v3466 = vunpack.c.h.b16 %v3326
    %v3467 = vunpack.c.l.b16 %v3327
    %v3468 = vunpack.c.h.b16 %v3327
    %v3469 = vunpack.c.l.b16 %v3328
    %v3470 = vunpack.c.h.b16 %v3328
    %v3471 = vunpack.c.l.b16 %v3329
    %v3472 = vunpack.c.h.b16 %v3329
    %v3473 = vunpack.c.l.b16 %v3330
    %v3474 = vunpack.c.h.b16 %v3330
    %v3475 = vunpack.c.l.b16 %v3331
    %v3476 = vunpack.c.h.b16 %v3331
    %v3477 = vunpack.c.l.b16 %v3332
    %v3478 = vunpack.c.h.b16 %v3332
    %v3479 = vunpack.c.l.b16 %v3333
    %v3480 = vunpack.c.h.b16 %v3333
    %v3481 = vunpack.c.l.b16 %v3334
    %v3482 = vunpack.c.h.b16 %v3334
    %v3483 = vunpack.c.l.b16 %v3335
    %v3484 = vunpack.c.h.b16 %v3335
    %v3485 = vunpack.c.l.b16 %v3336
    %v3486 = vunpack.c.h.b16 %v3336
    %v3487 = vunpack.c.l.b16 %v3337
    %v3488 = vunpack.c.h.b16 %v3337
    %v3489 = vunpack.c.l.b16 %v3338
    %v3490 = vunpack.c.h.b16 %v3338
    %v3491 = vunpack.c.l.b16 %v3339
    %v3492 = vunpack.c.h.b16 %v3339
    %v3493 = vunpack.c.l.b16 %v3340
    %v3494 = vunpack.c.h.b16 %v3340
    %v3495 = vunpack.c.l.b16 %v3341
    %v3496 = vunpack.c.h.b16 %v3341
    %v3497 = vunpack.c.l.b16 %v3342
    %v3498 = vunpack.c.h.b16 %v3342
    %v3499 = vunpack.c.l.b16 %v3343
    %v3500 = vunpack.c.h.b16 %v3343
    %v3501 = vunpack.c.l.b16 %v3344
    %v3502 = vunpack.c.h.b16 %v3344
    %v3503 = vunpack.c.l.b16 %v3345
    %v3504 = vunpack.c.h.b16 %v3345
    %v3505 = vunpack.c.l.b16 %v3346
    %v3506 = vunpack.c.h.b16 %v3346
    %v3507 = vunpack.c.l.b16 %v3347
    %v3508 = vunpack.c.h.b16 %v3347
    %v3509 = vunpack.c.l.b16 %v3348
    %v3510 = vunpack.c.h.b16 %v3348
    %v3511 = vpack.c.b16 %v3413, %v3411
    %v3512 = vpack.c.b16 %v3414, %v3412
    %v3513 = vpack.c.b16 %v3417, %v3415
    %v3514 = vpack.c.b16 %v3418, %v3416
    %v3515 = vpack.c.b16 %v3421, %v3419
    %v3516 = vpack.c.b16 %v3422, %v3420
    %v3517 = vpack.c.b16 %v3425, %v3423
    %v3518 = vpack.c.b16 %v3426, %v3424
    %v3519 = vpack.c.b16 %v3429, %v3427
    %v3520 = vpack.c.b16 %v3430, %v3428
    %v3521 = vpack.c.b16 %v3433, %v3431
    %v3522 = vpack.c.b16 %v3434, %v3432
    %v3523 = vpack.c.b16 %v3437, %v3435
    %v3524 = vpack.c.b16 %v3438, %v3436
    %v3525 = vpack.c.b16 %v3441, %v3439
    %v3526 = vpack.c.b16 %v3442, %v3440
    %v3527 = vpack.c.b16 %v3445, %v3443
    %v3528 = vpack.c.b16 %v3446, %v3444
    %v3529 = vpack.c.b16 %v3449, %v3447
    %v3530 = vpack.c.b16 %v3450, %v3448
    %v3531 = vpack.c.b16 %v3453, %v3451
    %v3532 = vpack.c.b16 %v3454, %v3452
    %v3533 = vpack.c.b16 %v3457, %v3455
    %v3534 = vpack.c.b16 %v3458, %v3456
    %v3535 = vpack.c.b16 %v3461, %v3459
    %v3536 = vpack.c.b16 %v3462, %v3460
    %v3537 = vpack.c.b16 %v3465, %v3463
    %v3538 = vpack.c.b16 %v3466, %v3464
    %v3539 = vpack.c.b16 %v3469, %v3467
    %v3540 = vpack.c.b16 %v3470, %v3468
    %v3541 = vpack.c.b16 %v3473, %v3471
    %v3542 = vpack.c.b16 %v3474, %v3472
    %v3543 = vpack.c.b16 %v3477, %v3475
    %v3544 = vpack.c.b16 %v3478, %v3476
    %v3545 = vpack.c.b16 %v3481, %v3479
    %v3546 = vpack.c.b16 %v3482, %v3480
    %v3547 = vpack.c.b16 %v3485, %v3483
    %v3548 = vpack.c.b16 %v3486, %v3484
    %v3549 = vpack.c.b16 %v3489, %v3487
    %v3550 = vpack.c.b16 %v3490, %v3488
    %v3551 = vpack.c.b16 %v3493, %v3491
    %v3552 = vpack.c.b16 %v3494, %v3492
    %v3553 = vpack.c.b16 %v3497, %v3495
    %v3554 = vpack.c.b16 %v3498, %v3496
    %v3555 = vpack.c.b16 %v3501, %v3499
    %v3556 = vpack.c.b16 %v3502, %v3500
    %v3557 = vpack.c.b16 %v3505, %v3503
    %v3558 = vpack.c.b16 %v3506, %v3504
    %v3559 = vpack.c.b16 %v3509, %v3507
    %v3560 = vpack.c.b16 %v3510, %v3508
    %vm3611 = vcmask 130048
    %v3613 = vsel %vm3611, %v3298, 0
    %3615 = vmatprep.subr.bf16.mxu0 %v3512
    %3616 = vmatpush1.bf16.msra.mxu0 %v3511
    %3617 = vmatprep.subr.bf16.mxu0 %v3514
    %3618 = vmatpush1.bf16.msra.mxu0 %v3513
    %3619 = vmatprep.subr.bf16.mxu0 %v3516
    %3620 = vmatpush1.bf16.msra.mxu0 %v3515
    %3621 = vmatprep.subr.bf16.mxu0 %v3518
    %3622 = vmatpush1.bf16.msra.mxu0 %v3517
    %3623 = vmatprep.subr.bf16.mxu0 %v3520
    %3624 = vmatpush1.bf16.msra.mxu0 %v3519
    %3625 = vmatprep.subr.bf16.mxu0 %v3522
    %3626 = vmatpush1.bf16.msra.mxu0 %v3521
    %3627 = vmatprep.subr.bf16.mxu0 %v3524
    %3628 = vmatpush1.bf16.msra.mxu0 %v3523
    %3629 = vmatprep.subr.bf16.mxu0 %v3526
    %3630 = vmatpush1.bf16.msra.mxu0 %v3525
    %3631 = vmatprep.subr.bf16.mxu0 %v3528
    %3632 = vmatpush1.bf16.msra.mxu0 %v3527
    %3633 = vmatprep.subr.bf16.mxu0 %v3530
    %3634 = vmatpush1.bf16.msra.mxu0 %v3529
    %3635 = vmatprep.subr.bf16.mxu0 %v3532
    %3636 = vmatpush1.bf16.msra.mxu0 %v3531
    %3637 = vmatprep.subr.bf16.mxu0 %v3534
    %3638 = vmatpush1.bf16.msra.mxu0 %v3533
    %3639 = vmatprep.subr.bf16.mxu0 %v3536
    %3640 = vmatpush1.bf16.msra.mxu0 %v3535
    %3641 = vmatprep.subr.bf16.mxu0 %v3538
    %3642 = vmatpush1.bf16.msra.mxu0 %v3537
    %3643 = vmatprep.subr.bf16.mxu0 %v3540
    %3644 = vmatpush1.bf16.msra.mxu0 %v3539
    %3645 = vmatprep.subr.bf16.mxu0 %v3542
    %3646 = vmatpush1.bf16.msra.mxu0 %v3541
    %3647 = vmatprep.mubr.bf16.mxu0 %v3296
    %3648 = vmatmul.mubr.bf16.gmra.mrb[0].mxu0 %v3295
    %v3649 = vpop.f32.mrb[0].mxu0
    %v3650 = vadd.f32 %v3354, %v3649
    %v3651 = vpop.f32.mrb[0].mxu0
    %v3652 = vadd.f32 %v3358, %v3651
    %v3653 = vpop.f32.mrb[0].mxu0
    %v3654 = vpop.f32.mrb[0].mxu0
    %3655 = vdwg.mxu0
    %3656 = vmatprep.subr.bf16.mxu0 %v3544
    %3657 = vmatpush1.bf16.msra.mxu0 %v3543
    %3658 = vmatprep.subr.bf16.mxu0 %v3546
    %3659 = vmatpush1.bf16.msra.mxu0 %v3545
    %3660 = vmatprep.subr.bf16.mxu0 %v3548
    %3661 = vmatpush1.bf16.msra.mxu0 %v3547
    %3662 = vmatprep.subr.bf16.mxu0 %v3550
    %3663 = vmatpush1.bf16.msra.mxu0 %v3549
    %3664 = vmatprep.subr.bf16.mxu0 %v3552
    %3665 = vmatpush1.bf16.msra.mxu0 %v3551
    %3666 = vmatprep.subr.bf16.mxu0 %v3554
    %3667 = vmatpush1.bf16.msra.mxu0 %v3553
    %3668 = vmatprep.subr.bf16.mxu0 %v3556
    %3669 = vmatpush1.bf16.msra.mxu0 %v3555
    %3670 = vmatprep.subr.bf16.mxu0 %v3558
    %3671 = vmatpush1.bf16.msra.mxu0 %v3557
    %3672 = vmatprep.subr.bf16.mxu0 %v3560
    %3673 = vmatpush1.bf16.msra.mxu0 %v3559
    %3674 = vmatprep.subr.bf16.mxu0 0
    %3675 = vmatpush1.bf16.msra.mxu0 0
    %3676 = vmatprep.subr.bf16.mxu0 0
    %3677 = vmatpush1.bf16.msra.mxu0 0
    %3678 = vmatprep.subr.bf16.mxu0 0
    %3679 = vmatpush1.bf16.msra.mxu0 0
    %3680 = vmatprep.subr.bf16.mxu0 0
    %3681 = vmatpush1.bf16.msra.mxu0 0
    %3682 = vmatprep.subr.bf16.mxu0 0
    %3683 = vmatpush1.bf16.msra.mxu0 0
    %3684 = vmatprep.subr.bf16.mxu0 0
    %3685 = vmatpush1.bf16.msra.mxu0 0
    %3686 = vmatprep.subr.bf16.mxu0 0
    %3687 = vmatpush1.bf16.msra.mxu0 0
    %3688 = vmatprep.mubr.bf16.mxu0 %v3613
    %3689 = vmatmul.mubr.bf16.gmra.mrb[0].mxu0 %v3297
    %v3690 = vpop.f32.mrb[0].mxu0
    %v3691 = vadd.f32 %v3650, %v3690
    %v3692 = vpop.f32.mrb[0].mxu0
    %v3693 = vadd.f32 %v3652, %v3692
    %v3694 = vpop.f32.mrb[0].mxu0
    %v3695 = vpop.f32.mrb[0].mxu0
    %3696 = vdwg.mxu0
    %v3697 = vmax.f32 %v3691, 0.0
    %v3698 = vmax.f32 %v3693, 0.0
    %v3699 = vld [vmem:[%s7] sm:$0x3]
    %v3700 = vld [vmem:[%s8] sm:$0x3]
    %v3701 = vsel %vm3146, %v3697, 0.0
    %v3702 = vrot.slane %v3701, 4
    %v3703 = vadd.f32 %v3701, %v3702
    %v3704 = vrot.slane %v3703, 2
    %v3705 = vadd.f32 %v3703, %v3704
    %v3706 = vrot.slane %v3705, 1
    %v3707 = vadd.f32 %v3705, %v3706
    %vm3708 = vcmask 582656
    %v3709 = vsel %vm3708, %v3698, 0.0
    %v3710 = vrot.slane %v3709, 4
    %v3711 = vadd.f32 %v3709, %v3710
    %v3712 = vrot.slane %v3711, 2
    %v3713 = vadd.f32 %v3711, %v3712
    %v3714 = vrot.slane %v3713, 1
    %v3715 = vadd.f32 %v3713, %v3714
    %v3716 = vmul.f32 %v3707, %v3176
    %v3717 = vmul.f32 %v3715, %v3176
    %v3718 = vmul.f32 %v3697, %v3697
    %v3719 = vmul.f32 %v3698, %v3698
    %v3720 = vsel %vm3146, %v3718, 0.0
    %v3721 = vrot.slane %v3720, 4
    %v3722 = vadd.f32 %v3720, %v3721
    %v3723 = vrot.slane %v3722, 2
    %v3724 = vadd.f32 %v3722, %v3723
    %v3725 = vrot.slane %v3724, 1
    %v3726 = vadd.f32 %v3724, %v3725
    %v3727 = vsel %vm3708, %v3719, 0.0
    %v3728 = vrot.slane %v3727, 4
    %v3729 = vadd.f32 %v3727, %v3728
    %v3730 = vrot.slane %v3729, 2
    %v3731 = vadd.f32 %v3729, %v3730
    %v3732 = vrot.slane %v3731, 1
    %v3733 = vadd.f32 %v3731, %v3732
    %v3734 = vmul.f32 %v3726, %v3176
    %v3735 = vmul.f32 %v3733, %v3176
    %v3736 = vmul.f32 %v3716, %v3716
    %v3737 = vmul.f32 %v3717, %v3717
    %v3738 = vsub.f32 %v3734, %v3736
    %v3739 = vsub.f32 %v3735, %v3737
    %v3740 = vsub.f32 %v3697, %v3716
    %v3741 = vsub.f32 %v3698, %v3717
    %v3742 = vadd.f32 %v3738, 1e-05
    %v3743 = vadd.f32 %v3739, 1e-05
    %v3744 = vrsqrt.pop %v3742
    %v3745 = vrsqrt.pop %v3743
    %v3746 = vmul.f32 %v3740, %v3744
    %v3747 = vmul.f32 %v3741, %v3745
    %v3749 = vlaneseq
    %v3750 = vshrl.u32 %v3749, 7
    %v3751 = vsub.s32 0, %v3750
    %v3752 = vrot.slane %v3699, %v3751
    %v3753 = vlaneseq
    %v3754 = vshrl.u32 %v3753, 7
    %v3755 = vsub.s32 1, %v3754
    %v3756 = vrot.slane %v3699, %v3755
    %v3759 = vmul.f32 %v3746, %v3752
    %v3760 = vmul.f32 %v3747, %v3756
    %v3762 = vlaneseq
    %v3763 = vshrl.u32 %v3762, 7
    %v3764 = vsub.s32 0, %v3763
    %v3765 = vrot.slane %v3700, %v3764
    %v3766 = vlaneseq
    %v3767 = vshrl.u32 %v3766, 7
    %v3768 = vsub.s32 1, %v3767
    %v3769 = vrot.slane %v3700, %v3768
    %v3772 = vadd.f32 %v3759, %v3765
    %v3773 = vadd.f32 %v3760, %v3769
    %v3774 = vpack.c.bf16 %v3772, %v3772
    %v3775 = vpack.c.bf16 %v3773, %v3773
    %v3776 = vld [vmem:[%s9] sm:$0xff]
    %v3777 = vld [vmem:[%s9 + $0x8] sm:$0xff]
    %v3778 = vld [vmem:[%s9 + $0x10] sm:$0xff]
    %v3779 = vld [vmem:[%s9 + $0x18] sm:$0xff]
    %v3780 = vld [vmem:[%s9 + $0x20] sm:$0xff]
    %v3781 = vld [vmem:[%s9 + $0x28] sm:$0xff]
    %v3782 = vld [vmem:[%s9 + $0x30] sm:$0xff]
    %v3783 = vld [vmem:[%s9 + $0x38] sm:$0xff]
    %v3784 = vld [vmem:[%s9 + $0x40] sm:$0xff]
    %v3785 = vld [vmem:[%s9 + $0x48] sm:$0xff]
    %v3786 = vld [vmem:[%s9 + $0x50] sm:$0xff]
    %v3787 = vld [vmem:[%s9 + $0x58] sm:$0xff]
    %v3788 = vld [vmem:[%s9 + $0x60] sm:$0xff]
    %v3789 = vld [vmem:[%s9 + $0x68] sm:$0xff]
    %v3790 = vld [vmem:[%s9 + $0x70] sm:$0xff]
    %v3791 = vld [vmem:[%s9 + $0x78] sm:$0xff]
    %v3792 = vld [vmem:[%s9 + $0x80] sm:$0xff]
    %v3793 = vld [vmem:[%s9 + $0x88] sm:$0xff]
    %v3794 = vld [vmem:[%s9 + $0x90] sm:$0xff]
    %v3795 = vld [vmem:[%s9 + $0x98] sm:$0xff]
    %v3796 = vld [vmem:[%s9 + $0xa0] sm:$0xff]
    %v3797 = vld [vmem:[%s9 + $0xa8] sm:$0xff]
    %v3798 = vld [vmem:[%s9 + $0xb0] sm:$0xff]
    %v3799 = vld [vmem:[%s9 + $0xb8] sm:$0xff]
    %v3800 = vld [vmem:[%s9 + $0xc0] sm:$0xff]
    %v3801 = vld [vmem:[%s10] sm:$0x3]
    %v3803 = vlaneseq
    %v3804 = vshrl.u32 %v3803, 7
    %v3805 = vsub.s32 0, %v3804
    %v3806 = vrot.slane %v3801, %v3805
    %v3807 = vlaneseq
    %v3808 = vshrl.u32 %v3807, 7
    %v3809 = vsub.s32 1, %v3808
    %v3810 = vrot.slane %v3801, %v3809
    %v3838 = vunpack.c.l.b16 %v3776
    %v3839 = vunpack.c.h.b16 %v3776
    %v3840 = vunpack.c.l.b16 %v3777
    %v3841 = vunpack.c.h.b16 %v3777
    %v3842 = vunpack.c.l.b16 %v3778
    %v3843 = vunpack.c.h.b16 %v3778
    %v3844 = vunpack.c.l.b16 %v3779
    %v3845 = vunpack.c.h.b16 %v3779
    %v3846 = vunpack.c.l.b16 %v3780
    %v3847 = vunpack.c.h.b16 %v3780
    %v3848 = vunpack.c.l.b16 %v3781
    %v3849 = vunpack.c.h.b16 %v3781
    %v3850 = vunpack.c.l.b16 %v3782
    %v3851 = vunpack.c.h.b16 %v3782
    %v3852 = vunpack.c.l.b16 %v3783
    %v3853 = vunpack.c.h.b16 %v3783
    %v3854 = vunpack.c.l.b16 %v3784
    %v3855 = vunpack.c.h.b16 %v3784
    %v3856 = vunpack.c.l.b16 %v3785
    %v3857 = vunpack.c.h.b16 %v3785
    %v3858 = vunpack.c.l.b16 %v3786
    %v3859 = vunpack.c.h.b16 %v3786
    %v3860 = vunpack.c.l.b16 %v3787
    %v3861 = vunpack.c.h.b16 %v3787
    %v3862 = vunpack.c.l.b16 %v3788
    %v3863 = vunpack.c.h.b16 %v3788
    %v3864 = vunpack.c.l.b16 %v3789
    %v3865 = vunpack.c.h.b16 %v3789
    %v3866 = vunpack.c.l.b16 %v3790
    %v3867 = vunpack.c.h.b16 %v3790
    %v3868 = vunpack.c.l.b16 %v3791
    %v3869 = vunpack.c.h.b16 %v3791
    %v3870 = vunpack.c.l.b16 %v3792
    %v3871 = vunpack.c.h.b16 %v3792
    %v3872 = vunpack.c.l.b16 %v3793
    %v3873 = vunpack.c.h.b16 %v3793
    %v3874 = vunpack.c.l.b16 %v3794
    %v3875 = vunpack.c.h.b16 %v3794
    %v3876 = vunpack.c.l.b16 %v3795
    %v3877 = vunpack.c.h.b16 %v3795
    %v3878 = vunpack.c.l.b16 %v3796
    %v3879 = vunpack.c.h.b16 %v3796
    %v3880 = vunpack.c.l.b16 %v3797
    %v3881 = vunpack.c.h.b16 %v3797
    %v3882 = vunpack.c.l.b16 %v3798
    %v3883 = vunpack.c.h.b16 %v3798
    %v3884 = vunpack.c.l.b16 %v3799
    %v3885 = vunpack.c.h.b16 %v3799
    %v3886 = vunpack.c.l.b16 %v3800
    %v3887 = vunpack.c.h.b16 %v3800
    %v3888 = vpack.c.b16 %v3840, %v3838
    %v3889 = vpack.c.b16 %v3841, %v3839
    %v3890 = vpack.c.b16 %v3844, %v3842
    %v3891 = vpack.c.b16 %v3845, %v3843
    %v3892 = vpack.c.b16 %v3848, %v3846
    %v3893 = vpack.c.b16 %v3849, %v3847
    %v3894 = vpack.c.b16 %v3852, %v3850
    %v3895 = vpack.c.b16 %v3853, %v3851
    %v3896 = vpack.c.b16 %v3856, %v3854
    %v3897 = vpack.c.b16 %v3857, %v3855
    %v3898 = vpack.c.b16 %v3860, %v3858
    %v3899 = vpack.c.b16 %v3861, %v3859
    %v3900 = vpack.c.b16 %v3864, %v3862
    %v3901 = vpack.c.b16 %v3865, %v3863
    %v3902 = vpack.c.b16 %v3868, %v3866
    %v3903 = vpack.c.b16 %v3869, %v3867
    %v3904 = vpack.c.b16 %v3872, %v3870
    %v3905 = vpack.c.b16 %v3873, %v3871
    %v3906 = vpack.c.b16 %v3876, %v3874
    %v3907 = vpack.c.b16 %v3877, %v3875
    %v3908 = vpack.c.b16 %v3880, %v3878
    %v3909 = vpack.c.b16 %v3881, %v3879
    %v3910 = vpack.c.b16 %v3884, %v3882
    %v3911 = vpack.c.b16 %v3885, %v3883
    %v3912 = vpack.c.b16 %v3886, %v3886
    %v3913 = vpack.c.b16 %v3887, %v3887
    %vm3938 = vcmask 588800
    %v3940 = vsel %vm3938, %v3775, 0
    %vm3942 = vcmask 1043456
    %v3944 = vsel %vm3942, %v3912, 0
    %v3947 = vsel %vm3942, %v3913, 0
    %3949 = vmatprep.subr.bf16.mxu0 %v3889
    %3950 = vmatpush1.bf16.msra.mxu0 %v3888
    %3951 = vmatprep.subr.bf16.mxu0 %v3891
    %3952 = vmatpush1.bf16.msra.mxu0 %v3890
    %3953 = vmatprep.subr.bf16.mxu0 %v3893
    %3954 = vmatpush1.bf16.msra.mxu0 %v3892
    %3955 = vmatprep.subr.bf16.mxu0 %v3895
    %3956 = vmatpush1.bf16.msra.mxu0 %v3894
    %3957 = vmatprep.subr.bf16.mxu0 %v3897
    %3958 = vmatpush1.bf16.msra.mxu0 %v3896
    %3959 = vmatprep.subr.bf16.mxu0 %v3899
    %3960 = vmatpush1.bf16.msra.mxu0 %v3898
    %3961 = vmatprep.subr.bf16.mxu0 %v3901
    %3962 = vmatpush1.bf16.msra.mxu0 %v3900
    %3963 = vmatprep.subr.bf16.mxu0 %v3903
    %3964 = vmatpush1.bf16.msra.mxu0 %v3902
    %3965 = vmatprep.subr.bf16.mxu0 %v3905
    %3966 = vmatpush1.bf16.msra.mxu0 %v3904
    %3967 = vmatprep.subr.bf16.mxu0 %v3907
    %3968 = vmatpush1.bf16.msra.mxu0 %v3906
    %3969 = vmatprep.subr.bf16.mxu0 %v3909
    %3970 = vmatpush1.bf16.msra.mxu0 %v3908
    %3971 = vmatprep.subr.bf16.mxu0 %v3911
    %3972 = vmatpush1.bf16.msra.mxu0 %v3910
    %3973 = vmatprep.subr.bf16.mxu0 %v3947
    %3974 = vmatpush1.bf16.msra.mxu0 %v3944
    %3975 = vmatprep.subr.bf16.mxu0 0
    %3976 = vmatpush1.bf16.msra.mxu0 0
    %3977 = vmatprep.subr.bf16.mxu0 0
    %3978 = vmatpush1.bf16.msra.mxu0 0
    %3979 = vmatprep.subr.bf16.mxu0 0
    %3980 = vmatpush1.bf16.msra.mxu0 0
    %3981 = vmatprep.mubr.bf16.mxu0 %v3940
    %3982 = vmatmul.mubr.bf16.gmra.mrb[0].mxu0 %v3774
    %v3983 = vpop.f32.mrb[0].mxu0
    %v3984 = vadd.f32 %v3806, %v3983
    %v3985 = vpop.f32.mrb[0].mxu0
    %v3986 = vadd.f32 %v3810, %v3985
    %v3987 = vpop.f32.mrb[0].mxu0
    %v3988 = vpop.f32.mrb[0].mxu0
    %3989 = vdwg.mxu0
    %v3992 = vcombine.low %v3984, %v3986
    %v3994 = vunpack.c.l.s4 1983009808
    %v3995 = vunpack.c.0.s8 %v3994
    %v3996 = vlaneseq
    %v3997 = vshrl.u32 %v3996, 7
    %v3998 = vsub.s32 %v3995, %v3997
    %v3999 = vrot.slane %v3992, %v3998
    %vm4001 = vcmask 60418
    %vm4002 = vmor %vm4001, %vm3146
    %4003 = vst.msk [vmem:[#allocation2] sm:$0xf] %vm4002, %v3999
    // Predicated region
    $region46: #{conv_classifier_forward.9} parent=1 // pred_check
      _
    $region47: #{conv_classifier_forward.9} parent=1 // pred_check_branch
      %4005 = sbr.rel (0) target = $region49
    $region48: #{conv_classifier_forward.9} parent=1 // pred_region
      %s4007 = ssub.s32 64, 64
      %4008 = vsyncadd [#allocation3], %s4007
      %s4010 = sshll.u32 [#allocation2], 4
      %s4011 = int_to_ptr.vmem [resolvable:$true] %s4010
      %4013 = dma.vmem_to_hbm [thread:$0]  %s4011, 64, %s11, [#allocation3]
    $region49: #{conv_classifier_forward.9} parent=1 // pred_fallthru
      _
    // Predicated region
    $region50: #{conv_classifier_forward.9} parent=1 // pred_check
      _
    $region51: #{conv_classifier_forward.9} parent=1 // pred_check_branch
      %4015 = sbr.rel (0) target = $region53
    $region52: #{conv_classifier_forward.9} parent=1 // pred_region
      %4016 = dma.done [#allocation3], 64
    $region53: #{conv_classifier_forward.9} parent=1 // pred_fallthru
      _
    %4017 = vsyncpa [#allocation3], 1

</llo_original>
